<compile_context>
chip_gen: v5e
topology: v5e:2x2
jax: 0.10.0
libtpu: 0.0.40
codegen_flags: <defaults>
</compile_context>

<pallas_src>
import math
from functools import partial

import jax
import jax.numpy as jnp
from jax import lax
from jax.experimental import pallas as pl
from jax.experimental.pallas import tpu as pltpu

LN_EPS = 1e-6                       # matches nn.LayerNorm(hidden, eps=1e-6)
VMEM_LIMIT = 64 * 1024 * 1024       # budgeted for v7x's 64 MiB physical VMEM


def _pick_row_tile(dim, prefs=(512, 256, 128)):
    """Largest lane/sublane-friendly row tile that divides `dim` while keeping at
    least 2 grid steps (so v7x's two TensorCores both get work)."""
    for t in prefs:
        if dim % t == 0 and dim // t >= 2:
            return t
    return dim  # single full-extent block (always legal)


def _layer_norm_f32(x, gamma, beta):
    mu = jnp.mean(x, axis=-1, keepdims=True)
    var = jnp.mean(jnp.square(x - mu), axis=-1, keepdims=True)
    return (x - mu) * lax.rsqrt(var + LN_EPS) * gamma + beta


# ----------------------------------------------------------------------------
# Kernel 1: fused attention sub-block, one grid step per batch element.
#   LN1 -> QKV matmul -> per-head softmax(QK^T/sqrt(Dh)) V -> out-proj -> +residual
# ----------------------------------------------------------------------------
def _attn_block_kernel(x_ref, g1_ref, b1_ref, wqkv_ref, bqkv_ref,
                       wo_ref, bo_ref, o_ref, *, num_heads, scale):
    x = x_ref[...].astype(jnp.float32)                               # (S, H) residual
    xn = _layer_norm_f32(x, g1_ref[...].astype(jnp.float32),
                         b1_ref[...].astype(jnp.float32))
    # Fused Q/K/V projection: bf16 MXU operands, f32 accumulation.
    qkv = jnp.dot(xn.astype(jnp.bfloat16), wqkv_ref[...],
                  preferred_element_type=jnp.float32)
    qkv = qkv + bqkv_ref[...].astype(jnp.float32)                    # (S, 3H) f32

    H = qkv.shape[1] // 3
    DH = H // num_heads

    ctx_heads = []
    for h in range(num_heads):                                       # static unroll
        # scale folded into Q: (S, DH) mul instead of scaling the (S, S) logits
        q_h = (qkv[:, h * DH:(h + 1) * DH] * scale).astype(jnp.bfloat16)
        k_h = qkv[:, H + h * DH:H + (h + 1) * DH].astype(jnp.bfloat16)
        v_h = qkv[:, 2 * H + h * DH:2 * H + (h + 1) * DH].astype(jnp.bfloat16)
        s = lax.dot_general(q_h, k_h, (((1,), (1,)), ((), ())),
                            preferred_element_type=jnp.float32)      # (S, S) f32
        s = s - jnp.max(s, axis=-1, keepdims=True)
        p = jnp.exp(s)
        p = p / jnp.sum(p, axis=-1, keepdims=True)                   # exact softmax
        ctx_heads.append(jnp.dot(p.astype(jnp.bfloat16), v_h,
                                 preferred_element_type=jnp.float32))
    ctx = jnp.concatenate(ctx_heads, axis=-1).astype(jnp.bfloat16)   # (S, H) lane-dense
    # TODO(synk): vis=True (returning attention probabilities) would need an extra
    # (num_heads, S, S) output per batch; Encoder is run with vis=False here.

    out = jnp.dot(ctx, wo_ref[...], preferred_element_type=jnp.float32)
    out = out + bo_ref[...].astype(jnp.float32) + x                  # fused residual
    o_ref[...] = out.astype(o_ref.dtype)


def attention_block(x, layer, num_heads, *, seq_len):
    M, H = x.shape
    B = M // seq_len
    scale = 1.0 / math.sqrt(H // num_heads)
    const = lambda b: (0, 0)   # weights / params: constant block index -> fetched once
    return pl.pallas_call(
        partial(_attn_block_kernel, num_heads=num_heads, scale=scale),
        out_shape=jax.ShapeDtypeStruct((M, H), jnp.float32),
        grid_spec=pltpu.PrefetchScalarGridSpec(
            num_scalar_prefetch=0,
            grid=(B,),
            in_specs=[
                pl.BlockSpec((seq_len, H), lambda b: (b, 0)),        # x (residual)
                pl.BlockSpec((1, H), const),                         # ln1 gamma
                pl.BlockSpec((1, H), const),                         # ln1 beta
                pl.BlockSpec((H, 3 * H), const),                     # w_qkv (resident)
                pl.BlockSpec((1, 3 * H), const),                     # b_qkv
                pl.BlockSpec((H, H), const),                         # w_o   (resident)
                pl.BlockSpec((1, H), const),                         # b_o
            ],
            out_specs=pl.BlockSpec((seq_len, H), lambda b: (b, 0)),
        ),
        compiler_params=pltpu.CompilerParams(
            dimension_semantics=("parallel",),
            vmem_limit_bytes=VMEM_LIMIT),
    )(x, layer["ln1_g"], layer["ln1_b"], layer["w_qkv"], layer["b_qkv"],
      layer["w_o"], layer["b_o"])


# ----------------------------------------------------------------------------
# Kernel 2: fused MLP sub-block, one grid step per row tile.
#   LN2 -> fc1 -> GELU -> fc2 -> +residual   (both weights VMEM-resident)
# ----------------------------------------------------------------------------
def _mlp_block_kernel(x_ref, g2_ref, b2_ref, w1_ref, bias1_ref,
                      w2_ref, bias2_ref, o_ref):
    x = x_ref[...].astype(jnp.float32)                               # (TM, H) residual
    xn = _layer_norm_f32(x, g2_ref[...].astype(jnp.float32),
                         b2_ref[...].astype(jnp.float32))            # LN once per tile
    h = jnp.dot(xn.astype(jnp.bfloat16), w1_ref[...],
                preferred_element_type=jnp.float32)
    h = h + bias1_ref[...].astype(jnp.float32)
    # TODO(synk): F.gelu default is exact erf-GELU; tanh approximation used because
    # erf lowering is not guaranteed in Mosaic.
    h = jax.nn.gelu(h, approximate=True)
    y = jnp.dot(h.astype(jnp.bfloat16), w2_ref[...],
                preferred_element_type=jnp.float32)
    y = y + bias2_ref[...].astype(jnp.float32) + x                   # fused residual
    o_ref[...] = y.astype(o_ref.dtype)


def mlp_block(x, layer):
    M, H = x.shape
    mlp_dim = layer["w_fc1"].shape[1]
    TM = _pick_row_tile(M)
    const = lambda i: (0, 0)
    return pl.pallas_call(
        _mlp_block_kernel,
        out_shape=jax.ShapeDtypeStruct((M, H), jnp.float32),
        grid_spec=pltpu.PrefetchScalarGridSpec(
            num_scalar_prefetch=0,
            grid=(M // TM,),
            in_specs=[
                pl.BlockSpec((TM, H), lambda i: (i, 0)),             # x (residual)
                pl.BlockSpec((1, H), const),                         # ln2 gamma
                pl.BlockSpec((1, H), const),                         # ln2 beta
                pl.BlockSpec((H, mlp_dim), const),                   # w_fc1 (resident)
                pl.BlockSpec((1, mlp_dim), const),                   # b_fc1
                pl.BlockSpec((mlp_dim, H), const),                   # w_fc2 (resident)
                pl.BlockSpec((1, H), const),                         # b_fc2
            ],
            out_specs=pl.BlockSpec((TM, H), lambda i: (i, 0)),
        ),
        compiler_params=pltpu.CompilerParams(
            dimension_semantics=("parallel",),
            vmem_limit_bytes=VMEM_LIMIT),
    )(x, layer["ln2_g"], layer["ln2_b"], layer["w_fc1"], layer["b_fc1"],
      layer["w_fc2"], layer["b_fc2"])


# ----------------------------------------------------------------------------
# Kernel 3: standalone LayerNorm (final encoder_norm)
# ----------------------------------------------------------------------------
def _ln_kernel(x_ref, g_ref, b_ref, o_ref):
    x = x_ref[...].astype(jnp.float32)
    y = _layer_norm_f32(x, g_ref[...].astype(jnp.float32),
                        b_ref[...].astype(jnp.float32))
    o_ref[...] = y.astype(o_ref.dtype)


def layer_norm(x, gamma, beta, out_dtype=jnp.float32):
    M, H = x.shape
    TM = _pick_row_tile(M)
    return pl.pallas_call(
        _ln_kernel,
        out_shape=jax.ShapeDtypeStruct((M, H), out_dtype),
        grid_spec=pltpu.PrefetchScalarGridSpec(
            num_scalar_prefetch=0,
            grid=(M // TM,),
            in_specs=[pl.BlockSpec((TM, H), lambda i: (i, 0)),
                      pl.BlockSpec((1, H), lambda i: (0, 0)),
                      pl.BlockSpec((1, H), lambda i: (0, 0))],
            out_specs=pl.BlockSpec((TM, H), lambda i: (i, 0)),
        ),
        compiler_params=pltpu.CompilerParams(
            dimension_semantics=("parallel",),
            vmem_limit_bytes=VMEM_LIMIT),
    )(x, gamma, beta)


# ----------------------------------------------------------------------------
# Deterministic parameters (standard MDU-Net/TransUNet ViT block shapes)
# ----------------------------------------------------------------------------
def make_params(key, num_layers, hidden, mlp_dim):
    # TODO(synk): Block/Attention/Mlp definitions and config were not included in the
    # prompt; the standard MDU-Net/TransUNet ViT block (pre-LN MHSA + pre-LN GELU MLP)
    # with deterministic random weights is used.
    H = hidden

    def nrm(k, shape, std):
        return jax.random.normal(k, shape, jnp.float32) * std

    layers = []
    keys = jax.random.split(key, num_layers + 1)
    for l in range(num_layers):
        k = jax.random.split(keys[l], 10)
        wq, wk, wv = (nrm(k[i], (H, H), 0.02) for i in range(3))
        layers.append({
            "ln1_g": jnp.ones((1, H), jnp.float32),
            "ln1_b": jnp.zeros((1, H), jnp.float32),
            # Q/K/V fused into a single (H, 3H) weight -> one matmul in-kernel.
            "w_qkv": jnp.concatenate([wq, wk, wv], axis=1).astype(jnp.bfloat16),
            "b_qkv": nrm(k[3], (1, 3 * H), 0.01),
            "w_o":   nrm(k[4], (H, H), 0.02).astype(jnp.bfloat16),
            "b_o":   nrm(k[5], (1, H), 0.01),
            "ln2_g": jnp.ones((1, H), jnp.float32),
            "ln2_b": jnp.zeros((1, H), jnp.float32),
            "w_fc1": nrm(k[6], (H, mlp_dim), 0.02).astype(jnp.bfloat16),
            "b_fc1": nrm(k[7], (1, mlp_dim), 0.01),
            "w_fc2": nrm(k[8], (mlp_dim, H), 0.02).astype(jnp.bfloat16),
            "b_fc2": nrm(k[9], (1, H), 0.01),
        })
    return {"layers": layers,
            "enc_g": jnp.ones((1, H), jnp.float32),
            "enc_b": jnp.zeros((1, H), jnp.float32)}


# ----------------------------------------------------------------------------
# Encoder forward: for each Block  (x += MHSA(LN(x));  x += MLP(LN(x)))  then LN.
# Dropout layers (attn/proj/mlp) are identity in eval mode.
# ----------------------------------------------------------------------------
def encoder_forward(hidden_states, params, num_heads):
    B, S, H = hidden_states.shape
    M = B * S
    x = hidden_states.reshape(M, H).astype(jnp.float32)   # f32 residual stream
    attn_weights = []                                      # vis=False

    for layer in params["layers"]:
        x = attention_block(x, layer, num_heads, seq_len=S)   # 1 call per sub-block
        x = mlp_block(x, layer)

    encoded = layer_norm(x, params["enc_g"], params["enc_b"], out_dtype=jnp.float32)
    return encoded.reshape(B, S, H), attn_weights


# ----------------------------------------------------------------------------
if __name__ == "__main__":
    BATCH, SEQ, HIDDEN = 2, 128, 128
    NUM_HEADS, MLP_DIM, NUM_LAYERS = 4, 256, 2

    key = jax.random.PRNGKey(0)
    kx, kp = jax.random.split(key)
    hidden_states = jax.random.normal(kx, (BATCH, SEQ, HIDDEN), jnp.float32)
    params = make_params(kp, NUM_LAYERS, HIDDEN, MLP_DIM)

    fwd = jax.jit(lambda inp: encoder_forward(inp, params, NUM_HEADS))
    encoded, attn_weights = fwd(hidden_states)
    encoded = jax.block_until_ready(encoded)

    assert encoded.shape == (BATCH, SEQ, HIDDEN), encoded.shape
    assert bool(jnp.all(jnp.isfinite(encoded)))
    print("KERNEL_OK")
</pallas_src>

<mosaic_0001>
module attributes {stable_mosaic.version = 11 : i64} {
  func.func @_attn_block_kernel(%arg0: i32, %arg1: memref<128x128xf32, #tpu.memory_space<vmem>>, %arg2: memref<1x128xf32, #tpu.memory_space<vmem>>, %arg3: memref<1x128xf32, #tpu.memory_space<vmem>>, %arg4: memref<128x384xbf16, #tpu.memory_space<vmem>>, %arg5: memref<1x384xf32, #tpu.memory_space<vmem>>, %arg6: memref<128x128xbf16, #tpu.memory_space<vmem>>, %arg7: memref<1x128xf32, #tpu.memory_space<vmem>>, %arg8: memref<128x128xf32, #tpu.memory_space<vmem>>) attributes {dimension_semantics = [#tpu.dimension_semantics<parallel>], iteration_bounds = array<i64: 2>, scalar_prefetch = 0 : i64, scratch_operands = 0 : i64, tpu.core_type = #tpu.core_type<tc>, window_params = [{transform_indices = @transform_0, window_bounds = array<i64: 128, 128>}, {pipeline_mode = #tpu.pipeline_mode<synchronous>, transform_indices = @transform_1, window_bounds = array<i64: 1, 128>}, {pipeline_mode = #tpu.pipeline_mode<synchronous>, transform_indices = @transform_2, window_bounds = array<i64: 1, 128>}, {pipeline_mode = #tpu.pipeline_mode<synchronous>, transform_indices = @transform_3, window_bounds = array<i64: 128, 384>}, {pipeline_mode = #tpu.pipeline_mode<synchronous>, transform_indices = @transform_4, window_bounds = array<i64: 1, 384>}, {pipeline_mode = #tpu.pipeline_mode<synchronous>, transform_indices = @transform_5, window_bounds = array<i64: 128, 128>}, {pipeline_mode = #tpu.pipeline_mode<synchronous>, transform_indices = @transform_6, window_bounds = array<i64: 1, 128>}, {transform_indices = @transform_7, window_bounds = array<i64: 128, 128>}]} {
    %c0 = arith.constant 0 : index
    %c0_0 = arith.constant 0 : index
    %0 = vector.load %arg1[%c0, %c0_0] : memref<128x128xf32, #tpu.memory_space<vmem>>, vector<128x128xf32>
    %c0_1 = arith.constant 0 : index
    %c0_2 = arith.constant 0 : index
    %1 = vector.load %arg2[%c0_1, %c0_2] : memref<1x128xf32, #tpu.memory_space<vmem>>, vector<1x128xf32>
    %c0_3 = arith.constant 0 : index
    %c0_4 = arith.constant 0 : index
    %2 = vector.load %arg3[%c0_3, %c0_4] : memref<1x128xf32, #tpu.memory_space<vmem>>, vector<1x128xf32>
    %cst = arith.constant dense<0.000000e+00> : vector<128xf32>
    %3 = vector.multi_reduction <add>, %0, %cst [1] : vector<128x128xf32> to vector<128xf32>
    %4 = vector.shape_cast %3 : vector<128xf32> to vector<128x1xf32>
    %cst_5 = arith.constant 1.280000e+02 : f32
    %5 = vector.broadcast %cst_5 : f32 to vector<128x1xf32>
    %6 = arith.divf %4, %5 : vector<128x1xf32>
    %7 = vector.broadcast %6 : vector<128x1xf32> to vector<128x128xf32>
    %8 = arith.subf %0, %7 : vector<128x128xf32>
    %9 = arith.mulf %8, %8 : vector<128x128xf32>
    %cst_6 = arith.constant dense<0.000000e+00> : vector<128xf32>
    %10 = vector.multi_reduction <add>, %9, %cst_6 [1] : vector<128x128xf32> to vector<128xf32>
    %11 = vector.shape_cast %10 : vector<128xf32> to vector<128x1xf32>
    %cst_7 = arith.constant 1.280000e+02 : f32
    %12 = vector.broadcast %cst_7 : f32 to vector<128x1xf32>
    %13 = arith.divf %11, %12 : vector<128x1xf32>
    %14 = vector.broadcast %6 : vector<128x1xf32> to vector<128x128xf32>
    %15 = arith.subf %0, %14 : vector<128x128xf32>
    %cst_8 = arith.constant 9.99999997E-7 : f32
    %16 = vector.broadcast %cst_8 : f32 to vector<128x1xf32>
    %17 = arith.addf %13, %16 : vector<128x1xf32>
    %18 = math.rsqrt %17 : vector<128x1xf32>
    %19 = vector.broadcast %18 : vector<128x1xf32> to vector<128x128xf32>
    %20 = arith.mulf %15, %19 : vector<128x128xf32>
    %21 = vector.broadcast %1 : vector<1x128xf32> to vector<128x128xf32>
    %22 = arith.mulf %20, %21 : vector<128x128xf32>
    %23 = vector.broadcast %2 : vector<1x128xf32> to vector<128x128xf32>
    %24 = arith.addf %22, %23 : vector<128x128xf32>
    %25 = arith.truncf %24 : vector<128x128xf32> to vector<128x128xbf16>
    %c0_9 = arith.constant 0 : index
    %c0_10 = arith.constant 0 : index
    %26 = vector.load %arg4[%c0_9, %c0_10] : memref<128x384xbf16, #tpu.memory_space<vmem>>, vector<128x384xbf16>
    %cst_11 = arith.constant dense<0.000000e+00> : vector<128x384xf32>
    %27 = tpu.matmul %25, %26, %cst_11 {dimension_numbers = #tpu.dot_dimension_numbers<[1], [0], [0], [1], [0, 0, 1, 1], [], []>} : vector<128x128xbf16>, vector<128x384xbf16>, vector<128x384xf32> -> vector<128x384xf32>
    %c0_12 = arith.constant 0 : index
    %c0_13 = arith.constant 0 : index
    %28 = vector.load %arg5[%c0_12, %c0_13] : memref<1x384xf32, #tpu.memory_space<vmem>>, vector<1x384xf32>
    %29 = vector.broadcast %28 : vector<1x384xf32> to vector<128x384xf32>
    %30 = arith.addf %27, %29 : vector<128x384xf32>
    %31 = vector.extract_strided_slice %30 {offsets = [0, 0], sizes = [128, 32], strides = [1, 1]} : vector<128x384xf32> to vector<128x32xf32>
    %cst_14 = arith.constant 0.176776692 : f32
    %32 = vector.broadcast %cst_14 : f32 to vector<128x32xf32>
    %33 = arith.mulf %31, %32 : vector<128x32xf32>
    %34 = arith.truncf %33 : vector<128x32xf32> to vector<128x32xbf16>
    %35 = vector.extract_strided_slice %30 {offsets = [0, 128], sizes = [128, 32], strides = [1, 1]} : vector<128x384xf32> to vector<128x32xf32>
    %36 = arith.truncf %35 : vector<128x32xf32> to vector<128x32xbf16>
    %37 = vector.extract_strided_slice %30 {offsets = [0, 256], sizes = [128, 32], strides = [1, 1]} : vector<128x384xf32> to vector<128x32xf32>
    %38 = arith.truncf %37 : vector<128x32xf32> to vector<128x32xbf16>
    %cst_15 = arith.constant dense<0.000000e+00> : vector<128x128xf32>
    %39 = tpu.matmul %34, %36, %cst_15 {dimension_numbers = #tpu.dot_dimension_numbers<[1], [1], [0], [0], [0, 0, 1, 0], [], []>} : vector<128x32xbf16>, vector<128x32xbf16>, vector<128x128xf32> -> vector<128x128xf32>
    %cst_16 = arith.constant dense<0xFF800000> : vector<128xf32>
    %40 = vector.multi_reduction <maximumf>, %39, %cst_16 [1] : vector<128x128xf32> to vector<128xf32>
    %41 = vector.shape_cast %40 : vector<128xf32> to vector<128x1xf32>
    %42 = vector.broadcast %41 : vector<128x1xf32> to vector<128x128xf32>
    %43 = arith.subf %39, %42 : vector<128x128xf32>
    %44 = math.exp %43 : vector<128x128xf32>
    %cst_17 = arith.constant dense<0.000000e+00> : vector<128xf32>
    %45 = vector.multi_reduction <add>, %44, %cst_17 [1] : vector<128x128xf32> to vector<128xf32>
    %46 = vector.shape_cast %45 : vector<128xf32> to vector<128x1xf32>
    %47 = vector.broadcast %46 : vector<128x1xf32> to vector<128x128xf32>
    %48 = arith.divf %44, %47 : vector<128x128xf32>
    %49 = arith.truncf %48 : vector<128x128xf32> to vector<128x128xbf16>
    %cst_18 = arith.constant dense<0.000000e+00> : vector<128x32xf32>
    %50 = tpu.matmul %49, %38, %cst_18 {dimension_numbers = #tpu.dot_dimension_numbers<[1], [0], [0], [1], [0, 0, 1, 1], [], []>} : vector<128x128xbf16>, vector<128x32xbf16>, vector<128x32xf32> -> vector<128x32xf32>
    %51 = vector.extract_strided_slice %30 {offsets = [0, 32], sizes = [128, 32], strides = [1, 1]} : vector<128x384xf32> to vector<128x32xf32>
    %cst_19 = arith.constant 0.176776692 : f32
    %52 = vector.broadcast %cst_19 : f32 to vector<128x32xf32>
    %53 = arith.mulf %51, %52 : vector<128x32xf32>
    %54 = arith.truncf %53 : vector<128x32xf32> to vector<128x32xbf16>
    %55 = vector.extract_strided_slice %30 {offsets = [0, 160], sizes = [128, 32], strides = [1, 1]} : vector<128x384xf32> to vector<128x32xf32>
    %56 = arith.truncf %55 : vector<128x32xf32> to vector<128x32xbf16>
    %57 = vector.extract_strided_slice %30 {offsets = [0, 288], sizes = [128, 32], strides = [1, 1]} : vector<128x384xf32> to vector<128x32xf32>
    %58 = arith.truncf %57 : vector<128x32xf32> to vector<128x32xbf16>
    %cst_20 = arith.constant dense<0.000000e+00> : vector<128x128xf32>
    %59 = tpu.matmul %54, %56, %cst_20 {dimension_numbers = #tpu.dot_dimension_numbers<[1], [1], [0], [0], [0, 0, 1, 0], [], []>} : vector<128x32xbf16>, vector<128x32xbf16>, vector<128x128xf32> -> vector<128x128xf32>
    %cst_21 = arith.constant dense<0xFF800000> : vector<128xf32>
    %60 = vector.multi_reduction <maximumf>, %59, %cst_21 [1] : vector<128x128xf32> to vector<128xf32>
    %61 = vector.shape_cast %60 : vector<128xf32> to vector<128x1xf32>
    %62 = vector.broadcast %61 : vector<128x1xf32> to vector<128x128xf32>
    %63 = arith.subf %59, %62 : vector<128x128xf32>
    %64 = math.exp %63 : vector<128x128xf32>
    %cst_22 = arith.constant dense<0.000000e+00> : vector<128xf32>
    %65 = vector.multi_reduction <add>, %64, %cst_22 [1] : vector<128x128xf32> to vector<128xf32>
    %66 = vector.shape_cast %65 : vector<128xf32> to vector<128x1xf32>
    %67 = vector.broadcast %66 : vector<128x1xf32> to vector<128x128xf32>
    %68 = arith.divf %64, %67 : vector<128x128xf32>
    %69 = arith.truncf %68 : vector<128x128xf32> to vector<128x128xbf16>
    %cst_23 = arith.constant dense<0.000000e+00> : vector<128x32xf32>
    %70 = tpu.matmul %69, %58, %cst_23 {dimension_numbers = #tpu.dot_dimension_numbers<[1], [0], [0], [1], [0, 0, 1, 1], [], []>} : vector<128x128xbf16>, vector<128x32xbf16>, vector<128x32xf32> -> vector<128x32xf32>
    %71 = vector.extract_strided_slice %30 {offsets = [0, 64], sizes = [128, 32], strides = [1, 1]} : vector<128x384xf32> to vector<128x32xf32>
    %cst_24 = arith.constant 0.176776692 : f32
    %72 = vector.broadcast %cst_24 : f32 to vector<128x32xf32>
    %73 = arith.mulf %71, %72 : vector<128x32xf32>
    %74 = arith.truncf %73 : vector<128x32xf32> to vector<128x32xbf16>
    %75 = vector.extract_strided_slice %30 {offsets = [0, 192], sizes = [128, 32], strides = [1, 1]} : vector<128x384xf32> to vector<128x32xf32>
    %76 = arith.truncf %75 : vector<128x32xf32> to vector<128x32xbf16>
    %77 = vector.extract_strided_slice %30 {offsets = [0, 320], sizes = [128, 32], strides = [1, 1]} : vector<128x384xf32> to vector<128x32xf32>
    %78 = arith.truncf %77 : vector<128x32xf32> to vector<128x32xbf16>
    %cst_25 = arith.constant dense<0.000000e+00> : vector<128x128xf32>
    %79 = tpu.matmul %74, %76, %cst_25 {dimension_numbers = #tpu.dot_dimension_numbers<[1], [1], [0], [0], [0, 0, 1, 0], [], []>} : vector<128x32xbf16>, vector<128x32xbf16>, vector<128x128xf32> -> vector<128x128xf32>
    %cst_26 = arith.constant dense<0xFF800000> : vector<128xf32>
    %80 = vector.multi_reduction <maximumf>, %79, %cst_26 [1] : vector<128x128xf32> to vector<128xf32>
    %81 = vector.shape_cast %80 : vector<128xf32> to vector<128x1xf32>
    %82 = vector.broadcast %81 : vector<128x1xf32> to vector<128x128xf32>
    %83 = arith.subf %79, %82 : vector<128x128xf32>
    %84 = math.exp %83 : vector<128x128xf32>
    %cst_27 = arith.constant dense<0.000000e+00> : vector<128xf32>
    %85 = vector.multi_reduction <add>, %84, %cst_27 [1] : vector<128x128xf32> to vector<128xf32>
    %86 = vector.shape_cast %85 : vector<128xf32> to vector<128x1xf32>
    %87 = vector.broadcast %86 : vector<128x1xf32> to vector<128x128xf32>
    %88 = arith.divf %84, %87 : vector<128x128xf32>
    %89 = arith.truncf %88 : vector<128x128xf32> to vector<128x128xbf16>
    %cst_28 = arith.constant dense<0.000000e+00> : vector<128x32xf32>
    %90 = tpu.matmul %89, %78, %cst_28 {dimension_numbers = #tpu.dot_dimension_numbers<[1], [0], [0], [1], [0, 0, 1, 1], [], []>} : vector<128x128xbf16>, vector<128x32xbf16>, vector<128x32xf32> -> vector<128x32xf32>
    %91 = vector.extract_strided_slice %30 {offsets = [0, 96], sizes = [128, 32], strides = [1, 1]} : vector<128x384xf32> to vector<128x32xf32>
    %cst_29 = arith.constant 0.176776692 : f32
    %92 = vector.broadcast %cst_29 : f32 to vector<128x32xf32>
    %93 = arith.mulf %91, %92 : vector<128x32xf32>
    %94 = arith.truncf %93 : vector<128x32xf32> to vector<128x32xbf16>
    %95 = vector.extract_strided_slice %30 {offsets = [0, 224], sizes = [128, 32], strides = [1, 1]} : vector<128x384xf32> to vector<128x32xf32>
    %96 = arith.truncf %95 : vector<128x32xf32> to vector<128x32xbf16>
    %97 = vector.extract_strided_slice %30 {offsets = [0, 352], sizes = [128, 32], strides = [1, 1]} : vector<128x384xf32> to vector<128x32xf32>
    %98 = arith.truncf %97 : vector<128x32xf32> to vector<128x32xbf16>
    %cst_30 = arith.constant dense<0.000000e+00> : vector<128x128xf32>
    %99 = tpu.matmul %94, %96, %cst_30 {dimension_numbers = #tpu.dot_dimension_numbers<[1], [1], [0], [0], [0, 0, 1, 0], [], []>} : vector<128x32xbf16>, vector<128x32xbf16>, vector<128x128xf32> -> vector<128x128xf32>
    %cst_31 = arith.constant dense<0xFF800000> : vector<128xf32>
    %100 = vector.multi_reduction <maximumf>, %99, %cst_31 [1] : vector<128x128xf32> to vector<128xf32>
    %101 = vector.shape_cast %100 : vector<128xf32> to vector<128x1xf32>
    %102 = vector.broadcast %101 : vector<128x1xf32> to vector<128x128xf32>
    %103 = arith.subf %99, %102 : vector<128x128xf32>
    %104 = math.exp %103 : vector<128x128xf32>
    %cst_32 = arith.constant dense<0.000000e+00> : vector<128xf32>
    %105 = vector.multi_reduction <add>, %104, %cst_32 [1] : vector<128x128xf32> to vector<128xf32>
    %106 = vector.shape_cast %105 : vector<128xf32> to vector<128x1xf32>
    %107 = vector.broadcast %106 : vector<128x1xf32> to vector<128x128xf32>
    %108 = arith.divf %104, %107 : vector<128x128xf32>
    %109 = arith.truncf %108 : vector<128x128xf32> to vector<128x128xbf16>
    %cst_33 = arith.constant dense<0.000000e+00> : vector<128x32xf32>
    %110 = tpu.matmul %109, %98, %cst_33 {dimension_numbers = #tpu.dot_dimension_numbers<[1], [0], [0], [1], [0, 0, 1, 1], [], []>} : vector<128x128xbf16>, vector<128x32xbf16>, vector<128x32xf32> -> vector<128x32xf32>
    %111 = tpu.concatenate %50, %70, %90, %110 in 1 : vector<128x32xf32>, vector<128x32xf32>, vector<128x32xf32>, vector<128x32xf32> -> vector<128x128xf32>
    %112 = arith.truncf %111 : vector<128x128xf32> to vector<128x128xbf16>
    %c0_34 = arith.constant 0 : index
    %c0_35 = arith.constant 0 : index
    %113 = vector.load %arg6[%c0_34, %c0_35] : memref<128x128xbf16, #tpu.memory_space<vmem>>, vector<128x128xbf16>
    %cst_36 = arith.constant dense<0.000000e+00> : vector<128x128xf32>
    %114 = tpu.matmul %112, %113, %cst_36 {dimension_numbers = #tpu.dot_dimension_numbers<[1], [0], [0], [1], [0, 0, 1, 1], [], []>} : vector<128x128xbf16>, vector<128x128xbf16>, vector<128x128xf32> -> vector<128x128xf32>
    %c0_37 = arith.constant 0 : index
    %c0_38 = arith.constant 0 : index
    %115 = vector.load %arg7[%c0_37, %c0_38] : memref<1x128xf32, #tpu.memory_space<vmem>>, vector<1x128xf32>
    %116 = vector.broadcast %115 : vector<1x128xf32> to vector<128x128xf32>
    %117 = arith.addf %114, %116 : vector<128x128xf32>
    %118 = arith.addf %117, %0 : vector<128x128xf32>
    %c0_39 = arith.constant 0 : index
    %c0_40 = arith.constant 0 : index
    %119 = vector.load %arg8[%c0_39, %c0_40] : memref<128x128xf32, #tpu.memory_space<vmem>>, vector<128x128xf32>
    tpu.vector_store %arg8[%c0_39, %c0_40], %118 {strides = array<i32>} : memref<128x128xf32, #tpu.memory_space<vmem>>, vector<128x128xf32>,
    return
  }
  func.func @transform_0(%arg0: i32) -> (i32, i32) {
    %c0_i32 = arith.constant 0 : i32
    %c0_i32_0 = arith.constant 0 : i32
    return %arg0, %c0_i32 : i32, i32
  }
  func.func @transform_1(%arg0: i32) -> (i32, i32) {
    %c0_i32 = arith.constant 0 : i32
    %c0_i32_0 = arith.constant 0 : i32
    %c0_i32_1 = arith.constant 0 : i32
    return %c0_i32, %c0_i32_0 : i32, i32
  }
  func.func @transform_2(%arg0: i32) -> (i32, i32) {
    %c0_i32 = arith.constant 0 : i32
    %c0_i32_0 = arith.constant 0 : i32
    %c0_i32_1 = arith.constant 0 : i32
    return %c0_i32, %c0_i32_0 : i32, i32
  }
  func.func @transform_3(%arg0: i32) -> (i32, i32) {
    %c0_i32 = arith.constant 0 : i32
    %c0_i32_0 = arith.constant 0 : i32
    %c0_i32_1 = arith.constant 0 : i32
    return %c0_i32, %c0_i32_0 : i32, i32
  }
  func.func @transform_4(%arg0: i32) -> (i32, i32) {
    %c0_i32 = arith.constant 0 : i32
    %c0_i32_0 = arith.constant 0 : i32
    %c0_i32_1 = arith.constant 0 : i32
    return %c0_i32, %c0_i32_0 : i32, i32
  }
  func.func @transform_5(%arg0: i32) -> (i32, i32) {
    %c0_i32 = arith.constant 0 : i32
    %c0_i32_0 = arith.constant 0 : i32
    %c0_i32_1 = arith.constant 0 : i32
    return %c0_i32, %c0_i32_0 : i32, i32
  }
  func.func @transform_6(%arg0: i32) -> (i32, i32) {
    %c0_i32 = arith.constant 0 : i32
    %c0_i32_0 = arith.constant 0 : i32
    %c0_i32_1 = arith.constant 0 : i32
    return %c0_i32, %c0_i32_0 : i32, i32
  }
  func.func @transform_7(%arg0: i32) -> (i32, i32) {
    %c0_i32 = arith.constant 0 : i32
    %c0_i32_0 = arith.constant 0 : i32
    return %arg0, %c0_i32 : i32, i32
  }
}

module attributes {stable_mosaic.version = 11 : i64} {
  func.func @_mlp_block_kernel(%arg0: i32, %arg1: memref<128x128xf32, #tpu.memory_space<vmem>>, %arg2: memref<1x128xf32, #tpu.memory_space<vmem>>, %arg3: memref<1x128xf32, #tpu.memory_space<vmem>>, %arg4: memref<128x256xbf16, #tpu.memory_space<vmem>>, %arg5: memref<1x256xf32, #tpu.memory_space<vmem>>, %arg6: memref<256x128xbf16, #tpu.memory_space<vmem>>, %arg7: memref<1x128xf32, #tpu.memory_space<vmem>>, %arg8: memref<128x128xf32, #tpu.memory_space<vmem>>) attributes {dimension_semantics = [#tpu.dimension_semantics<parallel>], iteration_bounds = array<i64: 2>, scalar_prefetch = 0 : i64, scratch_operands = 0 : i64, tpu.core_type = #tpu.core_type<tc>, window_params = [{transform_indices = @transform_0, window_bounds = array<i64: 128, 128>}, {pipeline_mode = #tpu.pipeline_mode<synchronous>, transform_indices = @transform_1, window_bounds = array<i64: 1, 128>}, {pipeline_mode = #tpu.pipeline_mode<synchronous>, transform_indices = @transform_2, window_bounds = array<i64: 1, 128>}, {pipeline_mode = #tpu.pipeline_mode<synchronous>, transform_indices = @transform_3, window_bounds = array<i64: 128, 256>}, {pipeline_mode = #tpu.pipeline_mode<synchronous>, transform_indices = @transform_4, window_bounds = array<i64: 1, 256>}, {pipeline_mode = #tpu.pipeline_mode<synchronous>, transform_indices = @transform_5, window_bounds = array<i64: 256, 128>}, {pipeline_mode = #tpu.pipeline_mode<synchronous>, transform_indices = @transform_6, window_bounds = array<i64: 1, 128>}, {transform_indices = @transform_7, window_bounds = array<i64: 128, 128>}]} {
    %c0 = arith.constant 0 : index
    %c0_0 = arith.constant 0 : index
    %0 = vector.load %arg1[%c0, %c0_0] : memref<128x128xf32, #tpu.memory_space<vmem>>, vector<128x128xf32>
    %c0_1 = arith.constant 0 : index
    %c0_2 = arith.constant 0 : index
    %1 = vector.load %arg2[%c0_1, %c0_2] : memref<1x128xf32, #tpu.memory_space<vmem>>, vector<1x128xf32>
    %c0_3 = arith.constant 0 : index
    %c0_4 = arith.constant 0 : index
    %2 = vector.load %arg3[%c0_3, %c0_4] : memref<1x128xf32, #tpu.memory_space<vmem>>, vector<1x128xf32>
    %cst = arith.constant dense<0.000000e+00> : vector<128xf32>
    %3 = vector.multi_reduction <add>, %0, %cst [1] : vector<128x128xf32> to vector<128xf32>
    %4 = vector.shape_cast %3 : vector<128xf32> to vector<128x1xf32>
    %cst_5 = arith.constant 1.280000e+02 : f32
    %5 = vector.broadcast %cst_5 : f32 to vector<128x1xf32>
    %6 = arith.divf %4, %5 : vector<128x1xf32>
    %7 = vector.broadcast %6 : vector<128x1xf32> to vector<128x128xf32>
    %8 = arith.subf %0, %7 : vector<128x128xf32>
    %9 = arith.mulf %8, %8 : vector<128x128xf32>
    %cst_6 = arith.constant dense<0.000000e+00> : vector<128xf32>
    %10 = vector.multi_reduction <add>, %9, %cst_6 [1] : vector<128x128xf32> to vector<128xf32>
    %11 = vector.shape_cast %10 : vector<128xf32> to vector<128x1xf32>
    %cst_7 = arith.constant 1.280000e+02 : f32
    %12 = vector.broadcast %cst_7 : f32 to vector<128x1xf32>
    %13 = arith.divf %11, %12 : vector<128x1xf32>
    %14 = vector.broadcast %6 : vector<128x1xf32> to vector<128x128xf32>
    %15 = arith.subf %0, %14 : vector<128x128xf32>
    %cst_8 = arith.constant 9.99999997E-7 : f32
    %16 = vector.broadcast %cst_8 : f32 to vector<128x1xf32>
    %17 = arith.addf %13, %16 : vector<128x1xf32>
    %18 = math.rsqrt %17 : vector<128x1xf32>
    %19 = vector.broadcast %18 : vector<128x1xf32> to vector<128x128xf32>
    %20 = arith.mulf %15, %19 : vector<128x128xf32>
    %21 = vector.broadcast %1 : vector<1x128xf32> to vector<128x128xf32>
    %22 = arith.mulf %20, %21 : vector<128x128xf32>
    %23 = vector.broadcast %2 : vector<1x128xf32> to vector<128x128xf32>
    %24 = arith.addf %22, %23 : vector<128x128xf32>
    %25 = arith.truncf %24 : vector<128x128xf32> to vector<128x128xbf16>
    %c0_9 = arith.constant 0 : index
    %c0_10 = arith.constant 0 : index
    %26 = vector.load %arg4[%c0_9, %c0_10] : memref<128x256xbf16, #tpu.memory_space<vmem>>, vector<128x256xbf16>
    %cst_11 = arith.constant dense<0.000000e+00> : vector<128x256xf32>
    %27 = tpu.matmul %25, %26, %cst_11 {dimension_numbers = #tpu.dot_dimension_numbers<[1], [0], [0], [1], [0, 0, 1, 1], [], []>} : vector<128x128xbf16>, vector<128x256xbf16>, vector<128x256xf32> -> vector<128x256xf32>
    %c0_12 = arith.constant 0 : index
    %c0_13 = arith.constant 0 : index
    %28 = vector.load %arg5[%c0_12, %c0_13] : memref<1x256xf32, #tpu.memory_space<vmem>>, vector<1x256xf32>
    %29 = vector.broadcast %28 : vector<1x256xf32> to vector<128x256xf32>
    %30 = arith.addf %27, %29 : vector<128x256xf32>
    %31 = arith.mulf %30, %30 : vector<128x256xf32>
    %32 = arith.mulf %30, %31 : vector<128x256xf32>
    %cst_14 = arith.constant 4.471500e-02 : f32
    %33 = vector.broadcast %cst_14 : f32 to vector<128x256xf32>
    %34 = arith.mulf %33, %32 : vector<128x256xf32>
    %35 = arith.addf %30, %34 : vector<128x256xf32>
    %cst_15 = arith.constant 0.797884583 : f32
    %36 = vector.broadcast %cst_15 : f32 to vector<128x256xf32>
    %37 = arith.mulf %36, %35 : vector<128x256xf32>
    %38 = math.tanh %37 : vector<128x256xf32>
    %cst_16 = arith.constant 1.000000e+00 : f32
    %39 = vector.broadcast %cst_16 : f32 to vector<128x256xf32>
    %40 = arith.addf %39, %38 : vector<128x256xf32>
    %cst_17 = arith.constant 5.000000e-01 : f32
    %41 = vector.broadcast %cst_17 : f32 to vector<128x256xf32>
    %42 = arith.mulf %41, %40 : vector<128x256xf32>
    %43 = arith.mulf %30, %42 : vector<128x256xf32>
    %44 = arith.truncf %43 : vector<128x256xf32> to vector<128x256xbf16>
    %c0_18 = arith.constant 0 : index
    %c0_19 = arith.constant 0 : index
    %45 = vector.load %arg6[%c0_18, %c0_19] : memref<256x128xbf16, #tpu.memory_space<vmem>>, vector<256x128xbf16>
    %cst_20 = arith.constant dense<0.000000e+00> : vector<128x128xf32>
    %46 = tpu.matmul %44, %45, %cst_20 {dimension_numbers = #tpu.dot_dimension_numbers<[1], [0], [0], [1], [0, 0, 1, 1], [], []>} : vector<128x256xbf16>, vector<256x128xbf16>, vector<128x128xf32> -> vector<128x128xf32>
    %c0_21 = arith.constant 0 : index
    %c0_22 = arith.constant 0 : index
    %47 = vector.load %arg7[%c0_21, %c0_22] : memref<1x128xf32, #tpu.memory_space<vmem>>, vector<1x128xf32>
    %48 = vector.broadcast %47 : vector<1x128xf32> to vector<128x128xf32>
    %49 = arith.addf %46, %48 : vector<128x128xf32>
    %50 = arith.addf %49, %0 : vector<128x128xf32>
    %c0_23 = arith.constant 0 : index
    %c0_24 = arith.constant 0 : index
    %51 = vector.load %arg8[%c0_23, %c0_24] : memref<128x128xf32, #tpu.memory_space<vmem>>, vector<128x128xf32>
    tpu.vector_store %arg8[%c0_23, %c0_24], %50 {strides = array<i32>} : memref<128x128xf32, #tpu.memory_space<vmem>>, vector<128x128xf32>,
    return
  }
  func.func @transform_0(%arg0: i32) -> (i32, i32) {
    %c0_i32 = arith.constant 0 : i32
    %c0_i32_0 = arith.constant 0 : i32
    return %arg0, %c0_i32 : i32, i32
  }
  func.func @transform_1(%arg0: i32) -> (i32, i32) {
    %c0_i32 = arith.constant 0 : i32
    %c0_i32_0 = arith.constant 0 : i32
    %c0_i32_1 = arith.constant 0 : i32
    return %c0_i32, %c0_i32_0 : i32, i32
  }
  func.func @transform_2(%arg0: i32) -> (i32, i32) {
    %c0_i32 = arith.constant 0 : i32
    %c0_i32_0 = arith.constant 0 : i32
    %c0_i32_1 = arith.constant 0 : i32
    return %c0_i32, %c0_i32_0 : i32, i32
  }
  func.func @transform_3(%arg0: i32) -> (i32, i32) {
    %c0_i32 = arith.constant 0 : i32
    %c0_i32_0 = arith.constant 0 : i32
    %c0_i32_1 = arith.constant 0 : i32
    return %c0_i32, %c0_i32_0 : i32, i32
  }
  func.func @transform_4(%arg0: i32) -> (i32, i32) {
    %c0_i32 = arith.constant 0 : i32
    %c0_i32_0 = arith.constant 0 : i32
    %c0_i32_1 = arith.constant 0 : i32
    return %c0_i32, %c0_i32_0 : i32, i32
  }
  func.func @transform_5(%arg0: i32) -> (i32, i32) {
    %c0_i32 = arith.constant 0 : i32
    %c0_i32_0 = arith.constant 0 : i32
    %c0_i32_1 = arith.constant 0 : i32
    return %c0_i32, %c0_i32_0 : i32, i32
  }
  func.func @transform_6(%arg0: i32) -> (i32, i32) {
    %c0_i32 = arith.constant 0 : i32
    %c0_i32_0 = arith.constant 0 : i32
    %c0_i32_1 = arith.constant 0 : i32
    return %c0_i32, %c0_i32_0 : i32, i32
  }
  func.func @transform_7(%arg0: i32) -> (i32, i32) {
    %c0_i32 = arith.constant 0 : i32
    %c0_i32_0 = arith.constant 0 : i32
    return %arg0, %c0_i32 : i32, i32
  }
}

module attributes {stable_mosaic.version = 11 : i64} {
  func.func @_attn_block_kernel(%arg0: i32, %arg1: memref<128x128xf32, #tpu.memory_space<vmem>>, %arg2: memref<1x128xf32, #tpu.memory_space<vmem>>, %arg3: memref<1x128xf32, #tpu.memory_space<vmem>>, %arg4: memref<128x384xbf16, #tpu.memory_space<vmem>>, %arg5: memref<1x384xf32, #tpu.memory_space<vmem>>, %arg6: memref<128x128xbf16, #tpu.memory_space<vmem>>, %arg7: memref<1x128xf32, #tpu.memory_space<vmem>>, %arg8: memref<128x128xf32, #tpu.memory_space<vmem>>) attributes {dimension_semantics = [#tpu.dimension_semantics<parallel>], iteration_bounds = array<i64: 2>, scalar_prefetch = 0 : i64, scratch_operands = 0 : i64, tpu.core_type = #tpu.core_type<tc>, window_params = [{transform_indices = @transform_0, window_bounds = array<i64: 128, 128>}, {pipeline_mode = #tpu.pipeline_mode<synchronous>, transform_indices = @transform_1, window_bounds = array<i64: 1, 128>}, {pipeline_mode = #tpu.pipeline_mode<synchronous>, transform_indices = @transform_2, window_bounds = array<i64: 1, 128>}, {pipeline_mode = #tpu.pipeline_mode<synchronous>, transform_indices = @transform_3, window_bounds = array<i64: 128, 384>}, {pipeline_mode = #tpu.pipeline_mode<synchronous>, transform_indices = @transform_4, window_bounds = array<i64: 1, 384>}, {pipeline_mode = #tpu.pipeline_mode<synchronous>, transform_indices = @transform_5, window_bounds = array<i64: 128, 128>}, {pipeline_mode = #tpu.pipeline_mode<synchronous>, transform_indices = @transform_6, window_bounds = array<i64: 1, 128>}, {transform_indices = @transform_7, window_bounds = array<i64: 128, 128>}]} {
    %c0 = arith.constant 0 : index
    %c0_0 = arith.constant 0 : index
    %0 = vector.load %arg1[%c0, %c0_0] : memref<128x128xf32, #tpu.memory_space<vmem>>, vector<128x128xf32>
    %c0_1 = arith.constant 0 : index
    %c0_2 = arith.constant 0 : index
    %1 = vector.load %arg2[%c0_1, %c0_2] : memref<1x128xf32, #tpu.memory_space<vmem>>, vector<1x128xf32>
    %c0_3 = arith.constant 0 : index
    %c0_4 = arith.constant 0 : index
    %2 = vector.load %arg3[%c0_3, %c0_4] : memref<1x128xf32, #tpu.memory_space<vmem>>, vector<1x128xf32>
    %cst = arith.constant dense<0.000000e+00> : vector<128xf32>
    %3 = vector.multi_reduction <add>, %0, %cst [1] : vector<128x128xf32> to vector<128xf32>
    %4 = vector.shape_cast %3 : vector<128xf32> to vector<128x1xf32>
    %cst_5 = arith.constant 1.280000e+02 : f32
    %5 = vector.broadcast %cst_5 : f32 to vector<128x1xf32>
    %6 = arith.divf %4, %5 : vector<128x1xf32>
    %7 = vector.broadcast %6 : vector<128x1xf32> to vector<128x128xf32>
    %8 = arith.subf %0, %7 : vector<128x128xf32>
    %9 = arith.mulf %8, %8 : vector<128x128xf32>
    %cst_6 = arith.constant dense<0.000000e+00> : vector<128xf32>
    %10 = vector.multi_reduction <add>, %9, %cst_6 [1] : vector<128x128xf32> to vector<128xf32>
    %11 = vector.shape_cast %10 : vector<128xf32> to vector<128x1xf32>
    %cst_7 = arith.constant 1.280000e+02 : f32
    %12 = vector.broadcast %cst_7 : f32 to vector<128x1xf32>
    %13 = arith.divf %11, %12 : vector<128x1xf32>
    %14 = vector.broadcast %6 : vector<128x1xf32> to vector<128x128xf32>
    %15 = arith.subf %0, %14 : vector<128x128xf32>
    %cst_8 = arith.constant 9.99999997E-7 : f32
    %16 = vector.broadcast %cst_8 : f32 to vector<128x1xf32>
    %17 = arith.addf %13, %16 : vector<128x1xf32>
    %18 = math.rsqrt %17 : vector<128x1xf32>
    %19 = vector.broadcast %18 : vector<128x1xf32> to vector<128x128xf32>
    %20 = arith.mulf %15, %19 : vector<128x128xf32>
    %21 = vector.broadcast %1 : vector<1x128xf32> to vector<128x128xf32>
    %22 = arith.mulf %20, %21 : vector<128x128xf32>
    %23 = vector.broadcast %2 : vector<1x128xf32> to vector<128x128xf32>
    %24 = arith.addf %22, %23 : vector<128x128xf32>
    %25 = arith.truncf %24 : vector<128x128xf32> to vector<128x128xbf16>
    %c0_9 = arith.constant 0 : index
    %c0_10 = arith.constant 0 : index
    %26 = vector.load %arg4[%c0_9, %c0_10] : memref<128x384xbf16, #tpu.memory_space<vmem>>, vector<128x384xbf16>
    %cst_11 = arith.constant dense<0.000000e+00> : vector<128x384xf32>
    %27 = tpu.matmul %25, %26, %cst_11 {dimension_numbers = #tpu.dot_dimension_numbers<[1], [0], [0], [1], [0, 0, 1, 1], [], []>} : vector<128x128xbf16>, vector<128x384xbf16>, vector<128x384xf32> -> vector<128x384xf32>
    %c0_12 = arith.constant 0 : index
    %c0_13 = arith.constant 0 : index
    %28 = vector.load %arg5[%c0_12, %c0_13] : memref<1x384xf32, #tpu.memory_space<vmem>>, vector<1x384xf32>
    %29 = vector.broadcast %28 : vector<1x384xf32> to vector<128x384xf32>
    %30 = arith.addf %27, %29 : vector<128x384xf32>
    %31 = vector.extract_strided_slice %30 {offsets = [0, 0], sizes = [128, 32], strides = [1, 1]} : vector<128x384xf32> to vector<128x32xf32>
    %cst_14 = arith.constant 0.176776692 : f32
    %32 = vector.broadcast %cst_14 : f32 to vector<128x32xf32>
    %33 = arith.mulf %31, %32 : vector<128x32xf32>
    %34 = arith.truncf %33 : vector<128x32xf32> to vector<128x32xbf16>
    %35 = vector.extract_strided_slice %30 {offsets = [0, 128], sizes = [128, 32], strides = [1, 1]} : vector<128x384xf32> to vector<128x32xf32>
    %36 = arith.truncf %35 : vector<128x32xf32> to vector<128x32xbf16>
    %37 = vector.extract_strided_slice %30 {offsets = [0, 256], sizes = [128, 32], strides = [1, 1]} : vector<128x384xf32> to vector<128x32xf32>
    %38 = arith.truncf %37 : vector<128x32xf32> to vector<128x32xbf16>
    %cst_15 = arith.constant dense<0.000000e+00> : vector<128x128xf32>
    %39 = tpu.matmul %34, %36, %cst_15 {dimension_numbers = #tpu.dot_dimension_numbers<[1], [1], [0], [0], [0, 0, 1, 0], [], []>} : vector<128x32xbf16>, vector<128x32xbf16>, vector<128x128xf32> -> vector<128x128xf32>
    %cst_16 = arith.constant dense<0xFF800000> : vector<128xf32>
    %40 = vector.multi_reduction <maximumf>, %39, %cst_16 [1] : vector<128x128xf32> to vector<128xf32>
    %41 = vector.shape_cast %40 : vector<128xf32> to vector<128x1xf32>
    %42 = vector.broadcast %41 : vector<128x1xf32> to vector<128x128xf32>
    %43 = arith.subf %39, %42 : vector<128x128xf32>
    %44 = math.exp %43 : vector<128x128xf32>
    %cst_17 = arith.constant dense<0.000000e+00> : vector<128xf32>
    %45 = vector.multi_reduction <add>, %44, %cst_17 [1] : vector<128x128xf32> to vector<128xf32>
    %46 = vector.shape_cast %45 : vector<128xf32> to vector<128x1xf32>
    %47 = vector.broadcast %46 : vector<128x1xf32> to vector<128x128xf32>
    %48 = arith.divf %44, %47 : vector<128x128xf32>
    %49 = arith.truncf %48 : vector<128x128xf32> to vector<128x128xbf16>
    %cst_18 = arith.constant dense<0.000000e+00> : vector<128x32xf32>
    %50 = tpu.matmul %49, %38, %cst_18 {dimension_numbers = #tpu.dot_dimension_numbers<[1], [0], [0], [1], [0, 0, 1, 1], [], []>} : vector<128x128xbf16>, vector<128x32xbf16>, vector<128x32xf32> -> vector<128x32xf32>
    %51 = vector.extract_strided_slice %30 {offsets = [0, 32], sizes = [128, 32], strides = [1, 1]} : vector<128x384xf32> to vector<128x32xf32>
    %cst_19 = arith.constant 0.176776692 : f32
    %52 = vector.broadcast %cst_19 : f32 to vector<128x32xf32>
    %53 = arith.mulf %51, %52 : vector<128x32xf32>
    %54 = arith.truncf %53 : vector<128x32xf32> to vector<128x32xbf16>
    %55 = vector.extract_strided_slice %30 {offsets = [0, 160], sizes = [128, 32], strides = [1, 1]} : vector<128x384xf32> to vector<128x32xf32>
    %56 = arith.truncf %55 : vector<128x32xf32> to vector<128x32xbf16>
    %57 = vector.extract_strided_slice %30 {offsets = [0, 288], sizes = [128, 32], strides = [1, 1]} : vector<128x384xf32> to vector<128x32xf32>
    %58 = arith.truncf %57 : vector<128x32xf32> to vector<128x32xbf16>
    %cst_20 = arith.constant dense<0.000000e+00> : vector<128x128xf32>
    %59 = tpu.matmul %54, %56, %cst_20 {dimension_numbers = #tpu.dot_dimension_numbers<[1], [1], [0], [0], [0, 0, 1, 0], [], []>} : vector<128x32xbf16>, vector<128x32xbf16>, vector<128x128xf32> -> vector<128x128xf32>
    %cst_21 = arith.constant dense<0xFF800000> : vector<128xf32>
    %60 = vector.multi_reduction <maximumf>, %59, %cst_21 [1] : vector<128x128xf32> to vector<128xf32>
    %61 = vector.shape_cast %60 : vector<128xf32> to vector<128x1xf32>
    %62 = vector.broadcast %61 : vector<128x1xf32> to vector<128x128xf32>
    %63 = arith.subf %59, %62 : vector<128x128xf32>
    %64 = math.exp %63 : vector<128x128xf32>
    %cst_22 = arith.constant dense<0.000000e+00> : vector<128xf32>
    %65 = vector.multi_reduction <add>, %64, %cst_22 [1] : vector<128x128xf32> to vector<128xf32>
    %66 = vector.shape_cast %65 : vector<128xf32> to vector<128x1xf32>
    %67 = vector.broadcast %66 : vector<128x1xf32> to vector<128x128xf32>
    %68 = arith.divf %64, %67 : vector<128x128xf32>
    %69 = arith.truncf %68 : vector<128x128xf32> to vector<128x128xbf16>
    %cst_23 = arith.constant dense<0.000000e+00> : vector<128x32xf32>
    %70 = tpu.matmul %69, %58, %cst_23 {dimension_numbers = #tpu.dot_dimension_numbers<[1], [0], [0], [1], [0, 0, 1, 1], [], []>} : vector<128x128xbf16>, vector<128x32xbf16>, vector<128x32xf32> -> vector<128x32xf32>
    %71 = vector.extract_strided_slice %30 {offsets = [0, 64], sizes = [128, 32], strides = [1, 1]} : vector<128x384xf32> to vector<128x32xf32>
    %cst_24 = arith.constant 0.176776692 : f32
    %72 = vector.broadcast %cst_24 : f32 to vector<128x32xf32>
    %73 = arith.mulf %71, %72 : vector<128x32xf32>
    %74 = arith.truncf %73 : vector<128x32xf32> to vector<128x32xbf16>
    %75 = vector.extract_strided_slice %30 {offsets = [0, 192], sizes = [128, 32], strides = [1, 1]} : vector<128x384xf32> to vector<128x32xf32>
    %76 = arith.truncf %75 : vector<128x32xf32> to vector<128x32xbf16>
    %77 = vector.extract_strided_slice %30 {offsets = [0, 320], sizes = [128, 32], strides = [1, 1]} : vector<128x384xf32> to vector<128x32xf32>
    %78 = arith.truncf %77 : vector<128x32xf32> to vector<128x32xbf16>
    %cst_25 = arith.constant dense<0.000000e+00> : vector<128x128xf32>
    %79 = tpu.matmul %74, %76, %cst_25 {dimension_numbers = #tpu.dot_dimension_numbers<[1], [1], [0], [0], [0, 0, 1, 0], [], []>} : vector<128x32xbf16>, vector<128x32xbf16>, vector<128x128xf32> -> vector<128x128xf32>
    %cst_26 = arith.constant dense<0xFF800000> : vector<128xf32>
    %80 = vector.multi_reduction <maximumf>, %79, %cst_26 [1] : vector<128x128xf32> to vector<128xf32>
    %81 = vector.shape_cast %80 : vector<128xf32> to vector<128x1xf32>
    %82 = vector.broadcast %81 : vector<128x1xf32> to vector<128x128xf32>
    %83 = arith.subf %79, %82 : vector<128x128xf32>
    %84 = math.exp %83 : vector<128x128xf32>
    %cst_27 = arith.constant dense<0.000000e+00> : vector<128xf32>
    %85 = vector.multi_reduction <add>, %84, %cst_27 [1] : vector<128x128xf32> to vector<128xf32>
    %86 = vector.shape_cast %85 : vector<128xf32> to vector<128x1xf32>
    %87 = vector.broadcast %86 : vector<128x1xf32> to vector<128x128xf32>
    %88 = arith.divf %84, %87 : vector<128x128xf32>
    %89 = arith.truncf %88 : vector<128x128xf32> to vector<128x128xbf16>
    %cst_28 = arith.constant dense<0.000000e+00> : vector<128x32xf32>
    %90 = tpu.matmul %89, %78, %cst_28 {dimension_numbers = #tpu.dot_dimension_numbers<[1], [0], [0], [1], [0, 0, 1, 1], [], []>} : vector<128x128xbf16>, vector<128x32xbf16>, vector<128x32xf32> -> vector<128x32xf32>
    %91 = vector.extract_strided_slice %30 {offsets = [0, 96], sizes = [128, 32], strides = [1, 1]} : vector<128x384xf32> to vector<128x32xf32>
    %cst_29 = arith.constant 0.176776692 : f32
    %92 = vector.broadcast %cst_29 : f32 to vector<128x32xf32>
    %93 = arith.mulf %91, %92 : vector<128x32xf32>
    %94 = arith.truncf %93 : vector<128x32xf32> to vector<128x32xbf16>
    %95 = vector.extract_strided_slice %30 {offsets = [0, 224], sizes = [128, 32], strides = [1, 1]} : vector<128x384xf32> to vector<128x32xf32>
    %96 = arith.truncf %95 : vector<128x32xf32> to vector<128x32xbf16>
    %97 = vector.extract_strided_slice %30 {offsets = [0, 352], sizes = [128, 32], strides = [1, 1]} : vector<128x384xf32> to vector<128x32xf32>
    %98 = arith.truncf %97 : vector<128x32xf32> to vector<128x32xbf16>
    %cst_30 = arith.constant dense<0.000000e+00> : vector<128x128xf32>
    %99 = tpu.matmul %94, %96, %cst_30 {dimension_numbers = #tpu.dot_dimension_numbers<[1], [1], [0], [0], [0, 0, 1, 0], [], []>} : vector<128x32xbf16>, vector<128x32xbf16>, vector<128x128xf32> -> vector<128x128xf32>
    %cst_31 = arith.constant dense<0xFF800000> : vector<128xf32>
    %100 = vector.multi_reduction <maximumf>, %99, %cst_31 [1] : vector<128x128xf32> to vector<128xf32>
    %101 = vector.shape_cast %100 : vector<128xf32> to vector<128x1xf32>
    %102 = vector.broadcast %101 : vector<128x1xf32> to vector<128x128xf32>
    %103 = arith.subf %99, %102 : vector<128x128xf32>
    %104 = math.exp %103 : vector<128x128xf32>
    %cst_32 = arith.constant dense<0.000000e+00> : vector<128xf32>
    %105 = vector.multi_reduction <add>, %104, %cst_32 [1] : vector<128x128xf32> to vector<128xf32>
    %106 = vector.shape_cast %105 : vector<128xf32> to vector<128x1xf32>
    %107 = vector.broadcast %106 : vector<128x1xf32> to vector<128x128xf32>
    %108 = arith.divf %104, %107 : vector<128x128xf32>
    %109 = arith.truncf %108 : vector<128x128xf32> to vector<128x128xbf16>
    %cst_33 = arith.constant dense<0.000000e+00> : vector<128x32xf32>
    %110 = tpu.matmul %109, %98, %cst_33 {dimension_numbers = #tpu.dot_dimension_numbers<[1], [0], [0], [1], [0, 0, 1, 1], [], []>} : vector<128x128xbf16>, vector<128x32xbf16>, vector<128x32xf32> -> vector<128x32xf32>
    %111 = tpu.concatenate %50, %70, %90, %110 in 1 : vector<128x32xf32>, vector<128x32xf32>, vector<128x32xf32>, vector<128x32xf32> -> vector<128x128xf32>
    %112 = arith.truncf %111 : vector<128x128xf32> to vector<128x128xbf16>
    %c0_34 = arith.constant 0 : index
    %c0_35 = arith.constant 0 : index
    %113 = vector.load %arg6[%c0_34, %c0_35] : memref<128x128xbf16, #tpu.memory_space<vmem>>, vector<128x128xbf16>
    %cst_36 = arith.constant dense<0.000000e+00> : vector<128x128xf32>
    %114 = tpu.matmul %112, %113, %cst_36 {dimension_numbers = #tpu.dot_dimension_numbers<[1], [0], [0], [1], [0, 0, 1, 1], [], []>} : vector<128x128xbf16>, vector<128x128xbf16>, vector<128x128xf32> -> vector<128x128xf32>
    %c0_37 = arith.constant 0 : index
    %c0_38 = arith.constant 0 : index
    %115 = vector.load %arg7[%c0_37, %c0_38] : memref<1x128xf32, #tpu.memory_space<vmem>>, vector<1x128xf32>
    %116 = vector.broadcast %115 : vector<1x128xf32> to vector<128x128xf32>
    %117 = arith.addf %114, %116 : vector<128x128xf32>
    %118 = arith.addf %117, %0 : vector<128x128xf32>
    %c0_39 = arith.constant 0 : index
    %c0_40 = arith.constant 0 : index
    %119 = vector.load %arg8[%c0_39, %c0_40] : memref<128x128xf32, #tpu.memory_space<vmem>>, vector<128x128xf32>
    tpu.vector_store %arg8[%c0_39, %c0_40], %118 {strides = array<i32>} : memref<128x128xf32, #tpu.memory_space<vmem>>, vector<128x128xf32>,
    return
  }
  func.func @transform_0(%arg0: i32) -> (i32, i32) {
    %c0_i32 = arith.constant 0 : i32
    %c0_i32_0 = arith.constant 0 : i32
    return %arg0, %c0_i32 : i32, i32
  }
  func.func @transform_1(%arg0: i32) -> (i32, i32) {
    %c0_i32 = arith.constant 0 : i32
    %c0_i32_0 = arith.constant 0 : i32
    %c0_i32_1 = arith.constant 0 : i32
    return %c0_i32, %c0_i32_0 : i32, i32
  }
  func.func @transform_2(%arg0: i32) -> (i32, i32) {
    %c0_i32 = arith.constant 0 : i32
    %c0_i32_0 = arith.constant 0 : i32
    %c0_i32_1 = arith.constant 0 : i32
    return %c0_i32, %c0_i32_0 : i32, i32
  }
  func.func @transform_3(%arg0: i32) -> (i32, i32) {
    %c0_i32 = arith.constant 0 : i32
    %c0_i32_0 = arith.constant 0 : i32
    %c0_i32_1 = arith.constant 0 : i32
    return %c0_i32, %c0_i32_0 : i32, i32
  }
  func.func @transform_4(%arg0: i32) -> (i32, i32) {
    %c0_i32 = arith.constant 0 : i32
    %c0_i32_0 = arith.constant 0 : i32
    %c0_i32_1 = arith.constant 0 : i32
    return %c0_i32, %c0_i32_0 : i32, i32
  }
  func.func @transform_5(%arg0: i32) -> (i32, i32) {
    %c0_i32 = arith.constant 0 : i32
    %c0_i32_0 = arith.constant 0 : i32
    %c0_i32_1 = arith.constant 0 : i32
    return %c0_i32, %c0_i32_0 : i32, i32
  }
  func.func @transform_6(%arg0: i32) -> (i32, i32) {
    %c0_i32 = arith.constant 0 : i32
    %c0_i32_0 = arith.constant 0 : i32
    %c0_i32_1 = arith.constant 0 : i32
    return %c0_i32, %c0_i32_0 : i32, i32
  }
  func.func @transform_7(%arg0: i32) -> (i32, i32) {
    %c0_i32 = arith.constant 0 : i32
    %c0_i32_0 = arith.constant 0 : i32
    return %arg0, %c0_i32 : i32, i32
  }
}

module attributes {stable_mosaic.version = 11 : i64} {
  func.func @_ln_kernel(%arg0: i32, %arg1: memref<128x128xf32, #tpu.memory_space<vmem>>, %arg2: memref<1x128xf32, #tpu.memory_space<vmem>>, %arg3: memref<1x128xf32, #tpu.memory_space<vmem>>, %arg4: memref<128x128xf32, #tpu.memory_space<vmem>>) attributes {dimension_semantics = [#tpu.dimension_semantics<parallel>], iteration_bounds = array<i64: 2>, scalar_prefetch = 0 : i64, scratch_operands = 0 : i64, tpu.core_type = #tpu.core_type<tc>, window_params = [{transform_indices = @transform_0, window_bounds = array<i64: 128, 128>}, {pipeline_mode = #tpu.pipeline_mode<synchronous>, transform_indices = @transform_1, window_bounds = array<i64: 1, 128>}, {pipeline_mode = #tpu.pipeline_mode<synchronous>, transform_indices = @transform_2, window_bounds = array<i64: 1, 128>}, {transform_indices = @transform_3, window_bounds = array<i64: 128, 128>}]} {
    %c0 = arith.constant 0 : index
    %c0_0 = arith.constant 0 : index
    %0 = vector.load %arg1[%c0, %c0_0] : memref<128x128xf32, #tpu.memory_space<vmem>>, vector<128x128xf32>
    %c0_1 = arith.constant 0 : index
    %c0_2 = arith.constant 0 : index
    %1 = vector.load %arg2[%c0_1, %c0_2] : memref<1x128xf32, #tpu.memory_space<vmem>>, vector<1x128xf32>
    %c0_3 = arith.constant 0 : index
    %c0_4 = arith.constant 0 : index
    %2 = vector.load %arg3[%c0_3, %c0_4] : memref<1x128xf32, #tpu.memory_space<vmem>>, vector<1x128xf32>
    %cst = arith.constant dense<0.000000e+00> : vector<128xf32>
    %3 = vector.multi_reduction <add>, %0, %cst [1] : vector<128x128xf32> to vector<128xf32>
    %4 = vector.shape_cast %3 : vector<128xf32> to vector<128x1xf32>
    %cst_5 = arith.constant 1.280000e+02 : f32
    %5 = vector.broadcast %cst_5 : f32 to vector<128x1xf32>
    %6 = arith.divf %4, %5 : vector<128x1xf32>
    %7 = vector.broadcast %6 : vector<128x1xf32> to vector<128x128xf32>
    %8 = arith.subf %0, %7 : vector<128x128xf32>
    %9 = arith.mulf %8, %8 : vector<128x128xf32>
    %cst_6 = arith.constant dense<0.000000e+00> : vector<128xf32>
    %10 = vector.multi_reduction <add>, %9, %cst_6 [1] : vector<128x128xf32> to vector<128xf32>
    %11 = vector.shape_cast %10 : vector<128xf32> to vector<128x1xf32>
    %cst_7 = arith.constant 1.280000e+02 : f32
    %12 = vector.broadcast %cst_7 : f32 to vector<128x1xf32>
    %13 = arith.divf %11, %12 : vector<128x1xf32>
    %14 = vector.broadcast %6 : vector<128x1xf32> to vector<128x128xf32>
    %15 = arith.subf %0, %14 : vector<128x128xf32>
    %cst_8 = arith.constant 9.99999997E-7 : f32
    %16 = vector.broadcast %cst_8 : f32 to vector<128x1xf32>
    %17 = arith.addf %13, %16 : vector<128x1xf32>
    %18 = math.rsqrt %17 : vector<128x1xf32>
    %19 = vector.broadcast %18 : vector<128x1xf32> to vector<128x128xf32>
    %20 = arith.mulf %15, %19 : vector<128x128xf32>
    %21 = vector.broadcast %1 : vector<1x128xf32> to vector<128x128xf32>
    %22 = arith.mulf %20, %21 : vector<128x128xf32>
    %23 = vector.broadcast %2 : vector<1x128xf32> to vector<128x128xf32>
    %24 = arith.addf %22, %23 : vector<128x128xf32>
    %c0_9 = arith.constant 0 : index
    %c0_10 = arith.constant 0 : index
    %25 = vector.load %arg4[%c0_9, %c0_10] : memref<128x128xf32, #tpu.memory_space<vmem>>, vector<128x128xf32>
    tpu.vector_store %arg4[%c0_9, %c0_10], %24 {strides = array<i32>} : memref<128x128xf32, #tpu.memory_space<vmem>>, vector<128x128xf32>,
    return
  }
  func.func @transform_0(%arg0: i32) -> (i32, i32) {
    %c0_i32 = arith.constant 0 : i32
    %c0_i32_0 = arith.constant 0 : i32
    return %arg0, %c0_i32 : i32, i32
  }
  func.func @transform_1(%arg0: i32) -> (i32, i32) {
    %c0_i32 = arith.constant 0 : i32
    %c0_i32_0 = arith.constant 0 : i32
    %c0_i32_1 = arith.constant 0 : i32
    return %c0_i32, %c0_i32_0 : i32, i32
  }
  func.func @transform_2(%arg0: i32) -> (i32, i32) {
    %c0_i32 = arith.constant 0 : i32
    %c0_i32_0 = arith.constant 0 : i32
    %c0_i32_1 = arith.constant 0 : i32
    return %c0_i32, %c0_i32_0 : i32, i32
  }
  func.func @transform_3(%arg0: i32) -> (i32, i32) {
    %c0_i32 = arith.constant 0 : i32
    %c0_i32_0 = arith.constant 0 : i32
    return %arg0, %c0_i32 : i32, i32
  }
}

</mosaic_0001>

<llo_original>
// kernel: _lambda_.9
$region0: #{_lambda_.9}
  #allocation0 [shape = 'u32[]', space=smem, size = 0x4, offset = 0x4, fixed_abs, tag = 'smem constant byte address 0x4 - core index']
  #allocation1 [shape = 'u32[72,128]{1,0:T(1,128)}', space=vmem, size = 0x9000, scoped, tag = 'internal scratch']
  %s0 = inlined_call_operand.vmem [shape: f32[256,128], index: 0, kind: input, shape index: {}]
  %s1 = inlined_call_operand.vmem [shape: f32[1,128], index: 1, kind: input, shape index: {}]
  %s2 = inlined_call_operand.vmem [shape: f32[1,128], index: 2, kind: input, shape index: {}]
  %s3 = inlined_call_operand.hbm [shape: f32[256,128], index: 3, kind: output, shape index: {}]
  %s4 = sld [smem:[#allocation0]]
  $region45: #{_lambda_.9} parent=0
    _
  %s6 = ssub.s32 1, %s4
  %s7 = scalar_select 0, %s6, %s4
  $region1: #{_lambda_.9} parent=0
    #allocation2 [shape = 'u8[131072]{0}', space=vmem, size = 0x20000, scoped, tag = 'output window, operand 0']
    #allocation3 [shape = 's32[2]{0}', space=sflag, size = 0x8, scoped, tag = 'scoped memory for _lambda_.9']
    %8 = vsyncpa [#allocation3], 0
    %s9 = scalar_lea.sflag [#allocation3], 1
    %10 = vsyncpa %s9, 0
    loop: start=0, step=1, limit=4
    $region2: #{_lambda_.9} parent=1 // loop_pre_header
      _
    $region3: #{_lambda_.9} parent=1 // loop_header
      %s12 = sphi 0, %s16
      %p13 = scmp.ge.s32.totalorder %s12, 4
      %s22 = sphi 0, %s24
      %s25 = sphi 0, %s22
      %s26 = sphi 0, %s25
      %s42 = sphi 0, %s26
      %s46 = sphi 0, %s46
      %s48 = sphi 0, %s46
      %s49 = sphi 0, %s48
      %s63 = sphi 0, %s49
      %s67 = sphi 0, %s67
      %s69 = sphi 0, %s67
      %s70 = sphi 0, %s69
      %s84 = sphi 0, %s70
      %s90 = sphi 0, %s92
      %s93 = sphi 0, %s90
      %s94 = sphi 0, %s93
      %s110 = sphi 0, %s94
    $region4: #{_lambda_.9} parent=1 // loop_header_branch
      %15 = sbr.rel (%p13) target = $region8
    $region5: #{_lambda_.9} parent=1 // loop_body
      %s17 = ssub.s32 %s12, 1
      %s18 = ssub.s32 %s12, 2
      %s19 = sadd.s32 %s12, 1
      %s20 = ssub.s32 %s12, %s19
      %p21 = scmp.eq.s32.totalorder %s20, 0
      %s23 = sadd.s32 %s22, 1
      %s24 = scalar_select %p21, %s22, %s23
      %p27 = pneg %p21
      %p28 = scmp.eq.s32.totalorder %s12, 1
      %p29 = por %p27, %p28
      %p30 = scmp.ne.s32.totalorder %s22, %s25
      %p31 = scmp.eq.s32.totalorder %s12, 0
      %p32 = por %p30, %p31
      %p33 = scmp.ne.s32.totalorder %s22, %s25
      %p34 = scmp.eq.s32.totalorder %s17, 1
      %p35 = por %p33, %p34
      %p36 = scmp.ne.s32.totalorder %s25, %s26
      %p37 = scmp.eq.s32.totalorder %s17, 0
      %p38 = por %p36, %p37
      %p39 = scmp.ne.s32.totalorder %s25, %s26
      %p40 = scmp.eq.s32.totalorder %s18, 1
      %p41 = por %p39, %p40
      %p43 = scmp.ne.s32.totalorder %s26, %s42
      %p44 = scmp.eq.s32.totalorder %s18, 0
      %p45 = por %p43, %p44
      %s47 = sadd.s32 %s46, 1
      %p50 = scmp.eq.s32.totalorder %s12, 1
      %p51 = scmp.ne.s32.totalorder %s46, %s48
      %p52 = scmp.eq.s32.totalorder %s12, 0
      %p53 = por %p51, %p52
      %p54 = scmp.ne.s32.totalorder %s46, %s48
      %p55 = scmp.eq.s32.totalorder %s17, 1
      %p56 = por %p54, %p55
      %p57 = scmp.ne.s32.totalorder %s48, %s49
      %p58 = scmp.eq.s32.totalorder %s17, 0
      %p59 = por %p57, %p58
      %p60 = scmp.ne.s32.totalorder %s48, %s49
      %p61 = scmp.eq.s32.totalorder %s18, 1
      %p62 = por %p60, %p61
      %p64 = scmp.ne.s32.totalorder %s49, %s63
      %p65 = scmp.eq.s32.totalorder %s18, 0
      %p66 = por %p64, %p65
      %s68 = sadd.s32 %s67, 1
      %p71 = scmp.eq.s32.totalorder %s12, 1
      %p72 = scmp.ne.s32.totalorder %s67, %s69
      %p73 = scmp.eq.s32.totalorder %s12, 0
      %p74 = por %p72, %p73
      %p75 = scmp.ne.s32.totalorder %s67, %s69
      %p76 = scmp.eq.s32.totalorder %s17, 1
      %p77 = por %p75, %p76
      %p78 = scmp.ne.s32.totalorder %s69, %s70
      %p79 = scmp.eq.s32.totalorder %s17, 0
      %p80 = por %p78, %p79
      %p81 = scmp.ne.s32.totalorder %s69, %s70
      %p82 = scmp.eq.s32.totalorder %s18, 1
      %p83 = por %p81, %p82
      %p85 = scmp.ne.s32.totalorder %s70, %s84
      %p86 = scmp.eq.s32.totalorder %s18, 0
      %p87 = por %p85, %p86
      %s88 = ssub.s32 %s12, %s19
      %p89 = scmp.eq.s32.totalorder %s88, 0
      %s91 = sadd.s32 %s90, 1
      %s92 = scalar_select %p89, %s90, %s91
      %p95 = pneg %p89
      %p96 = scmp.eq.s32.totalorder %s12, 1
      %p97 = por %p95, %p96
      %p98 = scmp.ne.s32.totalorder %s90, %s93
      %p99 = scmp.eq.s32.totalorder %s12, 0
      %p100 = por %p98, %p99
      %p101 = scmp.ne.s32.totalorder %s90, %s93
      %p102 = scmp.eq.s32.totalorder %s17, 1
      %p103 = por %p101, %p102
      %p104 = scmp.ne.s32.totalorder %s93, %s94
      %p105 = scmp.eq.s32.totalorder %s17, 0
      %p106 = por %p104, %p105
      %p107 = scmp.ne.s32.totalorder %s93, %s94
      %p108 = scmp.eq.s32.totalorder %s18, 1
      %p109 = por %p107, %p108
      %p111 = scmp.ne.s32.totalorder %s94, %s110
      %p112 = scmp.eq.s32.totalorder %s18, 0
      %p113 = por %p111, %p112
      %p114 = scmp.le.s32.totalorder 1, %s12
      %p115 = scmp.lt.s32.totalorder %s12, 3
      %p116 = pnand %p114, %p115
      %p117 = pneg %p116
      // Predicated region
      $region9: #{_lambda_.9} parent=5 // pred_check
        _
      $region10: #{_lambda_.9} parent=5 // pred_check_branch
        %119 = sbr.rel (%p116) target = $region12
      $region11: #{_lambda_.9} parent=5 // pred_region
        %s120 = ssub.s32 %s12, 1
        // Predicated region
        $region13: #{_lambda_.9} parent=11 // pred_check
          %p121 = pneg %p59
        $region14: #{_lambda_.9} parent=11 // pred_check_branch
          %123 = sbr.rel (%p121) target = $region16
        $region15: #{_lambda_.9} parent=11 // pred_region
          _
        $region16: #{_lambda_.9} parent=11 // pred_fallthru
          _
        // Predicated region
        $region17: #{_lambda_.9} parent=11 // pred_check
          %p124 = pneg %p80
        $region18: #{_lambda_.9} parent=11 // pred_check_branch
          %126 = sbr.rel (%p124) target = $region20
        $region19: #{_lambda_.9} parent=11 // pred_region
          _
        $region20: #{_lambda_.9} parent=11 // pred_fallthru
          _
      $region12: #{_lambda_.9} parent=5 // pred_fallthru
        _
      %p127 = scmp.lt.s32.totalorder %s12, 2
      // Predicated region
      $region21: #{_lambda_.9} parent=5 // pred_check
        %p128 = pneg %p127
      $region22: #{_lambda_.9} parent=5 // pred_check_branch
        %130 = sbr.rel (%p128) target = $region24
      $region23: #{_lambda_.9} parent=5 // pred_region
        // Predicated region
        $region25: #{_lambda_.9} parent=23 // pred_check
          %p131 = pneg %p32
        $region26: #{_lambda_.9} parent=23 // pred_check_branch
          %133 = sbr.rel (%p131) target = $region28
        $region27: #{_lambda_.9} parent=23 // pred_region
          %s134 = smul.u32 16, %s12
          %p135 = scmp.lt.s32.totalorder %s134, 31
          %s136 = scalar_select %p135, %s134, 31
          %s137 = smul.addr %s136, 8
          %s138 = scalar_lea.vmem %s0, %s137
          %s139 = smul.u32 16, %s12
        $region28: #{_lambda_.9} parent=23 // pred_fallthru
          _
      $region24: #{_lambda_.9} parent=5 // pred_fallthru
        _
      %p140 = scmp.le.s32.totalorder 1, %s12
      %p141 = scmp.lt.s32.totalorder %s12, 3
      %p142 = pnand %p140, %p141
      %p143 = pneg %p142
      // Predicated region
      $region29: #{_lambda_.9} parent=5 // pred_check
        _
      $region30: #{_lambda_.9} parent=5 // pred_check_branch
        %145 = sbr.rel (%p142) target = $region32
      $region31: #{_lambda_.9} parent=5 // pred_region
        %s146 = ssub.s32 %s12, 1
        %s147 = smul.u32 16, %s17
        %p148 = scmp.lt.s32.totalorder %s147, 31
        %s149 = scalar_select %p148, %s147, 31
        %s150 = smul.addr %s149, 8
        %s151 = scalar_lea.vmem %s0, %s150
        %p152 = pneg %p38
        %p153 = pneg %p35
        %p154 = pneg %p59
        %p155 = pneg %p56
        %p156 = pneg %p80
        %p157 = pneg %p77
        %p158 = pneg %p106
        %p159 = pneg %p103
        %s160 = sand.u32 %s93, 1
        %s161 = scalar_lea.sflag [#allocation3], %s160
        %s162 = sand.u32 %s93, 1
        %s163 = smul.addr %s162, 128
        %s164 = scalar_lea.vmem [#allocation2], %s163
        %s165 = smul.u32 16, %s17
        %p166 = scmp.lt.s32.totalorder %s165, 31
        %s167 = scalar_select %p166, %s165, 31
        %s168 = smul.addr %s167, 8
        %s169 = scalar_lea.vmem %s0, %s168
        %s170 = smul.u32 16, %s17
        %s171 = smul.u32 16, %s17
        %v172 = vld [vmem:[%s169] sm:$0xff]
        %v173 = vld [vmem:[%s169 + $0x8] sm:$0xff]
        %v174 = vld [vmem:[%s169 + $0x10] sm:$0xff]
        %v175 = vld [vmem:[%s169 + $0x18] sm:$0xff]
        %v176 = vld [vmem:[%s169 + $0x20] sm:$0xff]
        %v177 = vld [vmem:[%s169 + $0x28] sm:$0xff]
        %v178 = vld [vmem:[%s169 + $0x30] sm:$0xff]
        %v179 = vld [vmem:[%s169 + $0x38] sm:$0xff]
        %v180 = vld [vmem:[%s169 + $0x40] sm:$0xff]
        %v181 = vld [vmem:[%s169 + $0x48] sm:$0xff]
        %v182 = vld [vmem:[%s169 + $0x50] sm:$0xff]
        %v183 = vld [vmem:[%s169 + $0x58] sm:$0xff]
        %v184 = vld [vmem:[%s169 + $0x60] sm:$0xff]
        %v185 = vld [vmem:[%s169 + $0x68] sm:$0xff]
        %v186 = vld [vmem:[%s169 + $0x70] sm:$0xff]
        %v187 = vld [vmem:[%s169 + $0x78] sm:$0xff]
        %v188 = vld [vmem:[%s1] sm:$0x1]
        %v189 = vld [vmem:[%s2] sm:$0x1]
        %190 = vadd.xlane.f32.xlu0 %v172
        %v191 = vpop.xlane.xlu0 %190
        %192 = vadd.xlane.f32.xlu0 %v173
        %v193 = vpop.xlane.xlu0 %192
        %194 = vadd.xlane.f32.xlu0 %v174
        %v195 = vpop.xlane.xlu0 %194
        %196 = vadd.xlane.f32.xlu0 %v175
        %v197 = vpop.xlane.xlu0 %196
        %198 = vadd.xlane.f32.xlu0 %v176
        %v199 = vpop.xlane.xlu0 %198
        %200 = vadd.xlane.f32.xlu0 %v177
        %v201 = vpop.xlane.xlu0 %200
        %202 = vadd.xlane.f32.xlu0 %v178
        %v203 = vpop.xlane.xlu0 %202
        %204 = vadd.xlane.f32.xlu0 %v179
        %v205 = vpop.xlane.xlu0 %204
        %206 = vadd.xlane.f32.xlu0 %v180
        %v207 = vpop.xlane.xlu0 %206
        %208 = vadd.xlane.f32.xlu0 %v181
        %v209 = vpop.xlane.xlu0 %208
        %210 = vadd.xlane.f32.xlu0 %v182
        %v211 = vpop.xlane.xlu0 %210
        %212 = vadd.xlane.f32.xlu0 %v183
        %v213 = vpop.xlane.xlu0 %212
        %214 = vadd.xlane.f32.xlu0 %v184
        %v215 = vpop.xlane.xlu0 %214
        %216 = vadd.xlane.f32.xlu0 %v185
        %v217 = vpop.xlane.xlu0 %216
        %218 = vadd.xlane.f32.xlu0 %v186
        %v219 = vpop.xlane.xlu0 %218
        %220 = vadd.xlane.f32.xlu0 %v187
        %v221 = vpop.xlane.xlu0 %220
        %v222 = vrcp.pop 128.0
        %v223 = vmul.f32 128.0, %v222
        %v224 = vsub.f32 1.0, %v223
        %v225 = vmul.f32 %v222, %v224
        %v226 = vadd.f32 %v222, %v225
        %vm227 = vweird.f32 %v222
        %v228 = vsel %vm227, %v222, %v226
        %v229 = vmul.f32 %v191, %v228
        %v230 = vmul.f32 %v193, %v228
        %v231 = vmul.f32 %v195, %v228
        %v232 = vmul.f32 %v197, %v228
        %v233 = vmul.f32 %v199, %v228
        %v234 = vmul.f32 %v201, %v228
        %v235 = vmul.f32 %v203, %v228
        %v236 = vmul.f32 %v205, %v228
        %v237 = vmul.f32 %v207, %v228
        %v238 = vmul.f32 %v209, %v228
        %v239 = vmul.f32 %v211, %v228
        %v240 = vmul.f32 %v213, %v228
        %v241 = vmul.f32 %v215, %v228
        %v242 = vmul.f32 %v217, %v228
        %v243 = vmul.f32 %v219, %v228
        %v244 = vmul.f32 %v221, %v228
        %v245 = vsub.f32 %v172, %v229
        %v246 = vsub.f32 %v173, %v230
        %v247 = vsub.f32 %v174, %v231
        %v248 = vsub.f32 %v175, %v232
        %v249 = vsub.f32 %v176, %v233
        %v250 = vsub.f32 %v177, %v234
        %v251 = vsub.f32 %v178, %v235
        %v252 = vsub.f32 %v179, %v236
        %v253 = vsub.f32 %v180, %v237
        %v254 = vsub.f32 %v181, %v238
        %v255 = vsub.f32 %v182, %v239
        %v256 = vsub.f32 %v183, %v240
        %v257 = vsub.f32 %v184, %v241
        %v258 = vsub.f32 %v185, %v242
        %v259 = vsub.f32 %v186, %v243
        %v260 = vsub.f32 %v187, %v244
        %v261 = vmul.f32 %v245, %v245
        %v262 = vmul.f32 %v246, %v246
        %v263 = vmul.f32 %v247, %v247
        %v264 = vmul.f32 %v248, %v248
        %v265 = vmul.f32 %v249, %v249
        %v266 = vmul.f32 %v250, %v250
        %v267 = vmul.f32 %v251, %v251
        %v268 = vmul.f32 %v252, %v252
        %v269 = vmul.f32 %v253, %v253
        %v270 = vmul.f32 %v254, %v254
        %v271 = vmul.f32 %v255, %v255
        %v272 = vmul.f32 %v256, %v256
        %v273 = vmul.f32 %v257, %v257
        %v274 = vmul.f32 %v258, %v258
        %v275 = vmul.f32 %v259, %v259
        %v276 = vmul.f32 %v260, %v260
        %277 = vadd.xlane.f32.xlu0 %v261
        %v278 = vpop.xlane.xlu0 %277
        %279 = vadd.xlane.f32.xlu0 %v262
        %v280 = vpop.xlane.xlu0 %279
        %281 = vadd.xlane.f32.xlu0 %v263
        %v282 = vpop.xlane.xlu0 %281
        %283 = vadd.xlane.f32.xlu0 %v264
        %v284 = vpop.xlane.xlu0 %283
        %285 = vadd.xlane.f32.xlu0 %v265
        %v286 = vpop.xlane.xlu0 %285
        %287 = vadd.xlane.f32.xlu0 %v266
        %v288 = vpop.xlane.xlu0 %287
        %289 = vadd.xlane.f32.xlu0 %v267
        %v290 = vpop.xlane.xlu0 %289
        %291 = vadd.xlane.f32.xlu0 %v268
        %v292 = vpop.xlane.xlu0 %291
        %293 = vadd.xlane.f32.xlu0 %v269
        %v294 = vpop.xlane.xlu0 %293
        %295 = vadd.xlane.f32.xlu0 %v270
        %v296 = vpop.xlane.xlu0 %295
        %297 = vadd.xlane.f32.xlu0 %v271
        %v298 = vpop.xlane.xlu0 %297
        %299 = vadd.xlane.f32.xlu0 %v272
        %v300 = vpop.xlane.xlu0 %299
        %301 = vadd.xlane.f32.xlu0 %v273
        %v302 = vpop.xlane.xlu0 %301
        %303 = vadd.xlane.f32.xlu0 %v274
        %v304 = vpop.xlane.xlu0 %303
        %305 = vadd.xlane.f32.xlu0 %v275
        %v306 = vpop.xlane.xlu0 %305
        %307 = vadd.xlane.f32.xlu0 %v276
        %v308 = vpop.xlane.xlu0 %307
        %v309 = vmul.f32 %v278, %v228
        %v310 = vmul.f32 %v280, %v228
        %v311 = vmul.f32 %v282, %v228
        %v312 = vmul.f32 %v284, %v228
        %v313 = vmul.f32 %v286, %v228
        %v314 = vmul.f32 %v288, %v228
        %v315 = vmul.f32 %v290, %v228
        %v316 = vmul.f32 %v292, %v228
        %v317 = vmul.f32 %v294, %v228
        %v318 = vmul.f32 %v296, %v228
        %v319 = vmul.f32 %v298, %v228
        %v320 = vmul.f32 %v300, %v228
        %v321 = vmul.f32 %v302, %v228
        %v322 = vmul.f32 %v304, %v228
        %v323 = vmul.f32 %v306, %v228
        %v324 = vmul.f32 %v308, %v228
        %v325 = vadd.f32 %v309, 1e-06
        %v326 = vadd.f32 %v310, 1e-06
        %v327 = vadd.f32 %v311, 1e-06
        %v328 = vadd.f32 %v312, 1e-06
        %v329 = vadd.f32 %v313, 1e-06
        %v330 = vadd.f32 %v314, 1e-06
        %v331 = vadd.f32 %v315, 1e-06
        %v332 = vadd.f32 %v316, 1e-06
        %v333 = vadd.f32 %v317, 1e-06
        %v334 = vadd.f32 %v318, 1e-06
        %v335 = vadd.f32 %v319, 1e-06
        %v336 = vadd.f32 %v320, 1e-06
        %v337 = vadd.f32 %v321, 1e-06
        %v338 = vadd.f32 %v322, 1e-06
        %v339 = vadd.f32 %v323, 1e-06
        %v340 = vadd.f32 %v324, 1e-06
        %v341 = vrsqrt.pop %v325
        %v342 = vmul.f32 %v341, %v325
        %v343 = vmul.f32 %v342, %v341
        %v344 = vmul.f32 0.5, %v343
        %v345 = vsub.f32 1.5, %v344
        %v346 = vmul.f32 %v341, %v345
        %vm347 = vweird.f32 %v325
        %vm348 = vweird.f32 %v341
        %vm349 = vmor %vm347, %vm348
        %v350 = vsel %vm349, %v341, %v346
        %v351 = vrsqrt.pop %v326
        %v352 = vmul.f32 %v351, %v326
        %v353 = vmul.f32 %v352, %v351
        %v354 = vmul.f32 0.5, %v353
        %v355 = vsub.f32 1.5, %v354
        %v356 = vmul.f32 %v351, %v355
        %vm357 = vweird.f32 %v326
        %vm358 = vweird.f32 %v351
        %vm359 = vmor %vm357, %vm358
        %v360 = vsel %vm359, %v351, %v356
        %v361 = vrsqrt.pop %v327
        %v362 = vmul.f32 %v361, %v327
        %v363 = vmul.f32 %v362, %v361
        %v364 = vmul.f32 0.5, %v363
        %v365 = vsub.f32 1.5, %v364
        %v366 = vmul.f32 %v361, %v365
        %vm367 = vweird.f32 %v327
        %vm368 = vweird.f32 %v361
        %vm369 = vmor %vm367, %vm368
        %v370 = vsel %vm369, %v361, %v366
        %v371 = vrsqrt.pop %v328
        %v372 = vmul.f32 %v371, %v328
        %v373 = vmul.f32 %v372, %v371
        %v374 = vmul.f32 0.5, %v373
        %v375 = vsub.f32 1.5, %v374
        %v376 = vmul.f32 %v371, %v375
        %vm377 = vweird.f32 %v328
        %vm378 = vweird.f32 %v371
        %vm379 = vmor %vm377, %vm378
        %v380 = vsel %vm379, %v371, %v376
        %v381 = vrsqrt.pop %v329
        %v382 = vmul.f32 %v381, %v329
        %v383 = vmul.f32 %v382, %v381
        %v384 = vmul.f32 0.5, %v383
        %v385 = vsub.f32 1.5, %v384
        %v386 = vmul.f32 %v381, %v385
        %vm387 = vweird.f32 %v329
        %vm388 = vweird.f32 %v381
        %vm389 = vmor %vm387, %vm388
        %v390 = vsel %vm389, %v381, %v386
        %v391 = vrsqrt.pop %v330
        %v392 = vmul.f32 %v391, %v330
        %v393 = vmul.f32 %v392, %v391
        %v394 = vmul.f32 0.5, %v393
        %v395 = vsub.f32 1.5, %v394
        %v396 = vmul.f32 %v391, %v395
        %vm397 = vweird.f32 %v330
        %vm398 = vweird.f32 %v391
        %vm399 = vmor %vm397, %vm398
        %v400 = vsel %vm399, %v391, %v396
        %v401 = vrsqrt.pop %v331
        %v402 = vmul.f32 %v401, %v331
        %v403 = vmul.f32 %v402, %v401
        %v404 = vmul.f32 0.5, %v403
        %v405 = vsub.f32 1.5, %v404
        %v406 = vmul.f32 %v401, %v405
        %vm407 = vweird.f32 %v331
        %vm408 = vweird.f32 %v401
        %vm409 = vmor %vm407, %vm408
        %v410 = vsel %vm409, %v401, %v406
        %v411 = vrsqrt.pop %v332
        %v412 = vmul.f32 %v411, %v332
        %v413 = vmul.f32 %v412, %v411
        %v414 = vmul.f32 0.5, %v413
        %v415 = vsub.f32 1.5, %v414
        %v416 = vmul.f32 %v411, %v415
        %vm417 = vweird.f32 %v332
        %vm418 = vweird.f32 %v411
        %vm419 = vmor %vm417, %vm418
        %v420 = vsel %vm419, %v411, %v416
        %v421 = vrsqrt.pop %v333
        %v422 = vmul.f32 %v421, %v333
        %v423 = vmul.f32 %v422, %v421
        %v424 = vmul.f32 0.5, %v423
        %v425 = vsub.f32 1.5, %v424
        %v426 = vmul.f32 %v421, %v425
        %vm427 = vweird.f32 %v333
        %vm428 = vweird.f32 %v421
        %vm429 = vmor %vm427, %vm428
        %v430 = vsel %vm429, %v421, %v426
        %v431 = vrsqrt.pop %v334
        %v432 = vmul.f32 %v431, %v334
        %v433 = vmul.f32 %v432, %v431
        %v434 = vmul.f32 0.5, %v433
        %v435 = vsub.f32 1.5, %v434
        %v436 = vmul.f32 %v431, %v435
        %vm437 = vweird.f32 %v334
        %vm438 = vweird.f32 %v431
        %vm439 = vmor %vm437, %vm438
        %v440 = vsel %vm439, %v431, %v436
        %v441 = vrsqrt.pop %v335
        %v442 = vmul.f32 %v441, %v335
        %v443 = vmul.f32 %v442, %v441
        %v444 = vmul.f32 0.5, %v443
        %v445 = vsub.f32 1.5, %v444
        %v446 = vmul.f32 %v441, %v445
        %vm447 = vweird.f32 %v335
        %vm448 = vweird.f32 %v441
        %vm449 = vmor %vm447, %vm448
        %v450 = vsel %vm449, %v441, %v446
        %v451 = vrsqrt.pop %v336
        %v452 = vmul.f32 %v451, %v336
        %v453 = vmul.f32 %v452, %v451
        %v454 = vmul.f32 0.5, %v453
        %v455 = vsub.f32 1.5, %v454
        %v456 = vmul.f32 %v451, %v455
        %vm457 = vweird.f32 %v336
        %vm458 = vweird.f32 %v451
        %vm459 = vmor %vm457, %vm458
        %v460 = vsel %vm459, %v451, %v456
        %v461 = vrsqrt.pop %v337
        %v462 = vmul.f32 %v461, %v337
        %v463 = vmul.f32 %v462, %v461
        %v464 = vmul.f32 0.5, %v463
        %v465 = vsub.f32 1.5, %v464
        %v466 = vmul.f32 %v461, %v465
        %vm467 = vweird.f32 %v337
        %vm468 = vweird.f32 %v461
        %vm469 = vmor %vm467, %vm468
        %v470 = vsel %vm469, %v461, %v466
        %v471 = vrsqrt.pop %v338
        %v472 = vmul.f32 %v471, %v338
        %v473 = vmul.f32 %v472, %v471
        %v474 = vmul.f32 0.5, %v473
        %v475 = vsub.f32 1.5, %v474
        %v476 = vmul.f32 %v471, %v475
        %vm477 = vweird.f32 %v338
        %vm478 = vweird.f32 %v471
        %vm479 = vmor %vm477, %vm478
        %v480 = vsel %vm479, %v471, %v476
        %v481 = vrsqrt.pop %v339
        %v482 = vmul.f32 %v481, %v339
        %v483 = vmul.f32 %v482, %v481
        %v484 = vmul.f32 0.5, %v483
        %v485 = vsub.f32 1.5, %v484
        %v486 = vmul.f32 %v481, %v485
        %vm487 = vweird.f32 %v339
        %vm488 = vweird.f32 %v481
        %vm489 = vmor %vm487, %vm488
        %v490 = vsel %vm489, %v481, %v486
        %v491 = vrsqrt.pop %v340
        %v492 = vmul.f32 %v491, %v340
        %v493 = vmul.f32 %v492, %v491
        %v494 = vmul.f32 0.5, %v493
        %v495 = vsub.f32 1.5, %v494
        %v496 = vmul.f32 %v491, %v495
        %vm497 = vweird.f32 %v340
        %vm498 = vweird.f32 %v491
        %vm499 = vmor %vm497, %vm498
        %v500 = vsel %vm499, %v491, %v496
        %v501 = vmul.f32 %v245, %v350
        %v502 = vmul.f32 %v246, %v360
        %v503 = vmul.f32 %v247, %v370
        %v504 = vmul.f32 %v248, %v380
        %v505 = vmul.f32 %v249, %v390
        %v506 = vmul.f32 %v250, %v400
        %v507 = vmul.f32 %v251, %v410
        %v508 = vmul.f32 %v252, %v420
        %v509 = vmul.f32 %v253, %v430
        %v510 = vmul.f32 %v254, %v440
        %v511 = vmul.f32 %v255, %v450
        %v512 = vmul.f32 %v256, %v460
        %v513 = vmul.f32 %v257, %v470
        %v514 = vmul.f32 %v258, %v480
        %v515 = vmul.f32 %v259, %v490
        %v516 = vmul.f32 %v260, %v500
        %v518 = vperm.slane %v188, 0
        %v520 = vmul.f32 %v501, %v518
        %v521 = vmul.f32 %v502, %v518
        %v522 = vmul.f32 %v503, %v518
        %v523 = vmul.f32 %v504, %v518
        %v524 = vmul.f32 %v505, %v518
        %v525 = vmul.f32 %v506, %v518
        %v526 = vmul.f32 %v507, %v518
        %v527 = vmul.f32 %v508, %v518
        %v528 = vmul.f32 %v509, %v518
        %v529 = vmul.f32 %v510, %v518
        %v530 = vmul.f32 %v511, %v518
        %v531 = vmul.f32 %v512, %v518
        %v532 = vmul.f32 %v513, %v518
        %v533 = vmul.f32 %v514, %v518
        %v534 = vmul.f32 %v515, %v518
        %v535 = vmul.f32 %v516, %v518
        %v537 = vperm.slane %v189, 0
        %v539 = vadd.f32 %v520, %v537
        %v540 = vadd.f32 %v521, %v537
        %v541 = vadd.f32 %v522, %v537
        %v542 = vadd.f32 %v523, %v537
        %v543 = vadd.f32 %v524, %v537
        %v544 = vadd.f32 %v525, %v537
        %v545 = vadd.f32 %v526, %v537
        %v546 = vadd.f32 %v527, %v537
        %v547 = vadd.f32 %v528, %v537
        %v548 = vadd.f32 %v529, %v537
        %v549 = vadd.f32 %v530, %v537
        %v550 = vadd.f32 %v531, %v537
        %v551 = vadd.f32 %v532, %v537
        %v552 = vadd.f32 %v533, %v537
        %v553 = vadd.f32 %v534, %v537
        %v554 = vadd.f32 %v535, %v537
        %555 = vst [vmem:[%s164] sm:$0xff] %v539
        %556 = vst [vmem:[%s164 + $0x8] sm:$0xff] %v540
        %557 = vst [vmem:[%s164 + $0x10] sm:$0xff] %v541
        %558 = vst [vmem:[%s164 + $0x18] sm:$0xff] %v542
        %559 = vst [vmem:[%s164 + $0x20] sm:$0xff] %v543
        %560 = vst [vmem:[%s164 + $0x28] sm:$0xff] %v544
        %561 = vst [vmem:[%s164 + $0x30] sm:$0xff] %v545
        %562 = vst [vmem:[%s164 + $0x38] sm:$0xff] %v546
        %563 = vst [vmem:[%s164 + $0x40] sm:$0xff] %v547
        %564 = vst [vmem:[%s164 + $0x48] sm:$0xff] %v548
        %565 = vst [vmem:[%s164 + $0x50] sm:$0xff] %v549
        %566 = vst [vmem:[%s164 + $0x58] sm:$0xff] %v550
        %567 = vst [vmem:[%s164 + $0x60] sm:$0xff] %v551
        %568 = vst [vmem:[%s164 + $0x68] sm:$0xff] %v552
        %569 = vst [vmem:[%s164 + $0x70] sm:$0xff] %v553
        %570 = vst [vmem:[%s164 + $0x78] sm:$0xff] %v554
        %s571 = sand.u32 %s93, 1
        %s572 = scalar_lea.sflag [#allocation3], %s571
        %s573 = sand.u32 %s93, 1
        %s574 = smul.addr %s573, 128
        %s575 = scalar_lea.vmem [#allocation2], %s574
        // Predicated region
        $region33: #{_lambda_.9} parent=31 // pred_check
          %p576 = pneg %p103
        $region34: #{_lambda_.9} parent=31 // pred_check_branch
          %578 = sbr.rel (%p576) target = $region36
        $region35: #{_lambda_.9} parent=31 // pred_region
          %s579 = smul.u32 16, %s17
          %581 = vsyncadd %s572, 0
          %s582 = smul.addr %s579, 8
          %s583 = scalar_lea.hbm %s3, %s582
          %s584 = sshll.u32 %s575, 4
          %s585 = int_to_ptr.vmem [resolvable:$true] %s584
          %s586 = sshll.u32 %s583, 4
          %s587 = int_to_ptr.hbm [resolvable:$true] %s586
          %592 = dma.vmem_to_hbm [thread:$0]  %s585, 2048, %s587, %s572, 128, 128, 8
        $region36: #{_lambda_.9} parent=31 // pred_fallthru
          _
      $region32: #{_lambda_.9} parent=5 // pred_fallthru
        _
      %p593 = scmp.le.s32.totalorder 2, %s12
      // Predicated region
      $region37: #{_lambda_.9} parent=5 // pred_check
        %p594 = pneg %p593
      $region38: #{_lambda_.9} parent=5 // pred_check_branch
        %596 = sbr.rel (%p594) target = $region40
      $region39: #{_lambda_.9} parent=5 // pred_region
        %s597 = ssub.s32 %s12, 2
        // Predicated region
        $region41: #{_lambda_.9} parent=39 // pred_check
          %p598 = pneg %p109
        $region42: #{_lambda_.9} parent=39 // pred_check_branch
          %600 = sbr.rel (%p598) target = $region44
        $region43: #{_lambda_.9} parent=39 // pred_region
          %s601 = sand.u32 %s94, 1
          %s602 = scalar_lea.sflag [#allocation3], %s601
          %s603 = sand.u32 %s94, 1
          %s604 = smul.addr %s603, 128
          %s605 = scalar_lea.vmem [#allocation2], %s604
          %607 = dma.done %s602, 2048
        $region44: #{_lambda_.9} parent=39 // pred_fallthru
          _
      $region40: #{_lambda_.9} parent=5 // pred_fallthru
        _
    $region6: #{_lambda_.9} parent=1 // loop_footer
      %s16 = sadd.s32 1, %s12
    $region7: #{_lambda_.9} parent=1 // loop_footer_branch
      %11 = sbr.rel target = $region3
    $region8: #{_lambda_.9} parent=1 // loop_exit
      _
    %608 = vsyncpa [#allocation3], 1
    %s609 = scalar_lea.sflag [#allocation3], 1
    %610 = vsyncpa %s609, 1

// kernel: _lambda_.6
$region0: #{_lambda_.6}
  #allocation0 [shape = 'u32[]', space=smem, size = 0x4, offset = 0x4, fixed_abs, tag = 'smem constant byte address 0x4 - core index']
  #allocation1 [shape = 'u32[72,128]{1,0:T(1,128)}', space=vmem, size = 0x9000, scoped, tag = 'internal scratch']
  %s0 = inlined_call_operand.vmem [shape: f32[256,128], index: 0, kind: input, shape index: {}]
  %s1 = inlined_call_operand.vmem [shape: f32[1,128], index: 1, kind: input, shape index: {}]
  %s2 = inlined_call_operand.vmem [shape: f32[1,128], index: 2, kind: input, shape index: {}]
  %s3 = inlined_call_operand.hbm [shape: bf16[128,256], index: 3, kind: input, shape index: {}]
  %s4 = inlined_call_operand.vmem [shape: f32[1,256], index: 4, kind: input, shape index: {}]
  %s5 = inlined_call_operand.hbm [shape: bf16[256,128], index: 5, kind: input, shape index: {}]
  %s6 = inlined_call_operand.vmem [shape: f32[1,128], index: 6, kind: input, shape index: {}]
  %s7 = inlined_call_operand.vmem [shape: f32[256,128], index: 7, kind: output, shape index: {}]
  %s8 = sld [smem:[#allocation0]]
  $region69: #{_lambda_.6} parent=0
    _
  %s10 = ssub.s32 1, %s8
  %s11 = scalar_select 0, %s10, %s8
  $region1: #{_lambda_.6} parent=0
    #allocation2 [shape = 'u8[65536]{0}', space=vmem, size = 0x10000, scoped, tag = 'input window, operand 3, single buffered']
    #allocation3 [shape = 's32[2]{0}', space=sflag, size = 0x8, scoped, tag = 'scoped memory for _lambda_.6']
    #allocation4 [shape = 'u8[65536]{0}', space=vmem, size = 0x10000, scoped, tag = 'input window, operand 5, single buffered']
    #allocation5 [shape = 's32[1]{0}', space=sflag, size = 0x4, scoped, tag = 'scoped memory for _lambda_.6']
    %12 = vsyncpa [#allocation3], 0
    %13 = vsyncpa [#allocation5], 0
    loop: start=0, step=1, limit=4
    $region2: #{_lambda_.6} parent=1 // loop_pre_header
      _
    $region3: #{_lambda_.6} parent=1 // loop_header
      %s15 = sphi 0, %s19
      %p16 = scmp.ge.s32.totalorder %s15, 4
      %s25 = sphi 0, %s27
      %s28 = sphi 0, %s25
      %s29 = sphi 0, %s28
      %s45 = sphi 0, %s29
      %s49 = sphi 0, %s49
      %s51 = sphi 0, %s49
      %s52 = sphi 0, %s51
      %s66 = sphi 0, %s52
      %s70 = sphi 0, %s70
      %s72 = sphi 0, %s70
      %s73 = sphi 0, %s72
      %s87 = sphi 0, %s73
      %s91 = sphi 0, %s91
      %s93 = sphi 0, %s91
      %s94 = sphi 0, %s93
      %s108 = sphi 0, %s94
      %s112 = sphi 0, %s112
      %s114 = sphi 0, %s112
      %s115 = sphi 0, %s114
      %s129 = sphi 0, %s115
      %s133 = sphi 0, %s133
      %s135 = sphi 0, %s133
      %s136 = sphi 0, %s135
      %s150 = sphi 0, %s136
      %s154 = sphi 0, %s154
      %s156 = sphi 0, %s154
      %s157 = sphi 0, %s156
      %s171 = sphi 0, %s157
      %s177 = sphi 0, %s179
      %s180 = sphi 0, %s177
      %s181 = sphi 0, %s180
      %s197 = sphi 0, %s181
    $region4: #{_lambda_.6} parent=1 // loop_header_branch
      %18 = sbr.rel (%p16) target = $region8
    $region5: #{_lambda_.6} parent=1 // loop_body
      %s20 = ssub.s32 %s15, 1
      %s21 = ssub.s32 %s15, 2
      %s22 = sadd.s32 %s15, 1
      %s23 = ssub.s32 %s15, %s22
      %p24 = scmp.eq.s32.totalorder %s23, 0
      %s26 = sadd.s32 %s25, 1
      %s27 = scalar_select %p24, %s25, %s26
      %p30 = pneg %p24
      %p31 = scmp.eq.s32.totalorder %s15, 1
      %p32 = por %p30, %p31
      %p33 = scmp.ne.s32.totalorder %s25, %s28
      %p34 = scmp.eq.s32.totalorder %s15, 0
      %p35 = por %p33, %p34
      %p36 = scmp.ne.s32.totalorder %s25, %s28
      %p37 = scmp.eq.s32.totalorder %s20, 1
      %p38 = por %p36, %p37
      %p39 = scmp.ne.s32.totalorder %s28, %s29
      %p40 = scmp.eq.s32.totalorder %s20, 0
      %p41 = por %p39, %p40
      %p42 = scmp.ne.s32.totalorder %s28, %s29
      %p43 = scmp.eq.s32.totalorder %s21, 1
      %p44 = por %p42, %p43
      %p46 = scmp.ne.s32.totalorder %s29, %s45
      %p47 = scmp.eq.s32.totalorder %s21, 0
      %p48 = por %p46, %p47
      %s50 = sadd.s32 %s49, 1
      %p53 = scmp.eq.s32.totalorder %s15, 1
      %p54 = scmp.ne.s32.totalorder %s49, %s51
      %p55 = scmp.eq.s32.totalorder %s15, 0
      %p56 = por %p54, %p55
      %p57 = scmp.ne.s32.totalorder %s49, %s51
      %p58 = scmp.eq.s32.totalorder %s20, 1
      %p59 = por %p57, %p58
      %p60 = scmp.ne.s32.totalorder %s51, %s52
      %p61 = scmp.eq.s32.totalorder %s20, 0
      %p62 = por %p60, %p61
      %p63 = scmp.ne.s32.totalorder %s51, %s52
      %p64 = scmp.eq.s32.totalorder %s21, 1
      %p65 = por %p63, %p64
      %p67 = scmp.ne.s32.totalorder %s52, %s66
      %p68 = scmp.eq.s32.totalorder %s21, 0
      %p69 = por %p67, %p68
      %s71 = sadd.s32 %s70, 1
      %p74 = scmp.eq.s32.totalorder %s15, 1
      %p75 = scmp.ne.s32.totalorder %s70, %s72
      %p76 = scmp.eq.s32.totalorder %s15, 0
      %p77 = por %p75, %p76
      %p78 = scmp.ne.s32.totalorder %s70, %s72
      %p79 = scmp.eq.s32.totalorder %s20, 1
      %p80 = por %p78, %p79
      %p81 = scmp.ne.s32.totalorder %s72, %s73
      %p82 = scmp.eq.s32.totalorder %s20, 0
      %p83 = por %p81, %p82
      %p84 = scmp.ne.s32.totalorder %s72, %s73
      %p85 = scmp.eq.s32.totalorder %s21, 1
      %p86 = por %p84, %p85
      %p88 = scmp.ne.s32.totalorder %s73, %s87
      %p89 = scmp.eq.s32.totalorder %s21, 0
      %p90 = por %p88, %p89
      %s92 = sadd.s32 %s91, 1
      %p95 = scmp.eq.s32.totalorder %s15, 1
      %p96 = scmp.ne.s32.totalorder %s91, %s93
      %p97 = scmp.eq.s32.totalorder %s15, 0
      %p98 = por %p96, %p97
      %p99 = scmp.ne.s32.totalorder %s91, %s93
      %p100 = scmp.eq.s32.totalorder %s20, 1
      %p101 = por %p99, %p100
      %p102 = scmp.ne.s32.totalorder %s93, %s94
      %p103 = scmp.eq.s32.totalorder %s20, 0
      %p104 = por %p102, %p103
      %p105 = scmp.ne.s32.totalorder %s93, %s94
      %p106 = scmp.eq.s32.totalorder %s21, 1
      %p107 = por %p105, %p106
      %p109 = scmp.ne.s32.totalorder %s94, %s108
      %p110 = scmp.eq.s32.totalorder %s21, 0
      %p111 = por %p109, %p110
      %s113 = sadd.s32 %s112, 1
      %p116 = scmp.eq.s32.totalorder %s15, 1
      %p117 = scmp.ne.s32.totalorder %s112, %s114
      %p118 = scmp.eq.s32.totalorder %s15, 0
      %p119 = por %p117, %p118
      %p120 = scmp.ne.s32.totalorder %s112, %s114
      %p121 = scmp.eq.s32.totalorder %s20, 1
      %p122 = por %p120, %p121
      %p123 = scmp.ne.s32.totalorder %s114, %s115
      %p124 = scmp.eq.s32.totalorder %s20, 0
      %p125 = por %p123, %p124
      %p126 = scmp.ne.s32.totalorder %s114, %s115
      %p127 = scmp.eq.s32.totalorder %s21, 1
      %p128 = por %p126, %p127
      %p130 = scmp.ne.s32.totalorder %s115, %s129
      %p131 = scmp.eq.s32.totalorder %s21, 0
      %p132 = por %p130, %p131
      %s134 = sadd.s32 %s133, 1
      %p137 = scmp.eq.s32.totalorder %s15, 1
      %p138 = scmp.ne.s32.totalorder %s133, %s135
      %p139 = scmp.eq.s32.totalorder %s15, 0
      %p140 = por %p138, %p139
      %p141 = scmp.ne.s32.totalorder %s133, %s135
      %p142 = scmp.eq.s32.totalorder %s20, 1
      %p143 = por %p141, %p142
      %p144 = scmp.ne.s32.totalorder %s135, %s136
      %p145 = scmp.eq.s32.totalorder %s20, 0
      %p146 = por %p144, %p145
      %p147 = scmp.ne.s32.totalorder %s135, %s136
      %p148 = scmp.eq.s32.totalorder %s21, 1
      %p149 = por %p147, %p148
      %p151 = scmp.ne.s32.totalorder %s136, %s150
      %p152 = scmp.eq.s32.totalorder %s21, 0
      %p153 = por %p151, %p152
      %s155 = sadd.s32 %s154, 1
      %p158 = scmp.eq.s32.totalorder %s15, 1
      %p159 = scmp.ne.s32.totalorder %s154, %s156
      %p160 = scmp.eq.s32.totalorder %s15, 0
      %p161 = por %p159, %p160
      %p162 = scmp.ne.s32.totalorder %s154, %s156
      %p163 = scmp.eq.s32.totalorder %s20, 1
      %p164 = por %p162, %p163
      %p165 = scmp.ne.s32.totalorder %s156, %s157
      %p166 = scmp.eq.s32.totalorder %s20, 0
      %p167 = por %p165, %p166
      %p168 = scmp.ne.s32.totalorder %s156, %s157
      %p169 = scmp.eq.s32.totalorder %s21, 1
      %p170 = por %p168, %p169
      %p172 = scmp.ne.s32.totalorder %s157, %s171
      %p173 = scmp.eq.s32.totalorder %s21, 0
      %p174 = por %p172, %p173
      %s175 = ssub.s32 %s15, %s22
      %p176 = scmp.eq.s32.totalorder %s175, 0
      %s178 = sadd.s32 %s177, 1
      %s179 = scalar_select %p176, %s177, %s178
      %p182 = pneg %p176
      %p183 = scmp.eq.s32.totalorder %s15, 1
      %p184 = por %p182, %p183
      %p185 = scmp.ne.s32.totalorder %s177, %s180
      %p186 = scmp.eq.s32.totalorder %s15, 0
      %p187 = por %p185, %p186
      %p188 = scmp.ne.s32.totalorder %s177, %s180
      %p189 = scmp.eq.s32.totalorder %s20, 1
      %p190 = por %p188, %p189
      %p191 = scmp.ne.s32.totalorder %s180, %s181
      %p192 = scmp.eq.s32.totalorder %s20, 0
      %p193 = por %p191, %p192
      %p194 = scmp.ne.s32.totalorder %s180, %s181
      %p195 = scmp.eq.s32.totalorder %s21, 1
      %p196 = por %p194, %p195
      %p198 = scmp.ne.s32.totalorder %s181, %s197
      %p199 = scmp.eq.s32.totalorder %s21, 0
      %p200 = por %p198, %p199
      %p201 = scmp.le.s32.totalorder 1, %s15
      %p202 = scmp.lt.s32.totalorder %s15, 3
      %p203 = pnand %p201, %p202
      %p204 = pneg %p203
      // Predicated region
      $region9: #{_lambda_.6} parent=5 // pred_check
        _
      $region10: #{_lambda_.6} parent=5 // pred_check_branch
        %206 = sbr.rel (%p203) target = $region12
      $region11: #{_lambda_.6} parent=5 // pred_region
        %s207 = ssub.s32 %s15, 1
        // Predicated region
        $region13: #{_lambda_.6} parent=11 // pred_check
          %p208 = pneg %p62
        $region14: #{_lambda_.6} parent=11 // pred_check_branch
          %210 = sbr.rel (%p208) target = $region16
        $region15: #{_lambda_.6} parent=11 // pred_region
          _
        $region16: #{_lambda_.6} parent=11 // pred_fallthru
          _
        // Predicated region
        $region17: #{_lambda_.6} parent=11 // pred_check
          %p211 = pneg %p83
        $region18: #{_lambda_.6} parent=11 // pred_check_branch
          %213 = sbr.rel (%p211) target = $region20
        $region19: #{_lambda_.6} parent=11 // pred_region
          _
        $region20: #{_lambda_.6} parent=11 // pred_fallthru
          _
        // Predicated region
        $region21: #{_lambda_.6} parent=11 // pred_check
          %p214 = pneg %p104
        $region22: #{_lambda_.6} parent=11 // pred_check_branch
          %216 = sbr.rel (%p214) target = $region24
        $region23: #{_lambda_.6} parent=11 // pred_region
          %218 = vsyncadd [#allocation3], 0
          %s219 = sshll.u32 %s3, 4
          %s220 = int_to_ptr.hbm [resolvable:$true] %s219
          %s221 = sshll.u32 [#allocation2], 4
          %s222 = int_to_ptr.vmem [resolvable:$true] %s221
          %227 = dma.hbm_to_vmem [thread:$0]  %s220, 2048, %s222, [#allocation3], 128, 128, 8
        $region24: #{_lambda_.6} parent=11 // pred_fallthru
          _
        // Predicated region
        $region25: #{_lambda_.6} parent=11 // pred_check
          %p228 = pneg %p125
        $region26: #{_lambda_.6} parent=11 // pred_check_branch
          %230 = sbr.rel (%p228) target = $region28
        $region27: #{_lambda_.6} parent=11 // pred_region
          _
        $region28: #{_lambda_.6} parent=11 // pred_fallthru
          _
        // Predicated region
        $region29: #{_lambda_.6} parent=11 // pred_check
          %p231 = pneg %p146
        $region30: #{_lambda_.6} parent=11 // pred_check_branch
          %233 = sbr.rel (%p231) target = $region32
        $region31: #{_lambda_.6} parent=11 // pred_region
          %235 = vsyncadd [#allocation5], 0
          %s236 = sshll.u32 %s5, 4
          %s237 = int_to_ptr.hbm [resolvable:$true] %s236
          %s238 = sshll.u32 [#allocation4], 4
          %s239 = int_to_ptr.vmem [resolvable:$true] %s238
          %244 = dma.hbm_to_vmem [thread:$0]  %s237, 2048, %s239, [#allocation5], 64, 64, 4
        $region32: #{_lambda_.6} parent=11 // pred_fallthru
          _
        // Predicated region
        $region33: #{_lambda_.6} parent=11 // pred_check
          %p245 = pneg %p167
        $region34: #{_lambda_.6} parent=11 // pred_check_branch
          %247 = sbr.rel (%p245) target = $region36
        $region35: #{_lambda_.6} parent=11 // pred_region
          _
        $region36: #{_lambda_.6} parent=11 // pred_fallthru
          _
      $region12: #{_lambda_.6} parent=5 // pred_fallthru
        _
      %p248 = scmp.lt.s32.totalorder %s15, 2
      // Predicated region
      $region37: #{_lambda_.6} parent=5 // pred_check
        %p249 = pneg %p248
      $region38: #{_lambda_.6} parent=5 // pred_check_branch
        %251 = sbr.rel (%p249) target = $region40
      $region39: #{_lambda_.6} parent=5 // pred_region
        // Predicated region
        $region41: #{_lambda_.6} parent=39 // pred_check
          %p252 = pneg %p35
        $region42: #{_lambda_.6} parent=39 // pred_check_branch
          %254 = sbr.rel (%p252) target = $region44
        $region43: #{_lambda_.6} parent=39 // pred_region
          %s255 = smul.u32 16, %s15
          %p256 = scmp.lt.s32.totalorder %s255, 31
          %s257 = scalar_select %p256, %s255, 31
          %s258 = smul.addr %s257, 8
          %s259 = scalar_lea.vmem %s0, %s258
          %s260 = smul.u32 16, %s15
        $region44: #{_lambda_.6} parent=39 // pred_fallthru
          _
      $region40: #{_lambda_.6} parent=5 // pred_fallthru
        _
      %p261 = scmp.le.s32.totalorder 1, %s15
      %p262 = scmp.lt.s32.totalorder %s15, 3
      %p263 = pnand %p261, %p262
      %p264 = pneg %p263
      // Predicated region
      $region45: #{_lambda_.6} parent=5 // pred_check
        _
      $region46: #{_lambda_.6} parent=5 // pred_check_branch
        %266 = sbr.rel (%p263) target = $region48
      $region47: #{_lambda_.6} parent=5 // pred_region
        %s267 = ssub.s32 %s15, 1
        // Predicated region
        $region49: #{_lambda_.6} parent=47 // pred_check
          %p268 = pneg %p104
        $region50: #{_lambda_.6} parent=47 // pred_check_branch
          %270 = sbr.rel (%p268) target = $region52
        $region51: #{_lambda_.6} parent=47 // pred_region
          %272 = dma.done [#allocation3], 2048
        $region52: #{_lambda_.6} parent=47 // pred_fallthru
          _
        // Predicated region
        $region53: #{_lambda_.6} parent=47 // pred_check
          %p273 = pneg %p146
        $region54: #{_lambda_.6} parent=47 // pred_check_branch
          %275 = sbr.rel (%p273) target = $region56
        $region55: #{_lambda_.6} parent=47 // pred_region
          %277 = dma.done [#allocation5], 2048
        $region56: #{_lambda_.6} parent=47 // pred_fallthru
          _
        %s278 = smul.u32 16, %s20
        %p279 = scmp.lt.s32.totalorder %s278, 31
        %s280 = scalar_select %p279, %s278, 31
        %s281 = smul.addr %s280, 8
        %s282 = scalar_lea.vmem %s0, %s281
        %p283 = pneg %p41
        %p284 = pneg %p38
        %p285 = pneg %p62
        %p286 = pneg %p59
        %p287 = pneg %p83
        %p288 = pneg %p80
        %p289 = pneg %p104
        %p290 = pneg %p101
        %p291 = pneg %p125
        %p292 = pneg %p122
        %p293 = pneg %p146
        %p294 = pneg %p143
        %p295 = pneg %p167
        %p296 = pneg %p164
        %p297 = pneg %p193
        %p298 = pneg %p190
        %s299 = smul.u32 16, %s20
        %p300 = scmp.lt.s32.totalorder %s299, 31
        %s301 = scalar_select %p300, %s299, 31
        %s302 = smul.addr %s301, 8
        %s303 = scalar_lea.vmem %s7, %s302
        %s304 = smul.u32 16, %s20
        %p305 = scmp.lt.s32.totalorder %s304, 31
        %s306 = scalar_select %p305, %s304, 31
        %s307 = smul.addr %s306, 8
        %s308 = scalar_lea.vmem %s0, %s307
        %s309 = smul.u32 16, %s20
        %s310 = smul.u32 16, %s20
        %p311 = scmp.lt.s32.totalorder %s310, 31
        %s312 = scalar_select %p311, %s310, 31
        %s313 = smul.addr %s312, 8
        %s314 = scalar_lea.vmem %s7, %s313
        %s315 = smul.u32 16, %s20
        %v316 = vld [vmem:[%s308] sm:$0xff]
        %v317 = vld [vmem:[%s308 + $0x8] sm:$0xff]
        %v318 = vld [vmem:[%s308 + $0x10] sm:$0xff]
        %v319 = vld [vmem:[%s308 + $0x18] sm:$0xff]
        %v320 = vld [vmem:[%s308 + $0x20] sm:$0xff]
        %v321 = vld [vmem:[%s308 + $0x28] sm:$0xff]
        %v322 = vld [vmem:[%s308 + $0x30] sm:$0xff]
        %v323 = vld [vmem:[%s308 + $0x38] sm:$0xff]
        %v324 = vld [vmem:[%s308 + $0x40] sm:$0xff]
        %v325 = vld [vmem:[%s308 + $0x48] sm:$0xff]
        %v326 = vld [vmem:[%s308 + $0x50] sm:$0xff]
        %v327 = vld [vmem:[%s308 + $0x58] sm:$0xff]
        %v328 = vld [vmem:[%s308 + $0x60] sm:$0xff]
        %v329 = vld [vmem:[%s308 + $0x68] sm:$0xff]
        %v330 = vld [vmem:[%s308 + $0x70] sm:$0xff]
        %v331 = vld [vmem:[%s308 + $0x78] sm:$0xff]
        %v332 = vld [vmem:[%s1] sm:$0x1]
        %v333 = vld [vmem:[%s2] sm:$0x1]
        %334 = vadd.xlane.f32.xlu0 %v316
        %v335 = vpop.xlane.xlu0 %334
        %336 = vadd.xlane.f32.xlu0 %v317
        %v337 = vpop.xlane.xlu0 %336
        %338 = vadd.xlane.f32.xlu0 %v318
        %v339 = vpop.xlane.xlu0 %338
        %340 = vadd.xlane.f32.xlu0 %v319
        %v341 = vpop.xlane.xlu0 %340
        %342 = vadd.xlane.f32.xlu0 %v320
        %v343 = vpop.xlane.xlu0 %342
        %344 = vadd.xlane.f32.xlu0 %v321
        %v345 = vpop.xlane.xlu0 %344
        %346 = vadd.xlane.f32.xlu0 %v322
        %v347 = vpop.xlane.xlu0 %346
        %348 = vadd.xlane.f32.xlu0 %v323
        %v349 = vpop.xlane.xlu0 %348
        %350 = vadd.xlane.f32.xlu0 %v324
        %v351 = vpop.xlane.xlu0 %350
        %352 = vadd.xlane.f32.xlu0 %v325
        %v353 = vpop.xlane.xlu0 %352
        %354 = vadd.xlane.f32.xlu0 %v326
        %v355 = vpop.xlane.xlu0 %354
        %356 = vadd.xlane.f32.xlu0 %v327
        %v357 = vpop.xlane.xlu0 %356
        %358 = vadd.xlane.f32.xlu0 %v328
        %v359 = vpop.xlane.xlu0 %358
        %360 = vadd.xlane.f32.xlu0 %v329
        %v361 = vpop.xlane.xlu0 %360
        %362 = vadd.xlane.f32.xlu0 %v330
        %v363 = vpop.xlane.xlu0 %362
        %364 = vadd.xlane.f32.xlu0 %v331
        %v365 = vpop.xlane.xlu0 %364
        %v366 = vrcp.pop 128.0
        %v367 = vmul.f32 128.0, %v366
        %v368 = vsub.f32 1.0, %v367
        %v369 = vmul.f32 %v366, %v368
        %v370 = vadd.f32 %v366, %v369
        %vm371 = vweird.f32 %v366
        %v372 = vsel %vm371, %v366, %v370
        %v373 = vmul.f32 %v335, %v372
        %v374 = vmul.f32 %v337, %v372
        %v375 = vmul.f32 %v339, %v372
        %v376 = vmul.f32 %v341, %v372
        %v377 = vmul.f32 %v343, %v372
        %v378 = vmul.f32 %v345, %v372
        %v379 = vmul.f32 %v347, %v372
        %v380 = vmul.f32 %v349, %v372
        %v381 = vmul.f32 %v351, %v372
        %v382 = vmul.f32 %v353, %v372
        %v383 = vmul.f32 %v355, %v372
        %v384 = vmul.f32 %v357, %v372
        %v385 = vmul.f32 %v359, %v372
        %v386 = vmul.f32 %v361, %v372
        %v387 = vmul.f32 %v363, %v372
        %v388 = vmul.f32 %v365, %v372
        %v389 = vsub.f32 %v316, %v373
        %v390 = vsub.f32 %v317, %v374
        %v391 = vsub.f32 %v318, %v375
        %v392 = vsub.f32 %v319, %v376
        %v393 = vsub.f32 %v320, %v377
        %v394 = vsub.f32 %v321, %v378
        %v395 = vsub.f32 %v322, %v379
        %v396 = vsub.f32 %v323, %v380
        %v397 = vsub.f32 %v324, %v381
        %v398 = vsub.f32 %v325, %v382
        %v399 = vsub.f32 %v326, %v383
        %v400 = vsub.f32 %v327, %v384
        %v401 = vsub.f32 %v328, %v385
        %v402 = vsub.f32 %v329, %v386
        %v403 = vsub.f32 %v330, %v387
        %v404 = vsub.f32 %v331, %v388
        %v405 = vmul.f32 %v389, %v389
        %v406 = vmul.f32 %v390, %v390
        %v407 = vmul.f32 %v391, %v391
        %v408 = vmul.f32 %v392, %v392
        %v409 = vmul.f32 %v393, %v393
        %v410 = vmul.f32 %v394, %v394
        %v411 = vmul.f32 %v395, %v395
        %v412 = vmul.f32 %v396, %v396
        %v413 = vmul.f32 %v397, %v397
        %v414 = vmul.f32 %v398, %v398
        %v415 = vmul.f32 %v399, %v399
        %v416 = vmul.f32 %v400, %v400
        %v417 = vmul.f32 %v401, %v401
        %v418 = vmul.f32 %v402, %v402
        %v419 = vmul.f32 %v403, %v403
        %v420 = vmul.f32 %v404, %v404
        %421 = vadd.xlane.f32.xlu0 %v405
        %v422 = vpop.xlane.xlu0 %421
        %423 = vadd.xlane.f32.xlu0 %v406
        %v424 = vpop.xlane.xlu0 %423
        %425 = vadd.xlane.f32.xlu0 %v407
        %v426 = vpop.xlane.xlu0 %425
        %427 = vadd.xlane.f32.xlu0 %v408
        %v428 = vpop.xlane.xlu0 %427
        %429 = vadd.xlane.f32.xlu0 %v409
        %v430 = vpop.xlane.xlu0 %429
        %431 = vadd.xlane.f32.xlu0 %v410
        %v432 = vpop.xlane.xlu0 %431
        %433 = vadd.xlane.f32.xlu0 %v411
        %v434 = vpop.xlane.xlu0 %433
        %435 = vadd.xlane.f32.xlu0 %v412
        %v436 = vpop.xlane.xlu0 %435
        %437 = vadd.xlane.f32.xlu0 %v413
        %v438 = vpop.xlane.xlu0 %437
        %439 = vadd.xlane.f32.xlu0 %v414
        %v440 = vpop.xlane.xlu0 %439
        %441 = vadd.xlane.f32.xlu0 %v415
        %v442 = vpop.xlane.xlu0 %441
        %443 = vadd.xlane.f32.xlu0 %v416
        %v444 = vpop.xlane.xlu0 %443
        %445 = vadd.xlane.f32.xlu0 %v417
        %v446 = vpop.xlane.xlu0 %445
        %447 = vadd.xlane.f32.xlu0 %v418
        %v448 = vpop.xlane.xlu0 %447
        %449 = vadd.xlane.f32.xlu0 %v419
        %v450 = vpop.xlane.xlu0 %449
        %451 = vadd.xlane.f32.xlu0 %v420
        %v452 = vpop.xlane.xlu0 %451
        %v453 = vmul.f32 %v422, %v372
        %v454 = vmul.f32 %v424, %v372
        %v455 = vmul.f32 %v426, %v372
        %v456 = vmul.f32 %v428, %v372
        %v457 = vmul.f32 %v430, %v372
        %v458 = vmul.f32 %v432, %v372
        %v459 = vmul.f32 %v434, %v372
        %v460 = vmul.f32 %v436, %v372
        %v461 = vmul.f32 %v438, %v372
        %v462 = vmul.f32 %v440, %v372
        %v463 = vmul.f32 %v442, %v372
        %v464 = vmul.f32 %v444, %v372
        %v465 = vmul.f32 %v446, %v372
        %v466 = vmul.f32 %v448, %v372
        %v467 = vmul.f32 %v450, %v372
        %v468 = vmul.f32 %v452, %v372
        %v469 = vadd.f32 %v453, 1e-06
        %v470 = vadd.f32 %v454, 1e-06
        %v471 = vadd.f32 %v455, 1e-06
        %v472 = vadd.f32 %v456, 1e-06
        %v473 = vadd.f32 %v457, 1e-06
        %v474 = vadd.f32 %v458, 1e-06
        %v475 = vadd.f32 %v459, 1e-06
        %v476 = vadd.f32 %v460, 1e-06
        %v477 = vadd.f32 %v461, 1e-06
        %v478 = vadd.f32 %v462, 1e-06
        %v479 = vadd.f32 %v463, 1e-06
        %v480 = vadd.f32 %v464, 1e-06
        %v481 = vadd.f32 %v465, 1e-06
        %v482 = vadd.f32 %v466, 1e-06
        %v483 = vadd.f32 %v467, 1e-06
        %v484 = vadd.f32 %v468, 1e-06
        %v485 = vrsqrt.pop %v469
        %v486 = vmul.f32 %v485, %v469
        %v487 = vmul.f32 %v486, %v485
        %v488 = vmul.f32 0.5, %v487
        %v489 = vsub.f32 1.5, %v488
        %v490 = vmul.f32 %v485, %v489
        %vm491 = vweird.f32 %v469
        %vm492 = vweird.f32 %v485
        %vm493 = vmor %vm491, %vm492
        %v494 = vsel %vm493, %v485, %v490
        %v495 = vrsqrt.pop %v470
        %v496 = vmul.f32 %v495, %v470
        %v497 = vmul.f32 %v496, %v495
        %v498 = vmul.f32 0.5, %v497
        %v499 = vsub.f32 1.5, %v498
        %v500 = vmul.f32 %v495, %v499
        %vm501 = vweird.f32 %v470
        %vm502 = vweird.f32 %v495
        %vm503 = vmor %vm501, %vm502
        %v504 = vsel %vm503, %v495, %v500
        %v505 = vrsqrt.pop %v471
        %v506 = vmul.f32 %v505, %v471
        %v507 = vmul.f32 %v506, %v505
        %v508 = vmul.f32 0.5, %v507
        %v509 = vsub.f32 1.5, %v508
        %v510 = vmul.f32 %v505, %v509
        %vm511 = vweird.f32 %v471
        %vm512 = vweird.f32 %v505
        %vm513 = vmor %vm511, %vm512
        %v514 = vsel %vm513, %v505, %v510
        %v515 = vrsqrt.pop %v472
        %v516 = vmul.f32 %v515, %v472
        %v517 = vmul.f32 %v516, %v515
        %v518 = vmul.f32 0.5, %v517
        %v519 = vsub.f32 1.5, %v518
        %v520 = vmul.f32 %v515, %v519
        %vm521 = vweird.f32 %v472
        %vm522 = vweird.f32 %v515
        %vm523 = vmor %vm521, %vm522
        %v524 = vsel %vm523, %v515, %v520
        %v525 = vrsqrt.pop %v473
        %v526 = vmul.f32 %v525, %v473
        %v527 = vmul.f32 %v526, %v525
        %v528 = vmul.f32 0.5, %v527
        %v529 = vsub.f32 1.5, %v528
        %v530 = vmul.f32 %v525, %v529
        %vm531 = vweird.f32 %v473
        %vm532 = vweird.f32 %v525
        %vm533 = vmor %vm531, %vm532
        %v534 = vsel %vm533, %v525, %v530
        %v535 = vrsqrt.pop %v474
        %v536 = vmul.f32 %v535, %v474
        %v537 = vmul.f32 %v536, %v535
        %v538 = vmul.f32 0.5, %v537
        %v539 = vsub.f32 1.5, %v538
        %v540 = vmul.f32 %v535, %v539
        %vm541 = vweird.f32 %v474
        %vm542 = vweird.f32 %v535
        %vm543 = vmor %vm541, %vm542
        %v544 = vsel %vm543, %v535, %v540
        %v545 = vrsqrt.pop %v475
        %v546 = vmul.f32 %v545, %v475
        %v547 = vmul.f32 %v546, %v545
        %v548 = vmul.f32 0.5, %v547
        %v549 = vsub.f32 1.5, %v548
        %v550 = vmul.f32 %v545, %v549
        %vm551 = vweird.f32 %v475
        %vm552 = vweird.f32 %v545
        %vm553 = vmor %vm551, %vm552
        %v554 = vsel %vm553, %v545, %v550
        %v555 = vrsqrt.pop %v476
        %v556 = vmul.f32 %v555, %v476
        %v557 = vmul.f32 %v556, %v555
        %v558 = vmul.f32 0.5, %v557
        %v559 = vsub.f32 1.5, %v558
        %v560 = vmul.f32 %v555, %v559
        %vm561 = vweird.f32 %v476
        %vm562 = vweird.f32 %v555
        %vm563 = vmor %vm561, %vm562
        %v564 = vsel %vm563, %v555, %v560
        %v565 = vrsqrt.pop %v477
        %v566 = vmul.f32 %v565, %v477
        %v567 = vmul.f32 %v566, %v565
        %v568 = vmul.f32 0.5, %v567
        %v569 = vsub.f32 1.5, %v568
        %v570 = vmul.f32 %v565, %v569
        %vm571 = vweird.f32 %v477
        %vm572 = vweird.f32 %v565
        %vm573 = vmor %vm571, %vm572
        %v574 = vsel %vm573, %v565, %v570
        %v575 = vrsqrt.pop %v478
        %v576 = vmul.f32 %v575, %v478
        %v577 = vmul.f32 %v576, %v575
        %v578 = vmul.f32 0.5, %v577
        %v579 = vsub.f32 1.5, %v578
        %v580 = vmul.f32 %v575, %v579
        %vm581 = vweird.f32 %v478
        %vm582 = vweird.f32 %v575
        %vm583 = vmor %vm581, %vm582
        %v584 = vsel %vm583, %v575, %v580
        %v585 = vrsqrt.pop %v479
        %v586 = vmul.f32 %v585, %v479
        %v587 = vmul.f32 %v586, %v585
        %v588 = vmul.f32 0.5, %v587
        %v589 = vsub.f32 1.5, %v588
        %v590 = vmul.f32 %v585, %v589
        %vm591 = vweird.f32 %v479
        %vm592 = vweird.f32 %v585
        %vm593 = vmor %vm591, %vm592
        %v594 = vsel %vm593, %v585, %v590
        %v595 = vrsqrt.pop %v480
        %v596 = vmul.f32 %v595, %v480
        %v597 = vmul.f32 %v596, %v595
        %v598 = vmul.f32 0.5, %v597
        %v599 = vsub.f32 1.5, %v598
        %v600 = vmul.f32 %v595, %v599
        %vm601 = vweird.f32 %v480
        %vm602 = vweird.f32 %v595
        %vm603 = vmor %vm601, %vm602
        %v604 = vsel %vm603, %v595, %v600
        %v605 = vrsqrt.pop %v481
        %v606 = vmul.f32 %v605, %v481
        %v607 = vmul.f32 %v606, %v605
        %v608 = vmul.f32 0.5, %v607
        %v609 = vsub.f32 1.5, %v608
        %v610 = vmul.f32 %v605, %v609
        %vm611 = vweird.f32 %v481
        %vm612 = vweird.f32 %v605
        %vm613 = vmor %vm611, %vm612
        %v614 = vsel %vm613, %v605, %v610
        %v615 = vrsqrt.pop %v482
        %v616 = vmul.f32 %v615, %v482
        %v617 = vmul.f32 %v616, %v615
        %v618 = vmul.f32 0.5, %v617
        %v619 = vsub.f32 1.5, %v618
        %v620 = vmul.f32 %v615, %v619
        %vm621 = vweird.f32 %v482
        %vm622 = vweird.f32 %v615
        %vm623 = vmor %vm621, %vm622
        %v624 = vsel %vm623, %v615, %v620
        %v625 = vrsqrt.pop %v483
        %v626 = vmul.f32 %v625, %v483
        %v627 = vmul.f32 %v626, %v625
        %v628 = vmul.f32 0.5, %v627
        %v629 = vsub.f32 1.5, %v628
        %v630 = vmul.f32 %v625, %v629
        %vm631 = vweird.f32 %v483
        %vm632 = vweird.f32 %v625
        %vm633 = vmor %vm631, %vm632
        %v634 = vsel %vm633, %v625, %v630
        %v635 = vrsqrt.pop %v484
        %v636 = vmul.f32 %v635, %v484
        %v637 = vmul.f32 %v636, %v635
        %v638 = vmul.f32 0.5, %v637
        %v639 = vsub.f32 1.5, %v638
        %v640 = vmul.f32 %v635, %v639
        %vm641 = vweird.f32 %v484
        %vm642 = vweird.f32 %v635
        %vm643 = vmor %vm641, %vm642
        %v644 = vsel %vm643, %v635, %v640
        %v645 = vmul.f32 %v389, %v494
        %v646 = vmul.f32 %v390, %v504
        %v647 = vmul.f32 %v391, %v514
        %v648 = vmul.f32 %v392, %v524
        %v649 = vmul.f32 %v393, %v534
        %v650 = vmul.f32 %v394, %v544
        %v651 = vmul.f32 %v395, %v554
        %v652 = vmul.f32 %v396, %v564
        %v653 = vmul.f32 %v397, %v574
        %v654 = vmul.f32 %v398, %v584
        %v655 = vmul.f32 %v399, %v594
        %v656 = vmul.f32 %v400, %v604
        %v657 = vmul.f32 %v401, %v614
        %v658 = vmul.f32 %v402, %v624
        %v659 = vmul.f32 %v403, %v634
        %v660 = vmul.f32 %v404, %v644
        %v662 = vperm.slane %v332, 0
        %v664 = vmul.f32 %v645, %v662
        %v665 = vmul.f32 %v646, %v662
        %v666 = vmul.f32 %v647, %v662
        %v667 = vmul.f32 %v648, %v662
        %v668 = vmul.f32 %v649, %v662
        %v669 = vmul.f32 %v650, %v662
        %v670 = vmul.f32 %v651, %v662
        %v671 = vmul.f32 %v652, %v662
        %v672 = vmul.f32 %v653, %v662
        %v673 = vmul.f32 %v654, %v662
        %v674 = vmul.f32 %v655, %v662
        %v675 = vmul.f32 %v656, %v662
        %v676 = vmul.f32 %v657, %v662
        %v677 = vmul.f32 %v658, %v662
        %v678 = vmul.f32 %v659, %v662
        %v679 = vmul.f32 %v660, %v662
        %v681 = vperm.slane %v333, 0
        %v683 = vadd.f32 %v664, %v681
        %v684 = vadd.f32 %v665, %v681
        %v685 = vadd.f32 %v666, %v681
        %v686 = vadd.f32 %v667, %v681
        %v687 = vadd.f32 %v668, %v681
        %v688 = vadd.f32 %v669, %v681
        %v689 = vadd.f32 %v670, %v681
        %v690 = vadd.f32 %v671, %v681
        %v691 = vadd.f32 %v672, %v681
        %v692 = vadd.f32 %v673, %v681
        %v693 = vadd.f32 %v674, %v681
        %v694 = vadd.f32 %v675, %v681
        %v695 = vadd.f32 %v676, %v681
        %v696 = vadd.f32 %v677, %v681
        %v697 = vadd.f32 %v678, %v681
        %v698 = vadd.f32 %v679, %v681
        %v699 = vpack.c.bf16 %v684, %v683
        %v700 = vpack.c.bf16 %v686, %v685
        %v701 = vpack.c.bf16 %v688, %v687
        %v702 = vpack.c.bf16 %v690, %v689
        %v703 = vpack.c.bf16 %v692, %v691
        %v704 = vpack.c.bf16 %v694, %v693
        %v705 = vpack.c.bf16 %v696, %v695
        %v706 = vpack.c.bf16 %v698, %v697
        %v707 = vld [vmem:[#allocation2] sm:$0xff]
        %v708 = vld [vmem:[#allocation2 + $0x8] sm:$0xff]
        %v709 = vld [vmem:[#allocation2 + $0x10] sm:$0xff]
        %v710 = vld [vmem:[#allocation2 + $0x18] sm:$0xff]
        %v711 = vld [vmem:[#allocation2 + $0x20] sm:$0xff]
        %v712 = vld [vmem:[#allocation2 + $0x28] sm:$0xff]
        %v713 = vld [vmem:[#allocation2 + $0x30] sm:$0xff]
        %v714 = vld [vmem:[#allocation2 + $0x38] sm:$0xff]
        %v715 = vld [vmem:[#allocation2 + $0x40] sm:$0xff]
        %v716 = vld [vmem:[#allocation2 + $0x48] sm:$0xff]
        %v717 = vld [vmem:[#allocation2 + $0x50] sm:$0xff]
        %v718 = vld [vmem:[#allocation2 + $0x58] sm:$0xff]
        %v719 = vld [vmem:[#allocation2 + $0x60] sm:$0xff]
        %v720 = vld [vmem:[#allocation2 + $0x68] sm:$0xff]
        %v721 = vld [vmem:[#allocation2 + $0x70] sm:$0xff]
        %v722 = vld [vmem:[#allocation2 + $0x78] sm:$0xff]
        %v723 = vld [vmem:[%s4] sm:$0x3]
        %v725 = vperm.slane %v723, 0
        %v726 = vperm.slane %v723, 1
        %v745 = vunpack.c.l.b16 %v707
        %v746 = vunpack.c.h.b16 %v707
        %v747 = vunpack.c.l.b16 %v708
        %v748 = vunpack.c.h.b16 %v708
        %v749 = vunpack.c.l.b16 %v709
        %v750 = vunpack.c.h.b16 %v709
        %v751 = vunpack.c.l.b16 %v710
        %v752 = vunpack.c.h.b16 %v710
        %v753 = vunpack.c.l.b16 %v711
        %v754 = vunpack.c.h.b16 %v711
        %v755 = vunpack.c.l.b16 %v712
        %v756 = vunpack.c.h.b16 %v712
        %v757 = vunpack.c.l.b16 %v713
        %v758 = vunpack.c.h.b16 %v713
        %v759 = vunpack.c.l.b16 %v714
        %v760 = vunpack.c.h.b16 %v714
        %v761 = vunpack.c.l.b16 %v715
        %v762 = vunpack.c.h.b16 %v715
        %v763 = vunpack.c.l.b16 %v716
        %v764 = vunpack.c.h.b16 %v716
        %v765 = vunpack.c.l.b16 %v717
        %v766 = vunpack.c.h.b16 %v717
        %v767 = vunpack.c.l.b16 %v718
        %v768 = vunpack.c.h.b16 %v718
        %v769 = vunpack.c.l.b16 %v719
        %v770 = vunpack.c.h.b16 %v719
        %v771 = vunpack.c.l.b16 %v720
        %v772 = vunpack.c.h.b16 %v720
        %v773 = vunpack.c.l.b16 %v721
        %v774 = vunpack.c.h.b16 %v721
        %v775 = vunpack.c.l.b16 %v722
        %v776 = vunpack.c.h.b16 %v722
        %v777 = vpack.c.b16 %v747, %v745
        %v778 = vpack.c.b16 %v748, %v746
        %v779 = vpack.c.b16 %v751, %v749
        %v780 = vpack.c.b16 %v752, %v750
        %v781 = vpack.c.b16 %v755, %v753
        %v782 = vpack.c.b16 %v756, %v754
        %v783 = vpack.c.b16 %v759, %v757
        %v784 = vpack.c.b16 %v760, %v758
        %v785 = vpack.c.b16 %v763, %v761
        %v786 = vpack.c.b16 %v764, %v762
        %v787 = vpack.c.b16 %v767, %v765
        %v788 = vpack.c.b16 %v768, %v766
        %v789 = vpack.c.b16 %v771, %v769
        %v790 = vpack.c.b16 %v772, %v770
        %v791 = vpack.c.b16 %v775, %v773
        %v792 = vpack.c.b16 %v776, %v774
        %809 = vmatpush.bf16.msra.mxu0 %v791
        %810 = vmatpush.bf16.msra.mxu0 %v789
        %811 = vmatpush.bf16.msra.mxu0 %v787
        %812 = vmatpush.bf16.msra.mxu0 %v785
        %813 = vmatpush.bf16.msra.mxu0 %v783
        %814 = vmatpush.bf16.msra.mxu0 %v781
        %815 = vmatpush.bf16.msra.mxu0 %v779
        %816 = vmatpush.bf16.msra.mxu0 %v777
        %817 = vmatmul.bf16.gmra.mxu0 %v699
        %v818 = vpop.f32.mrf.mxu0
        %v819 = vadd.f32 %v725, %v818
        %v820 = vpop.f32.mrf.mxu0
        %v821 = vadd.f32 %v725, %v820
        %822 = vmatmul.bf16.gmra.mxu0 %v700
        %v823 = vpop.f32.mrf.mxu0
        %v824 = vadd.f32 %v725, %v823
        %v825 = vpop.f32.mrf.mxu0
        %v826 = vadd.f32 %v725, %v825
        %827 = vmatmul.bf16.gmra.mxu0 %v701
        %v828 = vpop.f32.mrf.mxu0
        %v829 = vadd.f32 %v725, %v828
        %v830 = vpop.f32.mrf.mxu0
        %v831 = vadd.f32 %v725, %v830
        %832 = vmatmul.bf16.gmra.mxu0 %v702
        %v833 = vpop.f32.mrf.mxu0
        %v834 = vadd.f32 %v725, %v833
        %v835 = vpop.f32.mrf.mxu0
        %v836 = vadd.f32 %v725, %v835
        %837 = vmatmul.bf16.gmra.mxu0 %v703
        %v838 = vpop.f32.mrf.mxu0
        %v839 = vadd.f32 %v725, %v838
        %v840 = vpop.f32.mrf.mxu0
        %v841 = vadd.f32 %v725, %v840
        %842 = vmatmul.bf16.gmra.mxu0 %v704
        %v843 = vpop.f32.mrf.mxu0
        %v844 = vadd.f32 %v725, %v843
        %v845 = vpop.f32.mrf.mxu0
        %v846 = vadd.f32 %v725, %v845
        %847 = vmatmul.bf16.gmra.mxu0 %v705
        %v848 = vpop.f32.mrf.mxu0
        %v849 = vadd.f32 %v725, %v848
        %v850 = vpop.f32.mrf.mxu0
        %v851 = vadd.f32 %v725, %v850
        %852 = vmatmul.bf16.gmra.mxu0 %v706
        %v853 = vpop.f32.mrf.mxu0
        %v854 = vadd.f32 %v725, %v853
        %v855 = vpop.f32.mrf.mxu0
        %v856 = vadd.f32 %v725, %v855
        %857 = vdwg.mxu0
        %858 = vmatpush.bf16.msra.mxu0 %v792
        %859 = vmatpush.bf16.msra.mxu0 %v790
        %860 = vmatpush.bf16.msra.mxu0 %v788
        %861 = vmatpush.bf16.msra.mxu0 %v786
        %862 = vmatpush.bf16.msra.mxu0 %v784
        %863 = vmatpush.bf16.msra.mxu0 %v782
        %864 = vmatpush.bf16.msra.mxu0 %v780
        %865 = vmatpush.bf16.msra.mxu0 %v778
        %866 = vmatmul.bf16.gmra.mxu0 %v699
        %v867 = vpop.f32.mrf.mxu0
        %v868 = vadd.f32 %v726, %v867
        %v869 = vpop.f32.mrf.mxu0
        %v870 = vadd.f32 %v726, %v869
        %871 = vmatmul.bf16.gmra.mxu0 %v700
        %v872 = vpop.f32.mrf.mxu0
        %v873 = vadd.f32 %v726, %v872
        %v874 = vpop.f32.mrf.mxu0
        %v875 = vadd.f32 %v726, %v874
        %876 = vmatmul.bf16.gmra.mxu0 %v701
        %v877 = vpop.f32.mrf.mxu0
        %v878 = vadd.f32 %v726, %v877
        %v879 = vpop.f32.mrf.mxu0
        %v880 = vadd.f32 %v726, %v879
        %881 = vmatmul.bf16.gmra.mxu0 %v702
        %v882 = vpop.f32.mrf.mxu0
        %v883 = vadd.f32 %v726, %v882
        %v884 = vpop.f32.mrf.mxu0
        %v885 = vadd.f32 %v726, %v884
        %886 = vmatmul.bf16.gmra.mxu0 %v703
        %v887 = vpop.f32.mrf.mxu0
        %v888 = vadd.f32 %v726, %v887
        %v889 = vpop.f32.mrf.mxu0
        %v890 = vadd.f32 %v726, %v889
        %891 = vmatmul.bf16.gmra.mxu0 %v704
        %v892 = vpop.f32.mrf.mxu0
        %v893 = vadd.f32 %v726, %v892
        %v894 = vpop.f32.mrf.mxu0
        %v895 = vadd.f32 %v726, %v894
        %896 = vmatmul.bf16.gmra.mxu0 %v705
        %v897 = vpop.f32.mrf.mxu0
        %v898 = vadd.f32 %v726, %v897
        %v899 = vpop.f32.mrf.mxu0
        %v900 = vadd.f32 %v726, %v899
        %901 = vmatmul.bf16.gmra.mxu0 %v706
        %v902 = vpop.f32.mrf.mxu0
        %v903 = vadd.f32 %v726, %v902
        %v904 = vpop.f32.mrf.mxu0
        %v905 = vadd.f32 %v726, %v904
        %906 = vdwg.mxu0
        %v907 = vmul.f32 %v819, %v819
        %v908 = vmul.f32 %v868, %v868
        %v909 = vmul.f32 %v821, %v821
        %v910 = vmul.f32 %v870, %v870
        %v911 = vmul.f32 %v824, %v824
        %v912 = vmul.f32 %v873, %v873
        %v913 = vmul.f32 %v826, %v826
        %v914 = vmul.f32 %v875, %v875
        %v915 = vmul.f32 %v829, %v829
        %v916 = vmul.f32 %v878, %v878
        %v917 = vmul.f32 %v831, %v831
        %v918 = vmul.f32 %v880, %v880
        %v919 = vmul.f32 %v834, %v834
        %v920 = vmul.f32 %v883, %v883
        %v921 = vmul.f32 %v836, %v836
        %v922 = vmul.f32 %v885, %v885
        %v923 = vmul.f32 %v839, %v839
        %v924 = vmul.f32 %v888, %v888
        %v925 = vmul.f32 %v841, %v841
        %v926 = vmul.f32 %v890, %v890
        %v927 = vmul.f32 %v844, %v844
        %v928 = vmul.f32 %v893, %v893
        %v929 = vmul.f32 %v846, %v846
        %v930 = vmul.f32 %v895, %v895
        %v931 = vmul.f32 %v849, %v849
        %v932 = vmul.f32 %v898, %v898
        %v933 = vmul.f32 %v851, %v851
        %v934 = vmul.f32 %v900, %v900
        %v935 = vmul.f32 %v854, %v854
        %v936 = vmul.f32 %v903, %v903
        %v937 = vmul.f32 %v856, %v856
        %v938 = vmul.f32 %v905, %v905
        %v939 = vmul.f32 %v819, %v907
        %v940 = vmul.f32 %v868, %v908
        %v941 = vmul.f32 %v821, %v909
        %v942 = vmul.f32 %v870, %v910
        %v943 = vmul.f32 %v824, %v911
        %v944 = vmul.f32 %v873, %v912
        %v945 = vmul.f32 %v826, %v913
        %v946 = vmul.f32 %v875, %v914
        %v947 = vmul.f32 %v829, %v915
        %v948 = vmul.f32 %v878, %v916
        %v949 = vmul.f32 %v831, %v917
        %v950 = vmul.f32 %v880, %v918
        %v951 = vmul.f32 %v834, %v919
        %v952 = vmul.f32 %v883, %v920
        %v953 = vmul.f32 %v836, %v921
        %v954 = vmul.f32 %v885, %v922
        %v955 = vmul.f32 %v839, %v923
        %v956 = vmul.f32 %v888, %v924
        %v957 = vmul.f32 %v841, %v925
        %v958 = vmul.f32 %v890, %v926
        %v959 = vmul.f32 %v844, %v927
        %v960 = vmul.f32 %v893, %v928
        %v961 = vmul.f32 %v846, %v929
        %v962 = vmul.f32 %v895, %v930
        %v963 = vmul.f32 %v849, %v931
        %v964 = vmul.f32 %v898, %v932
        %v965 = vmul.f32 %v851, %v933
        %v966 = vmul.f32 %v900, %v934
        %v967 = vmul.f32 %v854, %v935
        %v968 = vmul.f32 %v903, %v936
        %v969 = vmul.f32 %v856, %v937
        %v970 = vmul.f32 %v905, %v938
        %v971 = vmul.f32 %v939, 0.044715
        %v972 = vmul.f32 %v940, 0.044715
        %v973 = vmul.f32 %v941, 0.044715
        %v974 = vmul.f32 %v942, 0.044715
        %v975 = vmul.f32 %v943, 0.044715
        %v976 = vmul.f32 %v944, 0.044715
        %v977 = vmul.f32 %v945, 0.044715
        %v978 = vmul.f32 %v946, 0.044715
        %v979 = vmul.f32 %v947, 0.044715
        %v980 = vmul.f32 %v948, 0.044715
        %v981 = vmul.f32 %v949, 0.044715
        %v982 = vmul.f32 %v950, 0.044715
        %v983 = vmul.f32 %v951, 0.044715
        %v984 = vmul.f32 %v952, 0.044715
        %v985 = vmul.f32 %v953, 0.044715
        %v986 = vmul.f32 %v954, 0.044715
        %v987 = vmul.f32 %v955, 0.044715
        %v988 = vmul.f32 %v956, 0.044715
        %v989 = vmul.f32 %v957, 0.044715
        %v990 = vmul.f32 %v958, 0.044715
        %v991 = vmul.f32 %v959, 0.044715
        %v992 = vmul.f32 %v960, 0.044715
        %v993 = vmul.f32 %v961, 0.044715
        %v994 = vmul.f32 %v962, 0.044715
        %v995 = vmul.f32 %v963, 0.044715
        %v996 = vmul.f32 %v964, 0.044715
        %v997 = vmul.f32 %v965, 0.044715
        %v998 = vmul.f32 %v966, 0.044715
        %v999 = vmul.f32 %v967, 0.044715
        %v1000 = vmul.f32 %v968, 0.044715
        %v1001 = vmul.f32 %v969, 0.044715
        %v1002 = vmul.f32 %v970, 0.044715
        %v1003 = vadd.f32 %v819, %v971
        %v1004 = vadd.f32 %v868, %v972
        %v1005 = vadd.f32 %v821, %v973
        %v1006 = vadd.f32 %v870, %v974
        %v1007 = vadd.f32 %v824, %v975
        %v1008 = vadd.f32 %v873, %v976
        %v1009 = vadd.f32 %v826, %v977
        %v1010 = vadd.f32 %v875, %v978
        %v1011 = vadd.f32 %v829, %v979
        %v1012 = vadd.f32 %v878, %v980
        %v1013 = vadd.f32 %v831, %v981
        %v1014 = vadd.f32 %v880, %v982
        %v1015 = vadd.f32 %v834, %v983
        %v1016 = vadd.f32 %v883, %v984
        %v1017 = vadd.f32 %v836, %v985
        %v1018 = vadd.f32 %v885, %v986
        %v1019 = vadd.f32 %v839, %v987
        %v1020 = vadd.f32 %v888, %v988
        %v1021 = vadd.f32 %v841, %v989
        %v1022 = vadd.f32 %v890, %v990
        %v1023 = vadd.f32 %v844, %v991
        %v1024 = vadd.f32 %v893, %v992
        %v1025 = vadd.f32 %v846, %v993
        %v1026 = vadd.f32 %v895, %v994
        %v1027 = vadd.f32 %v849, %v995
        %v1028 = vadd.f32 %v898, %v996
        %v1029 = vadd.f32 %v851, %v997
        %v1030 = vadd.f32 %v900, %v998
        %v1031 = vadd.f32 %v854, %v999
        %v1032 = vadd.f32 %v903, %v1000
        %v1033 = vadd.f32 %v856, %v1001
        %v1034 = vadd.f32 %v905, %v1002
        %v1035 = vmul.f32 %v1003, 0.7978846
        %v1036 = vmul.f32 %v1004, 0.7978846
        %v1037 = vmul.f32 %v1005, 0.7978846
        %v1038 = vmul.f32 %v1006, 0.7978846
        %v1039 = vmul.f32 %v1007, 0.7978846
        %v1040 = vmul.f32 %v1008, 0.7978846
        %v1041 = vmul.f32 %v1009, 0.7978846
        %v1042 = vmul.f32 %v1010, 0.7978846
        %v1043 = vmul.f32 %v1011, 0.7978846
        %v1044 = vmul.f32 %v1012, 0.7978846
        %v1045 = vmul.f32 %v1013, 0.7978846
        %v1046 = vmul.f32 %v1014, 0.7978846
        %v1047 = vmul.f32 %v1015, 0.7978846
        %v1048 = vmul.f32 %v1016, 0.7978846
        %v1049 = vmul.f32 %v1017, 0.7978846
        %v1050 = vmul.f32 %v1018, 0.7978846
        %v1051 = vmul.f32 %v1019, 0.7978846
        %v1052 = vmul.f32 %v1020, 0.7978846
        %v1053 = vmul.f32 %v1021, 0.7978846
        %v1054 = vmul.f32 %v1022, 0.7978846
        %v1055 = vmul.f32 %v1023, 0.7978846
        %v1056 = vmul.f32 %v1024, 0.7978846
        %v1057 = vmul.f32 %v1025, 0.7978846
        %v1058 = vmul.f32 %v1026, 0.7978846
        %v1059 = vmul.f32 %v1027, 0.7978846
        %v1060 = vmul.f32 %v1028, 0.7978846
        %v1061 = vmul.f32 %v1029, 0.7978846
        %v1062 = vmul.f32 %v1030, 0.7978846
        %v1063 = vmul.f32 %v1031, 0.7978846
        %v1064 = vmul.f32 %v1032, 0.7978846
        %v1065 = vmul.f32 %v1033, 0.7978846
        %v1066 = vmul.f32 %v1034, 0.7978846
        %v1067 = vtanh.pop %v1035
        %v1068 = vtanh.pop %v1036
        %v1069 = vtanh.pop %v1037
        %v1070 = vtanh.pop %v1038
        %v1071 = vtanh.pop %v1039
        %v1072 = vtanh.pop %v1040
        %v1073 = vtanh.pop %v1041
        %v1074 = vtanh.pop %v1042
        %v1075 = vtanh.pop %v1043
        %v1076 = vtanh.pop %v1044
        %v1077 = vtanh.pop %v1045
        %v1078 = vtanh.pop %v1046
        %v1079 = vtanh.pop %v1047
        %v1080 = vtanh.pop %v1048
        %v1081 = vtanh.pop %v1049
        %v1082 = vtanh.pop %v1050
        %v1083 = vtanh.pop %v1051
        %v1084 = vtanh.pop %v1052
        %v1085 = vtanh.pop %v1053
        %v1086 = vtanh.pop %v1054
        %v1087 = vtanh.pop %v1055
        %v1088 = vtanh.pop %v1056
        %v1089 = vtanh.pop %v1057
        %v1090 = vtanh.pop %v1058
        %v1091 = vtanh.pop %v1059
        %v1092 = vtanh.pop %v1060
        %v1093 = vtanh.pop %v1061
        %v1094 = vtanh.pop %v1062
        %v1095 = vtanh.pop %v1063
        %v1096 = vtanh.pop %v1064
        %v1097 = vtanh.pop %v1065
        %v1098 = vtanh.pop %v1066
        %v1099 = vadd.f32 %v1067, 1.0
        %v1100 = vadd.f32 %v1068, 1.0
        %v1101 = vadd.f32 %v1069, 1.0
        %v1102 = vadd.f32 %v1070, 1.0
        %v1103 = vadd.f32 %v1071, 1.0
        %v1104 = vadd.f32 %v1072, 1.0
        %v1105 = vadd.f32 %v1073, 1.0
        %v1106 = vadd.f32 %v1074, 1.0
        %v1107 = vadd.f32 %v1075, 1.0
        %v1108 = vadd.f32 %v1076, 1.0
        %v1109 = vadd.f32 %v1077, 1.0
        %v1110 = vadd.f32 %v1078, 1.0
        %v1111 = vadd.f32 %v1079, 1.0
        %v1112 = vadd.f32 %v1080, 1.0
        %v1113 = vadd.f32 %v1081, 1.0
        %v1114 = vadd.f32 %v1082, 1.0
        %v1115 = vadd.f32 %v1083, 1.0
        %v1116 = vadd.f32 %v1084, 1.0
        %v1117 = vadd.f32 %v1085, 1.0
        %v1118 = vadd.f32 %v1086, 1.0
        %v1119 = vadd.f32 %v1087, 1.0
        %v1120 = vadd.f32 %v1088, 1.0
        %v1121 = vadd.f32 %v1089, 1.0
        %v1122 = vadd.f32 %v1090, 1.0
        %v1123 = vadd.f32 %v1091, 1.0
        %v1124 = vadd.f32 %v1092, 1.0
        %v1125 = vadd.f32 %v1093, 1.0
        %v1126 = vadd.f32 %v1094, 1.0
        %v1127 = vadd.f32 %v1095, 1.0
        %v1128 = vadd.f32 %v1096, 1.0
        %v1129 = vadd.f32 %v1097, 1.0
        %v1130 = vadd.f32 %v1098, 1.0
        %v1131 = vmul.f32 %v1099, 0.5
        %v1132 = vmul.f32 %v1100, 0.5
        %v1133 = vmul.f32 %v1101, 0.5
        %v1134 = vmul.f32 %v1102, 0.5
        %v1135 = vmul.f32 %v1103, 0.5
        %v1136 = vmul.f32 %v1104, 0.5
        %v1137 = vmul.f32 %v1105, 0.5
        %v1138 = vmul.f32 %v1106, 0.5
        %v1139 = vmul.f32 %v1107, 0.5
        %v1140 = vmul.f32 %v1108, 0.5
        %v1141 = vmul.f32 %v1109, 0.5
        %v1142 = vmul.f32 %v1110, 0.5
        %v1143 = vmul.f32 %v1111, 0.5
        %v1144 = vmul.f32 %v1112, 0.5
        %v1145 = vmul.f32 %v1113, 0.5
        %v1146 = vmul.f32 %v1114, 0.5
        %v1147 = vmul.f32 %v1115, 0.5
        %v1148 = vmul.f32 %v1116, 0.5
        %v1149 = vmul.f32 %v1117, 0.5
        %v1150 = vmul.f32 %v1118, 0.5
        %v1151 = vmul.f32 %v1119, 0.5
        %v1152 = vmul.f32 %v1120, 0.5
        %v1153 = vmul.f32 %v1121, 0.5
        %v1154 = vmul.f32 %v1122, 0.5
        %v1155 = vmul.f32 %v1123, 0.5
        %v1156 = vmul.f32 %v1124, 0.5
        %v1157 = vmul.f32 %v1125, 0.5
        %v1158 = vmul.f32 %v1126, 0.5
        %v1159 = vmul.f32 %v1127, 0.5
        %v1160 = vmul.f32 %v1128, 0.5
        %v1161 = vmul.f32 %v1129, 0.5
        %v1162 = vmul.f32 %v1130, 0.5
        %v1163 = vmul.f32 %v819, %v1131
        %v1164 = vmul.f32 %v868, %v1132
        %v1165 = vmul.f32 %v821, %v1133
        %v1166 = vmul.f32 %v870, %v1134
        %v1167 = vmul.f32 %v824, %v1135
        %v1168 = vmul.f32 %v873, %v1136
        %v1169 = vmul.f32 %v826, %v1137
        %v1170 = vmul.f32 %v875, %v1138
        %v1171 = vmul.f32 %v829, %v1139
        %v1172 = vmul.f32 %v878, %v1140
        %v1173 = vmul.f32 %v831, %v1141
        %v1174 = vmul.f32 %v880, %v1142
        %v1175 = vmul.f32 %v834, %v1143
        %v1176 = vmul.f32 %v883, %v1144
        %v1177 = vmul.f32 %v836, %v1145
        %v1178 = vmul.f32 %v885, %v1146
        %v1179 = vmul.f32 %v839, %v1147
        %v1180 = vmul.f32 %v888, %v1148
        %v1181 = vmul.f32 %v841, %v1149
        %v1182 = vmul.f32 %v890, %v1150
        %v1183 = vmul.f32 %v844, %v1151
        %v1184 = vmul.f32 %v893, %v1152
        %v1185 = vmul.f32 %v846, %v1153
        %v1186 = vmul.f32 %v895, %v1154
        %v1187 = vmul.f32 %v849, %v1155
        %v1188 = vmul.f32 %v898, %v1156
        %v1189 = vmul.f32 %v851, %v1157
        %v1190 = vmul.f32 %v900, %v1158
        %v1191 = vmul.f32 %v854, %v1159
        %v1192 = vmul.f32 %v903, %v1160
        %v1193 = vmul.f32 %v856, %v1161
        %v1194 = vmul.f32 %v905, %v1162
        %v1195 = vpack.c.bf16 %v1165, %v1163
        %v1196 = vpack.c.bf16 %v1166, %v1164
        %v1197 = vpack.c.bf16 %v1169, %v1167
        %v1198 = vpack.c.bf16 %v1170, %v1168
        %v1199 = vpack.c.bf16 %v1173, %v1171
        %v1200 = vpack.c.bf16 %v1174, %v1172
        %v1201 = vpack.c.bf16 %v1177, %v1175
        %v1202 = vpack.c.bf16 %v1178, %v1176
        %v1203 = vpack.c.bf16 %v1181, %v1179
        %v1204 = vpack.c.bf16 %v1182, %v1180
        %v1205 = vpack.c.bf16 %v1185, %v1183
        %v1206 = vpack.c.bf16 %v1186, %v1184
        %v1207 = vpack.c.bf16 %v1189, %v1187
        %v1208 = vpack.c.bf16 %v1190, %v1188
        %v1209 = vpack.c.bf16 %v1193, %v1191
        %v1210 = vpack.c.bf16 %v1194, %v1192
        %v1211 = vld [vmem:[#allocation4] sm:$0xf]
        %v1212 = vld [vmem:[#allocation4 + $0x4] sm:$0xf]
        %v1213 = vld [vmem:[#allocation4 + $0x8] sm:$0xf]
        %v1214 = vld [vmem:[#allocation4 + $0xc] sm:$0xf]
        %v1215 = vld [vmem:[#allocation4 + $0x10] sm:$0xf]
        %v1216 = vld [vmem:[#allocation4 + $0x14] sm:$0xf]
        %v1217 = vld [vmem:[#allocation4 + $0x18] sm:$0xf]
        %v1218 = vld [vmem:[#allocation4 + $0x1c] sm:$0xf]
        %v1219 = vld [vmem:[#allocation4 + $0x20] sm:$0xf]
        %v1220 = vld [vmem:[#allocation4 + $0x24] sm:$0xf]
        %v1221 = vld [vmem:[#allocation4 + $0x28] sm:$0xf]
        %v1222 = vld [vmem:[#allocation4 + $0x2c] sm:$0xf]
        %v1223 = vld [vmem:[#allocation4 + $0x30] sm:$0xf]
        %v1224 = vld [vmem:[#allocation4 + $0x34] sm:$0xf]
        %v1225 = vld [vmem:[#allocation4 + $0x38] sm:$0xf]
        %v1226 = vld [vmem:[#allocation4 + $0x3c] sm:$0xf]
        %v1227 = vld [vmem:[#allocation4 + $0x40] sm:$0xf]
        %v1228 = vld [vmem:[#allocation4 + $0x44] sm:$0xf]
        %v1229 = vld [vmem:[#allocation4 + $0x48] sm:$0xf]
        %v1230 = vld [vmem:[#allocation4 + $0x4c] sm:$0xf]
        %v1231 = vld [vmem:[#allocation4 + $0x50] sm:$0xf]
        %v1232 = vld [vmem:[#allocation4 + $0x54] sm:$0xf]
        %v1233 = vld [vmem:[#allocation4 + $0x58] sm:$0xf]
        %v1234 = vld [vmem:[#allocation4 + $0x5c] sm:$0xf]
        %v1235 = vld [vmem:[#allocation4 + $0x60] sm:$0xf]
        %v1236 = vld [vmem:[#allocation4 + $0x64] sm:$0xf]
        %v1237 = vld [vmem:[#allocation4 + $0x68] sm:$0xf]
        %v1238 = vld [vmem:[#allocation4 + $0x6c] sm:$0xf]
        %v1239 = vld [vmem:[#allocation4 + $0x70] sm:$0xf]
        %v1240 = vld [vmem:[#allocation4 + $0x74] sm:$0xf]
        %v1241 = vld [vmem:[#allocation4 + $0x78] sm:$0xf]
        %v1242 = vld [vmem:[#allocation4 + $0x7c] sm:$0xf]
        %v1243 = vld [vmem:[%s6] sm:$0x1]
        %v1245 = vperm.slane %v1243, 0
        %v1279 = vunpack.c.l.b16 %v1211
        %v1280 = vunpack.c.l.b16 %v1212
        %v1281 = vunpack.c.l.b16 %v1213
        %v1282 = vunpack.c.l.b16 %v1214
        %v1283 = vunpack.c.l.b16 %v1215
        %v1284 = vunpack.c.l.b16 %v1216
        %v1285 = vunpack.c.l.b16 %v1217
        %v1286 = vunpack.c.l.b16 %v1218
        %v1287 = vunpack.c.l.b16 %v1219
        %v1288 = vunpack.c.l.b16 %v1220
        %v1289 = vunpack.c.l.b16 %v1221
        %v1290 = vunpack.c.l.b16 %v1222
        %v1291 = vunpack.c.l.b16 %v1223
        %v1292 = vunpack.c.l.b16 %v1224
        %v1293 = vunpack.c.l.b16 %v1225
        %v1294 = vunpack.c.l.b16 %v1226
        %v1295 = vunpack.c.l.b16 %v1227
        %v1296 = vunpack.c.l.b16 %v1228
        %v1297 = vunpack.c.l.b16 %v1229
        %v1298 = vunpack.c.l.b16 %v1230
        %v1299 = vunpack.c.l.b16 %v1231
        %v1300 = vunpack.c.l.b16 %v1232
        %v1301 = vunpack.c.l.b16 %v1233
        %v1302 = vunpack.c.l.b16 %v1234
        %v1303 = vunpack.c.l.b16 %v1235
        %v1304 = vunpack.c.l.b16 %v1236
        %v1305 = vunpack.c.l.b16 %v1237
        %v1306 = vunpack.c.l.b16 %v1238
        %v1307 = vunpack.c.l.b16 %v1239
        %v1308 = vunpack.c.l.b16 %v1240
        %v1309 = vunpack.c.l.b16 %v1241
        %v1310 = vunpack.c.l.b16 %v1242
        %v1311 = vpack.c.b16 %v1280, %v1279
        %v1312 = vpack.c.b16 %v1282, %v1281
        %v1313 = vpack.c.b16 %v1284, %v1283
        %v1314 = vpack.c.b16 %v1286, %v1285
        %v1315 = vpack.c.b16 %v1288, %v1287
        %v1316 = vpack.c.b16 %v1290, %v1289
        %v1317 = vpack.c.b16 %v1292, %v1291
        %v1318 = vpack.c.b16 %v1294, %v1293
        %v1319 = vpack.c.b16 %v1296, %v1295
        %v1320 = vpack.c.b16 %v1298, %v1297
        %v1321 = vpack.c.b16 %v1300, %v1299
        %v1322 = vpack.c.b16 %v1302, %v1301
        %v1323 = vpack.c.b16 %v1304, %v1303
        %v1324 = vpack.c.b16 %v1306, %v1305
        %v1325 = vpack.c.b16 %v1308, %v1307
        %v1326 = vpack.c.b16 %v1310, %v1309
        %1343 = vmatpush.bf16.msra.mxu0 %v1318
        %1344 = vmatpush.bf16.msra.mxu0 %v1317
        %1345 = vmatpush.bf16.msra.mxu0 %v1316
        %1346 = vmatpush.bf16.msra.mxu0 %v1315
        %1347 = vmatpush.bf16.msra.mxu0 %v1314
        %1348 = vmatpush.bf16.msra.mxu0 %v1313
        %1349 = vmatpush.bf16.msra.mxu0 %v1312
        %1350 = vmatpush.bf16.msra.mxu0 %v1311
        %1351 = vmatmul.bf16.gmra.mxu0 %v1195
        %v1352 = vpop.f32.mrf.mxu0
        %v1353 = vadd.f32 %v1245, %v1352
        %v1354 = vpop.f32.mrf.mxu0
        %v1355 = vadd.f32 %v1245, %v1354
        %1356 = vmatmul.bf16.gmra.mxu0 %v1197
        %v1357 = vpop.f32.mrf.mxu0
        %v1358 = vadd.f32 %v1245, %v1357
        %v1359 = vpop.f32.mrf.mxu0
        %v1360 = vadd.f32 %v1245, %v1359
        %1361 = vmatmul.bf16.gmra.mxu0 %v1199
        %v1362 = vpop.f32.mrf.mxu0
        %v1363 = vadd.f32 %v1245, %v1362
        %v1364 = vpop.f32.mrf.mxu0
        %v1365 = vadd.f32 %v1245, %v1364
        %1366 = vmatmul.bf16.gmra.mxu0 %v1201
        %v1367 = vpop.f32.mrf.mxu0
        %v1368 = vadd.f32 %v1245, %v1367
        %v1369 = vpop.f32.mrf.mxu0
        %v1370 = vadd.f32 %v1245, %v1369
        %1371 = vmatmul.bf16.gmra.mxu0 %v1203
        %v1372 = vpop.f32.mrf.mxu0
        %v1373 = vadd.f32 %v1245, %v1372
        %v1374 = vpop.f32.mrf.mxu0
        %v1375 = vadd.f32 %v1245, %v1374
        %1376 = vmatmul.bf16.gmra.mxu0 %v1205
        %v1377 = vpop.f32.mrf.mxu0
        %v1378 = vadd.f32 %v1245, %v1377
        %v1379 = vpop.f32.mrf.mxu0
        %v1380 = vadd.f32 %v1245, %v1379
        %1381 = vmatmul.bf16.gmra.mxu0 %v1207
        %v1382 = vpop.f32.mrf.mxu0
        %v1383 = vadd.f32 %v1245, %v1382
        %v1384 = vpop.f32.mrf.mxu0
        %v1385 = vadd.f32 %v1245, %v1384
        %1386 = vmatmul.bf16.gmra.mxu0 %v1209
        %v1387 = vpop.f32.mrf.mxu0
        %v1388 = vadd.f32 %v1245, %v1387
        %v1389 = vpop.f32.mrf.mxu0
        %v1390 = vadd.f32 %v1245, %v1389
        %1391 = vdwg.mxu0
        %1392 = vmatpush.bf16.msra.mxu0 %v1326
        %1393 = vmatpush.bf16.msra.mxu0 %v1325
        %1394 = vmatpush.bf16.msra.mxu0 %v1324
        %1395 = vmatpush.bf16.msra.mxu0 %v1323
        %1396 = vmatpush.bf16.msra.mxu0 %v1322
        %1397 = vmatpush.bf16.msra.mxu0 %v1321
        %1398 = vmatpush.bf16.msra.mxu0 %v1320
        %1399 = vmatpush.bf16.msra.mxu0 %v1319
        %1400 = vmatmul.bf16.gmra.mxu0 %v1196
        %v1401 = vpop.f32.mrf.mxu0
        %v1402 = vadd.f32 %v1353, %v1401
        %v1403 = vpop.f32.mrf.mxu0
        %v1404 = vadd.f32 %v1355, %v1403
        %1405 = vmatmul.bf16.gmra.mxu0 %v1198
        %v1406 = vpop.f32.mrf.mxu0
        %v1407 = vadd.f32 %v1358, %v1406
        %v1408 = vpop.f32.mrf.mxu0
        %v1409 = vadd.f32 %v1360, %v1408
        %1410 = vmatmul.bf16.gmra.mxu0 %v1200
        %v1411 = vpop.f32.mrf.mxu0
        %v1412 = vadd.f32 %v1363, %v1411
        %v1413 = vpop.f32.mrf.mxu0
        %v1414 = vadd.f32 %v1365, %v1413
        %1415 = vmatmul.bf16.gmra.mxu0 %v1202
        %v1416 = vpop.f32.mrf.mxu0
        %v1417 = vadd.f32 %v1368, %v1416
        %v1418 = vpop.f32.mrf.mxu0
        %v1419 = vadd.f32 %v1370, %v1418
        %1420 = vmatmul.bf16.gmra.mxu0 %v1204
        %v1421 = vpop.f32.mrf.mxu0
        %v1422 = vadd.f32 %v1373, %v1421
        %v1423 = vpop.f32.mrf.mxu0
        %v1424 = vadd.f32 %v1375, %v1423
        %1425 = vmatmul.bf16.gmra.mxu0 %v1206
        %v1426 = vpop.f32.mrf.mxu0
        %v1427 = vadd.f32 %v1378, %v1426
        %v1428 = vpop.f32.mrf.mxu0
        %v1429 = vadd.f32 %v1380, %v1428
        %1430 = vmatmul.bf16.gmra.mxu0 %v1208
        %v1431 = vpop.f32.mrf.mxu0
        %v1432 = vadd.f32 %v1383, %v1431
        %v1433 = vpop.f32.mrf.mxu0
        %v1434 = vadd.f32 %v1385, %v1433
        %1435 = vmatmul.bf16.gmra.mxu0 %v1210
        %v1436 = vpop.f32.mrf.mxu0
        %v1437 = vadd.f32 %v1388, %v1436
        %v1438 = vpop.f32.mrf.mxu0
        %v1439 = vadd.f32 %v1390, %v1438
        %1440 = vdwg.mxu0
        %v1441 = vadd.f32 %v1402, %v316
        %v1442 = vadd.f32 %v1404, %v317
        %v1443 = vadd.f32 %v1407, %v318
        %v1444 = vadd.f32 %v1409, %v319
        %v1445 = vadd.f32 %v1412, %v320
        %v1446 = vadd.f32 %v1414, %v321
        %v1447 = vadd.f32 %v1417, %v322
        %v1448 = vadd.f32 %v1419, %v323
        %v1449 = vadd.f32 %v1422, %v324
        %v1450 = vadd.f32 %v1424, %v325
        %v1451 = vadd.f32 %v1427, %v326
        %v1452 = vadd.f32 %v1429, %v327
        %v1453 = vadd.f32 %v1432, %v328
        %v1454 = vadd.f32 %v1434, %v329
        %v1455 = vadd.f32 %v1437, %v330
        %v1456 = vadd.f32 %v1439, %v331
        %1457 = vst [vmem:[%s314] sm:$0xff] %v1441
        %1458 = vst [vmem:[%s314 + $0x8] sm:$0xff] %v1442
        %1459 = vst [vmem:[%s314 + $0x10] sm:$0xff] %v1443
        %1460 = vst [vmem:[%s314 + $0x18] sm:$0xff] %v1444
        %1461 = vst [vmem:[%s314 + $0x20] sm:$0xff] %v1445
        %1462 = vst [vmem:[%s314 + $0x28] sm:$0xff] %v1446
        %1463 = vst [vmem:[%s314 + $0x30] sm:$0xff] %v1447
        %1464 = vst [vmem:[%s314 + $0x38] sm:$0xff] %v1448
        %1465 = vst [vmem:[%s314 + $0x40] sm:$0xff] %v1449
        %1466 = vst [vmem:[%s314 + $0x48] sm:$0xff] %v1450
        %1467 = vst [vmem:[%s314 + $0x50] sm:$0xff] %v1451
        %1468 = vst [vmem:[%s314 + $0x58] sm:$0xff] %v1452
        %1469 = vst [vmem:[%s314 + $0x60] sm:$0xff] %v1453
        %1470 = vst [vmem:[%s314 + $0x68] sm:$0xff] %v1454
        %1471 = vst [vmem:[%s314 + $0x70] sm:$0xff] %v1455
        %1472 = vst [vmem:[%s314 + $0x78] sm:$0xff] %v1456
        %s1473 = smul.u32 16, %s20
        %p1474 = scmp.lt.s32.totalorder %s1473, 31
        %s1475 = scalar_select %p1474, %s1473, 31
        %s1476 = smul.addr %s1475, 8
        %s1477 = scalar_lea.vmem %s7, %s1476
        // Predicated region
        $region57: #{_lambda_.6} parent=47 // pred_check
          %p1478 = pneg %p190
        $region58: #{_lambda_.6} parent=47 // pred_check_branch
          %1480 = sbr.rel (%p1478) target = $region60
        $region59: #{_lambda_.6} parent=47 // pred_region
          %s1481 = smul.u32 16, %s20
        $region60: #{_lambda_.6} parent=47 // pred_fallthru
          _
      $region48: #{_lambda_.6} parent=5 // pred_fallthru
        _
      %p1482 = scmp.le.s32.totalorder 2, %s15
      // Predicated region
      $region61: #{_lambda_.6} parent=5 // pred_check
        %p1483 = pneg %p1482
      $region62: #{_lambda_.6} parent=5 // pred_check_branch
        %1485 = sbr.rel (%p1483) target = $region64
      $region63: #{_lambda_.6} parent=5 // pred_region
        %s1486 = ssub.s32 %s15, 2
        // Predicated region
        $region65: #{_lambda_.6} parent=63 // pred_check
          %p1487 = pneg %p196
        $region66: #{_lambda_.6} parent=63 // pred_check_branch
          %1489 = sbr.rel (%p1487) target = $region68
        $region67: #{_lambda_.6} parent=63 // pred_region
          %s1490 = smul.u32 16, %s21
          %p1491 = scmp.lt.s32.totalorder %s1490, 31
          %s1492 = scalar_select %p1491, %s1490, 31
          %s1493 = smul.addr %s1492, 8
          %s1494 = scalar_lea.vmem %s7, %s1493
        $region68: #{_lambda_.6} parent=63 // pred_fallthru
          _
      $region64: #{_lambda_.6} parent=5 // pred_fallthru
        _
    $region6: #{_lambda_.6} parent=1 // loop_footer
      %s19 = sadd.s32 1, %s15
    $region7: #{_lambda_.6} parent=1 // loop_footer_branch
      %14 = sbr.rel target = $region3
    $region8: #{_lambda_.6} parent=1 // loop_exit
      _
    %1495 = vsyncpa [#allocation3], 1
    %s1496 = scalar_lea.sflag [#allocation3], 1
    %1497 = vsyncpa %s1496, 1
    %1498 = vsyncpa [#allocation5], 1

// kernel: _lambda_.7
$region0: #{_lambda_.7}
  #allocation0 [shape = 'u32[]', space=smem, size = 0x4, offset = 0x4, fixed_abs, tag = 'smem constant byte address 0x4 - core index']
  #allocation1 [shape = 'u32[72,128]{1,0:T(1,128)}', space=vmem, size = 0x9000, scoped, tag = 'internal scratch']
  %s0 = inlined_call_operand.vmem [shape: f32[256,128], index: 0, kind: input, shape index: {}]
  %s1 = inlined_call_operand.vmem [shape: f32[1,128], index: 1, kind: input, shape index: {}]
  %s2 = inlined_call_operand.vmem [shape: f32[1,128], index: 2, kind: input, shape index: {}]
  %s3 = inlined_call_operand.hbm [shape: bf16[128,384], index: 3, kind: input, shape index: {}]
  %s4 = inlined_call_operand.vmem [shape: f32[1,384], index: 4, kind: input, shape index: {}]
  %s5 = inlined_call_operand.hbm [shape: bf16[128,128], index: 5, kind: input, shape index: {}]
  %s6 = inlined_call_operand.vmem [shape: f32[1,128], index: 6, kind: input, shape index: {}]
  %s7 = inlined_call_operand.vmem [shape: f32[256,128], index: 7, kind: output, shape index: {}]
  %s8 = sld [smem:[#allocation0]]
  $region69: #{_lambda_.7} parent=0
    _
  %s10 = ssub.s32 1, %s8
  %s11 = scalar_select 0, %s10, %s8
  $region1: #{_lambda_.7} parent=0
    #allocation2 [shape = 'u8[98304]{0}', space=vmem, size = 0x18000, scoped, tag = 'input window, operand 3, single buffered']
    #allocation3 [shape = 's32[2]{0}', space=sflag, size = 0x8, scoped, tag = 'scoped memory for _lambda_.7']
    #allocation4 [shape = 'u8[32768]{0}', space=vmem, size = 0x8000, scoped, tag = 'input window, operand 5, single buffered']
    #allocation5 [shape = 's32[1]{0}', space=sflag, size = 0x4, scoped, tag = 'scoped memory for _lambda_.7']
    %12 = vsyncpa [#allocation3], 0
    %13 = vsyncpa [#allocation5], 0
    loop: start=0, step=1, limit=4
    $region2: #{_lambda_.7} parent=1 // loop_pre_header
      _
    $region3: #{_lambda_.7} parent=1 // loop_header
      %s15 = sphi 0, %s19
      %p16 = scmp.ge.s32.totalorder %s15, 4
      %s25 = sphi 0, %s27
      %s28 = sphi 0, %s25
      %s29 = sphi 0, %s28
      %s45 = sphi 0, %s29
      %s49 = sphi 0, %s49
      %s51 = sphi 0, %s49
      %s52 = sphi 0, %s51
      %s66 = sphi 0, %s52
      %s70 = sphi 0, %s70
      %s72 = sphi 0, %s70
      %s73 = sphi 0, %s72
      %s87 = sphi 0, %s73
      %s91 = sphi 0, %s91
      %s93 = sphi 0, %s91
      %s94 = sphi 0, %s93
      %s108 = sphi 0, %s94
      %s112 = sphi 0, %s112
      %s114 = sphi 0, %s112
      %s115 = sphi 0, %s114
      %s129 = sphi 0, %s115
      %s133 = sphi 0, %s133
      %s135 = sphi 0, %s133
      %s136 = sphi 0, %s135
      %s150 = sphi 0, %s136
      %s154 = sphi 0, %s154
      %s156 = sphi 0, %s154
      %s157 = sphi 0, %s156
      %s171 = sphi 0, %s157
      %s177 = sphi 0, %s179
      %s180 = sphi 0, %s177
      %s181 = sphi 0, %s180
      %s197 = sphi 0, %s181
    $region4: #{_lambda_.7} parent=1 // loop_header_branch
      %18 = sbr.rel (%p16) target = $region8
    $region5: #{_lambda_.7} parent=1 // loop_body
      %s20 = ssub.s32 %s15, 1
      %s21 = ssub.s32 %s15, 2
      %s22 = sadd.s32 %s15, 1
      %s23 = ssub.s32 %s15, %s22
      %p24 = scmp.eq.s32.totalorder %s23, 0
      %s26 = sadd.s32 %s25, 1
      %s27 = scalar_select %p24, %s25, %s26
      %p30 = pneg %p24
      %p31 = scmp.eq.s32.totalorder %s15, 1
      %p32 = por %p30, %p31
      %p33 = scmp.ne.s32.totalorder %s25, %s28
      %p34 = scmp.eq.s32.totalorder %s15, 0
      %p35 = por %p33, %p34
      %p36 = scmp.ne.s32.totalorder %s25, %s28
      %p37 = scmp.eq.s32.totalorder %s20, 1
      %p38 = por %p36, %p37
      %p39 = scmp.ne.s32.totalorder %s28, %s29
      %p40 = scmp.eq.s32.totalorder %s20, 0
      %p41 = por %p39, %p40
      %p42 = scmp.ne.s32.totalorder %s28, %s29
      %p43 = scmp.eq.s32.totalorder %s21, 1
      %p44 = por %p42, %p43
      %p46 = scmp.ne.s32.totalorder %s29, %s45
      %p47 = scmp.eq.s32.totalorder %s21, 0
      %p48 = por %p46, %p47
      %s50 = sadd.s32 %s49, 1
      %p53 = scmp.eq.s32.totalorder %s15, 1
      %p54 = scmp.ne.s32.totalorder %s49, %s51
      %p55 = scmp.eq.s32.totalorder %s15, 0
      %p56 = por %p54, %p55
      %p57 = scmp.ne.s32.totalorder %s49, %s51
      %p58 = scmp.eq.s32.totalorder %s20, 1
      %p59 = por %p57, %p58
      %p60 = scmp.ne.s32.totalorder %s51, %s52
      %p61 = scmp.eq.s32.totalorder %s20, 0
      %p62 = por %p60, %p61
      %p63 = scmp.ne.s32.totalorder %s51, %s52
      %p64 = scmp.eq.s32.totalorder %s21, 1
      %p65 = por %p63, %p64
      %p67 = scmp.ne.s32.totalorder %s52, %s66
      %p68 = scmp.eq.s32.totalorder %s21, 0
      %p69 = por %p67, %p68
      %s71 = sadd.s32 %s70, 1
      %p74 = scmp.eq.s32.totalorder %s15, 1
      %p75 = scmp.ne.s32.totalorder %s70, %s72
      %p76 = scmp.eq.s32.totalorder %s15, 0
      %p77 = por %p75, %p76
      %p78 = scmp.ne.s32.totalorder %s70, %s72
      %p79 = scmp.eq.s32.totalorder %s20, 1
      %p80 = por %p78, %p79
      %p81 = scmp.ne.s32.totalorder %s72, %s73
      %p82 = scmp.eq.s32.totalorder %s20, 0
      %p83 = por %p81, %p82
      %p84 = scmp.ne.s32.totalorder %s72, %s73
      %p85 = scmp.eq.s32.totalorder %s21, 1
      %p86 = por %p84, %p85
      %p88 = scmp.ne.s32.totalorder %s73, %s87
      %p89 = scmp.eq.s32.totalorder %s21, 0
      %p90 = por %p88, %p89
      %s92 = sadd.s32 %s91, 1
      %p95 = scmp.eq.s32.totalorder %s15, 1
      %p96 = scmp.ne.s32.totalorder %s91, %s93
      %p97 = scmp.eq.s32.totalorder %s15, 0
      %p98 = por %p96, %p97
      %p99 = scmp.ne.s32.totalorder %s91, %s93
      %p100 = scmp.eq.s32.totalorder %s20, 1
      %p101 = por %p99, %p100
      %p102 = scmp.ne.s32.totalorder %s93, %s94
      %p103 = scmp.eq.s32.totalorder %s20, 0
      %p104 = por %p102, %p103
      %p105 = scmp.ne.s32.totalorder %s93, %s94
      %p106 = scmp.eq.s32.totalorder %s21, 1
      %p107 = por %p105, %p106
      %p109 = scmp.ne.s32.totalorder %s94, %s108
      %p110 = scmp.eq.s32.totalorder %s21, 0
      %p111 = por %p109, %p110
      %s113 = sadd.s32 %s112, 1
      %p116 = scmp.eq.s32.totalorder %s15, 1
      %p117 = scmp.ne.s32.totalorder %s112, %s114
      %p118 = scmp.eq.s32.totalorder %s15, 0
      %p119 = por %p117, %p118
      %p120 = scmp.ne.s32.totalorder %s112, %s114
      %p121 = scmp.eq.s32.totalorder %s20, 1
      %p122 = por %p120, %p121
      %p123 = scmp.ne.s32.totalorder %s114, %s115
      %p124 = scmp.eq.s32.totalorder %s20, 0
      %p125 = por %p123, %p124
      %p126 = scmp.ne.s32.totalorder %s114, %s115
      %p127 = scmp.eq.s32.totalorder %s21, 1
      %p128 = por %p126, %p127
      %p130 = scmp.ne.s32.totalorder %s115, %s129
      %p131 = scmp.eq.s32.totalorder %s21, 0
      %p132 = por %p130, %p131
      %s134 = sadd.s32 %s133, 1
      %p137 = scmp.eq.s32.totalorder %s15, 1
      %p138 = scmp.ne.s32.totalorder %s133, %s135
      %p139 = scmp.eq.s32.totalorder %s15, 0
      %p140 = por %p138, %p139
      %p141 = scmp.ne.s32.totalorder %s133, %s135
      %p142 = scmp.eq.s32.totalorder %s20, 1
      %p143 = por %p141, %p142
      %p144 = scmp.ne.s32.totalorder %s135, %s136
      %p145 = scmp.eq.s32.totalorder %s20, 0
      %p146 = por %p144, %p145
      %p147 = scmp.ne.s32.totalorder %s135, %s136
      %p148 = scmp.eq.s32.totalorder %s21, 1
      %p149 = por %p147, %p148
      %p151 = scmp.ne.s32.totalorder %s136, %s150
      %p152 = scmp.eq.s32.totalorder %s21, 0
      %p153 = por %p151, %p152
      %s155 = sadd.s32 %s154, 1
      %p158 = scmp.eq.s32.totalorder %s15, 1
      %p159 = scmp.ne.s32.totalorder %s154, %s156
      %p160 = scmp.eq.s32.totalorder %s15, 0
      %p161 = por %p159, %p160
      %p162 = scmp.ne.s32.totalorder %s154, %s156
      %p163 = scmp.eq.s32.totalorder %s20, 1
      %p164 = por %p162, %p163
      %p165 = scmp.ne.s32.totalorder %s156, %s157
      %p166 = scmp.eq.s32.totalorder %s20, 0
      %p167 = por %p165, %p166
      %p168 = scmp.ne.s32.totalorder %s156, %s157
      %p169 = scmp.eq.s32.totalorder %s21, 1
      %p170 = por %p168, %p169
      %p172 = scmp.ne.s32.totalorder %s157, %s171
      %p173 = scmp.eq.s32.totalorder %s21, 0
      %p174 = por %p172, %p173
      %s175 = ssub.s32 %s15, %s22
      %p176 = scmp.eq.s32.totalorder %s175, 0
      %s178 = sadd.s32 %s177, 1
      %s179 = scalar_select %p176, %s177, %s178
      %p182 = pneg %p176
      %p183 = scmp.eq.s32.totalorder %s15, 1
      %p184 = por %p182, %p183
      %p185 = scmp.ne.s32.totalorder %s177, %s180
      %p186 = scmp.eq.s32.totalorder %s15, 0
      %p187 = por %p185, %p186
      %p188 = scmp.ne.s32.totalorder %s177, %s180
      %p189 = scmp.eq.s32.totalorder %s20, 1
      %p190 = por %p188, %p189
      %p191 = scmp.ne.s32.totalorder %s180, %s181
      %p192 = scmp.eq.s32.totalorder %s20, 0
      %p193 = por %p191, %p192
      %p194 = scmp.ne.s32.totalorder %s180, %s181
      %p195 = scmp.eq.s32.totalorder %s21, 1
      %p196 = por %p194, %p195
      %p198 = scmp.ne.s32.totalorder %s181, %s197
      %p199 = scmp.eq.s32.totalorder %s21, 0
      %p200 = por %p198, %p199
      %p201 = scmp.le.s32.totalorder 1, %s15
      %p202 = scmp.lt.s32.totalorder %s15, 3
      %p203 = pnand %p201, %p202
      %p204 = pneg %p203
      // Predicated region
      $region9: #{_lambda_.7} parent=5 // pred_check
        _
      $region10: #{_lambda_.7} parent=5 // pred_check_branch
        %206 = sbr.rel (%p203) target = $region12
      $region11: #{_lambda_.7} parent=5 // pred_region
        %s207 = ssub.s32 %s15, 1
        // Predicated region
        $region13: #{_lambda_.7} parent=11 // pred_check
          %p208 = pneg %p62
        $region14: #{_lambda_.7} parent=11 // pred_check_branch
          %210 = sbr.rel (%p208) target = $region16
        $region15: #{_lambda_.7} parent=11 // pred_region
          _
        $region16: #{_lambda_.7} parent=11 // pred_fallthru
          _
        // Predicated region
        $region17: #{_lambda_.7} parent=11 // pred_check
          %p211 = pneg %p83
        $region18: #{_lambda_.7} parent=11 // pred_check_branch
          %213 = sbr.rel (%p211) target = $region20
        $region19: #{_lambda_.7} parent=11 // pred_region
          _
        $region20: #{_lambda_.7} parent=11 // pred_fallthru
          _
        // Predicated region
        $region21: #{_lambda_.7} parent=11 // pred_check
          %p214 = pneg %p104
        $region22: #{_lambda_.7} parent=11 // pred_check_branch
          %216 = sbr.rel (%p214) target = $region24
        $region23: #{_lambda_.7} parent=11 // pred_region
          %218 = vsyncadd [#allocation3], 0
          %s219 = sshll.u32 %s3, 4
          %s220 = int_to_ptr.hbm [resolvable:$true] %s219
          %s221 = sshll.u32 [#allocation2], 4
          %s222 = int_to_ptr.vmem [resolvable:$true] %s221
          %227 = dma.hbm_to_vmem [thread:$0]  %s220, 3072, %s222, [#allocation3], 192, 192, 12
        $region24: #{_lambda_.7} parent=11 // pred_fallthru
          _
        // Predicated region
        $region25: #{_lambda_.7} parent=11 // pred_check
          %p228 = pneg %p125
        $region26: #{_lambda_.7} parent=11 // pred_check_branch
          %230 = sbr.rel (%p228) target = $region28
        $region27: #{_lambda_.7} parent=11 // pred_region
          _
        $region28: #{_lambda_.7} parent=11 // pred_fallthru
          _
        // Predicated region
        $region29: #{_lambda_.7} parent=11 // pred_check
          %p231 = pneg %p146
        $region30: #{_lambda_.7} parent=11 // pred_check_branch
          %233 = sbr.rel (%p231) target = $region32
        $region31: #{_lambda_.7} parent=11 // pred_region
          %235 = vsyncadd [#allocation5], 0
          %s236 = sshll.u32 %s5, 4
          %s237 = int_to_ptr.hbm [resolvable:$true] %s236
          %s238 = sshll.u32 [#allocation4], 4
          %s239 = int_to_ptr.vmem [resolvable:$true] %s238
          %244 = dma.hbm_to_vmem [thread:$0]  %s237, 1024, %s239, [#allocation5], 64, 64, 4
        $region32: #{_lambda_.7} parent=11 // pred_fallthru
          _
        // Predicated region
        $region33: #{_lambda_.7} parent=11 // pred_check
          %p245 = pneg %p167
        $region34: #{_lambda_.7} parent=11 // pred_check_branch
          %247 = sbr.rel (%p245) target = $region36
        $region35: #{_lambda_.7} parent=11 // pred_region
          _
        $region36: #{_lambda_.7} parent=11 // pred_fallthru
          _
      $region12: #{_lambda_.7} parent=5 // pred_fallthru
        _
      %p248 = scmp.lt.s32.totalorder %s15, 2
      // Predicated region
      $region37: #{_lambda_.7} parent=5 // pred_check
        %p249 = pneg %p248
      $region38: #{_lambda_.7} parent=5 // pred_check_branch
        %251 = sbr.rel (%p249) target = $region40
      $region39: #{_lambda_.7} parent=5 // pred_region
        // Predicated region
        $region41: #{_lambda_.7} parent=39 // pred_check
          %p252 = pneg %p35
        $region42: #{_lambda_.7} parent=39 // pred_check_branch
          %254 = sbr.rel (%p252) target = $region44
        $region43: #{_lambda_.7} parent=39 // pred_region
          %s255 = smul.u32 16, %s15
          %p256 = scmp.lt.s32.totalorder %s255, 31
          %s257 = scalar_select %p256, %s255, 31
          %s258 = smul.addr %s257, 8
          %s259 = scalar_lea.vmem %s0, %s258
          %s260 = smul.u32 16, %s15
        $region44: #{_lambda_.7} parent=39 // pred_fallthru
          _
      $region40: #{_lambda_.7} parent=5 // pred_fallthru
        _
      %p261 = scmp.le.s32.totalorder 1, %s15
      %p262 = scmp.lt.s32.totalorder %s15, 3
      %p263 = pnand %p261, %p262
      %p264 = pneg %p263
      // Predicated region
      $region45: #{_lambda_.7} parent=5 // pred_check
        _
      $region46: #{_lambda_.7} parent=5 // pred_check_branch
        %266 = sbr.rel (%p263) target = $region48
      $region47: #{_lambda_.7} parent=5 // pred_region
        %s267 = ssub.s32 %s15, 1
        // Predicated region
        $region49: #{_lambda_.7} parent=47 // pred_check
          %p268 = pneg %p104
        $region50: #{_lambda_.7} parent=47 // pred_check_branch
          %270 = sbr.rel (%p268) target = $region52
        $region51: #{_lambda_.7} parent=47 // pred_region
          %272 = dma.done [#allocation3], 3072
        $region52: #{_lambda_.7} parent=47 // pred_fallthru
          _
        // Predicated region
        $region53: #{_lambda_.7} parent=47 // pred_check
          %p273 = pneg %p146
        $region54: #{_lambda_.7} parent=47 // pred_check_branch
          %275 = sbr.rel (%p273) target = $region56
        $region55: #{_lambda_.7} parent=47 // pred_region
          %277 = dma.done [#allocation5], 1024
        $region56: #{_lambda_.7} parent=47 // pred_fallthru
          _
        %s278 = smul.u32 16, %s20
        %p279 = scmp.lt.s32.totalorder %s278, 31
        %s280 = scalar_select %p279, %s278, 31
        %s281 = smul.addr %s280, 8
        %s282 = scalar_lea.vmem %s0, %s281
        %p283 = pneg %p41
        %p284 = pneg %p38
        %p285 = pneg %p62
        %p286 = pneg %p59
        %p287 = pneg %p83
        %p288 = pneg %p80
        %p289 = pneg %p104
        %p290 = pneg %p101
        %p291 = pneg %p125
        %p292 = pneg %p122
        %p293 = pneg %p146
        %p294 = pneg %p143
        %p295 = pneg %p167
        %p296 = pneg %p164
        %p297 = pneg %p193
        %p298 = pneg %p190
        %s299 = smul.u32 16, %s20
        %p300 = scmp.lt.s32.totalorder %s299, 31
        %s301 = scalar_select %p300, %s299, 31
        %s302 = smul.addr %s301, 8
        %s303 = scalar_lea.vmem %s7, %s302
        %s304 = smul.u32 16, %s20
        %p305 = scmp.lt.s32.totalorder %s304, 31
        %s306 = scalar_select %p305, %s304, 31
        %s307 = smul.addr %s306, 8
        %s308 = scalar_lea.vmem %s0, %s307
        %s309 = smul.u32 16, %s20
        %s310 = smul.u32 16, %s20
        %p311 = scmp.lt.s32.totalorder %s310, 31
        %s312 = scalar_select %p311, %s310, 31
        %s313 = smul.addr %s312, 8
        %s314 = scalar_lea.vmem %s7, %s313
        %s315 = smul.u32 16, %s20
        %v316 = vld [vmem:[%s308] sm:$0xff]
        %v317 = vld [vmem:[%s308 + $0x8] sm:$0xff]
        %v318 = vld [vmem:[%s308 + $0x10] sm:$0xff]
        %v319 = vld [vmem:[%s308 + $0x18] sm:$0xff]
        %v320 = vld [vmem:[%s308 + $0x20] sm:$0xff]
        %v321 = vld [vmem:[%s308 + $0x28] sm:$0xff]
        %v322 = vld [vmem:[%s308 + $0x30] sm:$0xff]
        %v323 = vld [vmem:[%s308 + $0x38] sm:$0xff]
        %v324 = vld [vmem:[%s308 + $0x40] sm:$0xff]
        %v325 = vld [vmem:[%s308 + $0x48] sm:$0xff]
        %v326 = vld [vmem:[%s308 + $0x50] sm:$0xff]
        %v327 = vld [vmem:[%s308 + $0x58] sm:$0xff]
        %v328 = vld [vmem:[%s308 + $0x60] sm:$0xff]
        %v329 = vld [vmem:[%s308 + $0x68] sm:$0xff]
        %v330 = vld [vmem:[%s308 + $0x70] sm:$0xff]
        %v331 = vld [vmem:[%s308 + $0x78] sm:$0xff]
        %v332 = vld [vmem:[%s1] sm:$0x1]
        %v333 = vld [vmem:[%s2] sm:$0x1]
        %334 = vadd.xlane.f32.xlu0 %v316
        %v335 = vpop.xlane.xlu0 %334
        %336 = vadd.xlane.f32.xlu0 %v317
        %v337 = vpop.xlane.xlu0 %336
        %338 = vadd.xlane.f32.xlu0 %v318
        %v339 = vpop.xlane.xlu0 %338
        %340 = vadd.xlane.f32.xlu0 %v319
        %v341 = vpop.xlane.xlu0 %340
        %342 = vadd.xlane.f32.xlu0 %v320
        %v343 = vpop.xlane.xlu0 %342
        %344 = vadd.xlane.f32.xlu0 %v321
        %v345 = vpop.xlane.xlu0 %344
        %346 = vadd.xlane.f32.xlu0 %v322
        %v347 = vpop.xlane.xlu0 %346
        %348 = vadd.xlane.f32.xlu0 %v323
        %v349 = vpop.xlane.xlu0 %348
        %350 = vadd.xlane.f32.xlu0 %v324
        %v351 = vpop.xlane.xlu0 %350
        %352 = vadd.xlane.f32.xlu0 %v325
        %v353 = vpop.xlane.xlu0 %352
        %354 = vadd.xlane.f32.xlu0 %v326
        %v355 = vpop.xlane.xlu0 %354
        %356 = vadd.xlane.f32.xlu0 %v327
        %v357 = vpop.xlane.xlu0 %356
        %358 = vadd.xlane.f32.xlu0 %v328
        %v359 = vpop.xlane.xlu0 %358
        %360 = vadd.xlane.f32.xlu0 %v329
        %v361 = vpop.xlane.xlu0 %360
        %362 = vadd.xlane.f32.xlu0 %v330
        %v363 = vpop.xlane.xlu0 %362
        %364 = vadd.xlane.f32.xlu0 %v331
        %v365 = vpop.xlane.xlu0 %364
        %v366 = vrcp.pop 128.0
        %v367 = vmul.f32 128.0, %v366
        %v368 = vsub.f32 1.0, %v367
        %v369 = vmul.f32 %v366, %v368
        %v370 = vadd.f32 %v366, %v369
        %vm371 = vweird.f32 %v366
        %v372 = vsel %vm371, %v366, %v370
        %v373 = vmul.f32 %v335, %v372
        %v374 = vmul.f32 %v337, %v372
        %v375 = vmul.f32 %v339, %v372
        %v376 = vmul.f32 %v341, %v372
        %v377 = vmul.f32 %v343, %v372
        %v378 = vmul.f32 %v345, %v372
        %v379 = vmul.f32 %v347, %v372
        %v380 = vmul.f32 %v349, %v372
        %v381 = vmul.f32 %v351, %v372
        %v382 = vmul.f32 %v353, %v372
        %v383 = vmul.f32 %v355, %v372
        %v384 = vmul.f32 %v357, %v372
        %v385 = vmul.f32 %v359, %v372
        %v386 = vmul.f32 %v361, %v372
        %v387 = vmul.f32 %v363, %v372
        %v388 = vmul.f32 %v365, %v372
        %v389 = vsub.f32 %v316, %v373
        %v390 = vsub.f32 %v317, %v374
        %v391 = vsub.f32 %v318, %v375
        %v392 = vsub.f32 %v319, %v376
        %v393 = vsub.f32 %v320, %v377
        %v394 = vsub.f32 %v321, %v378
        %v395 = vsub.f32 %v322, %v379
        %v396 = vsub.f32 %v323, %v380
        %v397 = vsub.f32 %v324, %v381
        %v398 = vsub.f32 %v325, %v382
        %v399 = vsub.f32 %v326, %v383
        %v400 = vsub.f32 %v327, %v384
        %v401 = vsub.f32 %v328, %v385
        %v402 = vsub.f32 %v329, %v386
        %v403 = vsub.f32 %v330, %v387
        %v404 = vsub.f32 %v331, %v388
        %v405 = vmul.f32 %v389, %v389
        %v406 = vmul.f32 %v390, %v390
        %v407 = vmul.f32 %v391, %v391
        %v408 = vmul.f32 %v392, %v392
        %v409 = vmul.f32 %v393, %v393
        %v410 = vmul.f32 %v394, %v394
        %v411 = vmul.f32 %v395, %v395
        %v412 = vmul.f32 %v396, %v396
        %v413 = vmul.f32 %v397, %v397
        %v414 = vmul.f32 %v398, %v398
        %v415 = vmul.f32 %v399, %v399
        %v416 = vmul.f32 %v400, %v400
        %v417 = vmul.f32 %v401, %v401
        %v418 = vmul.f32 %v402, %v402
        %v419 = vmul.f32 %v403, %v403
        %v420 = vmul.f32 %v404, %v404
        %421 = vadd.xlane.f32.xlu0 %v405
        %v422 = vpop.xlane.xlu0 %421
        %423 = vadd.xlane.f32.xlu0 %v406
        %v424 = vpop.xlane.xlu0 %423
        %425 = vadd.xlane.f32.xlu0 %v407
        %v426 = vpop.xlane.xlu0 %425
        %427 = vadd.xlane.f32.xlu0 %v408
        %v428 = vpop.xlane.xlu0 %427
        %429 = vadd.xlane.f32.xlu0 %v409
        %v430 = vpop.xlane.xlu0 %429
        %431 = vadd.xlane.f32.xlu0 %v410
        %v432 = vpop.xlane.xlu0 %431
        %433 = vadd.xlane.f32.xlu0 %v411
        %v434 = vpop.xlane.xlu0 %433
        %435 = vadd.xlane.f32.xlu0 %v412
        %v436 = vpop.xlane.xlu0 %435
        %437 = vadd.xlane.f32.xlu0 %v413
        %v438 = vpop.xlane.xlu0 %437
        %439 = vadd.xlane.f32.xlu0 %v414
        %v440 = vpop.xlane.xlu0 %439
        %441 = vadd.xlane.f32.xlu0 %v415
        %v442 = vpop.xlane.xlu0 %441
        %443 = vadd.xlane.f32.xlu0 %v416
        %v444 = vpop.xlane.xlu0 %443
        %445 = vadd.xlane.f32.xlu0 %v417
        %v446 = vpop.xlane.xlu0 %445
        %447 = vadd.xlane.f32.xlu0 %v418
        %v448 = vpop.xlane.xlu0 %447
        %449 = vadd.xlane.f32.xlu0 %v419
        %v450 = vpop.xlane.xlu0 %449
        %451 = vadd.xlane.f32.xlu0 %v420
        %v452 = vpop.xlane.xlu0 %451
        %v453 = vmul.f32 %v422, %v372
        %v454 = vmul.f32 %v424, %v372
        %v455 = vmul.f32 %v426, %v372
        %v456 = vmul.f32 %v428, %v372
        %v457 = vmul.f32 %v430, %v372
        %v458 = vmul.f32 %v432, %v372
        %v459 = vmul.f32 %v434, %v372
        %v460 = vmul.f32 %v436, %v372
        %v461 = vmul.f32 %v438, %v372
        %v462 = vmul.f32 %v440, %v372
        %v463 = vmul.f32 %v442, %v372
        %v464 = vmul.f32 %v444, %v372
        %v465 = vmul.f32 %v446, %v372
        %v466 = vmul.f32 %v448, %v372
        %v467 = vmul.f32 %v450, %v372
        %v468 = vmul.f32 %v452, %v372
        %v469 = vadd.f32 %v453, 1e-06
        %v470 = vadd.f32 %v454, 1e-06
        %v471 = vadd.f32 %v455, 1e-06
        %v472 = vadd.f32 %v456, 1e-06
        %v473 = vadd.f32 %v457, 1e-06
        %v474 = vadd.f32 %v458, 1e-06
        %v475 = vadd.f32 %v459, 1e-06
        %v476 = vadd.f32 %v460, 1e-06
        %v477 = vadd.f32 %v461, 1e-06
        %v478 = vadd.f32 %v462, 1e-06
        %v479 = vadd.f32 %v463, 1e-06
        %v480 = vadd.f32 %v464, 1e-06
        %v481 = vadd.f32 %v465, 1e-06
        %v482 = vadd.f32 %v466, 1e-06
        %v483 = vadd.f32 %v467, 1e-06
        %v484 = vadd.f32 %v468, 1e-06
        %v485 = vrsqrt.pop %v469
        %v486 = vmul.f32 %v485, %v469
        %v487 = vmul.f32 %v486, %v485
        %v488 = vmul.f32 0.5, %v487
        %v489 = vsub.f32 1.5, %v488
        %v490 = vmul.f32 %v485, %v489
        %vm491 = vweird.f32 %v469
        %vm492 = vweird.f32 %v485
        %vm493 = vmor %vm491, %vm492
        %v494 = vsel %vm493, %v485, %v490
        %v495 = vrsqrt.pop %v470
        %v496 = vmul.f32 %v495, %v470
        %v497 = vmul.f32 %v496, %v495
        %v498 = vmul.f32 0.5, %v497
        %v499 = vsub.f32 1.5, %v498
        %v500 = vmul.f32 %v495, %v499
        %vm501 = vweird.f32 %v470
        %vm502 = vweird.f32 %v495
        %vm503 = vmor %vm501, %vm502
        %v504 = vsel %vm503, %v495, %v500
        %v505 = vrsqrt.pop %v471
        %v506 = vmul.f32 %v505, %v471
        %v507 = vmul.f32 %v506, %v505
        %v508 = vmul.f32 0.5, %v507
        %v509 = vsub.f32 1.5, %v508
        %v510 = vmul.f32 %v505, %v509
        %vm511 = vweird.f32 %v471
        %vm512 = vweird.f32 %v505
        %vm513 = vmor %vm511, %vm512
        %v514 = vsel %vm513, %v505, %v510
        %v515 = vrsqrt.pop %v472
        %v516 = vmul.f32 %v515, %v472
        %v517 = vmul.f32 %v516, %v515
        %v518 = vmul.f32 0.5, %v517
        %v519 = vsub.f32 1.5, %v518
        %v520 = vmul.f32 %v515, %v519
        %vm521 = vweird.f32 %v472
        %vm522 = vweird.f32 %v515
        %vm523 = vmor %vm521, %vm522
        %v524 = vsel %vm523, %v515, %v520
        %v525 = vrsqrt.pop %v473
        %v526 = vmul.f32 %v525, %v473
        %v527 = vmul.f32 %v526, %v525
        %v528 = vmul.f32 0.5, %v527
        %v529 = vsub.f32 1.5, %v528
        %v530 = vmul.f32 %v525, %v529
        %vm531 = vweird.f32 %v473
        %vm532 = vweird.f32 %v525
        %vm533 = vmor %vm531, %vm532
        %v534 = vsel %vm533, %v525, %v530
        %v535 = vrsqrt.pop %v474
        %v536 = vmul.f32 %v535, %v474
        %v537 = vmul.f32 %v536, %v535
        %v538 = vmul.f32 0.5, %v537
        %v539 = vsub.f32 1.5, %v538
        %v540 = vmul.f32 %v535, %v539
        %vm541 = vweird.f32 %v474
        %vm542 = vweird.f32 %v535
        %vm543 = vmor %vm541, %vm542
        %v544 = vsel %vm543, %v535, %v540
        %v545 = vrsqrt.pop %v475
        %v546 = vmul.f32 %v545, %v475
        %v547 = vmul.f32 %v546, %v545
        %v548 = vmul.f32 0.5, %v547
        %v549 = vsub.f32 1.5, %v548
        %v550 = vmul.f32 %v545, %v549
        %vm551 = vweird.f32 %v475
        %vm552 = vweird.f32 %v545
        %vm553 = vmor %vm551, %vm552
        %v554 = vsel %vm553, %v545, %v550
        %v555 = vrsqrt.pop %v476
        %v556 = vmul.f32 %v555, %v476
        %v557 = vmul.f32 %v556, %v555
        %v558 = vmul.f32 0.5, %v557
        %v559 = vsub.f32 1.5, %v558
        %v560 = vmul.f32 %v555, %v559
        %vm561 = vweird.f32 %v476
        %vm562 = vweird.f32 %v555
        %vm563 = vmor %vm561, %vm562
        %v564 = vsel %vm563, %v555, %v560
        %v565 = vrsqrt.pop %v477
        %v566 = vmul.f32 %v565, %v477
        %v567 = vmul.f32 %v566, %v565
        %v568 = vmul.f32 0.5, %v567
        %v569 = vsub.f32 1.5, %v568
        %v570 = vmul.f32 %v565, %v569
        %vm571 = vweird.f32 %v477
        %vm572 = vweird.f32 %v565
        %vm573 = vmor %vm571, %vm572
        %v574 = vsel %vm573, %v565, %v570
        %v575 = vrsqrt.pop %v478
        %v576 = vmul.f32 %v575, %v478
        %v577 = vmul.f32 %v576, %v575
        %v578 = vmul.f32 0.5, %v577
        %v579 = vsub.f32 1.5, %v578
        %v580 = vmul.f32 %v575, %v579
        %vm581 = vweird.f32 %v478
        %vm582 = vweird.f32 %v575
        %vm583 = vmor %vm581, %vm582
        %v584 = vsel %vm583, %v575, %v580
        %v585 = vrsqrt.pop %v479
        %v586 = vmul.f32 %v585, %v479
        %v587 = vmul.f32 %v586, %v585
        %v588 = vmul.f32 0.5, %v587
        %v589 = vsub.f32 1.5, %v588
        %v590 = vmul.f32 %v585, %v589
        %vm591 = vweird.f32 %v479
        %vm592 = vweird.f32 %v585
        %vm593 = vmor %vm591, %vm592
        %v594 = vsel %vm593, %v585, %v590
        %v595 = vrsqrt.pop %v480
        %v596 = vmul.f32 %v595, %v480
        %v597 = vmul.f32 %v596, %v595
        %v598 = vmul.f32 0.5, %v597
        %v599 = vsub.f32 1.5, %v598
        %v600 = vmul.f32 %v595, %v599
        %vm601 = vweird.f32 %v480
        %vm602 = vweird.f32 %v595
        %vm603 = vmor %vm601, %vm602
        %v604 = vsel %vm603, %v595, %v600
        %v605 = vrsqrt.pop %v481
        %v606 = vmul.f32 %v605, %v481
        %v607 = vmul.f32 %v606, %v605
        %v608 = vmul.f32 0.5, %v607
        %v609 = vsub.f32 1.5, %v608
        %v610 = vmul.f32 %v605, %v609
        %vm611 = vweird.f32 %v481
        %vm612 = vweird.f32 %v605
        %vm613 = vmor %vm611, %vm612
        %v614 = vsel %vm613, %v605, %v610
        %v615 = vrsqrt.pop %v482
        %v616 = vmul.f32 %v615, %v482
        %v617 = vmul.f32 %v616, %v615
        %v618 = vmul.f32 0.5, %v617
        %v619 = vsub.f32 1.5, %v618
        %v620 = vmul.f32 %v615, %v619
        %vm621 = vweird.f32 %v482
        %vm622 = vweird.f32 %v615
        %vm623 = vmor %vm621, %vm622
        %v624 = vsel %vm623, %v615, %v620
        %v625 = vrsqrt.pop %v483
        %v626 = vmul.f32 %v625, %v483
        %v627 = vmul.f32 %v626, %v625
        %v628 = vmul.f32 0.5, %v627
        %v629 = vsub.f32 1.5, %v628
        %v630 = vmul.f32 %v625, %v629
        %vm631 = vweird.f32 %v483
        %vm632 = vweird.f32 %v625
        %vm633 = vmor %vm631, %vm632
        %v634 = vsel %vm633, %v625, %v630
        %v635 = vrsqrt.pop %v484
        %v636 = vmul.f32 %v635, %v484
        %v637 = vmul.f32 %v636, %v635
        %v638 = vmul.f32 0.5, %v637
        %v639 = vsub.f32 1.5, %v638
        %v640 = vmul.f32 %v635, %v639
        %vm641 = vweird.f32 %v484
        %vm642 = vweird.f32 %v635
        %vm643 = vmor %vm641, %vm642
        %v644 = vsel %vm643, %v635, %v640
        %v645 = vmul.f32 %v389, %v494
        %v646 = vmul.f32 %v390, %v504
        %v647 = vmul.f32 %v391, %v514
        %v648 = vmul.f32 %v392, %v524
        %v649 = vmul.f32 %v393, %v534
        %v650 = vmul.f32 %v394, %v544
        %v651 = vmul.f32 %v395, %v554
        %v652 = vmul.f32 %v396, %v564
        %v653 = vmul.f32 %v397, %v574
        %v654 = vmul.f32 %v398, %v584
        %v655 = vmul.f32 %v399, %v594
        %v656 = vmul.f32 %v400, %v604
        %v657 = vmul.f32 %v401, %v614
        %v658 = vmul.f32 %v402, %v624
        %v659 = vmul.f32 %v403, %v634
        %v660 = vmul.f32 %v404, %v644
        %v662 = vperm.slane %v332, 0
        %v664 = vmul.f32 %v645, %v662
        %v665 = vmul.f32 %v646, %v662
        %v666 = vmul.f32 %v647, %v662
        %v667 = vmul.f32 %v648, %v662
        %v668 = vmul.f32 %v649, %v662
        %v669 = vmul.f32 %v650, %v662
        %v670 = vmul.f32 %v651, %v662
        %v671 = vmul.f32 %v652, %v662
        %v672 = vmul.f32 %v653, %v662
        %v673 = vmul.f32 %v654, %v662
        %v674 = vmul.f32 %v655, %v662
        %v675 = vmul.f32 %v656, %v662
        %v676 = vmul.f32 %v657, %v662
        %v677 = vmul.f32 %v658, %v662
        %v678 = vmul.f32 %v659, %v662
        %v679 = vmul.f32 %v660, %v662
        %v681 = vperm.slane %v333, 0
        %v683 = vadd.f32 %v664, %v681
        %v684 = vadd.f32 %v665, %v681
        %v685 = vadd.f32 %v666, %v681
        %v686 = vadd.f32 %v667, %v681
        %v687 = vadd.f32 %v668, %v681
        %v688 = vadd.f32 %v669, %v681
        %v689 = vadd.f32 %v670, %v681
        %v690 = vadd.f32 %v671, %v681
        %v691 = vadd.f32 %v672, %v681
        %v692 = vadd.f32 %v673, %v681
        %v693 = vadd.f32 %v674, %v681
        %v694 = vadd.f32 %v675, %v681
        %v695 = vadd.f32 %v676, %v681
        %v696 = vadd.f32 %v677, %v681
        %v697 = vadd.f32 %v678, %v681
        %v698 = vadd.f32 %v679, %v681
        %v699 = vpack.c.bf16 %v684, %v683
        %v700 = vpack.c.bf16 %v686, %v685
        %v701 = vpack.c.bf16 %v688, %v687
        %v702 = vpack.c.bf16 %v690, %v689
        %v703 = vpack.c.bf16 %v692, %v691
        %v704 = vpack.c.bf16 %v694, %v693
        %v705 = vpack.c.bf16 %v696, %v695
        %v706 = vpack.c.bf16 %v698, %v697
        %v707 = vld [vmem:[#allocation2] sm:$0xff]
        %v708 = vld [vmem:[#allocation2 + $0x8] sm:$0xf]
        %v709 = vld [vmem:[#allocation2 + $0xc] sm:$0xff]
        %v710 = vld [vmem:[#allocation2 + $0x14] sm:$0xf]
        %v711 = vld [vmem:[#allocation2 + $0x18] sm:$0xff]
        %v712 = vld [vmem:[#allocation2 + $0x20] sm:$0xf]
        %v713 = vld [vmem:[#allocation2 + $0x24] sm:$0xff]
        %v714 = vld [vmem:[#allocation2 + $0x2c] sm:$0xf]
        %v715 = vld [vmem:[#allocation2 + $0x30] sm:$0xff]
        %v716 = vld [vmem:[#allocation2 + $0x38] sm:$0xf]
        %v717 = vld [vmem:[#allocation2 + $0x3c] sm:$0xff]
        %v718 = vld [vmem:[#allocation2 + $0x44] sm:$0xf]
        %v719 = vld [vmem:[#allocation2 + $0x48] sm:$0xff]
        %v720 = vld [vmem:[#allocation2 + $0x50] sm:$0xf]
        %v721 = vld [vmem:[#allocation2 + $0x54] sm:$0xff]
        %v722 = vld [vmem:[#allocation2 + $0x5c] sm:$0xf]
        %v723 = vld [vmem:[#allocation2 + $0x60] sm:$0xff]
        %v724 = vld [vmem:[#allocation2 + $0x68] sm:$0xf]
        %v725 = vld [vmem:[#allocation2 + $0x6c] sm:$0xff]
        %v726 = vld [vmem:[#allocation2 + $0x74] sm:$0xf]
        %v727 = vld [vmem:[#allocation2 + $0x78] sm:$0xff]
        %v728 = vld [vmem:[#allocation2 + $0x80] sm:$0xf]
        %v729 = vld [vmem:[#allocation2 + $0x84] sm:$0xff]
        %v730 = vld [vmem:[#allocation2 + $0x8c] sm:$0xf]
        %v731 = vld [vmem:[#allocation2 + $0x90] sm:$0xff]
        %v732 = vld [vmem:[#allocation2 + $0x98] sm:$0xf]
        %v733 = vld [vmem:[#allocation2 + $0x9c] sm:$0xff]
        %v734 = vld [vmem:[#allocation2 + $0xa4] sm:$0xf]
        %v735 = vld [vmem:[#allocation2 + $0xa8] sm:$0xff]
        %v736 = vld [vmem:[#allocation2 + $0xb0] sm:$0xf]
        %v737 = vld [vmem:[#allocation2 + $0xb4] sm:$0xff]
        %v738 = vld [vmem:[#allocation2 + $0xbc] sm:$0xf]
        %v739 = vld [vmem:[%s4] sm:$0x7]
        %v741 = vperm.slane %v739, 0
        %v742 = vperm.slane %v739, 1
        %v743 = vperm.slane %v739, 2
        %v779 = vunpack.c.l.b16 %v707
        %v780 = vunpack.c.h.b16 %v707
        %v781 = vunpack.c.l.b16 %v708
        %v782 = vunpack.c.l.b16 %v709
        %v783 = vunpack.c.h.b16 %v709
        %v784 = vunpack.c.l.b16 %v710
        %v785 = vunpack.c.l.b16 %v711
        %v786 = vunpack.c.h.b16 %v711
        %v787 = vunpack.c.l.b16 %v712
        %v788 = vunpack.c.l.b16 %v713
        %v789 = vunpack.c.h.b16 %v713
        %v790 = vunpack.c.l.b16 %v714
        %v791 = vunpack.c.l.b16 %v715
        %v792 = vunpack.c.h.b16 %v715
        %v793 = vunpack.c.l.b16 %v716
        %v794 = vunpack.c.l.b16 %v717
        %v795 = vunpack.c.h.b16 %v717
        %v796 = vunpack.c.l.b16 %v718
        %v797 = vunpack.c.l.b16 %v719
        %v798 = vunpack.c.h.b16 %v719
        %v799 = vunpack.c.l.b16 %v720
        %v800 = vunpack.c.l.b16 %v721
        %v801 = vunpack.c.h.b16 %v721
        %v802 = vunpack.c.l.b16 %v722
        %v803 = vunpack.c.l.b16 %v723
        %v804 = vunpack.c.h.b16 %v723
        %v805 = vunpack.c.l.b16 %v724
        %v806 = vunpack.c.l.b16 %v725
        %v807 = vunpack.c.h.b16 %v725
        %v808 = vunpack.c.l.b16 %v726
        %v809 = vunpack.c.l.b16 %v727
        %v810 = vunpack.c.h.b16 %v727
        %v811 = vunpack.c.l.b16 %v728
        %v812 = vunpack.c.l.b16 %v729
        %v813 = vunpack.c.h.b16 %v729
        %v814 = vunpack.c.l.b16 %v730
        %v815 = vunpack.c.l.b16 %v731
        %v816 = vunpack.c.h.b16 %v731
        %v817 = vunpack.c.l.b16 %v732
        %v818 = vunpack.c.l.b16 %v733
        %v819 = vunpack.c.h.b16 %v733
        %v820 = vunpack.c.l.b16 %v734
        %v821 = vunpack.c.l.b16 %v735
        %v822 = vunpack.c.h.b16 %v735
        %v823 = vunpack.c.l.b16 %v736
        %v824 = vunpack.c.l.b16 %v737
        %v825 = vunpack.c.h.b16 %v737
        %v826 = vunpack.c.l.b16 %v738
        %v827 = vpack.c.b16 %v782, %v779
        %v828 = vpack.c.b16 %v783, %v780
        %v829 = vpack.c.b16 %v784, %v781
        %v830 = vpack.c.b16 %v788, %v785
        %v831 = vpack.c.b16 %v789, %v786
        %v832 = vpack.c.b16 %v790, %v787
        %v833 = vpack.c.b16 %v794, %v791
        %v834 = vpack.c.b16 %v795, %v792
        %v835 = vpack.c.b16 %v796, %v793
        %v836 = vpack.c.b16 %v800, %v797
        %v837 = vpack.c.b16 %v801, %v798
        %v838 = vpack.c.b16 %v802, %v799
        %v839 = vpack.c.b16 %v806, %v803
        %v840 = vpack.c.b16 %v807, %v804
        %v841 = vpack.c.b16 %v808, %v805
        %v842 = vpack.c.b16 %v812, %v809
        %v843 = vpack.c.b16 %v813, %v810
        %v844 = vpack.c.b16 %v814, %v811
        %v845 = vpack.c.b16 %v818, %v815
        %v846 = vpack.c.b16 %v819, %v816
        %v847 = vpack.c.b16 %v820, %v817
        %v848 = vpack.c.b16 %v824, %v821
        %v849 = vpack.c.b16 %v825, %v822
        %v850 = vpack.c.b16 %v826, %v823
        %875 = vmatpush.bf16.msra.mxu0 %v848
        %876 = vmatpush.bf16.msra.mxu0 %v845
        %877 = vmatpush.bf16.msra.mxu0 %v842
        %878 = vmatpush.bf16.msra.mxu0 %v839
        %879 = vmatpush.bf16.msra.mxu0 %v836
        %880 = vmatpush.bf16.msra.mxu0 %v833
        %881 = vmatpush.bf16.msra.mxu0 %v830
        %882 = vmatpush.bf16.msra.mxu0 %v827
        %883 = vmatmul.bf16.gmra.mxu0 %v699
        %v884 = vpop.f32.mrf.mxu0
        %v885 = vadd.f32 %v741, %v884
        %v886 = vpop.f32.mrf.mxu0
        %v887 = vadd.f32 %v741, %v886
        %888 = vmatmul.bf16.gmra.mxu0 %v700
        %v889 = vpop.f32.mrf.mxu0
        %v890 = vadd.f32 %v741, %v889
        %v891 = vpop.f32.mrf.mxu0
        %v892 = vadd.f32 %v741, %v891
        %893 = vmatmul.bf16.gmra.mxu0 %v701
        %v894 = vpop.f32.mrf.mxu0
        %v895 = vadd.f32 %v741, %v894
        %v896 = vpop.f32.mrf.mxu0
        %v897 = vadd.f32 %v741, %v896
        %898 = vmatmul.bf16.gmra.mxu0 %v702
        %v899 = vpop.f32.mrf.mxu0
        %v900 = vadd.f32 %v741, %v899
        %v901 = vpop.f32.mrf.mxu0
        %v902 = vadd.f32 %v741, %v901
        %903 = vmatmul.bf16.gmra.mxu0 %v703
        %v904 = vpop.f32.mrf.mxu0
        %v905 = vadd.f32 %v741, %v904
        %v906 = vpop.f32.mrf.mxu0
        %v907 = vadd.f32 %v741, %v906
        %908 = vmatmul.bf16.gmra.mxu0 %v704
        %v909 = vpop.f32.mrf.mxu0
        %v910 = vadd.f32 %v741, %v909
        %v911 = vpop.f32.mrf.mxu0
        %v912 = vadd.f32 %v741, %v911
        %913 = vmatmul.bf16.gmra.mxu0 %v705
        %v914 = vpop.f32.mrf.mxu0
        %v915 = vadd.f32 %v741, %v914
        %v916 = vpop.f32.mrf.mxu0
        %v917 = vadd.f32 %v741, %v916
        %918 = vmatmul.bf16.gmra.mxu0 %v706
        %v919 = vpop.f32.mrf.mxu0
        %v920 = vadd.f32 %v741, %v919
        %v921 = vpop.f32.mrf.mxu0
        %v922 = vadd.f32 %v741, %v921
        %923 = vdwg.mxu0
        %924 = vmatpush.bf16.msra.mxu0 %v849
        %925 = vmatpush.bf16.msra.mxu0 %v846
        %926 = vmatpush.bf16.msra.mxu0 %v843
        %927 = vmatpush.bf16.msra.mxu0 %v840
        %928 = vmatpush.bf16.msra.mxu0 %v837
        %929 = vmatpush.bf16.msra.mxu0 %v834
        %930 = vmatpush.bf16.msra.mxu0 %v831
        %931 = vmatpush.bf16.msra.mxu0 %v828
        %932 = vmatmul.bf16.gmra.mxu0 %v699
        %v933 = vpop.f32.mrf.mxu0
        %v934 = vadd.f32 %v742, %v933
        %v935 = vpop.f32.mrf.mxu0
        %v936 = vadd.f32 %v742, %v935
        %937 = vmatmul.bf16.gmra.mxu0 %v700
        %v938 = vpop.f32.mrf.mxu0
        %v939 = vadd.f32 %v742, %v938
        %v940 = vpop.f32.mrf.mxu0
        %v941 = vadd.f32 %v742, %v940
        %942 = vmatmul.bf16.gmra.mxu0 %v701
        %v943 = vpop.f32.mrf.mxu0
        %v944 = vadd.f32 %v742, %v943
        %v945 = vpop.f32.mrf.mxu0
        %v946 = vadd.f32 %v742, %v945
        %947 = vmatmul.bf16.gmra.mxu0 %v702
        %v948 = vpop.f32.mrf.mxu0
        %v949 = vadd.f32 %v742, %v948
        %v950 = vpop.f32.mrf.mxu0
        %v951 = vadd.f32 %v742, %v950
        %952 = vmatmul.bf16.gmra.mxu0 %v703
        %v953 = vpop.f32.mrf.mxu0
        %v954 = vadd.f32 %v742, %v953
        %v955 = vpop.f32.mrf.mxu0
        %v956 = vadd.f32 %v742, %v955
        %957 = vmatmul.bf16.gmra.mxu0 %v704
        %v958 = vpop.f32.mrf.mxu0
        %v959 = vadd.f32 %v742, %v958
        %v960 = vpop.f32.mrf.mxu0
        %v961 = vadd.f32 %v742, %v960
        %962 = vmatmul.bf16.gmra.mxu0 %v705
        %v963 = vpop.f32.mrf.mxu0
        %v964 = vadd.f32 %v742, %v963
        %v965 = vpop.f32.mrf.mxu0
        %v966 = vadd.f32 %v742, %v965
        %967 = vmatmul.bf16.gmra.mxu0 %v706
        %v968 = vpop.f32.mrf.mxu0
        %v969 = vadd.f32 %v742, %v968
        %v970 = vpop.f32.mrf.mxu0
        %v971 = vadd.f32 %v742, %v970
        %972 = vdwg.mxu0
        %973 = vmatpush.bf16.msra.mxu0 %v850
        %974 = vmatpush.bf16.msra.mxu0 %v847
        %975 = vmatpush.bf16.msra.mxu0 %v844
        %976 = vmatpush.bf16.msra.mxu0 %v841
        %977 = vmatpush.bf16.msra.mxu0 %v838
        %978 = vmatpush.bf16.msra.mxu0 %v835
        %979 = vmatpush.bf16.msra.mxu0 %v832
        %980 = vmatpush.bf16.msra.mxu0 %v829
        %981 = vmatmul.bf16.gmra.mxu0 %v699
        %v982 = vpop.f32.mrf.mxu0
        %v983 = vadd.f32 %v743, %v982
        %v984 = vpop.f32.mrf.mxu0
        %v985 = vadd.f32 %v743, %v984
        %986 = vmatmul.bf16.gmra.mxu0 %v700
        %v987 = vpop.f32.mrf.mxu0
        %v988 = vadd.f32 %v743, %v987
        %v989 = vpop.f32.mrf.mxu0
        %v990 = vadd.f32 %v743, %v989
        %991 = vmatmul.bf16.gmra.mxu0 %v701
        %v992 = vpop.f32.mrf.mxu0
        %v993 = vadd.f32 %v743, %v992
        %v994 = vpop.f32.mrf.mxu0
        %v995 = vadd.f32 %v743, %v994
        %996 = vmatmul.bf16.gmra.mxu0 %v702
        %v997 = vpop.f32.mrf.mxu0
        %v998 = vadd.f32 %v743, %v997
        %v999 = vpop.f32.mrf.mxu0
        %v1000 = vadd.f32 %v743, %v999
        %1001 = vmatmul.bf16.gmra.mxu0 %v703
        %v1002 = vpop.f32.mrf.mxu0
        %v1003 = vadd.f32 %v743, %v1002
        %v1004 = vpop.f32.mrf.mxu0
        %v1005 = vadd.f32 %v743, %v1004
        %1006 = vmatmul.bf16.gmra.mxu0 %v704
        %v1007 = vpop.f32.mrf.mxu0
        %v1008 = vadd.f32 %v743, %v1007
        %v1009 = vpop.f32.mrf.mxu0
        %v1010 = vadd.f32 %v743, %v1009
        %1011 = vmatmul.bf16.gmra.mxu0 %v705
        %v1012 = vpop.f32.mrf.mxu0
        %v1013 = vadd.f32 %v743, %v1012
        %v1014 = vpop.f32.mrf.mxu0
        %v1015 = vadd.f32 %v743, %v1014
        %1016 = vmatmul.bf16.gmra.mxu0 %v706
        %v1017 = vpop.f32.mrf.mxu0
        %v1018 = vadd.f32 %v743, %v1017
        %v1019 = vpop.f32.mrf.mxu0
        %v1020 = vadd.f32 %v743, %v1019
        %1021 = vdwg.mxu0
        %v1022 = vmul.f32 %v885, 0.17677669
        %v1023 = vmul.f32 %v887, 0.17677669
        %v1024 = vmul.f32 %v890, 0.17677669
        %v1025 = vmul.f32 %v892, 0.17677669
        %v1026 = vmul.f32 %v895, 0.17677669
        %v1027 = vmul.f32 %v897, 0.17677669
        %v1028 = vmul.f32 %v900, 0.17677669
        %v1029 = vmul.f32 %v902, 0.17677669
        %v1030 = vmul.f32 %v905, 0.17677669
        %v1031 = vmul.f32 %v907, 0.17677669
        %v1032 = vmul.f32 %v910, 0.17677669
        %v1033 = vmul.f32 %v912, 0.17677669
        %v1034 = vmul.f32 %v915, 0.17677669
        %v1035 = vmul.f32 %v917, 0.17677669
        %v1036 = vmul.f32 %v920, 0.17677669
        %v1037 = vmul.f32 %v922, 0.17677669
        %v1038 = vpack.c.bf16 %v1023, %v1022
        %v1039 = vpack.c.bf16 %v1025, %v1024
        %v1040 = vpack.c.bf16 %v1027, %v1026
        %v1041 = vpack.c.bf16 %v1029, %v1028
        %v1042 = vpack.c.bf16 %v1031, %v1030
        %v1043 = vpack.c.bf16 %v1033, %v1032
        %v1044 = vpack.c.bf16 %v1035, %v1034
        %v1045 = vpack.c.bf16 %v1037, %v1036
        %v1046 = vpack.c.bf16 %v936, %v934
        %v1047 = vpack.c.bf16 %v941, %v939
        %v1048 = vpack.c.bf16 %v946, %v944
        %v1049 = vpack.c.bf16 %v951, %v949
        %v1050 = vpack.c.bf16 %v956, %v954
        %v1051 = vpack.c.bf16 %v961, %v959
        %v1052 = vpack.c.bf16 %v966, %v964
        %v1053 = vpack.c.bf16 %v971, %v969
        %v1054 = vpack.c.bf16 %v985, %v983
        %v1055 = vpack.c.bf16 %v990, %v988
        %v1056 = vpack.c.bf16 %v995, %v993
        %v1057 = vpack.c.bf16 %v1000, %v998
        %v1058 = vpack.c.bf16 %v1005, %v1003
        %v1059 = vpack.c.bf16 %v1010, %v1008
        %v1060 = vpack.c.bf16 %v1015, %v1013
        %v1061 = vpack.c.bf16 %v1020, %v1018
        %vm1062 = vcmask 261120
        %v1064 = vsel %vm1062, %v1038, 0
        %v1067 = vsel %vm1062, %v1039, 0
        %v1070 = vsel %vm1062, %v1040, 0
        %v1073 = vsel %vm1062, %v1041, 0
        %v1076 = vsel %vm1062, %v1042, 0
        %v1079 = vsel %vm1062, %v1043, 0
        %v1082 = vsel %vm1062, %v1044, 0
        %v1085 = vsel %vm1062, %v1045, 0
        %v1088 = vsel %vm1062, %v1046, 0
        %v1091 = vsel %vm1062, %v1047, 0
        %v1094 = vsel %vm1062, %v1048, 0
        %v1097 = vsel %vm1062, %v1049, 0
        %v1100 = vsel %vm1062, %v1050, 0
        %v1103 = vsel %vm1062, %v1051, 0
        %v1106 = vsel %vm1062, %v1052, 0
        %v1109 = vsel %vm1062, %v1053, 0
        %1111 = vmatpush.bf16.xpose.msra.mxu0 %v1109
        %1112 = vmatpush.bf16.xpose.msra.mxu0 %v1106
        %1113 = vmatpush.bf16.xpose.msra.mxu0 %v1103
        %1114 = vmatpush.bf16.xpose.msra.mxu0 %v1100
        %1115 = vmatpush.bf16.xpose.msra.mxu0 %v1097
        %1116 = vmatpush.bf16.xpose.msra.mxu0 %v1094
        %1117 = vmatpush.bf16.xpose.msra.mxu0 %v1091
        %1118 = vmatpush.bf16.xpose.msra.mxu0 %v1088
        %1119 = vmatmul.bf16.gmra.mxu0 %v1064
        %v1120 = vpop.f32.mrf.mxu0
        %v1121 = vadd.f32 0.0, %v1120
        %v1122 = vpop.f32.mrf.mxu0
        %v1123 = vadd.f32 0.0, %v1122
        %1124 = vmatmul.bf16.gmra.mxu0 %v1067
        %v1125 = vpop.f32.mrf.mxu0
        %v1126 = vadd.f32 0.0, %v1125
        %v1127 = vpop.f32.mrf.mxu0
        %v1128 = vadd.f32 0.0, %v1127
        %1129 = vmatmul.bf16.gmra.mxu0 %v1070
        %v1130 = vpop.f32.mrf.mxu0
        %v1131 = vadd.f32 0.0, %v1130
        %v1132 = vpop.f32.mrf.mxu0
        %v1133 = vadd.f32 0.0, %v1132
        %1134 = vmatmul.bf16.gmra.mxu0 %v1073
        %v1135 = vpop.f32.mrf.mxu0
        %v1136 = vadd.f32 0.0, %v1135
        %v1137 = vpop.f32.mrf.mxu0
        %v1138 = vadd.f32 0.0, %v1137
        %1139 = vmatmul.bf16.gmra.mxu0 %v1076
        %v1140 = vpop.f32.mrf.mxu0
        %v1141 = vadd.f32 0.0, %v1140
        %v1142 = vpop.f32.mrf.mxu0
        %v1143 = vadd.f32 0.0, %v1142
        %1144 = vmatmul.bf16.gmra.mxu0 %v1079
        %v1145 = vpop.f32.mrf.mxu0
        %v1146 = vadd.f32 0.0, %v1145
        %v1147 = vpop.f32.mrf.mxu0
        %v1148 = vadd.f32 0.0, %v1147
        %1149 = vmatmul.bf16.gmra.mxu0 %v1082
        %v1150 = vpop.f32.mrf.mxu0
        %v1151 = vadd.f32 0.0, %v1150
        %v1152 = vpop.f32.mrf.mxu0
        %v1153 = vadd.f32 0.0, %v1152
        %1154 = vmatmul.bf16.gmra.mxu0 %v1085
        %v1155 = vpop.f32.mrf.mxu0
        %v1156 = vadd.f32 0.0, %v1155
        %v1157 = vpop.f32.mrf.mxu0
        %v1158 = vadd.f32 0.0, %v1157
        %1159 = vdwg.mxu0
        %1160 = vmax.xlane.f32.xlu0 %v1121
        %v1161 = vpop.xlane.xlu0 %1160
        %1162 = vmax.xlane.f32.xlu0 %v1123
        %v1163 = vpop.xlane.xlu0 %1162
        %1164 = vmax.xlane.f32.xlu0 %v1126
        %v1165 = vpop.xlane.xlu0 %1164
        %1166 = vmax.xlane.f32.xlu0 %v1128
        %v1167 = vpop.xlane.xlu0 %1166
        %1168 = vmax.xlane.f32.xlu0 %v1131
        %v1169 = vpop.xlane.xlu0 %1168
        %1170 = vmax.xlane.f32.xlu0 %v1133
        %v1171 = vpop.xlane.xlu0 %1170
        %1172 = vmax.xlane.f32.xlu0 %v1136
        %v1173 = vpop.xlane.xlu0 %1172
        %1174 = vmax.xlane.f32.xlu0 %v1138
        %v1175 = vpop.xlane.xlu0 %1174
        %1176 = vmax.xlane.f32.xlu0 %v1141
        %v1177 = vpop.xlane.xlu0 %1176
        %1178 = vmax.xlane.f32.xlu0 %v1143
        %v1179 = vpop.xlane.xlu0 %1178
        %1180 = vmax.xlane.f32.xlu0 %v1146
        %v1181 = vpop.xlane.xlu0 %1180
        %1182 = vmax.xlane.f32.xlu0 %v1148
        %v1183 = vpop.xlane.xlu0 %1182
        %1184 = vmax.xlane.f32.xlu0 %v1151
        %v1185 = vpop.xlane.xlu0 %1184
        %1186 = vmax.xlane.f32.xlu0 %v1153
        %v1187 = vpop.xlane.xlu0 %1186
        %1188 = vmax.xlane.f32.xlu0 %v1156
        %v1189 = vpop.xlane.xlu0 %1188
        %1190 = vmax.xlane.f32.xlu0 %v1158
        %v1191 = vpop.xlane.xlu0 %1190
        %v1192 = vsub.f32 %v1121, %v1161
        %v1193 = vsub.f32 %v1123, %v1163
        %v1194 = vsub.f32 %v1126, %v1165
        %v1195 = vsub.f32 %v1128, %v1167
        %v1196 = vsub.f32 %v1131, %v1169
        %v1197 = vsub.f32 %v1133, %v1171
        %v1198 = vsub.f32 %v1136, %v1173
        %v1199 = vsub.f32 %v1138, %v1175
        %v1200 = vsub.f32 %v1141, %v1177
        %v1201 = vsub.f32 %v1143, %v1179
        %v1202 = vsub.f32 %v1146, %v1181
        %v1203 = vsub.f32 %v1148, %v1183
        %v1204 = vsub.f32 %v1151, %v1185
        %v1205 = vsub.f32 %v1153, %v1187
        %v1206 = vsub.f32 %v1156, %v1189
        %v1207 = vsub.f32 %v1158, %v1191
        %v1208 = vmul.f32 %v1192, 1.442695
        %v1209 = vpow.pop %v1208
        %v1210 = vmul.f32 %v1193, 1.442695
        %v1211 = vpow.pop %v1210
        %v1212 = vmul.f32 %v1194, 1.442695
        %v1213 = vpow.pop %v1212
        %v1214 = vmul.f32 %v1195, 1.442695
        %v1215 = vpow.pop %v1214
        %v1216 = vmul.f32 %v1196, 1.442695
        %v1217 = vpow.pop %v1216
        %v1218 = vmul.f32 %v1197, 1.442695
        %v1219 = vpow.pop %v1218
        %v1220 = vmul.f32 %v1198, 1.442695
        %v1221 = vpow.pop %v1220
        %v1222 = vmul.f32 %v1199, 1.442695
        %v1223 = vpow.pop %v1222
        %v1224 = vmul.f32 %v1200, 1.442695
        %v1225 = vpow.pop %v1224
        %v1226 = vmul.f32 %v1201, 1.442695
        %v1227 = vpow.pop %v1226
        %v1228 = vmul.f32 %v1202, 1.442695
        %v1229 = vpow.pop %v1228
        %v1230 = vmul.f32 %v1203, 1.442695
        %v1231 = vpow.pop %v1230
        %v1232 = vmul.f32 %v1204, 1.442695
        %v1233 = vpow.pop %v1232
        %v1234 = vmul.f32 %v1205, 1.442695
        %v1235 = vpow.pop %v1234
        %v1236 = vmul.f32 %v1206, 1.442695
        %v1237 = vpow.pop %v1236
        %v1238 = vmul.f32 %v1207, 1.442695
        %v1239 = vpow.pop %v1238
        %1240 = vadd.xlane.f32.xlu0 %v1209
        %v1241 = vpop.xlane.xlu0 %1240
        %1242 = vadd.xlane.f32.xlu0 %v1211
        %v1243 = vpop.xlane.xlu0 %1242
        %1244 = vadd.xlane.f32.xlu0 %v1213
        %v1245 = vpop.xlane.xlu0 %1244
        %1246 = vadd.xlane.f32.xlu0 %v1215
        %v1247 = vpop.xlane.xlu0 %1246
        %1248 = vadd.xlane.f32.xlu0 %v1217
        %v1249 = vpop.xlane.xlu0 %1248
        %1250 = vadd.xlane.f32.xlu0 %v1219
        %v1251 = vpop.xlane.xlu0 %1250
        %1252 = vadd.xlane.f32.xlu0 %v1221
        %v1253 = vpop.xlane.xlu0 %1252
        %1254 = vadd.xlane.f32.xlu0 %v1223
        %v1255 = vpop.xlane.xlu0 %1254
        %1256 = vadd.xlane.f32.xlu0 %v1225
        %v1257 = vpop.xlane.xlu0 %1256
        %1258 = vadd.xlane.f32.xlu0 %v1227
        %v1259 = vpop.xlane.xlu0 %1258
        %1260 = vadd.xlane.f32.xlu0 %v1229
        %v1261 = vpop.xlane.xlu0 %1260
        %1262 = vadd.xlane.f32.xlu0 %v1231
        %v1263 = vpop.xlane.xlu0 %1262
        %1264 = vadd.xlane.f32.xlu0 %v1233
        %v1265 = vpop.xlane.xlu0 %1264
        %1266 = vadd.xlane.f32.xlu0 %v1235
        %v1267 = vpop.xlane.xlu0 %1266
        %1268 = vadd.xlane.f32.xlu0 %v1237
        %v1269 = vpop.xlane.xlu0 %1268
        %1270 = vadd.xlane.f32.xlu0 %v1239
        %v1271 = vpop.xlane.xlu0 %1270
        %v1272 = vrcp.pop %v1241
        %v1273 = vmul.f32 %v1241, %v1272
        %v1274 = vsub.f32 1.0, %v1273
        %v1275 = vmul.f32 %v1272, %v1274
        %v1276 = vadd.f32 %v1272, %v1275
        %vm1277 = vweird.f32 %v1241
        %vm1278 = vweird.f32 %v1272
        %vm1279 = vmor %vm1277, %vm1278
        %v1280 = vsel %vm1279, %v1272, %v1276
        %v1281 = vand.u32 2147483647, %v1241
        %vm1282 = vcmp.eq.f32.partialorder %v1281, 8.507059e+37
        %v1283 = vand.u32 %v1241, 2147483648
        %v1284 = vor.u32 1.1754944e-38, %v1283
        %v1285 = vsel %vm1282, %v1284, %v1280
        %v1286 = vmul.f32 %v1209, %v1285
        %v1287 = vrcp.pop %v1243
        %v1288 = vmul.f32 %v1243, %v1287
        %v1289 = vsub.f32 1.0, %v1288
        %v1290 = vmul.f32 %v1287, %v1289
        %v1291 = vadd.f32 %v1287, %v1290
        %vm1292 = vweird.f32 %v1243
        %vm1293 = vweird.f32 %v1287
        %vm1294 = vmor %vm1292, %vm1293
        %v1295 = vsel %vm1294, %v1287, %v1291
        %v1296 = vand.u32 2147483647, %v1243
        %vm1297 = vcmp.eq.f32.partialorder %v1296, 8.507059e+37
        %v1298 = vand.u32 %v1243, 2147483648
        %v1299 = vor.u32 1.1754944e-38, %v1298
        %v1300 = vsel %vm1297, %v1299, %v1295
        %v1301 = vmul.f32 %v1211, %v1300
        %v1302 = vrcp.pop %v1245
        %v1303 = vmul.f32 %v1245, %v1302
        %v1304 = vsub.f32 1.0, %v1303
        %v1305 = vmul.f32 %v1302, %v1304
        %v1306 = vadd.f32 %v1302, %v1305
        %vm1307 = vweird.f32 %v1245
        %vm1308 = vweird.f32 %v1302
        %vm1309 = vmor %vm1307, %vm1308
        %v1310 = vsel %vm1309, %v1302, %v1306
        %v1311 = vand.u32 2147483647, %v1245
        %vm1312 = vcmp.eq.f32.partialorder %v1311, 8.507059e+37
        %v1313 = vand.u32 %v1245, 2147483648
        %v1314 = vor.u32 1.1754944e-38, %v1313
        %v1315 = vsel %vm1312, %v1314, %v1310
        %v1316 = vmul.f32 %v1213, %v1315
        %v1317 = vrcp.pop %v1247
        %v1318 = vmul.f32 %v1247, %v1317
        %v1319 = vsub.f32 1.0, %v1318
        %v1320 = vmul.f32 %v1317, %v1319
        %v1321 = vadd.f32 %v1317, %v1320
        %vm1322 = vweird.f32 %v1247
        %vm1323 = vweird.f32 %v1317
        %vm1324 = vmor %vm1322, %vm1323
        %v1325 = vsel %vm1324, %v1317, %v1321
        %v1326 = vand.u32 2147483647, %v1247
        %vm1327 = vcmp.eq.f32.partialorder %v1326, 8.507059e+37
        %v1328 = vand.u32 %v1247, 2147483648
        %v1329 = vor.u32 1.1754944e-38, %v1328
        %v1330 = vsel %vm1327, %v1329, %v1325
        %v1331 = vmul.f32 %v1215, %v1330
        %v1332 = vrcp.pop %v1249
        %v1333 = vmul.f32 %v1249, %v1332
        %v1334 = vsub.f32 1.0, %v1333
        %v1335 = vmul.f32 %v1332, %v1334
        %v1336 = vadd.f32 %v1332, %v1335
        %vm1337 = vweird.f32 %v1249
        %vm1338 = vweird.f32 %v1332
        %vm1339 = vmor %vm1337, %vm1338
        %v1340 = vsel %vm1339, %v1332, %v1336
        %v1341 = vand.u32 2147483647, %v1249
        %vm1342 = vcmp.eq.f32.partialorder %v1341, 8.507059e+37
        %v1343 = vand.u32 %v1249, 2147483648
        %v1344 = vor.u32 1.1754944e-38, %v1343
        %v1345 = vsel %vm1342, %v1344, %v1340
        %v1346 = vmul.f32 %v1217, %v1345
        %v1347 = vrcp.pop %v1251
        %v1348 = vmul.f32 %v1251, %v1347
        %v1349 = vsub.f32 1.0, %v1348
        %v1350 = vmul.f32 %v1347, %v1349
        %v1351 = vadd.f32 %v1347, %v1350
        %vm1352 = vweird.f32 %v1251
        %vm1353 = vweird.f32 %v1347
        %vm1354 = vmor %vm1352, %vm1353
        %v1355 = vsel %vm1354, %v1347, %v1351
        %v1356 = vand.u32 2147483647, %v1251
        %vm1357 = vcmp.eq.f32.partialorder %v1356, 8.507059e+37
        %v1358 = vand.u32 %v1251, 2147483648
        %v1359 = vor.u32 1.1754944e-38, %v1358
        %v1360 = vsel %vm1357, %v1359, %v1355
        %v1361 = vmul.f32 %v1219, %v1360
        %v1362 = vrcp.pop %v1253
        %v1363 = vmul.f32 %v1253, %v1362
        %v1364 = vsub.f32 1.0, %v1363
        %v1365 = vmul.f32 %v1362, %v1364
        %v1366 = vadd.f32 %v1362, %v1365
        %vm1367 = vweird.f32 %v1253
        %vm1368 = vweird.f32 %v1362
        %vm1369 = vmor %vm1367, %vm1368
        %v1370 = vsel %vm1369, %v1362, %v1366
        %v1371 = vand.u32 2147483647, %v1253
        %vm1372 = vcmp.eq.f32.partialorder %v1371, 8.507059e+37
        %v1373 = vand.u32 %v1253, 2147483648
        %v1374 = vor.u32 1.1754944e-38, %v1373
        %v1375 = vsel %vm1372, %v1374, %v1370
        %v1376 = vmul.f32 %v1221, %v1375
        %v1377 = vrcp.pop %v1255
        %v1378 = vmul.f32 %v1255, %v1377
        %v1379 = vsub.f32 1.0, %v1378
        %v1380 = vmul.f32 %v1377, %v1379
        %v1381 = vadd.f32 %v1377, %v1380
        %vm1382 = vweird.f32 %v1255
        %vm1383 = vweird.f32 %v1377
        %vm1384 = vmor %vm1382, %vm1383
        %v1385 = vsel %vm1384, %v1377, %v1381
        %v1386 = vand.u32 2147483647, %v1255
        %vm1387 = vcmp.eq.f32.partialorder %v1386, 8.507059e+37
        %v1388 = vand.u32 %v1255, 2147483648
        %v1389 = vor.u32 1.1754944e-38, %v1388
        %v1390 = vsel %vm1387, %v1389, %v1385
        %v1391 = vmul.f32 %v1223, %v1390
        %v1392 = vrcp.pop %v1257
        %v1393 = vmul.f32 %v1257, %v1392
        %v1394 = vsub.f32 1.0, %v1393
        %v1395 = vmul.f32 %v1392, %v1394
        %v1396 = vadd.f32 %v1392, %v1395
        %vm1397 = vweird.f32 %v1257
        %vm1398 = vweird.f32 %v1392
        %vm1399 = vmor %vm1397, %vm1398
        %v1400 = vsel %vm1399, %v1392, %v1396
        %v1401 = vand.u32 2147483647, %v1257
        %vm1402 = vcmp.eq.f32.partialorder %v1401, 8.507059e+37
        %v1403 = vand.u32 %v1257, 2147483648
        %v1404 = vor.u32 1.1754944e-38, %v1403
        %v1405 = vsel %vm1402, %v1404, %v1400
        %v1406 = vmul.f32 %v1225, %v1405
        %v1407 = vrcp.pop %v1259
        %v1408 = vmul.f32 %v1259, %v1407
        %v1409 = vsub.f32 1.0, %v1408
        %v1410 = vmul.f32 %v1407, %v1409
        %v1411 = vadd.f32 %v1407, %v1410
        %vm1412 = vweird.f32 %v1259
        %vm1413 = vweird.f32 %v1407
        %vm1414 = vmor %vm1412, %vm1413
        %v1415 = vsel %vm1414, %v1407, %v1411
        %v1416 = vand.u32 2147483647, %v1259
        %vm1417 = vcmp.eq.f32.partialorder %v1416, 8.507059e+37
        %v1418 = vand.u32 %v1259, 2147483648
        %v1419 = vor.u32 1.1754944e-38, %v1418
        %v1420 = vsel %vm1417, %v1419, %v1415
        %v1421 = vmul.f32 %v1227, %v1420
        %v1422 = vrcp.pop %v1261
        %v1423 = vmul.f32 %v1261, %v1422
        %v1424 = vsub.f32 1.0, %v1423
        %v1425 = vmul.f32 %v1422, %v1424
        %v1426 = vadd.f32 %v1422, %v1425
        %vm1427 = vweird.f32 %v1261
        %vm1428 = vweird.f32 %v1422
        %vm1429 = vmor %vm1427, %vm1428
        %v1430 = vsel %vm1429, %v1422, %v1426
        %v1431 = vand.u32 2147483647, %v1261
        %vm1432 = vcmp.eq.f32.partialorder %v1431, 8.507059e+37
        %v1433 = vand.u32 %v1261, 2147483648
        %v1434 = vor.u32 1.1754944e-38, %v1433
        %v1435 = vsel %vm1432, %v1434, %v1430
        %v1436 = vmul.f32 %v1229, %v1435
        %v1437 = vrcp.pop %v1263
        %v1438 = vmul.f32 %v1263, %v1437
        %v1439 = vsub.f32 1.0, %v1438
        %v1440 = vmul.f32 %v1437, %v1439
        %v1441 = vadd.f32 %v1437, %v1440
        %vm1442 = vweird.f32 %v1263
        %vm1443 = vweird.f32 %v1437
        %vm1444 = vmor %vm1442, %vm1443
        %v1445 = vsel %vm1444, %v1437, %v1441
        %v1446 = vand.u32 2147483647, %v1263
        %vm1447 = vcmp.eq.f32.partialorder %v1446, 8.507059e+37
        %v1448 = vand.u32 %v1263, 2147483648
        %v1449 = vor.u32 1.1754944e-38, %v1448
        %v1450 = vsel %vm1447, %v1449, %v1445
        %v1451 = vmul.f32 %v1231, %v1450
        %v1452 = vrcp.pop %v1265
        %v1453 = vmul.f32 %v1265, %v1452
        %v1454 = vsub.f32 1.0, %v1453
        %v1455 = vmul.f32 %v1452, %v1454
        %v1456 = vadd.f32 %v1452, %v1455
        %vm1457 = vweird.f32 %v1265
        %vm1458 = vweird.f32 %v1452
        %vm1459 = vmor %vm1457, %vm1458
        %v1460 = vsel %vm1459, %v1452, %v1456
        %v1461 = vand.u32 2147483647, %v1265
        %vm1462 = vcmp.eq.f32.partialorder %v1461, 8.507059e+37
        %v1463 = vand.u32 %v1265, 2147483648
        %v1464 = vor.u32 1.1754944e-38, %v1463
        %v1465 = vsel %vm1462, %v1464, %v1460
        %v1466 = vmul.f32 %v1233, %v1465
        %v1467 = vrcp.pop %v1267
        %v1468 = vmul.f32 %v1267, %v1467
        %v1469 = vsub.f32 1.0, %v1468
        %v1470 = vmul.f32 %v1467, %v1469
        %v1471 = vadd.f32 %v1467, %v1470
        %vm1472 = vweird.f32 %v1267
        %vm1473 = vweird.f32 %v1467
        %vm1474 = vmor %vm1472, %vm1473
        %v1475 = vsel %vm1474, %v1467, %v1471
        %v1476 = vand.u32 2147483647, %v1267
        %vm1477 = vcmp.eq.f32.partialorder %v1476, 8.507059e+37
        %v1478 = vand.u32 %v1267, 2147483648
        %v1479 = vor.u32 1.1754944e-38, %v1478
        %v1480 = vsel %vm1477, %v1479, %v1475
        %v1481 = vmul.f32 %v1235, %v1480
        %v1482 = vrcp.pop %v1269
        %v1483 = vmul.f32 %v1269, %v1482
        %v1484 = vsub.f32 1.0, %v1483
        %v1485 = vmul.f32 %v1482, %v1484
        %v1486 = vadd.f32 %v1482, %v1485
        %vm1487 = vweird.f32 %v1269
        %vm1488 = vweird.f32 %v1482
        %vm1489 = vmor %vm1487, %vm1488
        %v1490 = vsel %vm1489, %v1482, %v1486
        %v1491 = vand.u32 2147483647, %v1269
        %vm1492 = vcmp.eq.f32.partialorder %v1491, 8.507059e+37
        %v1493 = vand.u32 %v1269, 2147483648
        %v1494 = vor.u32 1.1754944e-38, %v1493
        %v1495 = vsel %vm1492, %v1494, %v1490
        %v1496 = vmul.f32 %v1237, %v1495
        %v1497 = vrcp.pop %v1271
        %v1498 = vmul.f32 %v1271, %v1497
        %v1499 = vsub.f32 1.0, %v1498
        %v1500 = vmul.f32 %v1497, %v1499
        %v1501 = vadd.f32 %v1497, %v1500
        %vm1502 = vweird.f32 %v1271
        %vm1503 = vweird.f32 %v1497
        %vm1504 = vmor %vm1502, %vm1503
        %v1505 = vsel %vm1504, %v1497, %v1501
        %v1506 = vand.u32 2147483647, %v1271
        %vm1507 = vcmp.eq.f32.partialorder %v1506, 8.507059e+37
        %v1508 = vand.u32 %v1271, 2147483648
        %v1509 = vor.u32 1.1754944e-38, %v1508
        %v1510 = vsel %vm1507, %v1509, %v1505
        %v1511 = vmul.f32 %v1239, %v1510
        %v1512 = vpack.c.bf16 %v1301, %v1286
        %v1513 = vpack.c.bf16 %v1331, %v1316
        %v1514 = vpack.c.bf16 %v1361, %v1346
        %v1515 = vpack.c.bf16 %v1391, %v1376
        %v1516 = vpack.c.bf16 %v1421, %v1406
        %v1517 = vpack.c.bf16 %v1451, %v1436
        %v1518 = vpack.c.bf16 %v1481, %v1466
        %v1519 = vpack.c.bf16 %v1511, %v1496
        %1520 = vmatpush.bf16.msra.mxu0 %v1061
        %1521 = vmatpush.bf16.msra.mxu0 %v1060
        %1522 = vmatpush.bf16.msra.mxu0 %v1059
        %1523 = vmatpush.bf16.msra.mxu0 %v1058
        %1524 = vmatpush.bf16.msra.mxu0 %v1057
        %1525 = vmatpush.bf16.msra.mxu0 %v1056
        %1526 = vmatpush.bf16.msra.mxu0 %v1055
        %1527 = vmatpush.bf16.msra.mxu0 %v1054
        %1528 = vmatmul.bf16.gmra.mxu0 %v1512
        %v1529 = vpop.f32.mrf.mxu0
        %v1530 = vadd.f32 0.0, %v1529
        %v1531 = vpop.f32.mrf.mxu0
        %v1532 = vadd.f32 0.0, %v1531
        %1533 = vmatmul.bf16.gmra.mxu0 %v1513
        %v1534 = vpop.f32.mrf.mxu0
        %v1535 = vadd.f32 0.0, %v1534
        %v1536 = vpop.f32.mrf.mxu0
        %v1537 = vadd.f32 0.0, %v1536
        %1538 = vmatmul.bf16.gmra.mxu0 %v1514
        %v1539 = vpop.f32.mrf.mxu0
        %v1540 = vadd.f32 0.0, %v1539
        %v1541 = vpop.f32.mrf.mxu0
        %v1542 = vadd.f32 0.0, %v1541
        %1543 = vmatmul.bf16.gmra.mxu0 %v1515
        %v1544 = vpop.f32.mrf.mxu0
        %v1545 = vadd.f32 0.0, %v1544
        %v1546 = vpop.f32.mrf.mxu0
        %v1547 = vadd.f32 0.0, %v1546
        %1548 = vmatmul.bf16.gmra.mxu0 %v1516
        %v1549 = vpop.f32.mrf.mxu0
        %v1550 = vadd.f32 0.0, %v1549
        %v1551 = vpop.f32.mrf.mxu0
        %v1552 = vadd.f32 0.0, %v1551
        %1553 = vmatmul.bf16.gmra.mxu0 %v1517
        %v1554 = vpop.f32.mrf.mxu0
        %v1555 = vadd.f32 0.0, %v1554
        %v1556 = vpop.f32.mrf.mxu0
        %v1557 = vadd.f32 0.0, %v1556
        %1558 = vmatmul.bf16.gmra.mxu0 %v1518
        %v1559 = vpop.f32.mrf.mxu0
        %v1560 = vadd.f32 0.0, %v1559
        %v1561 = vpop.f32.mrf.mxu0
        %v1562 = vadd.f32 0.0, %v1561
        %1563 = vmatmul.bf16.gmra.mxu0 %v1519
        %v1564 = vpop.f32.mrf.mxu0
        %v1565 = vadd.f32 0.0, %v1564
        %v1566 = vpop.f32.mrf.mxu0
        %v1567 = vadd.f32 0.0, %v1566
        %1568 = vdwg.mxu0
        %1577 = vrot.lane.b32.xlu0 %v1038, 96
        %v1578 = vpop.permute.xlu0 %1577
        %1579 = vrot.lane.b32.xlu0 %v1039, 96
        %v1580 = vpop.permute.xlu0 %1579
        %1581 = vrot.lane.b32.xlu0 %v1040, 96
        %v1582 = vpop.permute.xlu0 %1581
        %1583 = vrot.lane.b32.xlu0 %v1041, 96
        %v1584 = vpop.permute.xlu0 %1583
        %1585 = vrot.lane.b32.xlu0 %v1042, 96
        %v1586 = vpop.permute.xlu0 %1585
        %1587 = vrot.lane.b32.xlu0 %v1043, 96
        %v1588 = vpop.permute.xlu0 %1587
        %1589 = vrot.lane.b32.xlu0 %v1044, 96
        %v1590 = vpop.permute.xlu0 %1589
        %1591 = vrot.lane.b32.xlu0 %v1045, 96
        %v1592 = vpop.permute.xlu0 %1591
        %1601 = vrot.lane.b32.xlu0 %v1046, 96
        %v1602 = vpop.permute.xlu0 %1601
        %1603 = vrot.lane.b32.xlu0 %v1047, 96
        %v1604 = vpop.permute.xlu0 %1603
        %1605 = vrot.lane.b32.xlu0 %v1048, 96
        %v1606 = vpop.permute.xlu0 %1605
        %1607 = vrot.lane.b32.xlu0 %v1049, 96
        %v1608 = vpop.permute.xlu0 %1607
        %1609 = vrot.lane.b32.xlu0 %v1050, 96
        %v1610 = vpop.permute.xlu0 %1609
        %1611 = vrot.lane.b32.xlu0 %v1051, 96
        %v1612 = vpop.permute.xlu0 %1611
        %1613 = vrot.lane.b32.xlu0 %v1052, 96
        %v1614 = vpop.permute.xlu0 %1613
        %1615 = vrot.lane.b32.xlu0 %v1053, 96
        %v1616 = vpop.permute.xlu0 %1615
        %v1618 = vsel %vm1062, %v1578, 0
        %v1621 = vsel %vm1062, %v1580, 0
        %v1624 = vsel %vm1062, %v1582, 0
        %v1627 = vsel %vm1062, %v1584, 0
        %v1630 = vsel %vm1062, %v1586, 0
        %v1633 = vsel %vm1062, %v1588, 0
        %v1636 = vsel %vm1062, %v1590, 0
        %v1639 = vsel %vm1062, %v1592, 0
        %v1642 = vsel %vm1062, %v1602, 0
        %v1645 = vsel %vm1062, %v1604, 0
        %v1648 = vsel %vm1062, %v1606, 0
        %v1651 = vsel %vm1062, %v1608, 0
        %v1654 = vsel %vm1062, %v1610, 0
        %v1657 = vsel %vm1062, %v1612, 0
        %v1660 = vsel %vm1062, %v1614, 0
        %v1663 = vsel %vm1062, %v1616, 0
        %1665 = vmatpush.bf16.xpose.msra.mxu0 %v1663
        %1666 = vmatpush.bf16.xpose.msra.mxu0 %v1660
        %1667 = vmatpush.bf16.xpose.msra.mxu0 %v1657
        %1668 = vmatpush.bf16.xpose.msra.mxu0 %v1654
        %1669 = vmatpush.bf16.xpose.msra.mxu0 %v1651
        %1670 = vmatpush.bf16.xpose.msra.mxu0 %v1648
        %1671 = vmatpush.bf16.xpose.msra.mxu0 %v1645
        %1672 = vmatpush.bf16.xpose.msra.mxu0 %v1642
        %1673 = vmatmul.bf16.gmra.mxu0 %v1618
        %v1674 = vpop.f32.mrf.mxu0
        %v1675 = vadd.f32 0.0, %v1674
        %v1676 = vpop.f32.mrf.mxu0
        %v1677 = vadd.f32 0.0, %v1676
        %1678 = vmatmul.bf16.gmra.mxu0 %v1621
        %v1679 = vpop.f32.mrf.mxu0
        %v1680 = vadd.f32 0.0, %v1679
        %v1681 = vpop.f32.mrf.mxu0
        %v1682 = vadd.f32 0.0, %v1681
        %1683 = vmatmul.bf16.gmra.mxu0 %v1624
        %v1684 = vpop.f32.mrf.mxu0
        %v1685 = vadd.f32 0.0, %v1684
        %v1686 = vpop.f32.mrf.mxu0
        %v1687 = vadd.f32 0.0, %v1686
        %1688 = vmatmul.bf16.gmra.mxu0 %v1627
        %v1689 = vpop.f32.mrf.mxu0
        %v1690 = vadd.f32 0.0, %v1689
        %v1691 = vpop.f32.mrf.mxu0
        %v1692 = vadd.f32 0.0, %v1691
        %1693 = vmatmul.bf16.gmra.mxu0 %v1630
        %v1694 = vpop.f32.mrf.mxu0
        %v1695 = vadd.f32 0.0, %v1694
        %v1696 = vpop.f32.mrf.mxu0
        %v1697 = vadd.f32 0.0, %v1696
        %1698 = vmatmul.bf16.gmra.mxu0 %v1633
        %v1699 = vpop.f32.mrf.mxu0
        %v1700 = vadd.f32 0.0, %v1699
        %v1701 = vpop.f32.mrf.mxu0
        %v1702 = vadd.f32 0.0, %v1701
        %1703 = vmatmul.bf16.gmra.mxu0 %v1636
        %v1704 = vpop.f32.mrf.mxu0
        %v1705 = vadd.f32 0.0, %v1704
        %v1706 = vpop.f32.mrf.mxu0
        %v1707 = vadd.f32 0.0, %v1706
        %1708 = vmatmul.bf16.gmra.mxu0 %v1639
        %v1709 = vpop.f32.mrf.mxu0
        %v1710 = vadd.f32 0.0, %v1709
        %v1711 = vpop.f32.mrf.mxu0
        %v1712 = vadd.f32 0.0, %v1711
        %1713 = vdwg.mxu0
        %1714 = vmax.xlane.f32.xlu0 %v1675
        %v1715 = vpop.xlane.xlu0 %1714
        %1716 = vmax.xlane.f32.xlu0 %v1677
        %v1717 = vpop.xlane.xlu0 %1716
        %1718 = vmax.xlane.f32.xlu0 %v1680
        %v1719 = vpop.xlane.xlu0 %1718
        %1720 = vmax.xlane.f32.xlu0 %v1682
        %v1721 = vpop.xlane.xlu0 %1720
        %1722 = vmax.xlane.f32.xlu0 %v1685
        %v1723 = vpop.xlane.xlu0 %1722
        %1724 = vmax.xlane.f32.xlu0 %v1687
        %v1725 = vpop.xlane.xlu0 %1724
        %1726 = vmax.xlane.f32.xlu0 %v1690
        %v1727 = vpop.xlane.xlu0 %1726
        %1728 = vmax.xlane.f32.xlu0 %v1692
        %v1729 = vpop.xlane.xlu0 %1728
        %1730 = vmax.xlane.f32.xlu0 %v1695
        %v1731 = vpop.xlane.xlu0 %1730
        %1732 = vmax.xlane.f32.xlu0 %v1697
        %v1733 = vpop.xlane.xlu0 %1732
        %1734 = vmax.xlane.f32.xlu0 %v1700
        %v1735 = vpop.xlane.xlu0 %1734
        %1736 = vmax.xlane.f32.xlu0 %v1702
        %v1737 = vpop.xlane.xlu0 %1736
        %1738 = vmax.xlane.f32.xlu0 %v1705
        %v1739 = vpop.xlane.xlu0 %1738
        %1740 = vmax.xlane.f32.xlu0 %v1707
        %v1741 = vpop.xlane.xlu0 %1740
        %1742 = vmax.xlane.f32.xlu0 %v1710
        %v1743 = vpop.xlane.xlu0 %1742
        %1744 = vmax.xlane.f32.xlu0 %v1712
        %v1745 = vpop.xlane.xlu0 %1744
        %v1746 = vsub.f32 %v1675, %v1715
        %v1747 = vsub.f32 %v1677, %v1717
        %v1748 = vsub.f32 %v1680, %v1719
        %v1749 = vsub.f32 %v1682, %v1721
        %v1750 = vsub.f32 %v1685, %v1723
        %v1751 = vsub.f32 %v1687, %v1725
        %v1752 = vsub.f32 %v1690, %v1727
        %v1753 = vsub.f32 %v1692, %v1729
        %v1754 = vsub.f32 %v1695, %v1731
        %v1755 = vsub.f32 %v1697, %v1733
        %v1756 = vsub.f32 %v1700, %v1735
        %v1757 = vsub.f32 %v1702, %v1737
        %v1758 = vsub.f32 %v1705, %v1739
        %v1759 = vsub.f32 %v1707, %v1741
        %v1760 = vsub.f32 %v1710, %v1743
        %v1761 = vsub.f32 %v1712, %v1745
        %v1762 = vmul.f32 %v1746, 1.442695
        %v1763 = vpow.pop %v1762
        %v1764 = vmul.f32 %v1747, 1.442695
        %v1765 = vpow.pop %v1764
        %v1766 = vmul.f32 %v1748, 1.442695
        %v1767 = vpow.pop %v1766
        %v1768 = vmul.f32 %v1749, 1.442695
        %v1769 = vpow.pop %v1768
        %v1770 = vmul.f32 %v1750, 1.442695
        %v1771 = vpow.pop %v1770
        %v1772 = vmul.f32 %v1751, 1.442695
        %v1773 = vpow.pop %v1772
        %v1774 = vmul.f32 %v1752, 1.442695
        %v1775 = vpow.pop %v1774
        %v1776 = vmul.f32 %v1753, 1.442695
        %v1777 = vpow.pop %v1776
        %v1778 = vmul.f32 %v1754, 1.442695
        %v1779 = vpow.pop %v1778
        %v1780 = vmul.f32 %v1755, 1.442695
        %v1781 = vpow.pop %v1780
        %v1782 = vmul.f32 %v1756, 1.442695
        %v1783 = vpow.pop %v1782
        %v1784 = vmul.f32 %v1757, 1.442695
        %v1785 = vpow.pop %v1784
        %v1786 = vmul.f32 %v1758, 1.442695
        %v1787 = vpow.pop %v1786
        %v1788 = vmul.f32 %v1759, 1.442695
        %v1789 = vpow.pop %v1788
        %v1790 = vmul.f32 %v1760, 1.442695
        %v1791 = vpow.pop %v1790
        %v1792 = vmul.f32 %v1761, 1.442695
        %v1793 = vpow.pop %v1792
        %1794 = vadd.xlane.f32.xlu0 %v1763
        %v1795 = vpop.xlane.xlu0 %1794
        %1796 = vadd.xlane.f32.xlu0 %v1765
        %v1797 = vpop.xlane.xlu0 %1796
        %1798 = vadd.xlane.f32.xlu0 %v1767
        %v1799 = vpop.xlane.xlu0 %1798
        %1800 = vadd.xlane.f32.xlu0 %v1769
        %v1801 = vpop.xlane.xlu0 %1800
        %1802 = vadd.xlane.f32.xlu0 %v1771
        %v1803 = vpop.xlane.xlu0 %1802
        %1804 = vadd.xlane.f32.xlu0 %v1773
        %v1805 = vpop.xlane.xlu0 %1804
        %1806 = vadd.xlane.f32.xlu0 %v1775
        %v1807 = vpop.xlane.xlu0 %1806
        %1808 = vadd.xlane.f32.xlu0 %v1777
        %v1809 = vpop.xlane.xlu0 %1808
        %1810 = vadd.xlane.f32.xlu0 %v1779
        %v1811 = vpop.xlane.xlu0 %1810
        %1812 = vadd.xlane.f32.xlu0 %v1781
        %v1813 = vpop.xlane.xlu0 %1812
        %1814 = vadd.xlane.f32.xlu0 %v1783
        %v1815 = vpop.xlane.xlu0 %1814
        %1816 = vadd.xlane.f32.xlu0 %v1785
        %v1817 = vpop.xlane.xlu0 %1816
        %1818 = vadd.xlane.f32.xlu0 %v1787
        %v1819 = vpop.xlane.xlu0 %1818
        %1820 = vadd.xlane.f32.xlu0 %v1789
        %v1821 = vpop.xlane.xlu0 %1820
        %1822 = vadd.xlane.f32.xlu0 %v1791
        %v1823 = vpop.xlane.xlu0 %1822
        %1824 = vadd.xlane.f32.xlu0 %v1793
        %v1825 = vpop.xlane.xlu0 %1824
        %v1826 = vrcp.pop %v1795
        %v1827 = vmul.f32 %v1795, %v1826
        %v1828 = vsub.f32 1.0, %v1827
        %v1829 = vmul.f32 %v1826, %v1828
        %v1830 = vadd.f32 %v1826, %v1829
        %vm1831 = vweird.f32 %v1795
        %vm1832 = vweird.f32 %v1826
        %vm1833 = vmor %vm1831, %vm1832
        %v1834 = vsel %vm1833, %v1826, %v1830
        %v1835 = vand.u32 2147483647, %v1795
        %vm1836 = vcmp.eq.f32.partialorder %v1835, 8.507059e+37
        %v1837 = vand.u32 %v1795, 2147483648
        %v1838 = vor.u32 1.1754944e-38, %v1837
        %v1839 = vsel %vm1836, %v1838, %v1834
        %v1840 = vmul.f32 %v1763, %v1839
        %v1841 = vrcp.pop %v1797
        %v1842 = vmul.f32 %v1797, %v1841
        %v1843 = vsub.f32 1.0, %v1842
        %v1844 = vmul.f32 %v1841, %v1843
        %v1845 = vadd.f32 %v1841, %v1844
        %vm1846 = vweird.f32 %v1797
        %vm1847 = vweird.f32 %v1841
        %vm1848 = vmor %vm1846, %vm1847
        %v1849 = vsel %vm1848, %v1841, %v1845
        %v1850 = vand.u32 2147483647, %v1797
        %vm1851 = vcmp.eq.f32.partialorder %v1850, 8.507059e+37
        %v1852 = vand.u32 %v1797, 2147483648
        %v1853 = vor.u32 1.1754944e-38, %v1852
        %v1854 = vsel %vm1851, %v1853, %v1849
        %v1855 = vmul.f32 %v1765, %v1854
        %v1856 = vrcp.pop %v1799
        %v1857 = vmul.f32 %v1799, %v1856
        %v1858 = vsub.f32 1.0, %v1857
        %v1859 = vmul.f32 %v1856, %v1858
        %v1860 = vadd.f32 %v1856, %v1859
        %vm1861 = vweird.f32 %v1799
        %vm1862 = vweird.f32 %v1856
        %vm1863 = vmor %vm1861, %vm1862
        %v1864 = vsel %vm1863, %v1856, %v1860
        %v1865 = vand.u32 2147483647, %v1799
        %vm1866 = vcmp.eq.f32.partialorder %v1865, 8.507059e+37
        %v1867 = vand.u32 %v1799, 2147483648
        %v1868 = vor.u32 1.1754944e-38, %v1867
        %v1869 = vsel %vm1866, %v1868, %v1864
        %v1870 = vmul.f32 %v1767, %v1869
        %v1871 = vrcp.pop %v1801
        %v1872 = vmul.f32 %v1801, %v1871
        %v1873 = vsub.f32 1.0, %v1872
        %v1874 = vmul.f32 %v1871, %v1873
        %v1875 = vadd.f32 %v1871, %v1874
        %vm1876 = vweird.f32 %v1801
        %vm1877 = vweird.f32 %v1871
        %vm1878 = vmor %vm1876, %vm1877
        %v1879 = vsel %vm1878, %v1871, %v1875
        %v1880 = vand.u32 2147483647, %v1801
        %vm1881 = vcmp.eq.f32.partialorder %v1880, 8.507059e+37
        %v1882 = vand.u32 %v1801, 2147483648
        %v1883 = vor.u32 1.1754944e-38, %v1882
        %v1884 = vsel %vm1881, %v1883, %v1879
        %v1885 = vmul.f32 %v1769, %v1884
        %v1886 = vrcp.pop %v1803
        %v1887 = vmul.f32 %v1803, %v1886
        %v1888 = vsub.f32 1.0, %v1887
        %v1889 = vmul.f32 %v1886, %v1888
        %v1890 = vadd.f32 %v1886, %v1889
        %vm1891 = vweird.f32 %v1803
        %vm1892 = vweird.f32 %v1886
        %vm1893 = vmor %vm1891, %vm1892
        %v1894 = vsel %vm1893, %v1886, %v1890
        %v1895 = vand.u32 2147483647, %v1803
        %vm1896 = vcmp.eq.f32.partialorder %v1895, 8.507059e+37
        %v1897 = vand.u32 %v1803, 2147483648
        %v1898 = vor.u32 1.1754944e-38, %v1897
        %v1899 = vsel %vm1896, %v1898, %v1894
        %v1900 = vmul.f32 %v1771, %v1899
        %v1901 = vrcp.pop %v1805
        %v1902 = vmul.f32 %v1805, %v1901
        %v1903 = vsub.f32 1.0, %v1902
        %v1904 = vmul.f32 %v1901, %v1903
        %v1905 = vadd.f32 %v1901, %v1904
        %vm1906 = vweird.f32 %v1805
        %vm1907 = vweird.f32 %v1901
        %vm1908 = vmor %vm1906, %vm1907
        %v1909 = vsel %vm1908, %v1901, %v1905
        %v1910 = vand.u32 2147483647, %v1805
        %vm1911 = vcmp.eq.f32.partialorder %v1910, 8.507059e+37
        %v1912 = vand.u32 %v1805, 2147483648
        %v1913 = vor.u32 1.1754944e-38, %v1912
        %v1914 = vsel %vm1911, %v1913, %v1909
        %v1915 = vmul.f32 %v1773, %v1914
        %v1916 = vrcp.pop %v1807
        %v1917 = vmul.f32 %v1807, %v1916
        %v1918 = vsub.f32 1.0, %v1917
        %v1919 = vmul.f32 %v1916, %v1918
        %v1920 = vadd.f32 %v1916, %v1919
        %vm1921 = vweird.f32 %v1807
        %vm1922 = vweird.f32 %v1916
        %vm1923 = vmor %vm1921, %vm1922
        %v1924 = vsel %vm1923, %v1916, %v1920
        %v1925 = vand.u32 2147483647, %v1807
        %vm1926 = vcmp.eq.f32.partialorder %v1925, 8.507059e+37
        %v1927 = vand.u32 %v1807, 2147483648
        %v1928 = vor.u32 1.1754944e-38, %v1927
        %v1929 = vsel %vm1926, %v1928, %v1924
        %v1930 = vmul.f32 %v1775, %v1929
        %v1931 = vrcp.pop %v1809
        %v1932 = vmul.f32 %v1809, %v1931
        %v1933 = vsub.f32 1.0, %v1932
        %v1934 = vmul.f32 %v1931, %v1933
        %v1935 = vadd.f32 %v1931, %v1934
        %vm1936 = vweird.f32 %v1809
        %vm1937 = vweird.f32 %v1931
        %vm1938 = vmor %vm1936, %vm1937
        %v1939 = vsel %vm1938, %v1931, %v1935
        %v1940 = vand.u32 2147483647, %v1809
        %vm1941 = vcmp.eq.f32.partialorder %v1940, 8.507059e+37
        %v1942 = vand.u32 %v1809, 2147483648
        %v1943 = vor.u32 1.1754944e-38, %v1942
        %v1944 = vsel %vm1941, %v1943, %v1939
        %v1945 = vmul.f32 %v1777, %v1944
        %v1946 = vrcp.pop %v1811
        %v1947 = vmul.f32 %v1811, %v1946
        %v1948 = vsub.f32 1.0, %v1947
        %v1949 = vmul.f32 %v1946, %v1948
        %v1950 = vadd.f32 %v1946, %v1949
        %vm1951 = vweird.f32 %v1811
        %vm1952 = vweird.f32 %v1946
        %vm1953 = vmor %vm1951, %vm1952
        %v1954 = vsel %vm1953, %v1946, %v1950
        %v1955 = vand.u32 2147483647, %v1811
        %vm1956 = vcmp.eq.f32.partialorder %v1955, 8.507059e+37
        %v1957 = vand.u32 %v1811, 2147483648
        %v1958 = vor.u32 1.1754944e-38, %v1957
        %v1959 = vsel %vm1956, %v1958, %v1954
        %v1960 = vmul.f32 %v1779, %v1959
        %v1961 = vrcp.pop %v1813
        %v1962 = vmul.f32 %v1813, %v1961
        %v1963 = vsub.f32 1.0, %v1962
        %v1964 = vmul.f32 %v1961, %v1963
        %v1965 = vadd.f32 %v1961, %v1964
        %vm1966 = vweird.f32 %v1813
        %vm1967 = vweird.f32 %v1961
        %vm1968 = vmor %vm1966, %vm1967
        %v1969 = vsel %vm1968, %v1961, %v1965
        %v1970 = vand.u32 2147483647, %v1813
        %vm1971 = vcmp.eq.f32.partialorder %v1970, 8.507059e+37
        %v1972 = vand.u32 %v1813, 2147483648
        %v1973 = vor.u32 1.1754944e-38, %v1972
        %v1974 = vsel %vm1971, %v1973, %v1969
        %v1975 = vmul.f32 %v1781, %v1974
        %v1976 = vrcp.pop %v1815
        %v1977 = vmul.f32 %v1815, %v1976
        %v1978 = vsub.f32 1.0, %v1977
        %v1979 = vmul.f32 %v1976, %v1978
        %v1980 = vadd.f32 %v1976, %v1979
        %vm1981 = vweird.f32 %v1815
        %vm1982 = vweird.f32 %v1976
        %vm1983 = vmor %vm1981, %vm1982
        %v1984 = vsel %vm1983, %v1976, %v1980
        %v1985 = vand.u32 2147483647, %v1815
        %vm1986 = vcmp.eq.f32.partialorder %v1985, 8.507059e+37
        %v1987 = vand.u32 %v1815, 2147483648
        %v1988 = vor.u32 1.1754944e-38, %v1987
        %v1989 = vsel %vm1986, %v1988, %v1984
        %v1990 = vmul.f32 %v1783, %v1989
        %v1991 = vrcp.pop %v1817
        %v1992 = vmul.f32 %v1817, %v1991
        %v1993 = vsub.f32 1.0, %v1992
        %v1994 = vmul.f32 %v1991, %v1993
        %v1995 = vadd.f32 %v1991, %v1994
        %vm1996 = vweird.f32 %v1817
        %vm1997 = vweird.f32 %v1991
        %vm1998 = vmor %vm1996, %vm1997
        %v1999 = vsel %vm1998, %v1991, %v1995
        %v2000 = vand.u32 2147483647, %v1817
        %vm2001 = vcmp.eq.f32.partialorder %v2000, 8.507059e+37
        %v2002 = vand.u32 %v1817, 2147483648
        %v2003 = vor.u32 1.1754944e-38, %v2002
        %v2004 = vsel %vm2001, %v2003, %v1999
        %v2005 = vmul.f32 %v1785, %v2004
        %v2006 = vrcp.pop %v1819
        %v2007 = vmul.f32 %v1819, %v2006
        %v2008 = vsub.f32 1.0, %v2007
        %v2009 = vmul.f32 %v2006, %v2008
        %v2010 = vadd.f32 %v2006, %v2009
        %vm2011 = vweird.f32 %v1819
        %vm2012 = vweird.f32 %v2006
        %vm2013 = vmor %vm2011, %vm2012
        %v2014 = vsel %vm2013, %v2006, %v2010
        %v2015 = vand.u32 2147483647, %v1819
        %vm2016 = vcmp.eq.f32.partialorder %v2015, 8.507059e+37
        %v2017 = vand.u32 %v1819, 2147483648
        %v2018 = vor.u32 1.1754944e-38, %v2017
        %v2019 = vsel %vm2016, %v2018, %v2014
        %v2020 = vmul.f32 %v1787, %v2019
        %v2021 = vrcp.pop %v1821
        %v2022 = vmul.f32 %v1821, %v2021
        %v2023 = vsub.f32 1.0, %v2022
        %v2024 = vmul.f32 %v2021, %v2023
        %v2025 = vadd.f32 %v2021, %v2024
        %vm2026 = vweird.f32 %v1821
        %vm2027 = vweird.f32 %v2021
        %vm2028 = vmor %vm2026, %vm2027
        %v2029 = vsel %vm2028, %v2021, %v2025
        %v2030 = vand.u32 2147483647, %v1821
        %vm2031 = vcmp.eq.f32.partialorder %v2030, 8.507059e+37
        %v2032 = vand.u32 %v1821, 2147483648
        %v2033 = vor.u32 1.1754944e-38, %v2032
        %v2034 = vsel %vm2031, %v2033, %v2029
        %v2035 = vmul.f32 %v1789, %v2034
        %v2036 = vrcp.pop %v1823
        %v2037 = vmul.f32 %v1823, %v2036
        %v2038 = vsub.f32 1.0, %v2037
        %v2039 = vmul.f32 %v2036, %v2038
        %v2040 = vadd.f32 %v2036, %v2039
        %vm2041 = vweird.f32 %v1823
        %vm2042 = vweird.f32 %v2036
        %vm2043 = vmor %vm2041, %vm2042
        %v2044 = vsel %vm2043, %v2036, %v2040
        %v2045 = vand.u32 2147483647, %v1823
        %vm2046 = vcmp.eq.f32.partialorder %v2045, 8.507059e+37
        %v2047 = vand.u32 %v1823, 2147483648
        %v2048 = vor.u32 1.1754944e-38, %v2047
        %v2049 = vsel %vm2046, %v2048, %v2044
        %v2050 = vmul.f32 %v1791, %v2049
        %v2051 = vrcp.pop %v1825
        %v2052 = vmul.f32 %v1825, %v2051
        %v2053 = vsub.f32 1.0, %v2052
        %v2054 = vmul.f32 %v2051, %v2053
        %v2055 = vadd.f32 %v2051, %v2054
        %vm2056 = vweird.f32 %v1825
        %vm2057 = vweird.f32 %v2051
        %vm2058 = vmor %vm2056, %vm2057
        %v2059 = vsel %vm2058, %v2051, %v2055
        %v2060 = vand.u32 2147483647, %v1825
        %vm2061 = vcmp.eq.f32.partialorder %v2060, 8.507059e+37
        %v2062 = vand.u32 %v1825, 2147483648
        %v2063 = vor.u32 1.1754944e-38, %v2062
        %v2064 = vsel %vm2061, %v2063, %v2059
        %v2065 = vmul.f32 %v1793, %v2064
        %v2066 = vpack.c.bf16 %v1855, %v1840
        %v2067 = vpack.c.bf16 %v1885, %v1870
        %v2068 = vpack.c.bf16 %v1915, %v1900
        %v2069 = vpack.c.bf16 %v1945, %v1930
        %v2070 = vpack.c.bf16 %v1975, %v1960
        %v2071 = vpack.c.bf16 %v2005, %v1990
        %v2072 = vpack.c.bf16 %v2035, %v2020
        %v2073 = vpack.c.bf16 %v2065, %v2050
        %2082 = vrot.lane.b32.xlu0 %v1054, 96
        %v2083 = vpop.permute.xlu0 %2082
        %2084 = vrot.lane.b32.xlu0 %v1055, 96
        %v2085 = vpop.permute.xlu0 %2084
        %2086 = vrot.lane.b32.xlu0 %v1056, 96
        %v2087 = vpop.permute.xlu0 %2086
        %2088 = vrot.lane.b32.xlu0 %v1057, 96
        %v2089 = vpop.permute.xlu0 %2088
        %2090 = vrot.lane.b32.xlu0 %v1058, 96
        %v2091 = vpop.permute.xlu0 %2090
        %2092 = vrot.lane.b32.xlu0 %v1059, 96
        %v2093 = vpop.permute.xlu0 %2092
        %2094 = vrot.lane.b32.xlu0 %v1060, 96
        %v2095 = vpop.permute.xlu0 %2094
        %2096 = vrot.lane.b32.xlu0 %v1061, 96
        %v2097 = vpop.permute.xlu0 %2096
        %2106 = vmatpush.bf16.msra.mxu0 %v2097
        %2107 = vmatpush.bf16.msra.mxu0 %v2095
        %2108 = vmatpush.bf16.msra.mxu0 %v2093
        %2109 = vmatpush.bf16.msra.mxu0 %v2091
        %2110 = vmatpush.bf16.msra.mxu0 %v2089
        %2111 = vmatpush.bf16.msra.mxu0 %v2087
        %2112 = vmatpush.bf16.msra.mxu0 %v2085
        %2113 = vmatpush.bf16.msra.mxu0 %v2083
        %2114 = vmatmul.bf16.gmra.mxu0 %v2066
        %v2115 = vpop.f32.mrf.mxu0
        %v2116 = vadd.f32 0.0, %v2115
        %v2117 = vpop.f32.mrf.mxu0
        %v2118 = vadd.f32 0.0, %v2117
        %2119 = vmatmul.bf16.gmra.mxu0 %v2067
        %v2120 = vpop.f32.mrf.mxu0
        %v2121 = vadd.f32 0.0, %v2120
        %v2122 = vpop.f32.mrf.mxu0
        %v2123 = vadd.f32 0.0, %v2122
        %2124 = vmatmul.bf16.gmra.mxu0 %v2068
        %v2125 = vpop.f32.mrf.mxu0
        %v2126 = vadd.f32 0.0, %v2125
        %v2127 = vpop.f32.mrf.mxu0
        %v2128 = vadd.f32 0.0, %v2127
        %2129 = vmatmul.bf16.gmra.mxu0 %v2069
        %v2130 = vpop.f32.mrf.mxu0
        %v2131 = vadd.f32 0.0, %v2130
        %v2132 = vpop.f32.mrf.mxu0
        %v2133 = vadd.f32 0.0, %v2132
        %2134 = vmatmul.bf16.gmra.mxu0 %v2070
        %v2135 = vpop.f32.mrf.mxu0
        %v2136 = vadd.f32 0.0, %v2135
        %v2137 = vpop.f32.mrf.mxu0
        %v2138 = vadd.f32 0.0, %v2137
        %2139 = vmatmul.bf16.gmra.mxu0 %v2071
        %v2140 = vpop.f32.mrf.mxu0
        %v2141 = vadd.f32 0.0, %v2140
        %v2142 = vpop.f32.mrf.mxu0
        %v2143 = vadd.f32 0.0, %v2142
        %2144 = vmatmul.bf16.gmra.mxu0 %v2072
        %v2145 = vpop.f32.mrf.mxu0
        %v2146 = vadd.f32 0.0, %v2145
        %v2147 = vpop.f32.mrf.mxu0
        %v2148 = vadd.f32 0.0, %v2147
        %2149 = vmatmul.bf16.gmra.mxu0 %v2073
        %v2150 = vpop.f32.mrf.mxu0
        %v2151 = vadd.f32 0.0, %v2150
        %v2152 = vpop.f32.mrf.mxu0
        %v2153 = vadd.f32 0.0, %v2152
        %2154 = vdwg.mxu0
        %2155 = vrot.lane.b32.xlu0 %v1038, 64
        %v2156 = vpop.permute.xlu0 %2155
        %2157 = vrot.lane.b32.xlu0 %v1039, 64
        %v2158 = vpop.permute.xlu0 %2157
        %2159 = vrot.lane.b32.xlu0 %v1040, 64
        %v2160 = vpop.permute.xlu0 %2159
        %2161 = vrot.lane.b32.xlu0 %v1041, 64
        %v2162 = vpop.permute.xlu0 %2161
        %2163 = vrot.lane.b32.xlu0 %v1042, 64
        %v2164 = vpop.permute.xlu0 %2163
        %2165 = vrot.lane.b32.xlu0 %v1043, 64
        %v2166 = vpop.permute.xlu0 %2165
        %2167 = vrot.lane.b32.xlu0 %v1044, 64
        %v2168 = vpop.permute.xlu0 %2167
        %2169 = vrot.lane.b32.xlu0 %v1045, 64
        %v2170 = vpop.permute.xlu0 %2169
        %2171 = vrot.lane.b32.xlu0 %v1046, 64
        %v2172 = vpop.permute.xlu0 %2171
        %2173 = vrot.lane.b32.xlu0 %v1047, 64
        %v2174 = vpop.permute.xlu0 %2173
        %2175 = vrot.lane.b32.xlu0 %v1048, 64
        %v2176 = vpop.permute.xlu0 %2175
        %2177 = vrot.lane.b32.xlu0 %v1049, 64
        %v2178 = vpop.permute.xlu0 %2177
        %2179 = vrot.lane.b32.xlu0 %v1050, 64
        %v2180 = vpop.permute.xlu0 %2179
        %2181 = vrot.lane.b32.xlu0 %v1051, 64
        %v2182 = vpop.permute.xlu0 %2181
        %2183 = vrot.lane.b32.xlu0 %v1052, 64
        %v2184 = vpop.permute.xlu0 %2183
        %2185 = vrot.lane.b32.xlu0 %v1053, 64
        %v2186 = vpop.permute.xlu0 %2185
        %v2188 = vsel %vm1062, %v2156, 0
        %v2191 = vsel %vm1062, %v2158, 0
        %v2194 = vsel %vm1062, %v2160, 0
        %v2197 = vsel %vm1062, %v2162, 0
        %v2200 = vsel %vm1062, %v2164, 0
        %v2203 = vsel %vm1062, %v2166, 0
        %v2206 = vsel %vm1062, %v2168, 0
        %v2209 = vsel %vm1062, %v2170, 0
        %v2212 = vsel %vm1062, %v2172, 0
        %v2215 = vsel %vm1062, %v2174, 0
        %v2218 = vsel %vm1062, %v2176, 0
        %v2221 = vsel %vm1062, %v2178, 0
        %v2224 = vsel %vm1062, %v2180, 0
        %v2227 = vsel %vm1062, %v2182, 0
        %v2230 = vsel %vm1062, %v2184, 0
        %v2233 = vsel %vm1062, %v2186, 0
        %2235 = vmatpush.bf16.xpose.msra.mxu0 %v2233
        %2236 = vmatpush.bf16.xpose.msra.mxu0 %v2230
        %2237 = vmatpush.bf16.xpose.msra.mxu0 %v2227
        %2238 = vmatpush.bf16.xpose.msra.mxu0 %v2224
        %2239 = vmatpush.bf16.xpose.msra.mxu0 %v2221
        %2240 = vmatpush.bf16.xpose.msra.mxu0 %v2218
        %2241 = vmatpush.bf16.xpose.msra.mxu0 %v2215
        %2242 = vmatpush.bf16.xpose.msra.mxu0 %v2212
        %2243 = vmatmul.bf16.gmra.mxu0 %v2188
        %v2244 = vpop.f32.mrf.mxu0
        %v2245 = vadd.f32 0.0, %v2244
        %v2246 = vpop.f32.mrf.mxu0
        %v2247 = vadd.f32 0.0, %v2246
        %2248 = vmatmul.bf16.gmra.mxu0 %v2191
        %v2249 = vpop.f32.mrf.mxu0
        %v2250 = vadd.f32 0.0, %v2249
        %v2251 = vpop.f32.mrf.mxu0
        %v2252 = vadd.f32 0.0, %v2251
        %2253 = vmatmul.bf16.gmra.mxu0 %v2194
        %v2254 = vpop.f32.mrf.mxu0
        %v2255 = vadd.f32 0.0, %v2254
        %v2256 = vpop.f32.mrf.mxu0
        %v2257 = vadd.f32 0.0, %v2256
        %2258 = vmatmul.bf16.gmra.mxu0 %v2197
        %v2259 = vpop.f32.mrf.mxu0
        %v2260 = vadd.f32 0.0, %v2259
        %v2261 = vpop.f32.mrf.mxu0
        %v2262 = vadd.f32 0.0, %v2261
        %2263 = vmatmul.bf16.gmra.mxu0 %v2200
        %v2264 = vpop.f32.mrf.mxu0
        %v2265 = vadd.f32 0.0, %v2264
        %v2266 = vpop.f32.mrf.mxu0
        %v2267 = vadd.f32 0.0, %v2266
        %2268 = vmatmul.bf16.gmra.mxu0 %v2203
        %v2269 = vpop.f32.mrf.mxu0
        %v2270 = vadd.f32 0.0, %v2269
        %v2271 = vpop.f32.mrf.mxu0
        %v2272 = vadd.f32 0.0, %v2271
        %2273 = vmatmul.bf16.gmra.mxu0 %v2206
        %v2274 = vpop.f32.mrf.mxu0
        %v2275 = vadd.f32 0.0, %v2274
        %v2276 = vpop.f32.mrf.mxu0
        %v2277 = vadd.f32 0.0, %v2276
        %2278 = vmatmul.bf16.gmra.mxu0 %v2209
        %v2279 = vpop.f32.mrf.mxu0
        %v2280 = vadd.f32 0.0, %v2279
        %v2281 = vpop.f32.mrf.mxu0
        %v2282 = vadd.f32 0.0, %v2281
        %2283 = vdwg.mxu0
        %2284 = vmax.xlane.f32.xlu0 %v2245
        %v2285 = vpop.xlane.xlu0 %2284
        %2286 = vmax.xlane.f32.xlu0 %v2247
        %v2287 = vpop.xlane.xlu0 %2286
        %2288 = vmax.xlane.f32.xlu0 %v2250
        %v2289 = vpop.xlane.xlu0 %2288
        %2290 = vmax.xlane.f32.xlu0 %v2252
        %v2291 = vpop.xlane.xlu0 %2290
        %2292 = vmax.xlane.f32.xlu0 %v2255
        %v2293 = vpop.xlane.xlu0 %2292
        %2294 = vmax.xlane.f32.xlu0 %v2257
        %v2295 = vpop.xlane.xlu0 %2294
        %2296 = vmax.xlane.f32.xlu0 %v2260
        %v2297 = vpop.xlane.xlu0 %2296
        %2298 = vmax.xlane.f32.xlu0 %v2262
        %v2299 = vpop.xlane.xlu0 %2298
        %2300 = vmax.xlane.f32.xlu0 %v2265
        %v2301 = vpop.xlane.xlu0 %2300
        %2302 = vmax.xlane.f32.xlu0 %v2267
        %v2303 = vpop.xlane.xlu0 %2302
        %2304 = vmax.xlane.f32.xlu0 %v2270
        %v2305 = vpop.xlane.xlu0 %2304
        %2306 = vmax.xlane.f32.xlu0 %v2272
        %v2307 = vpop.xlane.xlu0 %2306
        %2308 = vmax.xlane.f32.xlu0 %v2275
        %v2309 = vpop.xlane.xlu0 %2308
        %2310 = vmax.xlane.f32.xlu0 %v2277
        %v2311 = vpop.xlane.xlu0 %2310
        %2312 = vmax.xlane.f32.xlu0 %v2280
        %v2313 = vpop.xlane.xlu0 %2312
        %2314 = vmax.xlane.f32.xlu0 %v2282
        %v2315 = vpop.xlane.xlu0 %2314
        %v2316 = vsub.f32 %v2245, %v2285
        %v2317 = vsub.f32 %v2247, %v2287
        %v2318 = vsub.f32 %v2250, %v2289
        %v2319 = vsub.f32 %v2252, %v2291
        %v2320 = vsub.f32 %v2255, %v2293
        %v2321 = vsub.f32 %v2257, %v2295
        %v2322 = vsub.f32 %v2260, %v2297
        %v2323 = vsub.f32 %v2262, %v2299
        %v2324 = vsub.f32 %v2265, %v2301
        %v2325 = vsub.f32 %v2267, %v2303
        %v2326 = vsub.f32 %v2270, %v2305
        %v2327 = vsub.f32 %v2272, %v2307
        %v2328 = vsub.f32 %v2275, %v2309
        %v2329 = vsub.f32 %v2277, %v2311
        %v2330 = vsub.f32 %v2280, %v2313
        %v2331 = vsub.f32 %v2282, %v2315
        %v2332 = vmul.f32 %v2316, 1.442695
        %v2333 = vpow.pop %v2332
        %v2334 = vmul.f32 %v2317, 1.442695
        %v2335 = vpow.pop %v2334
        %v2336 = vmul.f32 %v2318, 1.442695
        %v2337 = vpow.pop %v2336
        %v2338 = vmul.f32 %v2319, 1.442695
        %v2339 = vpow.pop %v2338
        %v2340 = vmul.f32 %v2320, 1.442695
        %v2341 = vpow.pop %v2340
        %v2342 = vmul.f32 %v2321, 1.442695
        %v2343 = vpow.pop %v2342
        %v2344 = vmul.f32 %v2322, 1.442695
        %v2345 = vpow.pop %v2344
        %v2346 = vmul.f32 %v2323, 1.442695
        %v2347 = vpow.pop %v2346
        %v2348 = vmul.f32 %v2324, 1.442695
        %v2349 = vpow.pop %v2348
        %v2350 = vmul.f32 %v2325, 1.442695
        %v2351 = vpow.pop %v2350
        %v2352 = vmul.f32 %v2326, 1.442695
        %v2353 = vpow.pop %v2352
        %v2354 = vmul.f32 %v2327, 1.442695
        %v2355 = vpow.pop %v2354
        %v2356 = vmul.f32 %v2328, 1.442695
        %v2357 = vpow.pop %v2356
        %v2358 = vmul.f32 %v2329, 1.442695
        %v2359 = vpow.pop %v2358
        %v2360 = vmul.f32 %v2330, 1.442695
        %v2361 = vpow.pop %v2360
        %v2362 = vmul.f32 %v2331, 1.442695
        %v2363 = vpow.pop %v2362
        %2364 = vadd.xlane.f32.xlu0 %v2333
        %v2365 = vpop.xlane.xlu0 %2364
        %2366 = vadd.xlane.f32.xlu0 %v2335
        %v2367 = vpop.xlane.xlu0 %2366
        %2368 = vadd.xlane.f32.xlu0 %v2337
        %v2369 = vpop.xlane.xlu0 %2368
        %2370 = vadd.xlane.f32.xlu0 %v2339
        %v2371 = vpop.xlane.xlu0 %2370
        %2372 = vadd.xlane.f32.xlu0 %v2341
        %v2373 = vpop.xlane.xlu0 %2372
        %2374 = vadd.xlane.f32.xlu0 %v2343
        %v2375 = vpop.xlane.xlu0 %2374
        %2376 = vadd.xlane.f32.xlu0 %v2345
        %v2377 = vpop.xlane.xlu0 %2376
        %2378 = vadd.xlane.f32.xlu0 %v2347
        %v2379 = vpop.xlane.xlu0 %2378
        %2380 = vadd.xlane.f32.xlu0 %v2349
        %v2381 = vpop.xlane.xlu0 %2380
        %2382 = vadd.xlane.f32.xlu0 %v2351
        %v2383 = vpop.xlane.xlu0 %2382
        %2384 = vadd.xlane.f32.xlu0 %v2353
        %v2385 = vpop.xlane.xlu0 %2384
        %2386 = vadd.xlane.f32.xlu0 %v2355
        %v2387 = vpop.xlane.xlu0 %2386
        %2388 = vadd.xlane.f32.xlu0 %v2357
        %v2389 = vpop.xlane.xlu0 %2388
        %2390 = vadd.xlane.f32.xlu0 %v2359
        %v2391 = vpop.xlane.xlu0 %2390
        %2392 = vadd.xlane.f32.xlu0 %v2361
        %v2393 = vpop.xlane.xlu0 %2392
        %2394 = vadd.xlane.f32.xlu0 %v2363
        %v2395 = vpop.xlane.xlu0 %2394
        %v2396 = vrcp.pop %v2365
        %v2397 = vmul.f32 %v2365, %v2396
        %v2398 = vsub.f32 1.0, %v2397
        %v2399 = vmul.f32 %v2396, %v2398
        %v2400 = vadd.f32 %v2396, %v2399
        %vm2401 = vweird.f32 %v2365
        %vm2402 = vweird.f32 %v2396
        %vm2403 = vmor %vm2401, %vm2402
        %v2404 = vsel %vm2403, %v2396, %v2400
        %v2405 = vand.u32 2147483647, %v2365
        %vm2406 = vcmp.eq.f32.partialorder %v2405, 8.507059e+37
        %v2407 = vand.u32 %v2365, 2147483648
        %v2408 = vor.u32 1.1754944e-38, %v2407
        %v2409 = vsel %vm2406, %v2408, %v2404
        %v2410 = vmul.f32 %v2333, %v2409
        %v2411 = vrcp.pop %v2367
        %v2412 = vmul.f32 %v2367, %v2411
        %v2413 = vsub.f32 1.0, %v2412
        %v2414 = vmul.f32 %v2411, %v2413
        %v2415 = vadd.f32 %v2411, %v2414
        %vm2416 = vweird.f32 %v2367
        %vm2417 = vweird.f32 %v2411
        %vm2418 = vmor %vm2416, %vm2417
        %v2419 = vsel %vm2418, %v2411, %v2415
        %v2420 = vand.u32 2147483647, %v2367
        %vm2421 = vcmp.eq.f32.partialorder %v2420, 8.507059e+37
        %v2422 = vand.u32 %v2367, 2147483648
        %v2423 = vor.u32 1.1754944e-38, %v2422
        %v2424 = vsel %vm2421, %v2423, %v2419
        %v2425 = vmul.f32 %v2335, %v2424
        %v2426 = vrcp.pop %v2369
        %v2427 = vmul.f32 %v2369, %v2426
        %v2428 = vsub.f32 1.0, %v2427
        %v2429 = vmul.f32 %v2426, %v2428
        %v2430 = vadd.f32 %v2426, %v2429
        %vm2431 = vweird.f32 %v2369
        %vm2432 = vweird.f32 %v2426
        %vm2433 = vmor %vm2431, %vm2432
        %v2434 = vsel %vm2433, %v2426, %v2430
        %v2435 = vand.u32 2147483647, %v2369
        %vm2436 = vcmp.eq.f32.partialorder %v2435, 8.507059e+37
        %v2437 = vand.u32 %v2369, 2147483648
        %v2438 = vor.u32 1.1754944e-38, %v2437
        %v2439 = vsel %vm2436, %v2438, %v2434
        %v2440 = vmul.f32 %v2337, %v2439
        %v2441 = vrcp.pop %v2371
        %v2442 = vmul.f32 %v2371, %v2441
        %v2443 = vsub.f32 1.0, %v2442
        %v2444 = vmul.f32 %v2441, %v2443
        %v2445 = vadd.f32 %v2441, %v2444
        %vm2446 = vweird.f32 %v2371
        %vm2447 = vweird.f32 %v2441
        %vm2448 = vmor %vm2446, %vm2447
        %v2449 = vsel %vm2448, %v2441, %v2445
        %v2450 = vand.u32 2147483647, %v2371
        %vm2451 = vcmp.eq.f32.partialorder %v2450, 8.507059e+37
        %v2452 = vand.u32 %v2371, 2147483648
        %v2453 = vor.u32 1.1754944e-38, %v2452
        %v2454 = vsel %vm2451, %v2453, %v2449
        %v2455 = vmul.f32 %v2339, %v2454
        %v2456 = vrcp.pop %v2373
        %v2457 = vmul.f32 %v2373, %v2456
        %v2458 = vsub.f32 1.0, %v2457
        %v2459 = vmul.f32 %v2456, %v2458
        %v2460 = vadd.f32 %v2456, %v2459
        %vm2461 = vweird.f32 %v2373
        %vm2462 = vweird.f32 %v2456
        %vm2463 = vmor %vm2461, %vm2462
        %v2464 = vsel %vm2463, %v2456, %v2460
        %v2465 = vand.u32 2147483647, %v2373
        %vm2466 = vcmp.eq.f32.partialorder %v2465, 8.507059e+37
        %v2467 = vand.u32 %v2373, 2147483648
        %v2468 = vor.u32 1.1754944e-38, %v2467
        %v2469 = vsel %vm2466, %v2468, %v2464
        %v2470 = vmul.f32 %v2341, %v2469
        %v2471 = vrcp.pop %v2375
        %v2472 = vmul.f32 %v2375, %v2471
        %v2473 = vsub.f32 1.0, %v2472
        %v2474 = vmul.f32 %v2471, %v2473
        %v2475 = vadd.f32 %v2471, %v2474
        %vm2476 = vweird.f32 %v2375
        %vm2477 = vweird.f32 %v2471
        %vm2478 = vmor %vm2476, %vm2477
        %v2479 = vsel %vm2478, %v2471, %v2475
        %v2480 = vand.u32 2147483647, %v2375
        %vm2481 = vcmp.eq.f32.partialorder %v2480, 8.507059e+37
        %v2482 = vand.u32 %v2375, 2147483648
        %v2483 = vor.u32 1.1754944e-38, %v2482
        %v2484 = vsel %vm2481, %v2483, %v2479
        %v2485 = vmul.f32 %v2343, %v2484
        %v2486 = vrcp.pop %v2377
        %v2487 = vmul.f32 %v2377, %v2486
        %v2488 = vsub.f32 1.0, %v2487
        %v2489 = vmul.f32 %v2486, %v2488
        %v2490 = vadd.f32 %v2486, %v2489
        %vm2491 = vweird.f32 %v2377
        %vm2492 = vweird.f32 %v2486
        %vm2493 = vmor %vm2491, %vm2492
        %v2494 = vsel %vm2493, %v2486, %v2490
        %v2495 = vand.u32 2147483647, %v2377
        %vm2496 = vcmp.eq.f32.partialorder %v2495, 8.507059e+37
        %v2497 = vand.u32 %v2377, 2147483648
        %v2498 = vor.u32 1.1754944e-38, %v2497
        %v2499 = vsel %vm2496, %v2498, %v2494
        %v2500 = vmul.f32 %v2345, %v2499
        %v2501 = vrcp.pop %v2379
        %v2502 = vmul.f32 %v2379, %v2501
        %v2503 = vsub.f32 1.0, %v2502
        %v2504 = vmul.f32 %v2501, %v2503
        %v2505 = vadd.f32 %v2501, %v2504
        %vm2506 = vweird.f32 %v2379
        %vm2507 = vweird.f32 %v2501
        %vm2508 = vmor %vm2506, %vm2507
        %v2509 = vsel %vm2508, %v2501, %v2505
        %v2510 = vand.u32 2147483647, %v2379
        %vm2511 = vcmp.eq.f32.partialorder %v2510, 8.507059e+37
        %v2512 = vand.u32 %v2379, 2147483648
        %v2513 = vor.u32 1.1754944e-38, %v2512
        %v2514 = vsel %vm2511, %v2513, %v2509
        %v2515 = vmul.f32 %v2347, %v2514
        %v2516 = vrcp.pop %v2381
        %v2517 = vmul.f32 %v2381, %v2516
        %v2518 = vsub.f32 1.0, %v2517
        %v2519 = vmul.f32 %v2516, %v2518
        %v2520 = vadd.f32 %v2516, %v2519
        %vm2521 = vweird.f32 %v2381
        %vm2522 = vweird.f32 %v2516
        %vm2523 = vmor %vm2521, %vm2522
        %v2524 = vsel %vm2523, %v2516, %v2520
        %v2525 = vand.u32 2147483647, %v2381
        %vm2526 = vcmp.eq.f32.partialorder %v2525, 8.507059e+37
        %v2527 = vand.u32 %v2381, 2147483648
        %v2528 = vor.u32 1.1754944e-38, %v2527
        %v2529 = vsel %vm2526, %v2528, %v2524
        %v2530 = vmul.f32 %v2349, %v2529
        %v2531 = vrcp.pop %v2383
        %v2532 = vmul.f32 %v2383, %v2531
        %v2533 = vsub.f32 1.0, %v2532
        %v2534 = vmul.f32 %v2531, %v2533
        %v2535 = vadd.f32 %v2531, %v2534
        %vm2536 = vweird.f32 %v2383
        %vm2537 = vweird.f32 %v2531
        %vm2538 = vmor %vm2536, %vm2537
        %v2539 = vsel %vm2538, %v2531, %v2535
        %v2540 = vand.u32 2147483647, %v2383
        %vm2541 = vcmp.eq.f32.partialorder %v2540, 8.507059e+37
        %v2542 = vand.u32 %v2383, 2147483648
        %v2543 = vor.u32 1.1754944e-38, %v2542
        %v2544 = vsel %vm2541, %v2543, %v2539
        %v2545 = vmul.f32 %v2351, %v2544
        %v2546 = vrcp.pop %v2385
        %v2547 = vmul.f32 %v2385, %v2546
        %v2548 = vsub.f32 1.0, %v2547
        %v2549 = vmul.f32 %v2546, %v2548
        %v2550 = vadd.f32 %v2546, %v2549
        %vm2551 = vweird.f32 %v2385
        %vm2552 = vweird.f32 %v2546
        %vm2553 = vmor %vm2551, %vm2552
        %v2554 = vsel %vm2553, %v2546, %v2550
        %v2555 = vand.u32 2147483647, %v2385
        %vm2556 = vcmp.eq.f32.partialorder %v2555, 8.507059e+37
        %v2557 = vand.u32 %v2385, 2147483648
        %v2558 = vor.u32 1.1754944e-38, %v2557
        %v2559 = vsel %vm2556, %v2558, %v2554
        %v2560 = vmul.f32 %v2353, %v2559
        %v2561 = vrcp.pop %v2387
        %v2562 = vmul.f32 %v2387, %v2561
        %v2563 = vsub.f32 1.0, %v2562
        %v2564 = vmul.f32 %v2561, %v2563
        %v2565 = vadd.f32 %v2561, %v2564
        %vm2566 = vweird.f32 %v2387
        %vm2567 = vweird.f32 %v2561
        %vm2568 = vmor %vm2566, %vm2567
        %v2569 = vsel %vm2568, %v2561, %v2565
        %v2570 = vand.u32 2147483647, %v2387
        %vm2571 = vcmp.eq.f32.partialorder %v2570, 8.507059e+37
        %v2572 = vand.u32 %v2387, 2147483648
        %v2573 = vor.u32 1.1754944e-38, %v2572
        %v2574 = vsel %vm2571, %v2573, %v2569
        %v2575 = vmul.f32 %v2355, %v2574
        %v2576 = vrcp.pop %v2389
        %v2577 = vmul.f32 %v2389, %v2576
        %v2578 = vsub.f32 1.0, %v2577
        %v2579 = vmul.f32 %v2576, %v2578
        %v2580 = vadd.f32 %v2576, %v2579
        %vm2581 = vweird.f32 %v2389
        %vm2582 = vweird.f32 %v2576
        %vm2583 = vmor %vm2581, %vm2582
        %v2584 = vsel %vm2583, %v2576, %v2580
        %v2585 = vand.u32 2147483647, %v2389
        %vm2586 = vcmp.eq.f32.partialorder %v2585, 8.507059e+37
        %v2587 = vand.u32 %v2389, 2147483648
        %v2588 = vor.u32 1.1754944e-38, %v2587
        %v2589 = vsel %vm2586, %v2588, %v2584
        %v2590 = vmul.f32 %v2357, %v2589
        %v2591 = vrcp.pop %v2391
        %v2592 = vmul.f32 %v2391, %v2591
        %v2593 = vsub.f32 1.0, %v2592
        %v2594 = vmul.f32 %v2591, %v2593
        %v2595 = vadd.f32 %v2591, %v2594
        %vm2596 = vweird.f32 %v2391
        %vm2597 = vweird.f32 %v2591
        %vm2598 = vmor %vm2596, %vm2597
        %v2599 = vsel %vm2598, %v2591, %v2595
        %v2600 = vand.u32 2147483647, %v2391
        %vm2601 = vcmp.eq.f32.partialorder %v2600, 8.507059e+37
        %v2602 = vand.u32 %v2391, 2147483648
        %v2603 = vor.u32 1.1754944e-38, %v2602
        %v2604 = vsel %vm2601, %v2603, %v2599
        %v2605 = vmul.f32 %v2359, %v2604
        %v2606 = vrcp.pop %v2393
        %v2607 = vmul.f32 %v2393, %v2606
        %v2608 = vsub.f32 1.0, %v2607
        %v2609 = vmul.f32 %v2606, %v2608
        %v2610 = vadd.f32 %v2606, %v2609
        %vm2611 = vweird.f32 %v2393
        %vm2612 = vweird.f32 %v2606
        %vm2613 = vmor %vm2611, %vm2612
        %v2614 = vsel %vm2613, %v2606, %v2610
        %v2615 = vand.u32 2147483647, %v2393
        %vm2616 = vcmp.eq.f32.partialorder %v2615, 8.507059e+37
        %v2617 = vand.u32 %v2393, 2147483648
        %v2618 = vor.u32 1.1754944e-38, %v2617
        %v2619 = vsel %vm2616, %v2618, %v2614
        %v2620 = vmul.f32 %v2361, %v2619
        %v2621 = vrcp.pop %v2395
        %v2622 = vmul.f32 %v2395, %v2621
        %v2623 = vsub.f32 1.0, %v2622
        %v2624 = vmul.f32 %v2621, %v2623
        %v2625 = vadd.f32 %v2621, %v2624
        %vm2626 = vweird.f32 %v2395
        %vm2627 = vweird.f32 %v2621
        %vm2628 = vmor %vm2626, %vm2627
        %v2629 = vsel %vm2628, %v2621, %v2625
        %v2630 = vand.u32 2147483647, %v2395
        %vm2631 = vcmp.eq.f32.partialorder %v2630, 8.507059e+37
        %v2632 = vand.u32 %v2395, 2147483648
        %v2633 = vor.u32 1.1754944e-38, %v2632
        %v2634 = vsel %vm2631, %v2633, %v2629
        %v2635 = vmul.f32 %v2363, %v2634
        %v2636 = vpack.c.bf16 %v2425, %v2410
        %v2637 = vpack.c.bf16 %v2455, %v2440
        %v2638 = vpack.c.bf16 %v2485, %v2470
        %v2639 = vpack.c.bf16 %v2515, %v2500
        %v2640 = vpack.c.bf16 %v2545, %v2530
        %v2641 = vpack.c.bf16 %v2575, %v2560
        %v2642 = vpack.c.bf16 %v2605, %v2590
        %v2643 = vpack.c.bf16 %v2635, %v2620
        %2644 = vrot.lane.b32.xlu0 %v1054, 64
        %v2645 = vpop.permute.xlu0 %2644
        %2646 = vrot.lane.b32.xlu0 %v1055, 64
        %v2647 = vpop.permute.xlu0 %2646
        %2648 = vrot.lane.b32.xlu0 %v1056, 64
        %v2649 = vpop.permute.xlu0 %2648
        %2650 = vrot.lane.b32.xlu0 %v1057, 64
        %v2651 = vpop.permute.xlu0 %2650
        %2652 = vrot.lane.b32.xlu0 %v1058, 64
        %v2653 = vpop.permute.xlu0 %2652
        %2654 = vrot.lane.b32.xlu0 %v1059, 64
        %v2655 = vpop.permute.xlu0 %2654
        %2656 = vrot.lane.b32.xlu0 %v1060, 64
        %v2657 = vpop.permute.xlu0 %2656
        %2658 = vrot.lane.b32.xlu0 %v1061, 64
        %v2659 = vpop.permute.xlu0 %2658
        %2668 = vmatpush.bf16.msra.mxu0 %v2659
        %2669 = vmatpush.bf16.msra.mxu0 %v2657
        %2670 = vmatpush.bf16.msra.mxu0 %v2655
        %2671 = vmatpush.bf16.msra.mxu0 %v2653
        %2672 = vmatpush.bf16.msra.mxu0 %v2651
        %2673 = vmatpush.bf16.msra.mxu0 %v2649
        %2674 = vmatpush.bf16.msra.mxu0 %v2647
        %2675 = vmatpush.bf16.msra.mxu0 %v2645
        %2676 = vmatmul.bf16.gmra.mxu0 %v2636
        %v2677 = vpop.f32.mrf.mxu0
        %v2678 = vadd.f32 0.0, %v2677
        %v2679 = vpop.f32.mrf.mxu0
        %v2680 = vadd.f32 0.0, %v2679
        %2681 = vmatmul.bf16.gmra.mxu0 %v2637
        %v2682 = vpop.f32.mrf.mxu0
        %v2683 = vadd.f32 0.0, %v2682
        %v2684 = vpop.f32.mrf.mxu0
        %v2685 = vadd.f32 0.0, %v2684
        %2686 = vmatmul.bf16.gmra.mxu0 %v2638
        %v2687 = vpop.f32.mrf.mxu0
        %v2688 = vadd.f32 0.0, %v2687
        %v2689 = vpop.f32.mrf.mxu0
        %v2690 = vadd.f32 0.0, %v2689
        %2691 = vmatmul.bf16.gmra.mxu0 %v2639
        %v2692 = vpop.f32.mrf.mxu0
        %v2693 = vadd.f32 0.0, %v2692
        %v2694 = vpop.f32.mrf.mxu0
        %v2695 = vadd.f32 0.0, %v2694
        %2696 = vmatmul.bf16.gmra.mxu0 %v2640
        %v2697 = vpop.f32.mrf.mxu0
        %v2698 = vadd.f32 0.0, %v2697
        %v2699 = vpop.f32.mrf.mxu0
        %v2700 = vadd.f32 0.0, %v2699
        %2701 = vmatmul.bf16.gmra.mxu0 %v2641
        %v2702 = vpop.f32.mrf.mxu0
        %v2703 = vadd.f32 0.0, %v2702
        %v2704 = vpop.f32.mrf.mxu0
        %v2705 = vadd.f32 0.0, %v2704
        %2706 = vmatmul.bf16.gmra.mxu0 %v2642
        %v2707 = vpop.f32.mrf.mxu0
        %v2708 = vadd.f32 0.0, %v2707
        %v2709 = vpop.f32.mrf.mxu0
        %v2710 = vadd.f32 0.0, %v2709
        %2711 = vmatmul.bf16.gmra.mxu0 %v2643
        %v2712 = vpop.f32.mrf.mxu0
        %v2713 = vadd.f32 0.0, %v2712
        %v2714 = vpop.f32.mrf.mxu0
        %v2715 = vadd.f32 0.0, %v2714
        %2716 = vdwg.mxu0
        %2717 = vrot.lane.b32.xlu0 %v1038, 32
        %v2718 = vpop.permute.xlu0 %2717
        %2719 = vrot.lane.b32.xlu0 %v1039, 32
        %v2720 = vpop.permute.xlu0 %2719
        %2721 = vrot.lane.b32.xlu0 %v1040, 32
        %v2722 = vpop.permute.xlu0 %2721
        %2723 = vrot.lane.b32.xlu0 %v1041, 32
        %v2724 = vpop.permute.xlu0 %2723
        %2725 = vrot.lane.b32.xlu0 %v1042, 32
        %v2726 = vpop.permute.xlu0 %2725
        %2727 = vrot.lane.b32.xlu0 %v1043, 32
        %v2728 = vpop.permute.xlu0 %2727
        %2729 = vrot.lane.b32.xlu0 %v1044, 32
        %v2730 = vpop.permute.xlu0 %2729
        %2731 = vrot.lane.b32.xlu0 %v1045, 32
        %v2732 = vpop.permute.xlu0 %2731
        %2733 = vrot.lane.b32.xlu0 %v1046, 32
        %v2734 = vpop.permute.xlu0 %2733
        %2735 = vrot.lane.b32.xlu0 %v1047, 32
        %v2736 = vpop.permute.xlu0 %2735
        %2737 = vrot.lane.b32.xlu0 %v1048, 32
        %v2738 = vpop.permute.xlu0 %2737
        %2739 = vrot.lane.b32.xlu0 %v1049, 32
        %v2740 = vpop.permute.xlu0 %2739
        %2741 = vrot.lane.b32.xlu0 %v1050, 32
        %v2742 = vpop.permute.xlu0 %2741
        %2743 = vrot.lane.b32.xlu0 %v1051, 32
        %v2744 = vpop.permute.xlu0 %2743
        %2745 = vrot.lane.b32.xlu0 %v1052, 32
        %v2746 = vpop.permute.xlu0 %2745
        %2747 = vrot.lane.b32.xlu0 %v1053, 32
        %v2748 = vpop.permute.xlu0 %2747
        %v2750 = vsel %vm1062, %v2718, 0
        %v2753 = vsel %vm1062, %v2720, 0
        %v2756 = vsel %vm1062, %v2722, 0
        %v2759 = vsel %vm1062, %v2724, 0
        %v2762 = vsel %vm1062, %v2726, 0
        %v2765 = vsel %vm1062, %v2728, 0
        %v2768 = vsel %vm1062, %v2730, 0
        %v2771 = vsel %vm1062, %v2732, 0
        %v2774 = vsel %vm1062, %v2734, 0
        %v2777 = vsel %vm1062, %v2736, 0
        %v2780 = vsel %vm1062, %v2738, 0
        %v2783 = vsel %vm1062, %v2740, 0
        %v2786 = vsel %vm1062, %v2742, 0
        %v2789 = vsel %vm1062, %v2744, 0
        %v2792 = vsel %vm1062, %v2746, 0
        %v2795 = vsel %vm1062, %v2748, 0
        %2797 = vmatpush.bf16.xpose.msra.mxu0 %v2795
        %2798 = vmatpush.bf16.xpose.msra.mxu0 %v2792
        %2799 = vmatpush.bf16.xpose.msra.mxu0 %v2789
        %2800 = vmatpush.bf16.xpose.msra.mxu0 %v2786
        %2801 = vmatpush.bf16.xpose.msra.mxu0 %v2783
        %2802 = vmatpush.bf16.xpose.msra.mxu0 %v2780
        %2803 = vmatpush.bf16.xpose.msra.mxu0 %v2777
        %2804 = vmatpush.bf16.xpose.msra.mxu0 %v2774
        %2805 = vmatmul.bf16.gmra.mxu0 %v2750
        %v2806 = vpop.f32.mrf.mxu0
        %v2807 = vadd.f32 0.0, %v2806
        %v2808 = vpop.f32.mrf.mxu0
        %v2809 = vadd.f32 0.0, %v2808
        %2810 = vmatmul.bf16.gmra.mxu0 %v2753
        %v2811 = vpop.f32.mrf.mxu0
        %v2812 = vadd.f32 0.0, %v2811
        %v2813 = vpop.f32.mrf.mxu0
        %v2814 = vadd.f32 0.0, %v2813
        %2815 = vmatmul.bf16.gmra.mxu0 %v2756
        %v2816 = vpop.f32.mrf.mxu0
        %v2817 = vadd.f32 0.0, %v2816
        %v2818 = vpop.f32.mrf.mxu0
        %v2819 = vadd.f32 0.0, %v2818
        %2820 = vmatmul.bf16.gmra.mxu0 %v2759
        %v2821 = vpop.f32.mrf.mxu0
        %v2822 = vadd.f32 0.0, %v2821
        %v2823 = vpop.f32.mrf.mxu0
        %v2824 = vadd.f32 0.0, %v2823
        %2825 = vmatmul.bf16.gmra.mxu0 %v2762
        %v2826 = vpop.f32.mrf.mxu0
        %v2827 = vadd.f32 0.0, %v2826
        %v2828 = vpop.f32.mrf.mxu0
        %v2829 = vadd.f32 0.0, %v2828
        %2830 = vmatmul.bf16.gmra.mxu0 %v2765
        %v2831 = vpop.f32.mrf.mxu0
        %v2832 = vadd.f32 0.0, %v2831
        %v2833 = vpop.f32.mrf.mxu0
        %v2834 = vadd.f32 0.0, %v2833
        %2835 = vmatmul.bf16.gmra.mxu0 %v2768
        %v2836 = vpop.f32.mrf.mxu0
        %v2837 = vadd.f32 0.0, %v2836
        %v2838 = vpop.f32.mrf.mxu0
        %v2839 = vadd.f32 0.0, %v2838
        %2840 = vmatmul.bf16.gmra.mxu0 %v2771
        %v2841 = vpop.f32.mrf.mxu0
        %v2842 = vadd.f32 0.0, %v2841
        %v2843 = vpop.f32.mrf.mxu0
        %v2844 = vadd.f32 0.0, %v2843
        %2845 = vdwg.mxu0
        %2846 = vmax.xlane.f32.xlu0 %v2807
        %v2847 = vpop.xlane.xlu0 %2846
        %2848 = vmax.xlane.f32.xlu0 %v2809
        %v2849 = vpop.xlane.xlu0 %2848
        %2850 = vmax.xlane.f32.xlu0 %v2812
        %v2851 = vpop.xlane.xlu0 %2850
        %2852 = vmax.xlane.f32.xlu0 %v2814
        %v2853 = vpop.xlane.xlu0 %2852
        %2854 = vmax.xlane.f32.xlu0 %v2817
        %v2855 = vpop.xlane.xlu0 %2854
        %2856 = vmax.xlane.f32.xlu0 %v2819
        %v2857 = vpop.xlane.xlu0 %2856
        %2858 = vmax.xlane.f32.xlu0 %v2822
        %v2859 = vpop.xlane.xlu0 %2858
        %2860 = vmax.xlane.f32.xlu0 %v2824
        %v2861 = vpop.xlane.xlu0 %2860
        %2862 = vmax.xlane.f32.xlu0 %v2827
        %v2863 = vpop.xlane.xlu0 %2862
        %2864 = vmax.xlane.f32.xlu0 %v2829
        %v2865 = vpop.xlane.xlu0 %2864
        %2866 = vmax.xlane.f32.xlu0 %v2832
        %v2867 = vpop.xlane.xlu0 %2866
        %2868 = vmax.xlane.f32.xlu0 %v2834
        %v2869 = vpop.xlane.xlu0 %2868
        %2870 = vmax.xlane.f32.xlu0 %v2837
        %v2871 = vpop.xlane.xlu0 %2870
        %2872 = vmax.xlane.f32.xlu0 %v2839
        %v2873 = vpop.xlane.xlu0 %2872
        %2874 = vmax.xlane.f32.xlu0 %v2842
        %v2875 = vpop.xlane.xlu0 %2874
        %2876 = vmax.xlane.f32.xlu0 %v2844
        %v2877 = vpop.xlane.xlu0 %2876
        %v2878 = vsub.f32 %v2807, %v2847
        %v2879 = vsub.f32 %v2809, %v2849
        %v2880 = vsub.f32 %v2812, %v2851
        %v2881 = vsub.f32 %v2814, %v2853
        %v2882 = vsub.f32 %v2817, %v2855
        %v2883 = vsub.f32 %v2819, %v2857
        %v2884 = vsub.f32 %v2822, %v2859
        %v2885 = vsub.f32 %v2824, %v2861
        %v2886 = vsub.f32 %v2827, %v2863
        %v2887 = vsub.f32 %v2829, %v2865
        %v2888 = vsub.f32 %v2832, %v2867
        %v2889 = vsub.f32 %v2834, %v2869
        %v2890 = vsub.f32 %v2837, %v2871
        %v2891 = vsub.f32 %v2839, %v2873
        %v2892 = vsub.f32 %v2842, %v2875
        %v2893 = vsub.f32 %v2844, %v2877
        %v2894 = vmul.f32 %v2878, 1.442695
        %v2895 = vpow.pop %v2894
        %v2896 = vmul.f32 %v2879, 1.442695
        %v2897 = vpow.pop %v2896
        %v2898 = vmul.f32 %v2880, 1.442695
        %v2899 = vpow.pop %v2898
        %v2900 = vmul.f32 %v2881, 1.442695
        %v2901 = vpow.pop %v2900
        %v2902 = vmul.f32 %v2882, 1.442695
        %v2903 = vpow.pop %v2902
        %v2904 = vmul.f32 %v2883, 1.442695
        %v2905 = vpow.pop %v2904
        %v2906 = vmul.f32 %v2884, 1.442695
        %v2907 = vpow.pop %v2906
        %v2908 = vmul.f32 %v2885, 1.442695
        %v2909 = vpow.pop %v2908
        %v2910 = vmul.f32 %v2886, 1.442695
        %v2911 = vpow.pop %v2910
        %v2912 = vmul.f32 %v2887, 1.442695
        %v2913 = vpow.pop %v2912
        %v2914 = vmul.f32 %v2888, 1.442695
        %v2915 = vpow.pop %v2914
        %v2916 = vmul.f32 %v2889, 1.442695
        %v2917 = vpow.pop %v2916
        %v2918 = vmul.f32 %v2890, 1.442695
        %v2919 = vpow.pop %v2918
        %v2920 = vmul.f32 %v2891, 1.442695
        %v2921 = vpow.pop %v2920
        %v2922 = vmul.f32 %v2892, 1.442695
        %v2923 = vpow.pop %v2922
        %v2924 = vmul.f32 %v2893, 1.442695
        %v2925 = vpow.pop %v2924
        %2926 = vadd.xlane.f32.xlu0 %v2895
        %v2927 = vpop.xlane.xlu0 %2926
        %2928 = vadd.xlane.f32.xlu0 %v2897
        %v2929 = vpop.xlane.xlu0 %2928
        %2930 = vadd.xlane.f32.xlu0 %v2899
        %v2931 = vpop.xlane.xlu0 %2930
        %2932 = vadd.xlane.f32.xlu0 %v2901
        %v2933 = vpop.xlane.xlu0 %2932
        %2934 = vadd.xlane.f32.xlu0 %v2903
        %v2935 = vpop.xlane.xlu0 %2934
        %2936 = vadd.xlane.f32.xlu0 %v2905
        %v2937 = vpop.xlane.xlu0 %2936
        %2938 = vadd.xlane.f32.xlu0 %v2907
        %v2939 = vpop.xlane.xlu0 %2938
        %2940 = vadd.xlane.f32.xlu0 %v2909
        %v2941 = vpop.xlane.xlu0 %2940
        %2942 = vadd.xlane.f32.xlu0 %v2911
        %v2943 = vpop.xlane.xlu0 %2942
        %2944 = vadd.xlane.f32.xlu0 %v2913
        %v2945 = vpop.xlane.xlu0 %2944
        %2946 = vadd.xlane.f32.xlu0 %v2915
        %v2947 = vpop.xlane.xlu0 %2946
        %2948 = vadd.xlane.f32.xlu0 %v2917
        %v2949 = vpop.xlane.xlu0 %2948
        %2950 = vadd.xlane.f32.xlu0 %v2919
        %v2951 = vpop.xlane.xlu0 %2950
        %2952 = vadd.xlane.f32.xlu0 %v2921
        %v2953 = vpop.xlane.xlu0 %2952
        %2954 = vadd.xlane.f32.xlu0 %v2923
        %v2955 = vpop.xlane.xlu0 %2954
        %2956 = vadd.xlane.f32.xlu0 %v2925
        %v2957 = vpop.xlane.xlu0 %2956
        %v2958 = vrcp.pop %v2927
        %v2959 = vmul.f32 %v2927, %v2958
        %v2960 = vsub.f32 1.0, %v2959
        %v2961 = vmul.f32 %v2958, %v2960
        %v2962 = vadd.f32 %v2958, %v2961
        %vm2963 = vweird.f32 %v2927
        %vm2964 = vweird.f32 %v2958
        %vm2965 = vmor %vm2963, %vm2964
        %v2966 = vsel %vm2965, %v2958, %v2962
        %v2967 = vand.u32 2147483647, %v2927
        %vm2968 = vcmp.eq.f32.partialorder %v2967, 8.507059e+37
        %v2969 = vand.u32 %v2927, 2147483648
        %v2970 = vor.u32 1.1754944e-38, %v2969
        %v2971 = vsel %vm2968, %v2970, %v2966
        %v2972 = vmul.f32 %v2895, %v2971
        %v2973 = vrcp.pop %v2929
        %v2974 = vmul.f32 %v2929, %v2973
        %v2975 = vsub.f32 1.0, %v2974
        %v2976 = vmul.f32 %v2973, %v2975
        %v2977 = vadd.f32 %v2973, %v2976
        %vm2978 = vweird.f32 %v2929
        %vm2979 = vweird.f32 %v2973
        %vm2980 = vmor %vm2978, %vm2979
        %v2981 = vsel %vm2980, %v2973, %v2977
        %v2982 = vand.u32 2147483647, %v2929
        %vm2983 = vcmp.eq.f32.partialorder %v2982, 8.507059e+37
        %v2984 = vand.u32 %v2929, 2147483648
        %v2985 = vor.u32 1.1754944e-38, %v2984
        %v2986 = vsel %vm2983, %v2985, %v2981
        %v2987 = vmul.f32 %v2897, %v2986
        %v2988 = vrcp.pop %v2931
        %v2989 = vmul.f32 %v2931, %v2988
        %v2990 = vsub.f32 1.0, %v2989
        %v2991 = vmul.f32 %v2988, %v2990
        %v2992 = vadd.f32 %v2988, %v2991
        %vm2993 = vweird.f32 %v2931
        %vm2994 = vweird.f32 %v2988
        %vm2995 = vmor %vm2993, %vm2994
        %v2996 = vsel %vm2995, %v2988, %v2992
        %v2997 = vand.u32 2147483647, %v2931
        %vm2998 = vcmp.eq.f32.partialorder %v2997, 8.507059e+37
        %v2999 = vand.u32 %v2931, 2147483648
        %v3000 = vor.u32 1.1754944e-38, %v2999
        %v3001 = vsel %vm2998, %v3000, %v2996
        %v3002 = vmul.f32 %v2899, %v3001
        %v3003 = vrcp.pop %v2933
        %v3004 = vmul.f32 %v2933, %v3003
        %v3005 = vsub.f32 1.0, %v3004
        %v3006 = vmul.f32 %v3003, %v3005
        %v3007 = vadd.f32 %v3003, %v3006
        %vm3008 = vweird.f32 %v2933
        %vm3009 = vweird.f32 %v3003
        %vm3010 = vmor %vm3008, %vm3009
        %v3011 = vsel %vm3010, %v3003, %v3007
        %v3012 = vand.u32 2147483647, %v2933
        %vm3013 = vcmp.eq.f32.partialorder %v3012, 8.507059e+37
        %v3014 = vand.u32 %v2933, 2147483648
        %v3015 = vor.u32 1.1754944e-38, %v3014
        %v3016 = vsel %vm3013, %v3015, %v3011
        %v3017 = vmul.f32 %v2901, %v3016
        %v3018 = vrcp.pop %v2935
        %v3019 = vmul.f32 %v2935, %v3018
        %v3020 = vsub.f32 1.0, %v3019
        %v3021 = vmul.f32 %v3018, %v3020
        %v3022 = vadd.f32 %v3018, %v3021
        %vm3023 = vweird.f32 %v2935
        %vm3024 = vweird.f32 %v3018
        %vm3025 = vmor %vm3023, %vm3024
        %v3026 = vsel %vm3025, %v3018, %v3022
        %v3027 = vand.u32 2147483647, %v2935
        %vm3028 = vcmp.eq.f32.partialorder %v3027, 8.507059e+37
        %v3029 = vand.u32 %v2935, 2147483648
        %v3030 = vor.u32 1.1754944e-38, %v3029
        %v3031 = vsel %vm3028, %v3030, %v3026
        %v3032 = vmul.f32 %v2903, %v3031
        %v3033 = vrcp.pop %v2937
        %v3034 = vmul.f32 %v2937, %v3033
        %v3035 = vsub.f32 1.0, %v3034
        %v3036 = vmul.f32 %v3033, %v3035
        %v3037 = vadd.f32 %v3033, %v3036
        %vm3038 = vweird.f32 %v2937
        %vm3039 = vweird.f32 %v3033
        %vm3040 = vmor %vm3038, %vm3039
        %v3041 = vsel %vm3040, %v3033, %v3037
        %v3042 = vand.u32 2147483647, %v2937
        %vm3043 = vcmp.eq.f32.partialorder %v3042, 8.507059e+37
        %v3044 = vand.u32 %v2937, 2147483648
        %v3045 = vor.u32 1.1754944e-38, %v3044
        %v3046 = vsel %vm3043, %v3045, %v3041
        %v3047 = vmul.f32 %v2905, %v3046
        %v3048 = vrcp.pop %v2939
        %v3049 = vmul.f32 %v2939, %v3048
        %v3050 = vsub.f32 1.0, %v3049
        %v3051 = vmul.f32 %v3048, %v3050
        %v3052 = vadd.f32 %v3048, %v3051
        %vm3053 = vweird.f32 %v2939
        %vm3054 = vweird.f32 %v3048
        %vm3055 = vmor %vm3053, %vm3054
        %v3056 = vsel %vm3055, %v3048, %v3052
        %v3057 = vand.u32 2147483647, %v2939
        %vm3058 = vcmp.eq.f32.partialorder %v3057, 8.507059e+37
        %v3059 = vand.u32 %v2939, 2147483648
        %v3060 = vor.u32 1.1754944e-38, %v3059
        %v3061 = vsel %vm3058, %v3060, %v3056
        %v3062 = vmul.f32 %v2907, %v3061
        %v3063 = vrcp.pop %v2941
        %v3064 = vmul.f32 %v2941, %v3063
        %v3065 = vsub.f32 1.0, %v3064
        %v3066 = vmul.f32 %v3063, %v3065
        %v3067 = vadd.f32 %v3063, %v3066
        %vm3068 = vweird.f32 %v2941
        %vm3069 = vweird.f32 %v3063
        %vm3070 = vmor %vm3068, %vm3069
        %v3071 = vsel %vm3070, %v3063, %v3067
        %v3072 = vand.u32 2147483647, %v2941
        %vm3073 = vcmp.eq.f32.partialorder %v3072, 8.507059e+37
        %v3074 = vand.u32 %v2941, 2147483648
        %v3075 = vor.u32 1.1754944e-38, %v3074
        %v3076 = vsel %vm3073, %v3075, %v3071
        %v3077 = vmul.f32 %v2909, %v3076
        %v3078 = vrcp.pop %v2943
        %v3079 = vmul.f32 %v2943, %v3078
        %v3080 = vsub.f32 1.0, %v3079
        %v3081 = vmul.f32 %v3078, %v3080
        %v3082 = vadd.f32 %v3078, %v3081
        %vm3083 = vweird.f32 %v2943
        %vm3084 = vweird.f32 %v3078
        %vm3085 = vmor %vm3083, %vm3084
        %v3086 = vsel %vm3085, %v3078, %v3082
        %v3087 = vand.u32 2147483647, %v2943
        %vm3088 = vcmp.eq.f32.partialorder %v3087, 8.507059e+37
        %v3089 = vand.u32 %v2943, 2147483648
        %v3090 = vor.u32 1.1754944e-38, %v3089
        %v3091 = vsel %vm3088, %v3090, %v3086
        %v3092 = vmul.f32 %v2911, %v3091
        %v3093 = vrcp.pop %v2945
        %v3094 = vmul.f32 %v2945, %v3093
        %v3095 = vsub.f32 1.0, %v3094
        %v3096 = vmul.f32 %v3093, %v3095
        %v3097 = vadd.f32 %v3093, %v3096
        %vm3098 = vweird.f32 %v2945
        %vm3099 = vweird.f32 %v3093
        %vm3100 = vmor %vm3098, %vm3099
        %v3101 = vsel %vm3100, %v3093, %v3097
        %v3102 = vand.u32 2147483647, %v2945
        %vm3103 = vcmp.eq.f32.partialorder %v3102, 8.507059e+37
        %v3104 = vand.u32 %v2945, 2147483648
        %v3105 = vor.u32 1.1754944e-38, %v3104
        %v3106 = vsel %vm3103, %v3105, %v3101
        %v3107 = vmul.f32 %v2913, %v3106
        %v3108 = vrcp.pop %v2947
        %v3109 = vmul.f32 %v2947, %v3108
        %v3110 = vsub.f32 1.0, %v3109
        %v3111 = vmul.f32 %v3108, %v3110
        %v3112 = vadd.f32 %v3108, %v3111
        %vm3113 = vweird.f32 %v2947
        %vm3114 = vweird.f32 %v3108
        %vm3115 = vmor %vm3113, %vm3114
        %v3116 = vsel %vm3115, %v3108, %v3112
        %v3117 = vand.u32 2147483647, %v2947
        %vm3118 = vcmp.eq.f32.partialorder %v3117, 8.507059e+37
        %v3119 = vand.u32 %v2947, 2147483648
        %v3120 = vor.u32 1.1754944e-38, %v3119
        %v3121 = vsel %vm3118, %v3120, %v3116
        %v3122 = vmul.f32 %v2915, %v3121
        %v3123 = vrcp.pop %v2949
        %v3124 = vmul.f32 %v2949, %v3123
        %v3125 = vsub.f32 1.0, %v3124
        %v3126 = vmul.f32 %v3123, %v3125
        %v3127 = vadd.f32 %v3123, %v3126
        %vm3128 = vweird.f32 %v2949
        %vm3129 = vweird.f32 %v3123
        %vm3130 = vmor %vm3128, %vm3129
        %v3131 = vsel %vm3130, %v3123, %v3127
        %v3132 = vand.u32 2147483647, %v2949
        %vm3133 = vcmp.eq.f32.partialorder %v3132, 8.507059e+37
        %v3134 = vand.u32 %v2949, 2147483648
        %v3135 = vor.u32 1.1754944e-38, %v3134
        %v3136 = vsel %vm3133, %v3135, %v3131
        %v3137 = vmul.f32 %v2917, %v3136
        %v3138 = vrcp.pop %v2951
        %v3139 = vmul.f32 %v2951, %v3138
        %v3140 = vsub.f32 1.0, %v3139
        %v3141 = vmul.f32 %v3138, %v3140
        %v3142 = vadd.f32 %v3138, %v3141
        %vm3143 = vweird.f32 %v2951
        %vm3144 = vweird.f32 %v3138
        %vm3145 = vmor %vm3143, %vm3144
        %v3146 = vsel %vm3145, %v3138, %v3142
        %v3147 = vand.u32 2147483647, %v2951
        %vm3148 = vcmp.eq.f32.partialorder %v3147, 8.507059e+37
        %v3149 = vand.u32 %v2951, 2147483648
        %v3150 = vor.u32 1.1754944e-38, %v3149
        %v3151 = vsel %vm3148, %v3150, %v3146
        %v3152 = vmul.f32 %v2919, %v3151
        %v3153 = vrcp.pop %v2953
        %v3154 = vmul.f32 %v2953, %v3153
        %v3155 = vsub.f32 1.0, %v3154
        %v3156 = vmul.f32 %v3153, %v3155
        %v3157 = vadd.f32 %v3153, %v3156
        %vm3158 = vweird.f32 %v2953
        %vm3159 = vweird.f32 %v3153
        %vm3160 = vmor %vm3158, %vm3159
        %v3161 = vsel %vm3160, %v3153, %v3157
        %v3162 = vand.u32 2147483647, %v2953
        %vm3163 = vcmp.eq.f32.partialorder %v3162, 8.507059e+37
        %v3164 = vand.u32 %v2953, 2147483648
        %v3165 = vor.u32 1.1754944e-38, %v3164
        %v3166 = vsel %vm3163, %v3165, %v3161
        %v3167 = vmul.f32 %v2921, %v3166
        %v3168 = vrcp.pop %v2955
        %v3169 = vmul.f32 %v2955, %v3168
        %v3170 = vsub.f32 1.0, %v3169
        %v3171 = vmul.f32 %v3168, %v3170
        %v3172 = vadd.f32 %v3168, %v3171
        %vm3173 = vweird.f32 %v2955
        %vm3174 = vweird.f32 %v3168
        %vm3175 = vmor %vm3173, %vm3174
        %v3176 = vsel %vm3175, %v3168, %v3172
        %v3177 = vand.u32 2147483647, %v2955
        %vm3178 = vcmp.eq.f32.partialorder %v3177, 8.507059e+37
        %v3179 = vand.u32 %v2955, 2147483648
        %v3180 = vor.u32 1.1754944e-38, %v3179
        %v3181 = vsel %vm3178, %v3180, %v3176
        %v3182 = vmul.f32 %v2923, %v3181
        %v3183 = vrcp.pop %v2957
        %v3184 = vmul.f32 %v2957, %v3183
        %v3185 = vsub.f32 1.0, %v3184
        %v3186 = vmul.f32 %v3183, %v3185
        %v3187 = vadd.f32 %v3183, %v3186
        %vm3188 = vweird.f32 %v2957
        %vm3189 = vweird.f32 %v3183
        %vm3190 = vmor %vm3188, %vm3189
        %v3191 = vsel %vm3190, %v3183, %v3187
        %v3192 = vand.u32 2147483647, %v2957
        %vm3193 = vcmp.eq.f32.partialorder %v3192, 8.507059e+37
        %v3194 = vand.u32 %v2957, 2147483648
        %v3195 = vor.u32 1.1754944e-38, %v3194
        %v3196 = vsel %vm3193, %v3195, %v3191
        %v3197 = vmul.f32 %v2925, %v3196
        %v3198 = vpack.c.bf16 %v2987, %v2972
        %v3199 = vpack.c.bf16 %v3017, %v3002
        %v3200 = vpack.c.bf16 %v3047, %v3032
        %v3201 = vpack.c.bf16 %v3077, %v3062
        %v3202 = vpack.c.bf16 %v3107, %v3092
        %v3203 = vpack.c.bf16 %v3137, %v3122
        %v3204 = vpack.c.bf16 %v3167, %v3152
        %v3205 = vpack.c.bf16 %v3197, %v3182
        %3206 = vrot.lane.b32.xlu0 %v1054, 32
        %v3207 = vpop.permute.xlu0 %3206
        %3208 = vrot.lane.b32.xlu0 %v1055, 32
        %v3209 = vpop.permute.xlu0 %3208
        %3210 = vrot.lane.b32.xlu0 %v1056, 32
        %v3211 = vpop.permute.xlu0 %3210
        %3212 = vrot.lane.b32.xlu0 %v1057, 32
        %v3213 = vpop.permute.xlu0 %3212
        %3214 = vrot.lane.b32.xlu0 %v1058, 32
        %v3215 = vpop.permute.xlu0 %3214
        %3216 = vrot.lane.b32.xlu0 %v1059, 32
        %v3217 = vpop.permute.xlu0 %3216
        %3218 = vrot.lane.b32.xlu0 %v1060, 32
        %v3219 = vpop.permute.xlu0 %3218
        %3220 = vrot.lane.b32.xlu0 %v1061, 32
        %v3221 = vpop.permute.xlu0 %3220
        %3230 = vmatpush.bf16.msra.mxu0 %v3221
        %3231 = vmatpush.bf16.msra.mxu0 %v3219
        %3232 = vmatpush.bf16.msra.mxu0 %v3217
        %3233 = vmatpush.bf16.msra.mxu0 %v3215
        %3234 = vmatpush.bf16.msra.mxu0 %v3213
        %3235 = vmatpush.bf16.msra.mxu0 %v3211
        %3236 = vmatpush.bf16.msra.mxu0 %v3209
        %3237 = vmatpush.bf16.msra.mxu0 %v3207
        %3238 = vmatmul.bf16.gmra.mxu0 %v3198
        %v3239 = vpop.f32.mrf.mxu0
        %v3240 = vadd.f32 0.0, %v3239
        %v3241 = vpop.f32.mrf.mxu0
        %v3242 = vadd.f32 0.0, %v3241
        %3243 = vmatmul.bf16.gmra.mxu0 %v3199
        %v3244 = vpop.f32.mrf.mxu0
        %v3245 = vadd.f32 0.0, %v3244
        %v3246 = vpop.f32.mrf.mxu0
        %v3247 = vadd.f32 0.0, %v3246
        %3248 = vmatmul.bf16.gmra.mxu0 %v3200
        %v3249 = vpop.f32.mrf.mxu0
        %v3250 = vadd.f32 0.0, %v3249
        %v3251 = vpop.f32.mrf.mxu0
        %v3252 = vadd.f32 0.0, %v3251
        %3253 = vmatmul.bf16.gmra.mxu0 %v3201
        %v3254 = vpop.f32.mrf.mxu0
        %v3255 = vadd.f32 0.0, %v3254
        %v3256 = vpop.f32.mrf.mxu0
        %v3257 = vadd.f32 0.0, %v3256
        %3258 = vmatmul.bf16.gmra.mxu0 %v3202
        %v3259 = vpop.f32.mrf.mxu0
        %v3260 = vadd.f32 0.0, %v3259
        %v3261 = vpop.f32.mrf.mxu0
        %v3262 = vadd.f32 0.0, %v3261
        %3263 = vmatmul.bf16.gmra.mxu0 %v3203
        %v3264 = vpop.f32.mrf.mxu0
        %v3265 = vadd.f32 0.0, %v3264
        %v3266 = vpop.f32.mrf.mxu0
        %v3267 = vadd.f32 0.0, %v3266
        %3268 = vmatmul.bf16.gmra.mxu0 %v3204
        %v3269 = vpop.f32.mrf.mxu0
        %v3270 = vadd.f32 0.0, %v3269
        %v3271 = vpop.f32.mrf.mxu0
        %v3272 = vadd.f32 0.0, %v3271
        %3273 = vmatmul.bf16.gmra.mxu0 %v3205
        %v3274 = vpop.f32.mrf.mxu0
        %v3275 = vadd.f32 0.0, %v3274
        %v3276 = vpop.f32.mrf.mxu0
        %v3277 = vadd.f32 0.0, %v3276
        %3278 = vdwg.mxu0
        %3295 = vrot.lane.b32.xlu0 %v2116, 32
        %v3296 = vpop.permute.xlu0 %3295
        %3297 = vrot.lane.b32.xlu0 %v2118, 32
        %v3298 = vpop.permute.xlu0 %3297
        %3299 = vrot.lane.b32.xlu0 %v2121, 32
        %v3300 = vpop.permute.xlu0 %3299
        %3301 = vrot.lane.b32.xlu0 %v2123, 32
        %v3302 = vpop.permute.xlu0 %3301
        %3303 = vrot.lane.b32.xlu0 %v2126, 32
        %v3304 = vpop.permute.xlu0 %3303
        %3305 = vrot.lane.b32.xlu0 %v2128, 32
        %v3306 = vpop.permute.xlu0 %3305
        %3307 = vrot.lane.b32.xlu0 %v2131, 32
        %v3308 = vpop.permute.xlu0 %3307
        %3309 = vrot.lane.b32.xlu0 %v2133, 32
        %v3310 = vpop.permute.xlu0 %3309
        %3311 = vrot.lane.b32.xlu0 %v2136, 32
        %v3312 = vpop.permute.xlu0 %3311
        %3313 = vrot.lane.b32.xlu0 %v2138, 32
        %v3314 = vpop.permute.xlu0 %3313
        %3315 = vrot.lane.b32.xlu0 %v2141, 32
        %v3316 = vpop.permute.xlu0 %3315
        %3317 = vrot.lane.b32.xlu0 %v2143, 32
        %v3318 = vpop.permute.xlu0 %3317
        %3319 = vrot.lane.b32.xlu0 %v2146, 32
        %v3320 = vpop.permute.xlu0 %3319
        %3321 = vrot.lane.b32.xlu0 %v2148, 32
        %v3322 = vpop.permute.xlu0 %3321
        %3323 = vrot.lane.b32.xlu0 %v2151, 32
        %v3324 = vpop.permute.xlu0 %3323
        %3325 = vrot.lane.b32.xlu0 %v2153, 32
        %v3326 = vpop.permute.xlu0 %3325
        %3359 = vrot.lane.b32.xlu0 %v2678, 64
        %v3360 = vpop.permute.xlu0 %3359
        %3361 = vrot.lane.b32.xlu0 %v2680, 64
        %v3362 = vpop.permute.xlu0 %3361
        %3363 = vrot.lane.b32.xlu0 %v2683, 64
        %v3364 = vpop.permute.xlu0 %3363
        %3365 = vrot.lane.b32.xlu0 %v2685, 64
        %v3366 = vpop.permute.xlu0 %3365
        %3367 = vrot.lane.b32.xlu0 %v2688, 64
        %v3368 = vpop.permute.xlu0 %3367
        %3369 = vrot.lane.b32.xlu0 %v2690, 64
        %v3370 = vpop.permute.xlu0 %3369
        %3371 = vrot.lane.b32.xlu0 %v2693, 64
        %v3372 = vpop.permute.xlu0 %3371
        %3373 = vrot.lane.b32.xlu0 %v2695, 64
        %v3374 = vpop.permute.xlu0 %3373
        %3375 = vrot.lane.b32.xlu0 %v2698, 64
        %v3376 = vpop.permute.xlu0 %3375
        %3377 = vrot.lane.b32.xlu0 %v2700, 64
        %v3378 = vpop.permute.xlu0 %3377
        %3379 = vrot.lane.b32.xlu0 %v2703, 64
        %v3380 = vpop.permute.xlu0 %3379
        %3381 = vrot.lane.b32.xlu0 %v2705, 64
        %v3382 = vpop.permute.xlu0 %3381
        %3383 = vrot.lane.b32.xlu0 %v2708, 64
        %v3384 = vpop.permute.xlu0 %3383
        %3385 = vrot.lane.b32.xlu0 %v2710, 64
        %v3386 = vpop.permute.xlu0 %3385
        %3387 = vrot.lane.b32.xlu0 %v2713, 64
        %v3388 = vpop.permute.xlu0 %3387
        %3389 = vrot.lane.b32.xlu0 %v2715, 64
        %v3390 = vpop.permute.xlu0 %3389
        %3423 = vrot.lane.b32.xlu0 %v3240, 96
        %v3424 = vpop.permute.xlu0 %3423
        %3425 = vrot.lane.b32.xlu0 %v3242, 96
        %v3426 = vpop.permute.xlu0 %3425
        %3427 = vrot.lane.b32.xlu0 %v3245, 96
        %v3428 = vpop.permute.xlu0 %3427
        %3429 = vrot.lane.b32.xlu0 %v3247, 96
        %v3430 = vpop.permute.xlu0 %3429
        %3431 = vrot.lane.b32.xlu0 %v3250, 96
        %v3432 = vpop.permute.xlu0 %3431
        %3433 = vrot.lane.b32.xlu0 %v3252, 96
        %v3434 = vpop.permute.xlu0 %3433
        %3435 = vrot.lane.b32.xlu0 %v3255, 96
        %v3436 = vpop.permute.xlu0 %3435
        %3437 = vrot.lane.b32.xlu0 %v3257, 96
        %v3438 = vpop.permute.xlu0 %3437
        %3439 = vrot.lane.b32.xlu0 %v3260, 96
        %v3440 = vpop.permute.xlu0 %3439
        %3441 = vrot.lane.b32.xlu0 %v3262, 96
        %v3442 = vpop.permute.xlu0 %3441
        %3443 = vrot.lane.b32.xlu0 %v3265, 96
        %v3444 = vpop.permute.xlu0 %3443
        %3445 = vrot.lane.b32.xlu0 %v3267, 96
        %v3446 = vpop.permute.xlu0 %3445
        %3447 = vrot.lane.b32.xlu0 %v3270, 96
        %v3448 = vpop.permute.xlu0 %3447
        %3449 = vrot.lane.b32.xlu0 %v3272, 96
        %v3450 = vpop.permute.xlu0 %3449
        %3451 = vrot.lane.b32.xlu0 %v3275, 96
        %v3452 = vpop.permute.xlu0 %3451
        %3453 = vrot.lane.b32.xlu0 %v3277, 96
        %v3454 = vpop.permute.xlu0 %3453
        %v3471 = vsel %vm1062, %v1530, %v3296
        %v3472 = vsel %vm1062, %v1532, %v3298
        %v3473 = vsel %vm1062, %v1535, %v3300
        %v3474 = vsel %vm1062, %v1537, %v3302
        %v3475 = vsel %vm1062, %v1540, %v3304
        %v3476 = vsel %vm1062, %v1542, %v3306
        %v3477 = vsel %vm1062, %v1545, %v3308
        %v3478 = vsel %vm1062, %v1547, %v3310
        %v3479 = vsel %vm1062, %v1550, %v3312
        %v3480 = vsel %vm1062, %v1552, %v3314
        %v3481 = vsel %vm1062, %v1555, %v3316
        %v3482 = vsel %vm1062, %v1557, %v3318
        %v3483 = vsel %vm1062, %v1560, %v3320
        %v3484 = vsel %vm1062, %v1562, %v3322
        %v3485 = vsel %vm1062, %v1565, %v3324
        %v3486 = vsel %vm1062, %v1567, %v3326
        %vm3487 = vcmask 523264
        %v3488 = vsel %vm3487, %v3471, %v3360
        %v3489 = vsel %vm3487, %v3472, %v3362
        %v3490 = vsel %vm3487, %v3473, %v3364
        %v3491 = vsel %vm3487, %v3474, %v3366
        %v3492 = vsel %vm3487, %v3475, %v3368
        %v3493 = vsel %vm3487, %v3476, %v3370
        %v3494 = vsel %vm3487, %v3477, %v3372
        %v3495 = vsel %vm3487, %v3478, %v3374
        %v3496 = vsel %vm3487, %v3479, %v3376
        %v3497 = vsel %vm3487, %v3480, %v3378
        %v3498 = vsel %vm3487, %v3481, %v3380
        %v3499 = vsel %vm3487, %v3482, %v3382
        %v3500 = vsel %vm3487, %v3483, %v3384
        %v3501 = vsel %vm3487, %v3484, %v3386
        %v3502 = vsel %vm3487, %v3485, %v3388
        %v3503 = vsel %vm3487, %v3486, %v3390
        %vm3504 = vcmask 785408
        %v3505 = vsel %vm3504, %v3488, %v3424
        %v3506 = vsel %vm3504, %v3489, %v3426
        %v3507 = vsel %vm3504, %v3490, %v3428
        %v3508 = vsel %vm3504, %v3491, %v3430
        %v3509 = vsel %vm3504, %v3492, %v3432
        %v3510 = vsel %vm3504, %v3493, %v3434
        %v3511 = vsel %vm3504, %v3494, %v3436
        %v3512 = vsel %vm3504, %v3495, %v3438
        %v3513 = vsel %vm3504, %v3496, %v3440
        %v3514 = vsel %vm3504, %v3497, %v3442
        %v3515 = vsel %vm3504, %v3498, %v3444
        %v3516 = vsel %vm3504, %v3499, %v3446
        %v3517 = vsel %vm3504, %v3500, %v3448
        %v3518 = vsel %vm3504, %v3501, %v3450
        %v3519 = vsel %vm3504, %v3502, %v3452
        %v3520 = vsel %vm3504, %v3503, %v3454
        %v3521 = vpack.c.bf16 %v3506, %v3505
        %v3522 = vpack.c.bf16 %v3508, %v3507
        %v3523 = vpack.c.bf16 %v3510, %v3509
        %v3524 = vpack.c.bf16 %v3512, %v3511
        %v3525 = vpack.c.bf16 %v3514, %v3513
        %v3526 = vpack.c.bf16 %v3516, %v3515
        %v3527 = vpack.c.bf16 %v3518, %v3517
        %v3528 = vpack.c.bf16 %v3520, %v3519
        %v3529 = vld [vmem:[#allocation4] sm:$0xf]
        %v3530 = vld [vmem:[#allocation4 + $0x4] sm:$0xf]
        %v3531 = vld [vmem:[#allocation4 + $0x8] sm:$0xf]
        %v3532 = vld [vmem:[#allocation4 + $0xc] sm:$0xf]
        %v3533 = vld [vmem:[#allocation4 + $0x10] sm:$0xf]
        %v3534 = vld [vmem:[#allocation4 + $0x14] sm:$0xf]
        %v3535 = vld [vmem:[#allocation4 + $0x18] sm:$0xf]
        %v3536 = vld [vmem:[#allocation4 + $0x1c] sm:$0xf]
        %v3537 = vld [vmem:[#allocation4 + $0x20] sm:$0xf]
        %v3538 = vld [vmem:[#allocation4 + $0x24] sm:$0xf]
        %v3539 = vld [vmem:[#allocation4 + $0x28] sm:$0xf]
        %v3540 = vld [vmem:[#allocation4 + $0x2c] sm:$0xf]
        %v3541 = vld [vmem:[#allocation4 + $0x30] sm:$0xf]
        %v3542 = vld [vmem:[#allocation4 + $0x34] sm:$0xf]
        %v3543 = vld [vmem:[#allocation4 + $0x38] sm:$0xf]
        %v3544 = vld [vmem:[#allocation4 + $0x3c] sm:$0xf]
        %v3545 = vld [vmem:[%s6] sm:$0x1]
        %v3547 = vperm.slane %v3545, 0
        %v3565 = vunpack.c.l.b16 %v3529
        %v3566 = vunpack.c.l.b16 %v3530
        %v3567 = vunpack.c.l.b16 %v3531
        %v3568 = vunpack.c.l.b16 %v3532
        %v3569 = vunpack.c.l.b16 %v3533
        %v3570 = vunpack.c.l.b16 %v3534
        %v3571 = vunpack.c.l.b16 %v3535
        %v3572 = vunpack.c.l.b16 %v3536
        %v3573 = vunpack.c.l.b16 %v3537
        %v3574 = vunpack.c.l.b16 %v3538
        %v3575 = vunpack.c.l.b16 %v3539
        %v3576 = vunpack.c.l.b16 %v3540
        %v3577 = vunpack.c.l.b16 %v3541
        %v3578 = vunpack.c.l.b16 %v3542
        %v3579 = vunpack.c.l.b16 %v3543
        %v3580 = vunpack.c.l.b16 %v3544
        %v3581 = vpack.c.b16 %v3566, %v3565
        %v3582 = vpack.c.b16 %v3568, %v3567
        %v3583 = vpack.c.b16 %v3570, %v3569
        %v3584 = vpack.c.b16 %v3572, %v3571
        %v3585 = vpack.c.b16 %v3574, %v3573
        %v3586 = vpack.c.b16 %v3576, %v3575
        %v3587 = vpack.c.b16 %v3578, %v3577
        %v3588 = vpack.c.b16 %v3580, %v3579
        %3597 = vmatpush.bf16.msra.mxu0 %v3588
        %3598 = vmatpush.bf16.msra.mxu0 %v3587
        %3599 = vmatpush.bf16.msra.mxu0 %v3586
        %3600 = vmatpush.bf16.msra.mxu0 %v3585
        %3601 = vmatpush.bf16.msra.mxu0 %v3584
        %3602 = vmatpush.bf16.msra.mxu0 %v3583
        %3603 = vmatpush.bf16.msra.mxu0 %v3582
        %3604 = vmatpush.bf16.msra.mxu0 %v3581
        %3605 = vmatmul.bf16.gmra.mxu0 %v3521
        %v3606 = vpop.f32.mrf.mxu0
        %v3607 = vadd.f32 %v3547, %v3606
        %v3608 = vpop.f32.mrf.mxu0
        %v3609 = vadd.f32 %v3547, %v3608
        %3610 = vmatmul.bf16.gmra.mxu0 %v3522
        %v3611 = vpop.f32.mrf.mxu0
        %v3612 = vadd.f32 %v3547, %v3611
        %v3613 = vpop.f32.mrf.mxu0
        %v3614 = vadd.f32 %v3547, %v3613
        %3615 = vmatmul.bf16.gmra.mxu0 %v3523
        %v3616 = vpop.f32.mrf.mxu0
        %v3617 = vadd.f32 %v3547, %v3616
        %v3618 = vpop.f32.mrf.mxu0
        %v3619 = vadd.f32 %v3547, %v3618
        %3620 = vmatmul.bf16.gmra.mxu0 %v3524
        %v3621 = vpop.f32.mrf.mxu0
        %v3622 = vadd.f32 %v3547, %v3621
        %v3623 = vpop.f32.mrf.mxu0
        %v3624 = vadd.f32 %v3547, %v3623
        %3625 = vmatmul.bf16.gmra.mxu0 %v3525
        %v3626 = vpop.f32.mrf.mxu0
        %v3627 = vadd.f32 %v3547, %v3626
        %v3628 = vpop.f32.mrf.mxu0
        %v3629 = vadd.f32 %v3547, %v3628
        %3630 = vmatmul.bf16.gmra.mxu0 %v3526
        %v3631 = vpop.f32.mrf.mxu0
        %v3632 = vadd.f32 %v3547, %v3631
        %v3633 = vpop.f32.mrf.mxu0
        %v3634 = vadd.f32 %v3547, %v3633
        %3635 = vmatmul.bf16.gmra.mxu0 %v3527
        %v3636 = vpop.f32.mrf.mxu0
        %v3637 = vadd.f32 %v3547, %v3636
        %v3638 = vpop.f32.mrf.mxu0
        %v3639 = vadd.f32 %v3547, %v3638
        %3640 = vmatmul.bf16.gmra.mxu0 %v3528
        %v3641 = vpop.f32.mrf.mxu0
        %v3642 = vadd.f32 %v3547, %v3641
        %v3643 = vpop.f32.mrf.mxu0
        %v3644 = vadd.f32 %v3547, %v3643
        %3645 = vdwg.mxu0
        %v3646 = vadd.f32 %v3607, %v316
        %v3647 = vadd.f32 %v3609, %v317
        %v3648 = vadd.f32 %v3612, %v318
        %v3649 = vadd.f32 %v3614, %v319
        %v3650 = vadd.f32 %v3617, %v320
        %v3651 = vadd.f32 %v3619, %v321
        %v3652 = vadd.f32 %v3622, %v322
        %v3653 = vadd.f32 %v3624, %v323
        %v3654 = vadd.f32 %v3627, %v324
        %v3655 = vadd.f32 %v3629, %v325
        %v3656 = vadd.f32 %v3632, %v326
        %v3657 = vadd.f32 %v3634, %v327
        %v3658 = vadd.f32 %v3637, %v328
        %v3659 = vadd.f32 %v3639, %v329
        %v3660 = vadd.f32 %v3642, %v330
        %v3661 = vadd.f32 %v3644, %v331
        %3662 = vst [vmem:[%s314] sm:$0xff] %v3646
        %3663 = vst [vmem:[%s314 + $0x8] sm:$0xff] %v3647
        %3664 = vst [vmem:[%s314 + $0x10] sm:$0xff] %v3648
        %3665 = vst [vmem:[%s314 + $0x18] sm:$0xff] %v3649
        %3666 = vst [vmem:[%s314 + $0x20] sm:$0xff] %v3650
        %3667 = vst [vmem:[%s314 + $0x28] sm:$0xff] %v3651
        %3668 = vst [vmem:[%s314 + $0x30] sm:$0xff] %v3652
        %3669 = vst [vmem:[%s314 + $0x38] sm:$0xff] %v3653
        %3670 = vst [vmem:[%s314 + $0x40] sm:$0xff] %v3654
        %3671 = vst [vmem:[%s314 + $0x48] sm:$0xff] %v3655
        %3672 = vst [vmem:[%s314 + $0x50] sm:$0xff] %v3656
        %3673 = vst [vmem:[%s314 + $0x58] sm:$0xff] %v3657
        %3674 = vst [vmem:[%s314 + $0x60] sm:$0xff] %v3658
        %3675 = vst [vmem:[%s314 + $0x68] sm:$0xff] %v3659
        %3676 = vst [vmem:[%s314 + $0x70] sm:$0xff] %v3660
        %3677 = vst [vmem:[%s314 + $0x78] sm:$0xff] %v3661
        %s3678 = smul.u32 16, %s20
        %p3679 = scmp.lt.s32.totalorder %s3678, 31
        %s3680 = scalar_select %p3679, %s3678, 31
        %s3681 = smul.addr %s3680, 8
        %s3682 = scalar_lea.vmem %s7, %s3681
        // Predicated region
        $region57: #{_lambda_.7} parent=47 // pred_check
          %p3683 = pneg %p190
        $region58: #{_lambda_.7} parent=47 // pred_check_branch
          %3685 = sbr.rel (%p3683) target = $region60
        $region59: #{_lambda_.7} parent=47 // pred_region
          %s3686 = smul.u32 16, %s20
        $region60: #{_lambda_.7} parent=47 // pred_fallthru
          _
      $region48: #{_lambda_.7} parent=5 // pred_fallthru
        _
      %p3687 = scmp.le.s32.totalorder 2, %s15
      // Predicated region
      $region61: #{_lambda_.7} parent=5 // pred_check
        %p3688 = pneg %p3687
      $region62: #{_lambda_.7} parent=5 // pred_check_branch
        %3690 = sbr.rel (%p3688) target = $region64
      $region63: #{_lambda_.7} parent=5 // pred_region
        %s3691 = ssub.s32 %s15, 2
        // Predicated region
        $region65: #{_lambda_.7} parent=63 // pred_check
          %p3692 = pneg %p196
        $region66: #{_lambda_.7} parent=63 // pred_check_branch
          %3694 = sbr.rel (%p3692) target = $region68
        $region67: #{_lambda_.7} parent=63 // pred_region
          %s3695 = smul.u32 16, %s21
          %p3696 = scmp.lt.s32.totalorder %s3695, 31
          %s3697 = scalar_select %p3696, %s3695, 31
          %s3698 = smul.addr %s3697, 8
          %s3699 = scalar_lea.vmem %s7, %s3698
        $region68: #{_lambda_.7} parent=63 // pred_fallthru
          _
      $region64: #{_lambda_.7} parent=5 // pred_fallthru
        _
    $region6: #{_lambda_.7} parent=1 // loop_footer
      %s19 = sadd.s32 1, %s15
    $region7: #{_lambda_.7} parent=1 // loop_footer_branch
      %14 = sbr.rel target = $region3
    $region8: #{_lambda_.7} parent=1 // loop_exit
      _
    %3700 = vsyncpa [#allocation3], 1
    %s3701 = scalar_lea.sflag [#allocation3], 1
    %3702 = vsyncpa %s3701, 1
    %3703 = vsyncpa [#allocation5], 1

// kernel: _lambda_.5
$region0: #{_lambda_.5}
  #allocation0 [shape = 'u32[]', space=smem, size = 0x4, offset = 0x4, fixed_abs, tag = 'smem constant byte address 0x4 - core index']
  #allocation1 [shape = 'u32[72,128]{1,0:T(1,128)}', space=vmem, size = 0x9000, scoped, tag = 'internal scratch']
  %s0 = inlined_call_operand.hbm [shape: f32[256,128], index: 0, kind: input, shape index: {}]
  %s1 = inlined_call_operand.vmem [shape: f32[1,128], index: 1, kind: input, shape index: {}]
  %s2 = inlined_call_operand.vmem [shape: f32[1,128], index: 2, kind: input, shape index: {}]
  %s3 = inlined_call_operand.hbm [shape: bf16[128,384], index: 3, kind: input, shape index: {}]
  %s4 = inlined_call_operand.vmem [shape: f32[1,384], index: 4, kind: input, shape index: {}]
  %s5 = inlined_call_operand.hbm [shape: bf16[128,128], index: 5, kind: input, shape index: {}]
  %s6 = inlined_call_operand.vmem [shape: f32[1,128], index: 6, kind: input, shape index: {}]
  %s7 = inlined_call_operand.vmem [shape: f32[256,128], index: 7, kind: output, shape index: {}]
  %s8 = sld [smem:[#allocation0]]
  $region73: #{_lambda_.5} parent=0
    _
  %s10 = ssub.s32 1, %s8
  %s11 = scalar_select 0, %s10, %s8
  $region1: #{_lambda_.5} parent=0
    #allocation2 [shape = 'u8[131072]{0}', space=vmem, size = 0x20000, scoped, tag = 'input window, operand 0']
    #allocation3 [shape = 's32[2]{0}', space=sflag, size = 0x8, scoped, tag = 'scoped memory for _lambda_.5']
    #allocation4 [shape = 'u8[98304]{0}', space=vmem, size = 0x18000, scoped, tag = 'input window, operand 3, single buffered']
    #allocation5 [shape = 's32[1]{0}', space=sflag, size = 0x4, scoped, tag = 'scoped memory for _lambda_.5']
    #allocation6 [shape = 'u8[32768]{0}', space=vmem, size = 0x8000, scoped, tag = 'input window, operand 5, single buffered']
    %12 = vsyncpa [#allocation3], 0
    %s13 = scalar_lea.sflag [#allocation3], 1
    %14 = vsyncpa %s13, 0
    %15 = vsyncpa [#allocation5], 0
    loop: start=0, step=1, limit=4
    $region2: #{_lambda_.5} parent=1 // loop_pre_header
      _
    $region3: #{_lambda_.5} parent=1 // loop_header
      %s17 = sphi 0, %s21
      %p18 = scmp.ge.s32.totalorder %s17, 4
      %s27 = sphi 0, %s29
      %s30 = sphi 0, %s27
      %s31 = sphi 0, %s30
      %s47 = sphi 0, %s31
      %s51 = sphi 0, %s51
      %s53 = sphi 0, %s51
      %s54 = sphi 0, %s53
      %s68 = sphi 0, %s54
      %s72 = sphi 0, %s72
      %s74 = sphi 0, %s72
      %s75 = sphi 0, %s74
      %s89 = sphi 0, %s75
      %s93 = sphi 0, %s93
      %s95 = sphi 0, %s93
      %s96 = sphi 0, %s95
      %s110 = sphi 0, %s96
      %s114 = sphi 0, %s114
      %s116 = sphi 0, %s114
      %s117 = sphi 0, %s116
      %s131 = sphi 0, %s117
      %s135 = sphi 0, %s135
      %s137 = sphi 0, %s135
      %s138 = sphi 0, %s137
      %s152 = sphi 0, %s138
      %s156 = sphi 0, %s156
      %s158 = sphi 0, %s156
      %s159 = sphi 0, %s158
      %s173 = sphi 0, %s159
      %s179 = sphi 0, %s181
      %s182 = sphi 0, %s179
      %s183 = sphi 0, %s182
      %s199 = sphi 0, %s183
    $region4: #{_lambda_.5} parent=1 // loop_header_branch
      %20 = sbr.rel (%p18) target = $region8
    $region5: #{_lambda_.5} parent=1 // loop_body
      %s22 = ssub.s32 %s17, 1
      %s23 = ssub.s32 %s17, 2
      %s24 = sadd.s32 %s17, 1
      %s25 = ssub.s32 %s17, %s24
      %p26 = scmp.eq.s32.totalorder %s25, 0
      %s28 = sadd.s32 %s27, 1
      %s29 = scalar_select %p26, %s27, %s28
      %p32 = pneg %p26
      %p33 = scmp.eq.s32.totalorder %s17, 1
      %p34 = por %p32, %p33
      %p35 = scmp.ne.s32.totalorder %s27, %s30
      %p36 = scmp.eq.s32.totalorder %s17, 0
      %p37 = por %p35, %p36
      %p38 = scmp.ne.s32.totalorder %s27, %s30
      %p39 = scmp.eq.s32.totalorder %s22, 1
      %p40 = por %p38, %p39
      %p41 = scmp.ne.s32.totalorder %s30, %s31
      %p42 = scmp.eq.s32.totalorder %s22, 0
      %p43 = por %p41, %p42
      %p44 = scmp.ne.s32.totalorder %s30, %s31
      %p45 = scmp.eq.s32.totalorder %s23, 1
      %p46 = por %p44, %p45
      %p48 = scmp.ne.s32.totalorder %s31, %s47
      %p49 = scmp.eq.s32.totalorder %s23, 0
      %p50 = por %p48, %p49
      %s52 = sadd.s32 %s51, 1
      %p55 = scmp.eq.s32.totalorder %s17, 1
      %p56 = scmp.ne.s32.totalorder %s51, %s53
      %p57 = scmp.eq.s32.totalorder %s17, 0
      %p58 = por %p56, %p57
      %p59 = scmp.ne.s32.totalorder %s51, %s53
      %p60 = scmp.eq.s32.totalorder %s22, 1
      %p61 = por %p59, %p60
      %p62 = scmp.ne.s32.totalorder %s53, %s54
      %p63 = scmp.eq.s32.totalorder %s22, 0
      %p64 = por %p62, %p63
      %p65 = scmp.ne.s32.totalorder %s53, %s54
      %p66 = scmp.eq.s32.totalorder %s23, 1
      %p67 = por %p65, %p66
      %p69 = scmp.ne.s32.totalorder %s54, %s68
      %p70 = scmp.eq.s32.totalorder %s23, 0
      %p71 = por %p69, %p70
      %s73 = sadd.s32 %s72, 1
      %p76 = scmp.eq.s32.totalorder %s17, 1
      %p77 = scmp.ne.s32.totalorder %s72, %s74
      %p78 = scmp.eq.s32.totalorder %s17, 0
      %p79 = por %p77, %p78
      %p80 = scmp.ne.s32.totalorder %s72, %s74
      %p81 = scmp.eq.s32.totalorder %s22, 1
      %p82 = por %p80, %p81
      %p83 = scmp.ne.s32.totalorder %s74, %s75
      %p84 = scmp.eq.s32.totalorder %s22, 0
      %p85 = por %p83, %p84
      %p86 = scmp.ne.s32.totalorder %s74, %s75
      %p87 = scmp.eq.s32.totalorder %s23, 1
      %p88 = por %p86, %p87
      %p90 = scmp.ne.s32.totalorder %s75, %s89
      %p91 = scmp.eq.s32.totalorder %s23, 0
      %p92 = por %p90, %p91
      %s94 = sadd.s32 %s93, 1
      %p97 = scmp.eq.s32.totalorder %s17, 1
      %p98 = scmp.ne.s32.totalorder %s93, %s95
      %p99 = scmp.eq.s32.totalorder %s17, 0
      %p100 = por %p98, %p99
      %p101 = scmp.ne.s32.totalorder %s93, %s95
      %p102 = scmp.eq.s32.totalorder %s22, 1
      %p103 = por %p101, %p102
      %p104 = scmp.ne.s32.totalorder %s95, %s96
      %p105 = scmp.eq.s32.totalorder %s22, 0
      %p106 = por %p104, %p105
      %p107 = scmp.ne.s32.totalorder %s95, %s96
      %p108 = scmp.eq.s32.totalorder %s23, 1
      %p109 = por %p107, %p108
      %p111 = scmp.ne.s32.totalorder %s96, %s110
      %p112 = scmp.eq.s32.totalorder %s23, 0
      %p113 = por %p111, %p112
      %s115 = sadd.s32 %s114, 1
      %p118 = scmp.eq.s32.totalorder %s17, 1
      %p119 = scmp.ne.s32.totalorder %s114, %s116
      %p120 = scmp.eq.s32.totalorder %s17, 0
      %p121 = por %p119, %p120
      %p122 = scmp.ne.s32.totalorder %s114, %s116
      %p123 = scmp.eq.s32.totalorder %s22, 1
      %p124 = por %p122, %p123
      %p125 = scmp.ne.s32.totalorder %s116, %s117
      %p126 = scmp.eq.s32.totalorder %s22, 0
      %p127 = por %p125, %p126
      %p128 = scmp.ne.s32.totalorder %s116, %s117
      %p129 = scmp.eq.s32.totalorder %s23, 1
      %p130 = por %p128, %p129
      %p132 = scmp.ne.s32.totalorder %s117, %s131
      %p133 = scmp.eq.s32.totalorder %s23, 0
      %p134 = por %p132, %p133
      %s136 = sadd.s32 %s135, 1
      %p139 = scmp.eq.s32.totalorder %s17, 1
      %p140 = scmp.ne.s32.totalorder %s135, %s137
      %p141 = scmp.eq.s32.totalorder %s17, 0
      %p142 = por %p140, %p141
      %p143 = scmp.ne.s32.totalorder %s135, %s137
      %p144 = scmp.eq.s32.totalorder %s22, 1
      %p145 = por %p143, %p144
      %p146 = scmp.ne.s32.totalorder %s137, %s138
      %p147 = scmp.eq.s32.totalorder %s22, 0
      %p148 = por %p146, %p147
      %p149 = scmp.ne.s32.totalorder %s137, %s138
      %p150 = scmp.eq.s32.totalorder %s23, 1
      %p151 = por %p149, %p150
      %p153 = scmp.ne.s32.totalorder %s138, %s152
      %p154 = scmp.eq.s32.totalorder %s23, 0
      %p155 = por %p153, %p154
      %s157 = sadd.s32 %s156, 1
      %p160 = scmp.eq.s32.totalorder %s17, 1
      %p161 = scmp.ne.s32.totalorder %s156, %s158
      %p162 = scmp.eq.s32.totalorder %s17, 0
      %p163 = por %p161, %p162
      %p164 = scmp.ne.s32.totalorder %s156, %s158
      %p165 = scmp.eq.s32.totalorder %s22, 1
      %p166 = por %p164, %p165
      %p167 = scmp.ne.s32.totalorder %s158, %s159
      %p168 = scmp.eq.s32.totalorder %s22, 0
      %p169 = por %p167, %p168
      %p170 = scmp.ne.s32.totalorder %s158, %s159
      %p171 = scmp.eq.s32.totalorder %s23, 1
      %p172 = por %p170, %p171
      %p174 = scmp.ne.s32.totalorder %s159, %s173
      %p175 = scmp.eq.s32.totalorder %s23, 0
      %p176 = por %p174, %p175
      %s177 = ssub.s32 %s17, %s24
      %p178 = scmp.eq.s32.totalorder %s177, 0
      %s180 = sadd.s32 %s179, 1
      %s181 = scalar_select %p178, %s179, %s180
      %p184 = pneg %p178
      %p185 = scmp.eq.s32.totalorder %s17, 1
      %p186 = por %p184, %p185
      %p187 = scmp.ne.s32.totalorder %s179, %s182
      %p188 = scmp.eq.s32.totalorder %s17, 0
      %p189 = por %p187, %p188
      %p190 = scmp.ne.s32.totalorder %s179, %s182
      %p191 = scmp.eq.s32.totalorder %s22, 1
      %p192 = por %p190, %p191
      %p193 = scmp.ne.s32.totalorder %s182, %s183
      %p194 = scmp.eq.s32.totalorder %s22, 0
      %p195 = por %p193, %p194
      %p196 = scmp.ne.s32.totalorder %s182, %s183
      %p197 = scmp.eq.s32.totalorder %s23, 1
      %p198 = por %p196, %p197
      %p200 = scmp.ne.s32.totalorder %s183, %s199
      %p201 = scmp.eq.s32.totalorder %s23, 0
      %p202 = por %p200, %p201
      %p203 = scmp.le.s32.totalorder 1, %s17
      %p204 = scmp.lt.s32.totalorder %s17, 3
      %p205 = pnand %p203, %p204
      %p206 = pneg %p205
      // Predicated region
      $region9: #{_lambda_.5} parent=5 // pred_check
        _
      $region10: #{_lambda_.5} parent=5 // pred_check_branch
        %208 = sbr.rel (%p205) target = $region12
      $region11: #{_lambda_.5} parent=5 // pred_region
        %s209 = ssub.s32 %s17, 1
        // Predicated region
        $region13: #{_lambda_.5} parent=11 // pred_check
          %p210 = pneg %p64
        $region14: #{_lambda_.5} parent=11 // pred_check_branch
          %212 = sbr.rel (%p210) target = $region16
        $region15: #{_lambda_.5} parent=11 // pred_region
          _
        $region16: #{_lambda_.5} parent=11 // pred_fallthru
          _
        // Predicated region
        $region17: #{_lambda_.5} parent=11 // pred_check
          %p213 = pneg %p85
        $region18: #{_lambda_.5} parent=11 // pred_check_branch
          %215 = sbr.rel (%p213) target = $region20
        $region19: #{_lambda_.5} parent=11 // pred_region
          _
        $region20: #{_lambda_.5} parent=11 // pred_fallthru
          _
        // Predicated region
        $region21: #{_lambda_.5} parent=11 // pred_check
          %p216 = pneg %p106
        $region22: #{_lambda_.5} parent=11 // pred_check_branch
          %218 = sbr.rel (%p216) target = $region24
        $region23: #{_lambda_.5} parent=11 // pred_region
          %220 = vsyncadd [#allocation5], 0
          %s221 = sshll.u32 %s3, 4
          %s222 = int_to_ptr.hbm [resolvable:$true] %s221
          %s223 = sshll.u32 [#allocation4], 4
          %s224 = int_to_ptr.vmem [resolvable:$true] %s223
          %229 = dma.hbm_to_vmem [thread:$0]  %s222, 3072, %s224, [#allocation5], 192, 192, 12
        $region24: #{_lambda_.5} parent=11 // pred_fallthru
          _
        // Predicated region
        $region25: #{_lambda_.5} parent=11 // pred_check
          %p230 = pneg %p127
        $region26: #{_lambda_.5} parent=11 // pred_check_branch
          %232 = sbr.rel (%p230) target = $region28
        $region27: #{_lambda_.5} parent=11 // pred_region
          _
        $region28: #{_lambda_.5} parent=11 // pred_fallthru
          _
        // Predicated region
        $region29: #{_lambda_.5} parent=11 // pred_check
          %p233 = pneg %p148
        $region30: #{_lambda_.5} parent=11 // pred_check_branch
          %235 = sbr.rel (%p233) target = $region32
        $region31: #{_lambda_.5} parent=11 // pred_region
          %237 = vsyncadd [#allocation5], 0
          %s238 = sshll.u32 %s5, 4
          %s239 = int_to_ptr.hbm [resolvable:$true] %s238
          %s240 = sshll.u32 [#allocation6], 4
          %s241 = int_to_ptr.vmem [resolvable:$true] %s240
          %246 = dma.hbm_to_vmem [thread:$0]  %s239, 1024, %s241, [#allocation5], 64, 64, 4
        $region32: #{_lambda_.5} parent=11 // pred_fallthru
          _
        // Predicated region
        $region33: #{_lambda_.5} parent=11 // pred_check
          %p247 = pneg %p169
        $region34: #{_lambda_.5} parent=11 // pred_check_branch
          %249 = sbr.rel (%p247) target = $region36
        $region35: #{_lambda_.5} parent=11 // pred_region
          _
        $region36: #{_lambda_.5} parent=11 // pred_fallthru
          _
      $region12: #{_lambda_.5} parent=5 // pred_fallthru
        _
      %p250 = scmp.lt.s32.totalorder %s17, 2
      // Predicated region
      $region37: #{_lambda_.5} parent=5 // pred_check
        %p251 = pneg %p250
      $region38: #{_lambda_.5} parent=5 // pred_check_branch
        %253 = sbr.rel (%p251) target = $region40
      $region39: #{_lambda_.5} parent=5 // pred_region
        // Predicated region
        $region41: #{_lambda_.5} parent=39 // pred_check
          %p254 = pneg %p37
        $region42: #{_lambda_.5} parent=39 // pred_check_branch
          %256 = sbr.rel (%p254) target = $region44
        $region43: #{_lambda_.5} parent=39 // pred_region
          %s257 = sand.u32 %s27, 1
          %s258 = scalar_lea.sflag [#allocation3], %s257
          %s259 = sand.u32 %s27, 1
          %s260 = smul.addr %s259, 128
          %s261 = scalar_lea.vmem [#allocation2], %s260
          %s262 = smul.u32 16, %s17
          %264 = vsyncadd %s258, 0
          %s265 = smul.addr %s262, 8
          %s266 = scalar_lea.hbm %s0, %s265
          %s267 = sshll.u32 %s266, 4
          %s268 = int_to_ptr.hbm [resolvable:$true] %s267
          %s269 = sshll.u32 %s261, 4
          %s270 = int_to_ptr.vmem [resolvable:$true] %s269
          %275 = dma.hbm_to_vmem [thread:$0]  %s268, 2048, %s270, %s258, 128, 128, 8
        $region44: #{_lambda_.5} parent=39 // pred_fallthru
          _
      $region40: #{_lambda_.5} parent=5 // pred_fallthru
        _
      %p276 = scmp.le.s32.totalorder 1, %s17
      %p277 = scmp.lt.s32.totalorder %s17, 3
      %p278 = pnand %p276, %p277
      %p279 = pneg %p278
      // Predicated region
      $region45: #{_lambda_.5} parent=5 // pred_check
        _
      $region46: #{_lambda_.5} parent=5 // pred_check_branch
        %281 = sbr.rel (%p278) target = $region48
      $region47: #{_lambda_.5} parent=5 // pred_region
        %s282 = ssub.s32 %s17, 1
        %s283 = sand.u32 %s30, 1
        %s284 = scalar_lea.sflag [#allocation3], %s283
        %s285 = sand.u32 %s30, 1
        %s286 = smul.addr %s285, 128
        %s287 = scalar_lea.vmem [#allocation2], %s286
        // Predicated region
        $region49: #{_lambda_.5} parent=47 // pred_check
          %p288 = pneg %p43
        $region50: #{_lambda_.5} parent=47 // pred_check_branch
          %290 = sbr.rel (%p288) target = $region52
        $region51: #{_lambda_.5} parent=47 // pred_region
          %292 = dma.done %s284, 2048
        $region52: #{_lambda_.5} parent=47 // pred_fallthru
          _
        // Predicated region
        $region53: #{_lambda_.5} parent=47 // pred_check
          %p293 = pneg %p106
        $region54: #{_lambda_.5} parent=47 // pred_check_branch
          %295 = sbr.rel (%p293) target = $region56
        $region55: #{_lambda_.5} parent=47 // pred_region
          %297 = dma.done [#allocation5], 3072
        $region56: #{_lambda_.5} parent=47 // pred_fallthru
          _
        // Predicated region
        $region57: #{_lambda_.5} parent=47 // pred_check
          %p298 = pneg %p148
        $region58: #{_lambda_.5} parent=47 // pred_check_branch
          %300 = sbr.rel (%p298) target = $region60
        $region59: #{_lambda_.5} parent=47 // pred_region
          %302 = dma.done [#allocation5], 1024
        $region60: #{_lambda_.5} parent=47 // pred_fallthru
          _
        %s303 = sand.u32 %s30, 1
        %s304 = scalar_lea.sflag [#allocation3], %s303
        %s305 = sand.u32 %s30, 1
        %s306 = smul.addr %s305, 128
        %s307 = scalar_lea.vmem [#allocation2], %s306
        %p308 = pneg %p43
        %p309 = pneg %p40
        %p310 = pneg %p64
        %p311 = pneg %p61
        %p312 = pneg %p85
        %p313 = pneg %p82
        %p314 = pneg %p106
        %p315 = pneg %p103
        %p316 = pneg %p127
        %p317 = pneg %p124
        %p318 = pneg %p148
        %p319 = pneg %p145
        %p320 = pneg %p169
        %p321 = pneg %p166
        %p322 = pneg %p195
        %p323 = pneg %p192
        %s324 = smul.u32 16, %s22
        %p325 = scmp.lt.s32.totalorder %s324, 31
        %s326 = scalar_select %p325, %s324, 31
        %s327 = smul.addr %s326, 8
        %s328 = scalar_lea.vmem %s7, %s327
        %s329 = smul.u32 16, %s22
        %s330 = smul.u32 16, %s22
        %p331 = scmp.lt.s32.totalorder %s330, 31
        %s332 = scalar_select %p331, %s330, 31
        %s333 = smul.addr %s332, 8
        %s334 = scalar_lea.vmem %s7, %s333
        %s335 = smul.u32 16, %s22
        %v336 = vld [vmem:[%s287] sm:$0xff]
        %v337 = vld [vmem:[%s287 + $0x8] sm:$0xff]
        %v338 = vld [vmem:[%s287 + $0x10] sm:$0xff]
        %v339 = vld [vmem:[%s287 + $0x18] sm:$0xff]
        %v340 = vld [vmem:[%s287 + $0x20] sm:$0xff]
        %v341 = vld [vmem:[%s287 + $0x28] sm:$0xff]
        %v342 = vld [vmem:[%s287 + $0x30] sm:$0xff]
        %v343 = vld [vmem:[%s287 + $0x38] sm:$0xff]
        %v344 = vld [vmem:[%s287 + $0x40] sm:$0xff]
        %v345 = vld [vmem:[%s287 + $0x48] sm:$0xff]
        %v346 = vld [vmem:[%s287 + $0x50] sm:$0xff]
        %v347 = vld [vmem:[%s287 + $0x58] sm:$0xff]
        %v348 = vld [vmem:[%s287 + $0x60] sm:$0xff]
        %v349 = vld [vmem:[%s287 + $0x68] sm:$0xff]
        %v350 = vld [vmem:[%s287 + $0x70] sm:$0xff]
        %v351 = vld [vmem:[%s287 + $0x78] sm:$0xff]
        %v352 = vld [vmem:[%s1] sm:$0x1]
        %v353 = vld [vmem:[%s2] sm:$0x1]
        %354 = vadd.xlane.f32.xlu0 %v336
        %v355 = vpop.xlane.xlu0 %354
        %356 = vadd.xlane.f32.xlu0 %v337
        %v357 = vpop.xlane.xlu0 %356
        %358 = vadd.xlane.f32.xlu0 %v338
        %v359 = vpop.xlane.xlu0 %358
        %360 = vadd.xlane.f32.xlu0 %v339
        %v361 = vpop.xlane.xlu0 %360
        %362 = vadd.xlane.f32.xlu0 %v340
        %v363 = vpop.xlane.xlu0 %362
        %364 = vadd.xlane.f32.xlu0 %v341
        %v365 = vpop.xlane.xlu0 %364
        %366 = vadd.xlane.f32.xlu0 %v342
        %v367 = vpop.xlane.xlu0 %366
        %368 = vadd.xlane.f32.xlu0 %v343
        %v369 = vpop.xlane.xlu0 %368
        %370 = vadd.xlane.f32.xlu0 %v344
        %v371 = vpop.xlane.xlu0 %370
        %372 = vadd.xlane.f32.xlu0 %v345
        %v373 = vpop.xlane.xlu0 %372
        %374 = vadd.xlane.f32.xlu0 %v346
        %v375 = vpop.xlane.xlu0 %374
        %376 = vadd.xlane.f32.xlu0 %v347
        %v377 = vpop.xlane.xlu0 %376
        %378 = vadd.xlane.f32.xlu0 %v348
        %v379 = vpop.xlane.xlu0 %378
        %380 = vadd.xlane.f32.xlu0 %v349
        %v381 = vpop.xlane.xlu0 %380
        %382 = vadd.xlane.f32.xlu0 %v350
        %v383 = vpop.xlane.xlu0 %382
        %384 = vadd.xlane.f32.xlu0 %v351
        %v385 = vpop.xlane.xlu0 %384
        %v386 = vrcp.pop 128.0
        %v387 = vmul.f32 128.0, %v386
        %v388 = vsub.f32 1.0, %v387
        %v389 = vmul.f32 %v386, %v388
        %v390 = vadd.f32 %v386, %v389
        %vm391 = vweird.f32 %v386
        %v392 = vsel %vm391, %v386, %v390
        %v393 = vmul.f32 %v355, %v392
        %v394 = vmul.f32 %v357, %v392
        %v395 = vmul.f32 %v359, %v392
        %v396 = vmul.f32 %v361, %v392
        %v397 = vmul.f32 %v363, %v392
        %v398 = vmul.f32 %v365, %v392
        %v399 = vmul.f32 %v367, %v392
        %v400 = vmul.f32 %v369, %v392
        %v401 = vmul.f32 %v371, %v392
        %v402 = vmul.f32 %v373, %v392
        %v403 = vmul.f32 %v375, %v392
        %v404 = vmul.f32 %v377, %v392
        %v405 = vmul.f32 %v379, %v392
        %v406 = vmul.f32 %v381, %v392
        %v407 = vmul.f32 %v383, %v392
        %v408 = vmul.f32 %v385, %v392
        %v409 = vsub.f32 %v336, %v393
        %v410 = vsub.f32 %v337, %v394
        %v411 = vsub.f32 %v338, %v395
        %v412 = vsub.f32 %v339, %v396
        %v413 = vsub.f32 %v340, %v397
        %v414 = vsub.f32 %v341, %v398
        %v415 = vsub.f32 %v342, %v399
        %v416 = vsub.f32 %v343, %v400
        %v417 = vsub.f32 %v344, %v401
        %v418 = vsub.f32 %v345, %v402
        %v419 = vsub.f32 %v346, %v403
        %v420 = vsub.f32 %v347, %v404
        %v421 = vsub.f32 %v348, %v405
        %v422 = vsub.f32 %v349, %v406
        %v423 = vsub.f32 %v350, %v407
        %v424 = vsub.f32 %v351, %v408
        %v425 = vmul.f32 %v409, %v409
        %v426 = vmul.f32 %v410, %v410
        %v427 = vmul.f32 %v411, %v411
        %v428 = vmul.f32 %v412, %v412
        %v429 = vmul.f32 %v413, %v413
        %v430 = vmul.f32 %v414, %v414
        %v431 = vmul.f32 %v415, %v415
        %v432 = vmul.f32 %v416, %v416
        %v433 = vmul.f32 %v417, %v417
        %v434 = vmul.f32 %v418, %v418
        %v435 = vmul.f32 %v419, %v419
        %v436 = vmul.f32 %v420, %v420
        %v437 = vmul.f32 %v421, %v421
        %v438 = vmul.f32 %v422, %v422
        %v439 = vmul.f32 %v423, %v423
        %v440 = vmul.f32 %v424, %v424
        %441 = vadd.xlane.f32.xlu0 %v425
        %v442 = vpop.xlane.xlu0 %441
        %443 = vadd.xlane.f32.xlu0 %v426
        %v444 = vpop.xlane.xlu0 %443
        %445 = vadd.xlane.f32.xlu0 %v427
        %v446 = vpop.xlane.xlu0 %445
        %447 = vadd.xlane.f32.xlu0 %v428
        %v448 = vpop.xlane.xlu0 %447
        %449 = vadd.xlane.f32.xlu0 %v429
        %v450 = vpop.xlane.xlu0 %449
        %451 = vadd.xlane.f32.xlu0 %v430
        %v452 = vpop.xlane.xlu0 %451
        %453 = vadd.xlane.f32.xlu0 %v431
        %v454 = vpop.xlane.xlu0 %453
        %455 = vadd.xlane.f32.xlu0 %v432
        %v456 = vpop.xlane.xlu0 %455
        %457 = vadd.xlane.f32.xlu0 %v433
        %v458 = vpop.xlane.xlu0 %457
        %459 = vadd.xlane.f32.xlu0 %v434
        %v460 = vpop.xlane.xlu0 %459
        %461 = vadd.xlane.f32.xlu0 %v435
        %v462 = vpop.xlane.xlu0 %461
        %463 = vadd.xlane.f32.xlu0 %v436
        %v464 = vpop.xlane.xlu0 %463
        %465 = vadd.xlane.f32.xlu0 %v437
        %v466 = vpop.xlane.xlu0 %465
        %467 = vadd.xlane.f32.xlu0 %v438
        %v468 = vpop.xlane.xlu0 %467
        %469 = vadd.xlane.f32.xlu0 %v439
        %v470 = vpop.xlane.xlu0 %469
        %471 = vadd.xlane.f32.xlu0 %v440
        %v472 = vpop.xlane.xlu0 %471
        %v473 = vmul.f32 %v442, %v392
        %v474 = vmul.f32 %v444, %v392
        %v475 = vmul.f32 %v446, %v392
        %v476 = vmul.f32 %v448, %v392
        %v477 = vmul.f32 %v450, %v392
        %v478 = vmul.f32 %v452, %v392
        %v479 = vmul.f32 %v454, %v392
        %v480 = vmul.f32 %v456, %v392
        %v481 = vmul.f32 %v458, %v392
        %v482 = vmul.f32 %v460, %v392
        %v483 = vmul.f32 %v462, %v392
        %v484 = vmul.f32 %v464, %v392
        %v485 = vmul.f32 %v466, %v392
        %v486 = vmul.f32 %v468, %v392
        %v487 = vmul.f32 %v470, %v392
        %v488 = vmul.f32 %v472, %v392
        %v489 = vadd.f32 %v473, 1e-06
        %v490 = vadd.f32 %v474, 1e-06
        %v491 = vadd.f32 %v475, 1e-06
        %v492 = vadd.f32 %v476, 1e-06
        %v493 = vadd.f32 %v477, 1e-06
        %v494 = vadd.f32 %v478, 1e-06
        %v495 = vadd.f32 %v479, 1e-06
        %v496 = vadd.f32 %v480, 1e-06
        %v497 = vadd.f32 %v481, 1e-06
        %v498 = vadd.f32 %v482, 1e-06
        %v499 = vadd.f32 %v483, 1e-06
        %v500 = vadd.f32 %v484, 1e-06
        %v501 = vadd.f32 %v485, 1e-06
        %v502 = vadd.f32 %v486, 1e-06
        %v503 = vadd.f32 %v487, 1e-06
        %v504 = vadd.f32 %v488, 1e-06
        %v505 = vrsqrt.pop %v489
        %v506 = vmul.f32 %v505, %v489
        %v507 = vmul.f32 %v506, %v505
        %v508 = vmul.f32 0.5, %v507
        %v509 = vsub.f32 1.5, %v508
        %v510 = vmul.f32 %v505, %v509
        %vm511 = vweird.f32 %v489
        %vm512 = vweird.f32 %v505
        %vm513 = vmor %vm511, %vm512
        %v514 = vsel %vm513, %v505, %v510
        %v515 = vrsqrt.pop %v490
        %v516 = vmul.f32 %v515, %v490
        %v517 = vmul.f32 %v516, %v515
        %v518 = vmul.f32 0.5, %v517
        %v519 = vsub.f32 1.5, %v518
        %v520 = vmul.f32 %v515, %v519
        %vm521 = vweird.f32 %v490
        %vm522 = vweird.f32 %v515
        %vm523 = vmor %vm521, %vm522
        %v524 = vsel %vm523, %v515, %v520
        %v525 = vrsqrt.pop %v491
        %v526 = vmul.f32 %v525, %v491
        %v527 = vmul.f32 %v526, %v525
        %v528 = vmul.f32 0.5, %v527
        %v529 = vsub.f32 1.5, %v528
        %v530 = vmul.f32 %v525, %v529
        %vm531 = vweird.f32 %v491
        %vm532 = vweird.f32 %v525
        %vm533 = vmor %vm531, %vm532
        %v534 = vsel %vm533, %v525, %v530
        %v535 = vrsqrt.pop %v492
        %v536 = vmul.f32 %v535, %v492
        %v537 = vmul.f32 %v536, %v535
        %v538 = vmul.f32 0.5, %v537
        %v539 = vsub.f32 1.5, %v538
        %v540 = vmul.f32 %v535, %v539
        %vm541 = vweird.f32 %v492
        %vm542 = vweird.f32 %v535
        %vm543 = vmor %vm541, %vm542
        %v544 = vsel %vm543, %v535, %v540
        %v545 = vrsqrt.pop %v493
        %v546 = vmul.f32 %v545, %v493
        %v547 = vmul.f32 %v546, %v545
        %v548 = vmul.f32 0.5, %v547
        %v549 = vsub.f32 1.5, %v548
        %v550 = vmul.f32 %v545, %v549
        %vm551 = vweird.f32 %v493
        %vm552 = vweird.f32 %v545
        %vm553 = vmor %vm551, %vm552
        %v554 = vsel %vm553, %v545, %v550
        %v555 = vrsqrt.pop %v494
        %v556 = vmul.f32 %v555, %v494
        %v557 = vmul.f32 %v556, %v555
        %v558 = vmul.f32 0.5, %v557
        %v559 = vsub.f32 1.5, %v558
        %v560 = vmul.f32 %v555, %v559
        %vm561 = vweird.f32 %v494
        %vm562 = vweird.f32 %v555
        %vm563 = vmor %vm561, %vm562
        %v564 = vsel %vm563, %v555, %v560
        %v565 = vrsqrt.pop %v495
        %v566 = vmul.f32 %v565, %v495
        %v567 = vmul.f32 %v566, %v565
        %v568 = vmul.f32 0.5, %v567
        %v569 = vsub.f32 1.5, %v568
        %v570 = vmul.f32 %v565, %v569
        %vm571 = vweird.f32 %v495
        %vm572 = vweird.f32 %v565
        %vm573 = vmor %vm571, %vm572
        %v574 = vsel %vm573, %v565, %v570
        %v575 = vrsqrt.pop %v496
        %v576 = vmul.f32 %v575, %v496
        %v577 = vmul.f32 %v576, %v575
        %v578 = vmul.f32 0.5, %v577
        %v579 = vsub.f32 1.5, %v578
        %v580 = vmul.f32 %v575, %v579
        %vm581 = vweird.f32 %v496
        %vm582 = vweird.f32 %v575
        %vm583 = vmor %vm581, %vm582
        %v584 = vsel %vm583, %v575, %v580
        %v585 = vrsqrt.pop %v497
        %v586 = vmul.f32 %v585, %v497
        %v587 = vmul.f32 %v586, %v585
        %v588 = vmul.f32 0.5, %v587
        %v589 = vsub.f32 1.5, %v588
        %v590 = vmul.f32 %v585, %v589
        %vm591 = vweird.f32 %v497
        %vm592 = vweird.f32 %v585
        %vm593 = vmor %vm591, %vm592
        %v594 = vsel %vm593, %v585, %v590
        %v595 = vrsqrt.pop %v498
        %v596 = vmul.f32 %v595, %v498
        %v597 = vmul.f32 %v596, %v595
        %v598 = vmul.f32 0.5, %v597
        %v599 = vsub.f32 1.5, %v598
        %v600 = vmul.f32 %v595, %v599
        %vm601 = vweird.f32 %v498
        %vm602 = vweird.f32 %v595
        %vm603 = vmor %vm601, %vm602
        %v604 = vsel %vm603, %v595, %v600
        %v605 = vrsqrt.pop %v499
        %v606 = vmul.f32 %v605, %v499
        %v607 = vmul.f32 %v606, %v605
        %v608 = vmul.f32 0.5, %v607
        %v609 = vsub.f32 1.5, %v608
        %v610 = vmul.f32 %v605, %v609
        %vm611 = vweird.f32 %v499
        %vm612 = vweird.f32 %v605
        %vm613 = vmor %vm611, %vm612
        %v614 = vsel %vm613, %v605, %v610
        %v615 = vrsqrt.pop %v500
        %v616 = vmul.f32 %v615, %v500
        %v617 = vmul.f32 %v616, %v615
        %v618 = vmul.f32 0.5, %v617
        %v619 = vsub.f32 1.5, %v618
        %v620 = vmul.f32 %v615, %v619
        %vm621 = vweird.f32 %v500
        %vm622 = vweird.f32 %v615
        %vm623 = vmor %vm621, %vm622
        %v624 = vsel %vm623, %v615, %v620
        %v625 = vrsqrt.pop %v501
        %v626 = vmul.f32 %v625, %v501
        %v627 = vmul.f32 %v626, %v625
        %v628 = vmul.f32 0.5, %v627
        %v629 = vsub.f32 1.5, %v628
        %v630 = vmul.f32 %v625, %v629
        %vm631 = vweird.f32 %v501
        %vm632 = vweird.f32 %v625
        %vm633 = vmor %vm631, %vm632
        %v634 = vsel %vm633, %v625, %v630
        %v635 = vrsqrt.pop %v502
        %v636 = vmul.f32 %v635, %v502
        %v637 = vmul.f32 %v636, %v635
        %v638 = vmul.f32 0.5, %v637
        %v639 = vsub.f32 1.5, %v638
        %v640 = vmul.f32 %v635, %v639
        %vm641 = vweird.f32 %v502
        %vm642 = vweird.f32 %v635
        %vm643 = vmor %vm641, %vm642
        %v644 = vsel %vm643, %v635, %v640
        %v645 = vrsqrt.pop %v503
        %v646 = vmul.f32 %v645, %v503
        %v647 = vmul.f32 %v646, %v645
        %v648 = vmul.f32 0.5, %v647
        %v649 = vsub.f32 1.5, %v648
        %v650 = vmul.f32 %v645, %v649
        %vm651 = vweird.f32 %v503
        %vm652 = vweird.f32 %v645
        %vm653 = vmor %vm651, %vm652
        %v654 = vsel %vm653, %v645, %v650
        %v655 = vrsqrt.pop %v504
        %v656 = vmul.f32 %v655, %v504
        %v657 = vmul.f32 %v656, %v655
        %v658 = vmul.f32 0.5, %v657
        %v659 = vsub.f32 1.5, %v658
        %v660 = vmul.f32 %v655, %v659
        %vm661 = vweird.f32 %v504
        %vm662 = vweird.f32 %v655
        %vm663 = vmor %vm661, %vm662
        %v664 = vsel %vm663, %v655, %v660
        %v665 = vmul.f32 %v409, %v514
        %v666 = vmul.f32 %v410, %v524
        %v667 = vmul.f32 %v411, %v534
        %v668 = vmul.f32 %v412, %v544
        %v669 = vmul.f32 %v413, %v554
        %v670 = vmul.f32 %v414, %v564
        %v671 = vmul.f32 %v415, %v574
        %v672 = vmul.f32 %v416, %v584
        %v673 = vmul.f32 %v417, %v594
        %v674 = vmul.f32 %v418, %v604
        %v675 = vmul.f32 %v419, %v614
        %v676 = vmul.f32 %v420, %v624
        %v677 = vmul.f32 %v421, %v634
        %v678 = vmul.f32 %v422, %v644
        %v679 = vmul.f32 %v423, %v654
        %v680 = vmul.f32 %v424, %v664
        %v682 = vperm.slane %v352, 0
        %v684 = vmul.f32 %v665, %v682
        %v685 = vmul.f32 %v666, %v682
        %v686 = vmul.f32 %v667, %v682
        %v687 = vmul.f32 %v668, %v682
        %v688 = vmul.f32 %v669, %v682
        %v689 = vmul.f32 %v670, %v682
        %v690 = vmul.f32 %v671, %v682
        %v691 = vmul.f32 %v672, %v682
        %v692 = vmul.f32 %v673, %v682
        %v693 = vmul.f32 %v674, %v682
        %v694 = vmul.f32 %v675, %v682
        %v695 = vmul.f32 %v676, %v682
        %v696 = vmul.f32 %v677, %v682
        %v697 = vmul.f32 %v678, %v682
        %v698 = vmul.f32 %v679, %v682
        %v699 = vmul.f32 %v680, %v682
        %v701 = vperm.slane %v353, 0
        %v703 = vadd.f32 %v684, %v701
        %v704 = vadd.f32 %v685, %v701
        %v705 = vadd.f32 %v686, %v701
        %v706 = vadd.f32 %v687, %v701
        %v707 = vadd.f32 %v688, %v701
        %v708 = vadd.f32 %v689, %v701
        %v709 = vadd.f32 %v690, %v701
        %v710 = vadd.f32 %v691, %v701
        %v711 = vadd.f32 %v692, %v701
        %v712 = vadd.f32 %v693, %v701
        %v713 = vadd.f32 %v694, %v701
        %v714 = vadd.f32 %v695, %v701
        %v715 = vadd.f32 %v696, %v701
        %v716 = vadd.f32 %v697, %v701
        %v717 = vadd.f32 %v698, %v701
        %v718 = vadd.f32 %v699, %v701
        %v719 = vpack.c.bf16 %v704, %v703
        %v720 = vpack.c.bf16 %v706, %v705
        %v721 = vpack.c.bf16 %v708, %v707
        %v722 = vpack.c.bf16 %v710, %v709
        %v723 = vpack.c.bf16 %v712, %v711
        %v724 = vpack.c.bf16 %v714, %v713
        %v725 = vpack.c.bf16 %v716, %v715
        %v726 = vpack.c.bf16 %v718, %v717
        %v727 = vld [vmem:[#allocation4] sm:$0xff]
        %v728 = vld [vmem:[#allocation4 + $0x8] sm:$0xf]
        %v729 = vld [vmem:[#allocation4 + $0xc] sm:$0xff]
        %v730 = vld [vmem:[#allocation4 + $0x14] sm:$0xf]
        %v731 = vld [vmem:[#allocation4 + $0x18] sm:$0xff]
        %v732 = vld [vmem:[#allocation4 + $0x20] sm:$0xf]
        %v733 = vld [vmem:[#allocation4 + $0x24] sm:$0xff]
        %v734 = vld [vmem:[#allocation4 + $0x2c] sm:$0xf]
        %v735 = vld [vmem:[#allocation4 + $0x30] sm:$0xff]
        %v736 = vld [vmem:[#allocation4 + $0x38] sm:$0xf]
        %v737 = vld [vmem:[#allocation4 + $0x3c] sm:$0xff]
        %v738 = vld [vmem:[#allocation4 + $0x44] sm:$0xf]
        %v739 = vld [vmem:[#allocation4 + $0x48] sm:$0xff]
        %v740 = vld [vmem:[#allocation4 + $0x50] sm:$0xf]
        %v741 = vld [vmem:[#allocation4 + $0x54] sm:$0xff]
        %v742 = vld [vmem:[#allocation4 + $0x5c] sm:$0xf]
        %v743 = vld [vmem:[#allocation4 + $0x60] sm:$0xff]
        %v744 = vld [vmem:[#allocation4 + $0x68] sm:$0xf]
        %v745 = vld [vmem:[#allocation4 + $0x6c] sm:$0xff]
        %v746 = vld [vmem:[#allocation4 + $0x74] sm:$0xf]
        %v747 = vld [vmem:[#allocation4 + $0x78] sm:$0xff]
        %v748 = vld [vmem:[#allocation4 + $0x80] sm:$0xf]
        %v749 = vld [vmem:[#allocation4 + $0x84] sm:$0xff]
        %v750 = vld [vmem:[#allocation4 + $0x8c] sm:$0xf]
        %v751 = vld [vmem:[#allocation4 + $0x90] sm:$0xff]
        %v752 = vld [vmem:[#allocation4 + $0x98] sm:$0xf]
        %v753 = vld [vmem:[#allocation4 + $0x9c] sm:$0xff]
        %v754 = vld [vmem:[#allocation4 + $0xa4] sm:$0xf]
        %v755 = vld [vmem:[#allocation4 + $0xa8] sm:$0xff]
        %v756 = vld [vmem:[#allocation4 + $0xb0] sm:$0xf]
        %v757 = vld [vmem:[#allocation4 + $0xb4] sm:$0xff]
        %v758 = vld [vmem:[#allocation4 + $0xbc] sm:$0xf]
        %v759 = vld [vmem:[%s4] sm:$0x7]
        %v761 = vperm.slane %v759, 0
        %v762 = vperm.slane %v759, 1
        %v763 = vperm.slane %v759, 2
        %v799 = vunpack.c.l.b16 %v727
        %v800 = vunpack.c.h.b16 %v727
        %v801 = vunpack.c.l.b16 %v728
        %v802 = vunpack.c.l.b16 %v729
        %v803 = vunpack.c.h.b16 %v729
        %v804 = vunpack.c.l.b16 %v730
        %v805 = vunpack.c.l.b16 %v731
        %v806 = vunpack.c.h.b16 %v731
        %v807 = vunpack.c.l.b16 %v732
        %v808 = vunpack.c.l.b16 %v733
        %v809 = vunpack.c.h.b16 %v733
        %v810 = vunpack.c.l.b16 %v734
        %v811 = vunpack.c.l.b16 %v735
        %v812 = vunpack.c.h.b16 %v735
        %v813 = vunpack.c.l.b16 %v736
        %v814 = vunpack.c.l.b16 %v737
        %v815 = vunpack.c.h.b16 %v737
        %v816 = vunpack.c.l.b16 %v738
        %v817 = vunpack.c.l.b16 %v739
        %v818 = vunpack.c.h.b16 %v739
        %v819 = vunpack.c.l.b16 %v740
        %v820 = vunpack.c.l.b16 %v741
        %v821 = vunpack.c.h.b16 %v741
        %v822 = vunpack.c.l.b16 %v742
        %v823 = vunpack.c.l.b16 %v743
        %v824 = vunpack.c.h.b16 %v743
        %v825 = vunpack.c.l.b16 %v744
        %v826 = vunpack.c.l.b16 %v745
        %v827 = vunpack.c.h.b16 %v745
        %v828 = vunpack.c.l.b16 %v746
        %v829 = vunpack.c.l.b16 %v747
        %v830 = vunpack.c.h.b16 %v747
        %v831 = vunpack.c.l.b16 %v748
        %v832 = vunpack.c.l.b16 %v749
        %v833 = vunpack.c.h.b16 %v749
        %v834 = vunpack.c.l.b16 %v750
        %v835 = vunpack.c.l.b16 %v751
        %v836 = vunpack.c.h.b16 %v751
        %v837 = vunpack.c.l.b16 %v752
        %v838 = vunpack.c.l.b16 %v753
        %v839 = vunpack.c.h.b16 %v753
        %v840 = vunpack.c.l.b16 %v754
        %v841 = vunpack.c.l.b16 %v755
        %v842 = vunpack.c.h.b16 %v755
        %v843 = vunpack.c.l.b16 %v756
        %v844 = vunpack.c.l.b16 %v757
        %v845 = vunpack.c.h.b16 %v757
        %v846 = vunpack.c.l.b16 %v758
        %v847 = vpack.c.b16 %v802, %v799
        %v848 = vpack.c.b16 %v803, %v800
        %v849 = vpack.c.b16 %v804, %v801
        %v850 = vpack.c.b16 %v808, %v805
        %v851 = vpack.c.b16 %v809, %v806
        %v852 = vpack.c.b16 %v810, %v807
        %v853 = vpack.c.b16 %v814, %v811
        %v854 = vpack.c.b16 %v815, %v812
        %v855 = vpack.c.b16 %v816, %v813
        %v856 = vpack.c.b16 %v820, %v817
        %v857 = vpack.c.b16 %v821, %v818
        %v858 = vpack.c.b16 %v822, %v819
        %v859 = vpack.c.b16 %v826, %v823
        %v860 = vpack.c.b16 %v827, %v824
        %v861 = vpack.c.b16 %v828, %v825
        %v862 = vpack.c.b16 %v832, %v829
        %v863 = vpack.c.b16 %v833, %v830
        %v864 = vpack.c.b16 %v834, %v831
        %v865 = vpack.c.b16 %v838, %v835
        %v866 = vpack.c.b16 %v839, %v836
        %v867 = vpack.c.b16 %v840, %v837
        %v868 = vpack.c.b16 %v844, %v841
        %v869 = vpack.c.b16 %v845, %v842
        %v870 = vpack.c.b16 %v846, %v843
        %895 = vmatpush.bf16.msra.mxu0 %v868
        %896 = vmatpush.bf16.msra.mxu0 %v865
        %897 = vmatpush.bf16.msra.mxu0 %v862
        %898 = vmatpush.bf16.msra.mxu0 %v859
        %899 = vmatpush.bf16.msra.mxu0 %v856
        %900 = vmatpush.bf16.msra.mxu0 %v853
        %901 = vmatpush.bf16.msra.mxu0 %v850
        %902 = vmatpush.bf16.msra.mxu0 %v847
        %903 = vmatmul.bf16.gmra.mxu0 %v719
        %v904 = vpop.f32.mrf.mxu0
        %v905 = vadd.f32 %v761, %v904
        %v906 = vpop.f32.mrf.mxu0
        %v907 = vadd.f32 %v761, %v906
        %908 = vmatmul.bf16.gmra.mxu0 %v720
        %v909 = vpop.f32.mrf.mxu0
        %v910 = vadd.f32 %v761, %v909
        %v911 = vpop.f32.mrf.mxu0
        %v912 = vadd.f32 %v761, %v911
        %913 = vmatmul.bf16.gmra.mxu0 %v721
        %v914 = vpop.f32.mrf.mxu0
        %v915 = vadd.f32 %v761, %v914
        %v916 = vpop.f32.mrf.mxu0
        %v917 = vadd.f32 %v761, %v916
        %918 = vmatmul.bf16.gmra.mxu0 %v722
        %v919 = vpop.f32.mrf.mxu0
        %v920 = vadd.f32 %v761, %v919
        %v921 = vpop.f32.mrf.mxu0
        %v922 = vadd.f32 %v761, %v921
        %923 = vmatmul.bf16.gmra.mxu0 %v723
        %v924 = vpop.f32.mrf.mxu0
        %v925 = vadd.f32 %v761, %v924
        %v926 = vpop.f32.mrf.mxu0
        %v927 = vadd.f32 %v761, %v926
        %928 = vmatmul.bf16.gmra.mxu0 %v724
        %v929 = vpop.f32.mrf.mxu0
        %v930 = vadd.f32 %v761, %v929
        %v931 = vpop.f32.mrf.mxu0
        %v932 = vadd.f32 %v761, %v931
        %933 = vmatmul.bf16.gmra.mxu0 %v725
        %v934 = vpop.f32.mrf.mxu0
        %v935 = vadd.f32 %v761, %v934
        %v936 = vpop.f32.mrf.mxu0
        %v937 = vadd.f32 %v761, %v936
        %938 = vmatmul.bf16.gmra.mxu0 %v726
        %v939 = vpop.f32.mrf.mxu0
        %v940 = vadd.f32 %v761, %v939
        %v941 = vpop.f32.mrf.mxu0
        %v942 = vadd.f32 %v761, %v941
        %943 = vdwg.mxu0
        %944 = vmatpush.bf16.msra.mxu0 %v869
        %945 = vmatpush.bf16.msra.mxu0 %v866
        %946 = vmatpush.bf16.msra.mxu0 %v863
        %947 = vmatpush.bf16.msra.mxu0 %v860
        %948 = vmatpush.bf16.msra.mxu0 %v857
        %949 = vmatpush.bf16.msra.mxu0 %v854
        %950 = vmatpush.bf16.msra.mxu0 %v851
        %951 = vmatpush.bf16.msra.mxu0 %v848
        %952 = vmatmul.bf16.gmra.mxu0 %v719
        %v953 = vpop.f32.mrf.mxu0
        %v954 = vadd.f32 %v762, %v953
        %v955 = vpop.f32.mrf.mxu0
        %v956 = vadd.f32 %v762, %v955
        %957 = vmatmul.bf16.gmra.mxu0 %v720
        %v958 = vpop.f32.mrf.mxu0
        %v959 = vadd.f32 %v762, %v958
        %v960 = vpop.f32.mrf.mxu0
        %v961 = vadd.f32 %v762, %v960
        %962 = vmatmul.bf16.gmra.mxu0 %v721
        %v963 = vpop.f32.mrf.mxu0
        %v964 = vadd.f32 %v762, %v963
        %v965 = vpop.f32.mrf.mxu0
        %v966 = vadd.f32 %v762, %v965
        %967 = vmatmul.bf16.gmra.mxu0 %v722
        %v968 = vpop.f32.mrf.mxu0
        %v969 = vadd.f32 %v762, %v968
        %v970 = vpop.f32.mrf.mxu0
        %v971 = vadd.f32 %v762, %v970
        %972 = vmatmul.bf16.gmra.mxu0 %v723
        %v973 = vpop.f32.mrf.mxu0
        %v974 = vadd.f32 %v762, %v973
        %v975 = vpop.f32.mrf.mxu0
        %v976 = vadd.f32 %v762, %v975
        %977 = vmatmul.bf16.gmra.mxu0 %v724
        %v978 = vpop.f32.mrf.mxu0
        %v979 = vadd.f32 %v762, %v978
        %v980 = vpop.f32.mrf.mxu0
        %v981 = vadd.f32 %v762, %v980
        %982 = vmatmul.bf16.gmra.mxu0 %v725
        %v983 = vpop.f32.mrf.mxu0
        %v984 = vadd.f32 %v762, %v983
        %v985 = vpop.f32.mrf.mxu0
        %v986 = vadd.f32 %v762, %v985
        %987 = vmatmul.bf16.gmra.mxu0 %v726
        %v988 = vpop.f32.mrf.mxu0
        %v989 = vadd.f32 %v762, %v988
        %v990 = vpop.f32.mrf.mxu0
        %v991 = vadd.f32 %v762, %v990
        %992 = vdwg.mxu0
        %993 = vmatpush.bf16.msra.mxu0 %v870
        %994 = vmatpush.bf16.msra.mxu0 %v867
        %995 = vmatpush.bf16.msra.mxu0 %v864
        %996 = vmatpush.bf16.msra.mxu0 %v861
        %997 = vmatpush.bf16.msra.mxu0 %v858
        %998 = vmatpush.bf16.msra.mxu0 %v855
        %999 = vmatpush.bf16.msra.mxu0 %v852
        %1000 = vmatpush.bf16.msra.mxu0 %v849
        %1001 = vmatmul.bf16.gmra.mxu0 %v719
        %v1002 = vpop.f32.mrf.mxu0
        %v1003 = vadd.f32 %v763, %v1002
        %v1004 = vpop.f32.mrf.mxu0
        %v1005 = vadd.f32 %v763, %v1004
        %1006 = vmatmul.bf16.gmra.mxu0 %v720
        %v1007 = vpop.f32.mrf.mxu0
        %v1008 = vadd.f32 %v763, %v1007
        %v1009 = vpop.f32.mrf.mxu0
        %v1010 = vadd.f32 %v763, %v1009
        %1011 = vmatmul.bf16.gmra.mxu0 %v721
        %v1012 = vpop.f32.mrf.mxu0
        %v1013 = vadd.f32 %v763, %v1012
        %v1014 = vpop.f32.mrf.mxu0
        %v1015 = vadd.f32 %v763, %v1014
        %1016 = vmatmul.bf16.gmra.mxu0 %v722
        %v1017 = vpop.f32.mrf.mxu0
        %v1018 = vadd.f32 %v763, %v1017
        %v1019 = vpop.f32.mrf.mxu0
        %v1020 = vadd.f32 %v763, %v1019
        %1021 = vmatmul.bf16.gmra.mxu0 %v723
        %v1022 = vpop.f32.mrf.mxu0
        %v1023 = vadd.f32 %v763, %v1022
        %v1024 = vpop.f32.mrf.mxu0
        %v1025 = vadd.f32 %v763, %v1024
        %1026 = vmatmul.bf16.gmra.mxu0 %v724
        %v1027 = vpop.f32.mrf.mxu0
        %v1028 = vadd.f32 %v763, %v1027
        %v1029 = vpop.f32.mrf.mxu0
        %v1030 = vadd.f32 %v763, %v1029
        %1031 = vmatmul.bf16.gmra.mxu0 %v725
        %v1032 = vpop.f32.mrf.mxu0
        %v1033 = vadd.f32 %v763, %v1032
        %v1034 = vpop.f32.mrf.mxu0
        %v1035 = vadd.f32 %v763, %v1034
        %1036 = vmatmul.bf16.gmra.mxu0 %v726
        %v1037 = vpop.f32.mrf.mxu0
        %v1038 = vadd.f32 %v763, %v1037
        %v1039 = vpop.f32.mrf.mxu0
        %v1040 = vadd.f32 %v763, %v1039
        %1041 = vdwg.mxu0
        %v1042 = vmul.f32 %v905, 0.17677669
        %v1043 = vmul.f32 %v907, 0.17677669
        %v1044 = vmul.f32 %v910, 0.17677669
        %v1045 = vmul.f32 %v912, 0.17677669
        %v1046 = vmul.f32 %v915, 0.17677669
        %v1047 = vmul.f32 %v917, 0.17677669
        %v1048 = vmul.f32 %v920, 0.17677669
        %v1049 = vmul.f32 %v922, 0.17677669
        %v1050 = vmul.f32 %v925, 0.17677669
        %v1051 = vmul.f32 %v927, 0.17677669
        %v1052 = vmul.f32 %v930, 0.17677669
        %v1053 = vmul.f32 %v932, 0.17677669
        %v1054 = vmul.f32 %v935, 0.17677669
        %v1055 = vmul.f32 %v937, 0.17677669
        %v1056 = vmul.f32 %v940, 0.17677669
        %v1057 = vmul.f32 %v942, 0.17677669
        %v1058 = vpack.c.bf16 %v1043, %v1042
        %v1059 = vpack.c.bf16 %v1045, %v1044
        %v1060 = vpack.c.bf16 %v1047, %v1046
        %v1061 = vpack.c.bf16 %v1049, %v1048
        %v1062 = vpack.c.bf16 %v1051, %v1050
        %v1063 = vpack.c.bf16 %v1053, %v1052
        %v1064 = vpack.c.bf16 %v1055, %v1054
        %v1065 = vpack.c.bf16 %v1057, %v1056
        %v1066 = vpack.c.bf16 %v956, %v954
        %v1067 = vpack.c.bf16 %v961, %v959
        %v1068 = vpack.c.bf16 %v966, %v964
        %v1069 = vpack.c.bf16 %v971, %v969
        %v1070 = vpack.c.bf16 %v976, %v974
        %v1071 = vpack.c.bf16 %v981, %v979
        %v1072 = vpack.c.bf16 %v986, %v984
        %v1073 = vpack.c.bf16 %v991, %v989
        %v1074 = vpack.c.bf16 %v1005, %v1003
        %v1075 = vpack.c.bf16 %v1010, %v1008
        %v1076 = vpack.c.bf16 %v1015, %v1013
        %v1077 = vpack.c.bf16 %v1020, %v1018
        %v1078 = vpack.c.bf16 %v1025, %v1023
        %v1079 = vpack.c.bf16 %v1030, %v1028
        %v1080 = vpack.c.bf16 %v1035, %v1033
        %v1081 = vpack.c.bf16 %v1040, %v1038
        %vm1082 = vcmask 261120
        %v1084 = vsel %vm1082, %v1058, 0
        %v1087 = vsel %vm1082, %v1059, 0
        %v1090 = vsel %vm1082, %v1060, 0
        %v1093 = vsel %vm1082, %v1061, 0
        %v1096 = vsel %vm1082, %v1062, 0
        %v1099 = vsel %vm1082, %v1063, 0
        %v1102 = vsel %vm1082, %v1064, 0
        %v1105 = vsel %vm1082, %v1065, 0
        %v1108 = vsel %vm1082, %v1066, 0
        %v1111 = vsel %vm1082, %v1067, 0
        %v1114 = vsel %vm1082, %v1068, 0
        %v1117 = vsel %vm1082, %v1069, 0
        %v1120 = vsel %vm1082, %v1070, 0
        %v1123 = vsel %vm1082, %v1071, 0
        %v1126 = vsel %vm1082, %v1072, 0
        %v1129 = vsel %vm1082, %v1073, 0
        %1131 = vmatpush.bf16.xpose.msra.mxu0 %v1129
        %1132 = vmatpush.bf16.xpose.msra.mxu0 %v1126
        %1133 = vmatpush.bf16.xpose.msra.mxu0 %v1123
        %1134 = vmatpush.bf16.xpose.msra.mxu0 %v1120
        %1135 = vmatpush.bf16.xpose.msra.mxu0 %v1117
        %1136 = vmatpush.bf16.xpose.msra.mxu0 %v1114
        %1137 = vmatpush.bf16.xpose.msra.mxu0 %v1111
        %1138 = vmatpush.bf16.xpose.msra.mxu0 %v1108
        %1139 = vmatmul.bf16.gmra.mxu0 %v1084
        %v1140 = vpop.f32.mrf.mxu0
        %v1141 = vadd.f32 0.0, %v1140
        %v1142 = vpop.f32.mrf.mxu0
        %v1143 = vadd.f32 0.0, %v1142
        %1144 = vmatmul.bf16.gmra.mxu0 %v1087
        %v1145 = vpop.f32.mrf.mxu0
        %v1146 = vadd.f32 0.0, %v1145
        %v1147 = vpop.f32.mrf.mxu0
        %v1148 = vadd.f32 0.0, %v1147
        %1149 = vmatmul.bf16.gmra.mxu0 %v1090
        %v1150 = vpop.f32.mrf.mxu0
        %v1151 = vadd.f32 0.0, %v1150
        %v1152 = vpop.f32.mrf.mxu0
        %v1153 = vadd.f32 0.0, %v1152
        %1154 = vmatmul.bf16.gmra.mxu0 %v1093
        %v1155 = vpop.f32.mrf.mxu0
        %v1156 = vadd.f32 0.0, %v1155
        %v1157 = vpop.f32.mrf.mxu0
        %v1158 = vadd.f32 0.0, %v1157
        %1159 = vmatmul.bf16.gmra.mxu0 %v1096
        %v1160 = vpop.f32.mrf.mxu0
        %v1161 = vadd.f32 0.0, %v1160
        %v1162 = vpop.f32.mrf.mxu0
        %v1163 = vadd.f32 0.0, %v1162
        %1164 = vmatmul.bf16.gmra.mxu0 %v1099
        %v1165 = vpop.f32.mrf.mxu0
        %v1166 = vadd.f32 0.0, %v1165
        %v1167 = vpop.f32.mrf.mxu0
        %v1168 = vadd.f32 0.0, %v1167
        %1169 = vmatmul.bf16.gmra.mxu0 %v1102
        %v1170 = vpop.f32.mrf.mxu0
        %v1171 = vadd.f32 0.0, %v1170
        %v1172 = vpop.f32.mrf.mxu0
        %v1173 = vadd.f32 0.0, %v1172
        %1174 = vmatmul.bf16.gmra.mxu0 %v1105
        %v1175 = vpop.f32.mrf.mxu0
        %v1176 = vadd.f32 0.0, %v1175
        %v1177 = vpop.f32.mrf.mxu0
        %v1178 = vadd.f32 0.0, %v1177
        %1179 = vdwg.mxu0
        %1180 = vmax.xlane.f32.xlu0 %v1141
        %v1181 = vpop.xlane.xlu0 %1180
        %1182 = vmax.xlane.f32.xlu0 %v1143
        %v1183 = vpop.xlane.xlu0 %1182
        %1184 = vmax.xlane.f32.xlu0 %v1146
        %v1185 = vpop.xlane.xlu0 %1184
        %1186 = vmax.xlane.f32.xlu0 %v1148
        %v1187 = vpop.xlane.xlu0 %1186
        %1188 = vmax.xlane.f32.xlu0 %v1151
        %v1189 = vpop.xlane.xlu0 %1188
        %1190 = vmax.xlane.f32.xlu0 %v1153
        %v1191 = vpop.xlane.xlu0 %1190
        %1192 = vmax.xlane.f32.xlu0 %v1156
        %v1193 = vpop.xlane.xlu0 %1192
        %1194 = vmax.xlane.f32.xlu0 %v1158
        %v1195 = vpop.xlane.xlu0 %1194
        %1196 = vmax.xlane.f32.xlu0 %v1161
        %v1197 = vpop.xlane.xlu0 %1196
        %1198 = vmax.xlane.f32.xlu0 %v1163
        %v1199 = vpop.xlane.xlu0 %1198
        %1200 = vmax.xlane.f32.xlu0 %v1166
        %v1201 = vpop.xlane.xlu0 %1200
        %1202 = vmax.xlane.f32.xlu0 %v1168
        %v1203 = vpop.xlane.xlu0 %1202
        %1204 = vmax.xlane.f32.xlu0 %v1171
        %v1205 = vpop.xlane.xlu0 %1204
        %1206 = vmax.xlane.f32.xlu0 %v1173
        %v1207 = vpop.xlane.xlu0 %1206
        %1208 = vmax.xlane.f32.xlu0 %v1176
        %v1209 = vpop.xlane.xlu0 %1208
        %1210 = vmax.xlane.f32.xlu0 %v1178
        %v1211 = vpop.xlane.xlu0 %1210
        %v1212 = vsub.f32 %v1141, %v1181
        %v1213 = vsub.f32 %v1143, %v1183
        %v1214 = vsub.f32 %v1146, %v1185
        %v1215 = vsub.f32 %v1148, %v1187
        %v1216 = vsub.f32 %v1151, %v1189
        %v1217 = vsub.f32 %v1153, %v1191
        %v1218 = vsub.f32 %v1156, %v1193
        %v1219 = vsub.f32 %v1158, %v1195
        %v1220 = vsub.f32 %v1161, %v1197
        %v1221 = vsub.f32 %v1163, %v1199
        %v1222 = vsub.f32 %v1166, %v1201
        %v1223 = vsub.f32 %v1168, %v1203
        %v1224 = vsub.f32 %v1171, %v1205
        %v1225 = vsub.f32 %v1173, %v1207
        %v1226 = vsub.f32 %v1176, %v1209
        %v1227 = vsub.f32 %v1178, %v1211
        %v1228 = vmul.f32 %v1212, 1.442695
        %v1229 = vpow.pop %v1228
        %v1230 = vmul.f32 %v1213, 1.442695
        %v1231 = vpow.pop %v1230
        %v1232 = vmul.f32 %v1214, 1.442695
        %v1233 = vpow.pop %v1232
        %v1234 = vmul.f32 %v1215, 1.442695
        %v1235 = vpow.pop %v1234
        %v1236 = vmul.f32 %v1216, 1.442695
        %v1237 = vpow.pop %v1236
        %v1238 = vmul.f32 %v1217, 1.442695
        %v1239 = vpow.pop %v1238
        %v1240 = vmul.f32 %v1218, 1.442695
        %v1241 = vpow.pop %v1240
        %v1242 = vmul.f32 %v1219, 1.442695
        %v1243 = vpow.pop %v1242
        %v1244 = vmul.f32 %v1220, 1.442695
        %v1245 = vpow.pop %v1244
        %v1246 = vmul.f32 %v1221, 1.442695
        %v1247 = vpow.pop %v1246
        %v1248 = vmul.f32 %v1222, 1.442695
        %v1249 = vpow.pop %v1248
        %v1250 = vmul.f32 %v1223, 1.442695
        %v1251 = vpow.pop %v1250
        %v1252 = vmul.f32 %v1224, 1.442695
        %v1253 = vpow.pop %v1252
        %v1254 = vmul.f32 %v1225, 1.442695
        %v1255 = vpow.pop %v1254
        %v1256 = vmul.f32 %v1226, 1.442695
        %v1257 = vpow.pop %v1256
        %v1258 = vmul.f32 %v1227, 1.442695
        %v1259 = vpow.pop %v1258
        %1260 = vadd.xlane.f32.xlu0 %v1229
        %v1261 = vpop.xlane.xlu0 %1260
        %1262 = vadd.xlane.f32.xlu0 %v1231
        %v1263 = vpop.xlane.xlu0 %1262
        %1264 = vadd.xlane.f32.xlu0 %v1233
        %v1265 = vpop.xlane.xlu0 %1264
        %1266 = vadd.xlane.f32.xlu0 %v1235
        %v1267 = vpop.xlane.xlu0 %1266
        %1268 = vadd.xlane.f32.xlu0 %v1237
        %v1269 = vpop.xlane.xlu0 %1268
        %1270 = vadd.xlane.f32.xlu0 %v1239
        %v1271 = vpop.xlane.xlu0 %1270
        %1272 = vadd.xlane.f32.xlu0 %v1241
        %v1273 = vpop.xlane.xlu0 %1272
        %1274 = vadd.xlane.f32.xlu0 %v1243
        %v1275 = vpop.xlane.xlu0 %1274
        %1276 = vadd.xlane.f32.xlu0 %v1245
        %v1277 = vpop.xlane.xlu0 %1276
        %1278 = vadd.xlane.f32.xlu0 %v1247
        %v1279 = vpop.xlane.xlu0 %1278
        %1280 = vadd.xlane.f32.xlu0 %v1249
        %v1281 = vpop.xlane.xlu0 %1280
        %1282 = vadd.xlane.f32.xlu0 %v1251
        %v1283 = vpop.xlane.xlu0 %1282
        %1284 = vadd.xlane.f32.xlu0 %v1253
        %v1285 = vpop.xlane.xlu0 %1284
        %1286 = vadd.xlane.f32.xlu0 %v1255
        %v1287 = vpop.xlane.xlu0 %1286
        %1288 = vadd.xlane.f32.xlu0 %v1257
        %v1289 = vpop.xlane.xlu0 %1288
        %1290 = vadd.xlane.f32.xlu0 %v1259
        %v1291 = vpop.xlane.xlu0 %1290
        %v1292 = vrcp.pop %v1261
        %v1293 = vmul.f32 %v1261, %v1292
        %v1294 = vsub.f32 1.0, %v1293
        %v1295 = vmul.f32 %v1292, %v1294
        %v1296 = vadd.f32 %v1292, %v1295
        %vm1297 = vweird.f32 %v1261
        %vm1298 = vweird.f32 %v1292
        %vm1299 = vmor %vm1297, %vm1298
        %v1300 = vsel %vm1299, %v1292, %v1296
        %v1301 = vand.u32 2147483647, %v1261
        %vm1302 = vcmp.eq.f32.partialorder %v1301, 8.507059e+37
        %v1303 = vand.u32 %v1261, 2147483648
        %v1304 = vor.u32 1.1754944e-38, %v1303
        %v1305 = vsel %vm1302, %v1304, %v1300
        %v1306 = vmul.f32 %v1229, %v1305
        %v1307 = vrcp.pop %v1263
        %v1308 = vmul.f32 %v1263, %v1307
        %v1309 = vsub.f32 1.0, %v1308
        %v1310 = vmul.f32 %v1307, %v1309
        %v1311 = vadd.f32 %v1307, %v1310
        %vm1312 = vweird.f32 %v1263
        %vm1313 = vweird.f32 %v1307
        %vm1314 = vmor %vm1312, %vm1313
        %v1315 = vsel %vm1314, %v1307, %v1311
        %v1316 = vand.u32 2147483647, %v1263
        %vm1317 = vcmp.eq.f32.partialorder %v1316, 8.507059e+37
        %v1318 = vand.u32 %v1263, 2147483648
        %v1319 = vor.u32 1.1754944e-38, %v1318
        %v1320 = vsel %vm1317, %v1319, %v1315
        %v1321 = vmul.f32 %v1231, %v1320
        %v1322 = vrcp.pop %v1265
        %v1323 = vmul.f32 %v1265, %v1322
        %v1324 = vsub.f32 1.0, %v1323
        %v1325 = vmul.f32 %v1322, %v1324
        %v1326 = vadd.f32 %v1322, %v1325
        %vm1327 = vweird.f32 %v1265
        %vm1328 = vweird.f32 %v1322
        %vm1329 = vmor %vm1327, %vm1328
        %v1330 = vsel %vm1329, %v1322, %v1326
        %v1331 = vand.u32 2147483647, %v1265
        %vm1332 = vcmp.eq.f32.partialorder %v1331, 8.507059e+37
        %v1333 = vand.u32 %v1265, 2147483648
        %v1334 = vor.u32 1.1754944e-38, %v1333
        %v1335 = vsel %vm1332, %v1334, %v1330
        %v1336 = vmul.f32 %v1233, %v1335
        %v1337 = vrcp.pop %v1267
        %v1338 = vmul.f32 %v1267, %v1337
        %v1339 = vsub.f32 1.0, %v1338
        %v1340 = vmul.f32 %v1337, %v1339
        %v1341 = vadd.f32 %v1337, %v1340
        %vm1342 = vweird.f32 %v1267
        %vm1343 = vweird.f32 %v1337
        %vm1344 = vmor %vm1342, %vm1343
        %v1345 = vsel %vm1344, %v1337, %v1341
        %v1346 = vand.u32 2147483647, %v1267
        %vm1347 = vcmp.eq.f32.partialorder %v1346, 8.507059e+37
        %v1348 = vand.u32 %v1267, 2147483648
        %v1349 = vor.u32 1.1754944e-38, %v1348
        %v1350 = vsel %vm1347, %v1349, %v1345
        %v1351 = vmul.f32 %v1235, %v1350
        %v1352 = vrcp.pop %v1269
        %v1353 = vmul.f32 %v1269, %v1352
        %v1354 = vsub.f32 1.0, %v1353
        %v1355 = vmul.f32 %v1352, %v1354
        %v1356 = vadd.f32 %v1352, %v1355
        %vm1357 = vweird.f32 %v1269
        %vm1358 = vweird.f32 %v1352
        %vm1359 = vmor %vm1357, %vm1358
        %v1360 = vsel %vm1359, %v1352, %v1356
        %v1361 = vand.u32 2147483647, %v1269
        %vm1362 = vcmp.eq.f32.partialorder %v1361, 8.507059e+37
        %v1363 = vand.u32 %v1269, 2147483648
        %v1364 = vor.u32 1.1754944e-38, %v1363
        %v1365 = vsel %vm1362, %v1364, %v1360
        %v1366 = vmul.f32 %v1237, %v1365
        %v1367 = vrcp.pop %v1271
        %v1368 = vmul.f32 %v1271, %v1367
        %v1369 = vsub.f32 1.0, %v1368
        %v1370 = vmul.f32 %v1367, %v1369
        %v1371 = vadd.f32 %v1367, %v1370
        %vm1372 = vweird.f32 %v1271
        %vm1373 = vweird.f32 %v1367
        %vm1374 = vmor %vm1372, %vm1373
        %v1375 = vsel %vm1374, %v1367, %v1371
        %v1376 = vand.u32 2147483647, %v1271
        %vm1377 = vcmp.eq.f32.partialorder %v1376, 8.507059e+37
        %v1378 = vand.u32 %v1271, 2147483648
        %v1379 = vor.u32 1.1754944e-38, %v1378
        %v1380 = vsel %vm1377, %v1379, %v1375
        %v1381 = vmul.f32 %v1239, %v1380
        %v1382 = vrcp.pop %v1273
        %v1383 = vmul.f32 %v1273, %v1382
        %v1384 = vsub.f32 1.0, %v1383
        %v1385 = vmul.f32 %v1382, %v1384
        %v1386 = vadd.f32 %v1382, %v1385
        %vm1387 = vweird.f32 %v1273
        %vm1388 = vweird.f32 %v1382
        %vm1389 = vmor %vm1387, %vm1388
        %v1390 = vsel %vm1389, %v1382, %v1386
        %v1391 = vand.u32 2147483647, %v1273
        %vm1392 = vcmp.eq.f32.partialorder %v1391, 8.507059e+37
        %v1393 = vand.u32 %v1273, 2147483648
        %v1394 = vor.u32 1.1754944e-38, %v1393
        %v1395 = vsel %vm1392, %v1394, %v1390
        %v1396 = vmul.f32 %v1241, %v1395
        %v1397 = vrcp.pop %v1275
        %v1398 = vmul.f32 %v1275, %v1397
        %v1399 = vsub.f32 1.0, %v1398
        %v1400 = vmul.f32 %v1397, %v1399
        %v1401 = vadd.f32 %v1397, %v1400
        %vm1402 = vweird.f32 %v1275
        %vm1403 = vweird.f32 %v1397
        %vm1404 = vmor %vm1402, %vm1403
        %v1405 = vsel %vm1404, %v1397, %v1401
        %v1406 = vand.u32 2147483647, %v1275
        %vm1407 = vcmp.eq.f32.partialorder %v1406, 8.507059e+37
        %v1408 = vand.u32 %v1275, 2147483648
        %v1409 = vor.u32 1.1754944e-38, %v1408
        %v1410 = vsel %vm1407, %v1409, %v1405
        %v1411 = vmul.f32 %v1243, %v1410
        %v1412 = vrcp.pop %v1277
        %v1413 = vmul.f32 %v1277, %v1412
        %v1414 = vsub.f32 1.0, %v1413
        %v1415 = vmul.f32 %v1412, %v1414
        %v1416 = vadd.f32 %v1412, %v1415
        %vm1417 = vweird.f32 %v1277
        %vm1418 = vweird.f32 %v1412
        %vm1419 = vmor %vm1417, %vm1418
        %v1420 = vsel %vm1419, %v1412, %v1416
        %v1421 = vand.u32 2147483647, %v1277
        %vm1422 = vcmp.eq.f32.partialorder %v1421, 8.507059e+37
        %v1423 = vand.u32 %v1277, 2147483648
        %v1424 = vor.u32 1.1754944e-38, %v1423
        %v1425 = vsel %vm1422, %v1424, %v1420
        %v1426 = vmul.f32 %v1245, %v1425
        %v1427 = vrcp.pop %v1279
        %v1428 = vmul.f32 %v1279, %v1427
        %v1429 = vsub.f32 1.0, %v1428
        %v1430 = vmul.f32 %v1427, %v1429
        %v1431 = vadd.f32 %v1427, %v1430
        %vm1432 = vweird.f32 %v1279
        %vm1433 = vweird.f32 %v1427
        %vm1434 = vmor %vm1432, %vm1433
        %v1435 = vsel %vm1434, %v1427, %v1431
        %v1436 = vand.u32 2147483647, %v1279
        %vm1437 = vcmp.eq.f32.partialorder %v1436, 8.507059e+37
        %v1438 = vand.u32 %v1279, 2147483648
        %v1439 = vor.u32 1.1754944e-38, %v1438
        %v1440 = vsel %vm1437, %v1439, %v1435
        %v1441 = vmul.f32 %v1247, %v1440
        %v1442 = vrcp.pop %v1281
        %v1443 = vmul.f32 %v1281, %v1442
        %v1444 = vsub.f32 1.0, %v1443
        %v1445 = vmul.f32 %v1442, %v1444
        %v1446 = vadd.f32 %v1442, %v1445
        %vm1447 = vweird.f32 %v1281
        %vm1448 = vweird.f32 %v1442
        %vm1449 = vmor %vm1447, %vm1448
        %v1450 = vsel %vm1449, %v1442, %v1446
        %v1451 = vand.u32 2147483647, %v1281
        %vm1452 = vcmp.eq.f32.partialorder %v1451, 8.507059e+37
        %v1453 = vand.u32 %v1281, 2147483648
        %v1454 = vor.u32 1.1754944e-38, %v1453
        %v1455 = vsel %vm1452, %v1454, %v1450
        %v1456 = vmul.f32 %v1249, %v1455
        %v1457 = vrcp.pop %v1283
        %v1458 = vmul.f32 %v1283, %v1457
        %v1459 = vsub.f32 1.0, %v1458
        %v1460 = vmul.f32 %v1457, %v1459
        %v1461 = vadd.f32 %v1457, %v1460
        %vm1462 = vweird.f32 %v1283
        %vm1463 = vweird.f32 %v1457
        %vm1464 = vmor %vm1462, %vm1463
        %v1465 = vsel %vm1464, %v1457, %v1461
        %v1466 = vand.u32 2147483647, %v1283
        %vm1467 = vcmp.eq.f32.partialorder %v1466, 8.507059e+37
        %v1468 = vand.u32 %v1283, 2147483648
        %v1469 = vor.u32 1.1754944e-38, %v1468
        %v1470 = vsel %vm1467, %v1469, %v1465
        %v1471 = vmul.f32 %v1251, %v1470
        %v1472 = vrcp.pop %v1285
        %v1473 = vmul.f32 %v1285, %v1472
        %v1474 = vsub.f32 1.0, %v1473
        %v1475 = vmul.f32 %v1472, %v1474
        %v1476 = vadd.f32 %v1472, %v1475
        %vm1477 = vweird.f32 %v1285
        %vm1478 = vweird.f32 %v1472
        %vm1479 = vmor %vm1477, %vm1478
        %v1480 = vsel %vm1479, %v1472, %v1476
        %v1481 = vand.u32 2147483647, %v1285
        %vm1482 = vcmp.eq.f32.partialorder %v1481, 8.507059e+37
        %v1483 = vand.u32 %v1285, 2147483648
        %v1484 = vor.u32 1.1754944e-38, %v1483
        %v1485 = vsel %vm1482, %v1484, %v1480
        %v1486 = vmul.f32 %v1253, %v1485
        %v1487 = vrcp.pop %v1287
        %v1488 = vmul.f32 %v1287, %v1487
        %v1489 = vsub.f32 1.0, %v1488
        %v1490 = vmul.f32 %v1487, %v1489
        %v1491 = vadd.f32 %v1487, %v1490
        %vm1492 = vweird.f32 %v1287
        %vm1493 = vweird.f32 %v1487
        %vm1494 = vmor %vm1492, %vm1493
        %v1495 = vsel %vm1494, %v1487, %v1491
        %v1496 = vand.u32 2147483647, %v1287
        %vm1497 = vcmp.eq.f32.partialorder %v1496, 8.507059e+37
        %v1498 = vand.u32 %v1287, 2147483648
        %v1499 = vor.u32 1.1754944e-38, %v1498
        %v1500 = vsel %vm1497, %v1499, %v1495
        %v1501 = vmul.f32 %v1255, %v1500
        %v1502 = vrcp.pop %v1289
        %v1503 = vmul.f32 %v1289, %v1502
        %v1504 = vsub.f32 1.0, %v1503
        %v1505 = vmul.f32 %v1502, %v1504
        %v1506 = vadd.f32 %v1502, %v1505
        %vm1507 = vweird.f32 %v1289
        %vm1508 = vweird.f32 %v1502
        %vm1509 = vmor %vm1507, %vm1508
        %v1510 = vsel %vm1509, %v1502, %v1506
        %v1511 = vand.u32 2147483647, %v1289
        %vm1512 = vcmp.eq.f32.partialorder %v1511, 8.507059e+37
        %v1513 = vand.u32 %v1289, 2147483648
        %v1514 = vor.u32 1.1754944e-38, %v1513
        %v1515 = vsel %vm1512, %v1514, %v1510
        %v1516 = vmul.f32 %v1257, %v1515
        %v1517 = vrcp.pop %v1291
        %v1518 = vmul.f32 %v1291, %v1517
        %v1519 = vsub.f32 1.0, %v1518
        %v1520 = vmul.f32 %v1517, %v1519
        %v1521 = vadd.f32 %v1517, %v1520
        %vm1522 = vweird.f32 %v1291
        %vm1523 = vweird.f32 %v1517
        %vm1524 = vmor %vm1522, %vm1523
        %v1525 = vsel %vm1524, %v1517, %v1521
        %v1526 = vand.u32 2147483647, %v1291
        %vm1527 = vcmp.eq.f32.partialorder %v1526, 8.507059e+37
        %v1528 = vand.u32 %v1291, 2147483648
        %v1529 = vor.u32 1.1754944e-38, %v1528
        %v1530 = vsel %vm1527, %v1529, %v1525
        %v1531 = vmul.f32 %v1259, %v1530
        %v1532 = vpack.c.bf16 %v1321, %v1306
        %v1533 = vpack.c.bf16 %v1351, %v1336
        %v1534 = vpack.c.bf16 %v1381, %v1366
        %v1535 = vpack.c.bf16 %v1411, %v1396
        %v1536 = vpack.c.bf16 %v1441, %v1426
        %v1537 = vpack.c.bf16 %v1471, %v1456
        %v1538 = vpack.c.bf16 %v1501, %v1486
        %v1539 = vpack.c.bf16 %v1531, %v1516
        %1540 = vmatpush.bf16.msra.mxu0 %v1081
        %1541 = vmatpush.bf16.msra.mxu0 %v1080
        %1542 = vmatpush.bf16.msra.mxu0 %v1079
        %1543 = vmatpush.bf16.msra.mxu0 %v1078
        %1544 = vmatpush.bf16.msra.mxu0 %v1077
        %1545 = vmatpush.bf16.msra.mxu0 %v1076
        %1546 = vmatpush.bf16.msra.mxu0 %v1075
        %1547 = vmatpush.bf16.msra.mxu0 %v1074
        %1548 = vmatmul.bf16.gmra.mxu0 %v1532
        %v1549 = vpop.f32.mrf.mxu0
        %v1550 = vadd.f32 0.0, %v1549
        %v1551 = vpop.f32.mrf.mxu0
        %v1552 = vadd.f32 0.0, %v1551
        %1553 = vmatmul.bf16.gmra.mxu0 %v1533
        %v1554 = vpop.f32.mrf.mxu0
        %v1555 = vadd.f32 0.0, %v1554
        %v1556 = vpop.f32.mrf.mxu0
        %v1557 = vadd.f32 0.0, %v1556
        %1558 = vmatmul.bf16.gmra.mxu0 %v1534
        %v1559 = vpop.f32.mrf.mxu0
        %v1560 = vadd.f32 0.0, %v1559
        %v1561 = vpop.f32.mrf.mxu0
        %v1562 = vadd.f32 0.0, %v1561
        %1563 = vmatmul.bf16.gmra.mxu0 %v1535
        %v1564 = vpop.f32.mrf.mxu0
        %v1565 = vadd.f32 0.0, %v1564
        %v1566 = vpop.f32.mrf.mxu0
        %v1567 = vadd.f32 0.0, %v1566
        %1568 = vmatmul.bf16.gmra.mxu0 %v1536
        %v1569 = vpop.f32.mrf.mxu0
        %v1570 = vadd.f32 0.0, %v1569
        %v1571 = vpop.f32.mrf.mxu0
        %v1572 = vadd.f32 0.0, %v1571
        %1573 = vmatmul.bf16.gmra.mxu0 %v1537
        %v1574 = vpop.f32.mrf.mxu0
        %v1575 = vadd.f32 0.0, %v1574
        %v1576 = vpop.f32.mrf.mxu0
        %v1577 = vadd.f32 0.0, %v1576
        %1578 = vmatmul.bf16.gmra.mxu0 %v1538
        %v1579 = vpop.f32.mrf.mxu0
        %v1580 = vadd.f32 0.0, %v1579
        %v1581 = vpop.f32.mrf.mxu0
        %v1582 = vadd.f32 0.0, %v1581
        %1583 = vmatmul.bf16.gmra.mxu0 %v1539
        %v1584 = vpop.f32.mrf.mxu0
        %v1585 = vadd.f32 0.0, %v1584
        %v1586 = vpop.f32.mrf.mxu0
        %v1587 = vadd.f32 0.0, %v1586
        %1588 = vdwg.mxu0
        %1597 = vrot.lane.b32.xlu0 %v1058, 96
        %v1598 = vpop.permute.xlu0 %1597
        %1599 = vrot.lane.b32.xlu0 %v1059, 96
        %v1600 = vpop.permute.xlu0 %1599
        %1601 = vrot.lane.b32.xlu0 %v1060, 96
        %v1602 = vpop.permute.xlu0 %1601
        %1603 = vrot.lane.b32.xlu0 %v1061, 96
        %v1604 = vpop.permute.xlu0 %1603
        %1605 = vrot.lane.b32.xlu0 %v1062, 96
        %v1606 = vpop.permute.xlu0 %1605
        %1607 = vrot.lane.b32.xlu0 %v1063, 96
        %v1608 = vpop.permute.xlu0 %1607
        %1609 = vrot.lane.b32.xlu0 %v1064, 96
        %v1610 = vpop.permute.xlu0 %1609
        %1611 = vrot.lane.b32.xlu0 %v1065, 96
        %v1612 = vpop.permute.xlu0 %1611
        %1621 = vrot.lane.b32.xlu0 %v1066, 96
        %v1622 = vpop.permute.xlu0 %1621
        %1623 = vrot.lane.b32.xlu0 %v1067, 96
        %v1624 = vpop.permute.xlu0 %1623
        %1625 = vrot.lane.b32.xlu0 %v1068, 96
        %v1626 = vpop.permute.xlu0 %1625
        %1627 = vrot.lane.b32.xlu0 %v1069, 96
        %v1628 = vpop.permute.xlu0 %1627
        %1629 = vrot.lane.b32.xlu0 %v1070, 96
        %v1630 = vpop.permute.xlu0 %1629
        %1631 = vrot.lane.b32.xlu0 %v1071, 96
        %v1632 = vpop.permute.xlu0 %1631
        %1633 = vrot.lane.b32.xlu0 %v1072, 96
        %v1634 = vpop.permute.xlu0 %1633
        %1635 = vrot.lane.b32.xlu0 %v1073, 96
        %v1636 = vpop.permute.xlu0 %1635
        %v1638 = vsel %vm1082, %v1598, 0
        %v1641 = vsel %vm1082, %v1600, 0
        %v1644 = vsel %vm1082, %v1602, 0
        %v1647 = vsel %vm1082, %v1604, 0
        %v1650 = vsel %vm1082, %v1606, 0
        %v1653 = vsel %vm1082, %v1608, 0
        %v1656 = vsel %vm1082, %v1610, 0
        %v1659 = vsel %vm1082, %v1612, 0
        %v1662 = vsel %vm1082, %v1622, 0
        %v1665 = vsel %vm1082, %v1624, 0
        %v1668 = vsel %vm1082, %v1626, 0
        %v1671 = vsel %vm1082, %v1628, 0
        %v1674 = vsel %vm1082, %v1630, 0
        %v1677 = vsel %vm1082, %v1632, 0
        %v1680 = vsel %vm1082, %v1634, 0
        %v1683 = vsel %vm1082, %v1636, 0
        %1685 = vmatpush.bf16.xpose.msra.mxu0 %v1683
        %1686 = vmatpush.bf16.xpose.msra.mxu0 %v1680
        %1687 = vmatpush.bf16.xpose.msra.mxu0 %v1677
        %1688 = vmatpush.bf16.xpose.msra.mxu0 %v1674
        %1689 = vmatpush.bf16.xpose.msra.mxu0 %v1671
        %1690 = vmatpush.bf16.xpose.msra.mxu0 %v1668
        %1691 = vmatpush.bf16.xpose.msra.mxu0 %v1665
        %1692 = vmatpush.bf16.xpose.msra.mxu0 %v1662
        %1693 = vmatmul.bf16.gmra.mxu0 %v1638
        %v1694 = vpop.f32.mrf.mxu0
        %v1695 = vadd.f32 0.0, %v1694
        %v1696 = vpop.f32.mrf.mxu0
        %v1697 = vadd.f32 0.0, %v1696
        %1698 = vmatmul.bf16.gmra.mxu0 %v1641
        %v1699 = vpop.f32.mrf.mxu0
        %v1700 = vadd.f32 0.0, %v1699
        %v1701 = vpop.f32.mrf.mxu0
        %v1702 = vadd.f32 0.0, %v1701
        %1703 = vmatmul.bf16.gmra.mxu0 %v1644
        %v1704 = vpop.f32.mrf.mxu0
        %v1705 = vadd.f32 0.0, %v1704
        %v1706 = vpop.f32.mrf.mxu0
        %v1707 = vadd.f32 0.0, %v1706
        %1708 = vmatmul.bf16.gmra.mxu0 %v1647
        %v1709 = vpop.f32.mrf.mxu0
        %v1710 = vadd.f32 0.0, %v1709
        %v1711 = vpop.f32.mrf.mxu0
        %v1712 = vadd.f32 0.0, %v1711
        %1713 = vmatmul.bf16.gmra.mxu0 %v1650
        %v1714 = vpop.f32.mrf.mxu0
        %v1715 = vadd.f32 0.0, %v1714
        %v1716 = vpop.f32.mrf.mxu0
        %v1717 = vadd.f32 0.0, %v1716
        %1718 = vmatmul.bf16.gmra.mxu0 %v1653
        %v1719 = vpop.f32.mrf.mxu0
        %v1720 = vadd.f32 0.0, %v1719
        %v1721 = vpop.f32.mrf.mxu0
        %v1722 = vadd.f32 0.0, %v1721
        %1723 = vmatmul.bf16.gmra.mxu0 %v1656
        %v1724 = vpop.f32.mrf.mxu0
        %v1725 = vadd.f32 0.0, %v1724
        %v1726 = vpop.f32.mrf.mxu0
        %v1727 = vadd.f32 0.0, %v1726
        %1728 = vmatmul.bf16.gmra.mxu0 %v1659
        %v1729 = vpop.f32.mrf.mxu0
        %v1730 = vadd.f32 0.0, %v1729
        %v1731 = vpop.f32.mrf.mxu0
        %v1732 = vadd.f32 0.0, %v1731
        %1733 = vdwg.mxu0
        %1734 = vmax.xlane.f32.xlu0 %v1695
        %v1735 = vpop.xlane.xlu0 %1734
        %1736 = vmax.xlane.f32.xlu0 %v1697
        %v1737 = vpop.xlane.xlu0 %1736
        %1738 = vmax.xlane.f32.xlu0 %v1700
        %v1739 = vpop.xlane.xlu0 %1738
        %1740 = vmax.xlane.f32.xlu0 %v1702
        %v1741 = vpop.xlane.xlu0 %1740
        %1742 = vmax.xlane.f32.xlu0 %v1705
        %v1743 = vpop.xlane.xlu0 %1742
        %1744 = vmax.xlane.f32.xlu0 %v1707
        %v1745 = vpop.xlane.xlu0 %1744
        %1746 = vmax.xlane.f32.xlu0 %v1710
        %v1747 = vpop.xlane.xlu0 %1746
        %1748 = vmax.xlane.f32.xlu0 %v1712
        %v1749 = vpop.xlane.xlu0 %1748
        %1750 = vmax.xlane.f32.xlu0 %v1715
        %v1751 = vpop.xlane.xlu0 %1750
        %1752 = vmax.xlane.f32.xlu0 %v1717
        %v1753 = vpop.xlane.xlu0 %1752
        %1754 = vmax.xlane.f32.xlu0 %v1720
        %v1755 = vpop.xlane.xlu0 %1754
        %1756 = vmax.xlane.f32.xlu0 %v1722
        %v1757 = vpop.xlane.xlu0 %1756
        %1758 = vmax.xlane.f32.xlu0 %v1725
        %v1759 = vpop.xlane.xlu0 %1758
        %1760 = vmax.xlane.f32.xlu0 %v1727
        %v1761 = vpop.xlane.xlu0 %1760
        %1762 = vmax.xlane.f32.xlu0 %v1730
        %v1763 = vpop.xlane.xlu0 %1762
        %1764 = vmax.xlane.f32.xlu0 %v1732
        %v1765 = vpop.xlane.xlu0 %1764
        %v1766 = vsub.f32 %v1695, %v1735
        %v1767 = vsub.f32 %v1697, %v1737
        %v1768 = vsub.f32 %v1700, %v1739
        %v1769 = vsub.f32 %v1702, %v1741
        %v1770 = vsub.f32 %v1705, %v1743
        %v1771 = vsub.f32 %v1707, %v1745
        %v1772 = vsub.f32 %v1710, %v1747
        %v1773 = vsub.f32 %v1712, %v1749
        %v1774 = vsub.f32 %v1715, %v1751
        %v1775 = vsub.f32 %v1717, %v1753
        %v1776 = vsub.f32 %v1720, %v1755
        %v1777 = vsub.f32 %v1722, %v1757
        %v1778 = vsub.f32 %v1725, %v1759
        %v1779 = vsub.f32 %v1727, %v1761
        %v1780 = vsub.f32 %v1730, %v1763
        %v1781 = vsub.f32 %v1732, %v1765
        %v1782 = vmul.f32 %v1766, 1.442695
        %v1783 = vpow.pop %v1782
        %v1784 = vmul.f32 %v1767, 1.442695
        %v1785 = vpow.pop %v1784
        %v1786 = vmul.f32 %v1768, 1.442695
        %v1787 = vpow.pop %v1786
        %v1788 = vmul.f32 %v1769, 1.442695
        %v1789 = vpow.pop %v1788
        %v1790 = vmul.f32 %v1770, 1.442695
        %v1791 = vpow.pop %v1790
        %v1792 = vmul.f32 %v1771, 1.442695
        %v1793 = vpow.pop %v1792
        %v1794 = vmul.f32 %v1772, 1.442695
        %v1795 = vpow.pop %v1794
        %v1796 = vmul.f32 %v1773, 1.442695
        %v1797 = vpow.pop %v1796
        %v1798 = vmul.f32 %v1774, 1.442695
        %v1799 = vpow.pop %v1798
        %v1800 = vmul.f32 %v1775, 1.442695
        %v1801 = vpow.pop %v1800
        %v1802 = vmul.f32 %v1776, 1.442695
        %v1803 = vpow.pop %v1802
        %v1804 = vmul.f32 %v1777, 1.442695
        %v1805 = vpow.pop %v1804
        %v1806 = vmul.f32 %v1778, 1.442695
        %v1807 = vpow.pop %v1806
        %v1808 = vmul.f32 %v1779, 1.442695
        %v1809 = vpow.pop %v1808
        %v1810 = vmul.f32 %v1780, 1.442695
        %v1811 = vpow.pop %v1810
        %v1812 = vmul.f32 %v1781, 1.442695
        %v1813 = vpow.pop %v1812
        %1814 = vadd.xlane.f32.xlu0 %v1783
        %v1815 = vpop.xlane.xlu0 %1814
        %1816 = vadd.xlane.f32.xlu0 %v1785
        %v1817 = vpop.xlane.xlu0 %1816
        %1818 = vadd.xlane.f32.xlu0 %v1787
        %v1819 = vpop.xlane.xlu0 %1818
        %1820 = vadd.xlane.f32.xlu0 %v1789
        %v1821 = vpop.xlane.xlu0 %1820
        %1822 = vadd.xlane.f32.xlu0 %v1791
        %v1823 = vpop.xlane.xlu0 %1822
        %1824 = vadd.xlane.f32.xlu0 %v1793
        %v1825 = vpop.xlane.xlu0 %1824
        %1826 = vadd.xlane.f32.xlu0 %v1795
        %v1827 = vpop.xlane.xlu0 %1826
        %1828 = vadd.xlane.f32.xlu0 %v1797
        %v1829 = vpop.xlane.xlu0 %1828
        %1830 = vadd.xlane.f32.xlu0 %v1799
        %v1831 = vpop.xlane.xlu0 %1830
        %1832 = vadd.xlane.f32.xlu0 %v1801
        %v1833 = vpop.xlane.xlu0 %1832
        %1834 = vadd.xlane.f32.xlu0 %v1803
        %v1835 = vpop.xlane.xlu0 %1834
        %1836 = vadd.xlane.f32.xlu0 %v1805
        %v1837 = vpop.xlane.xlu0 %1836
        %1838 = vadd.xlane.f32.xlu0 %v1807
        %v1839 = vpop.xlane.xlu0 %1838
        %1840 = vadd.xlane.f32.xlu0 %v1809
        %v1841 = vpop.xlane.xlu0 %1840
        %1842 = vadd.xlane.f32.xlu0 %v1811
        %v1843 = vpop.xlane.xlu0 %1842
        %1844 = vadd.xlane.f32.xlu0 %v1813
        %v1845 = vpop.xlane.xlu0 %1844
        %v1846 = vrcp.pop %v1815
        %v1847 = vmul.f32 %v1815, %v1846
        %v1848 = vsub.f32 1.0, %v1847
        %v1849 = vmul.f32 %v1846, %v1848
        %v1850 = vadd.f32 %v1846, %v1849
        %vm1851 = vweird.f32 %v1815
        %vm1852 = vweird.f32 %v1846
        %vm1853 = vmor %vm1851, %vm1852
        %v1854 = vsel %vm1853, %v1846, %v1850
        %v1855 = vand.u32 2147483647, %v1815
        %vm1856 = vcmp.eq.f32.partialorder %v1855, 8.507059e+37
        %v1857 = vand.u32 %v1815, 2147483648
        %v1858 = vor.u32 1.1754944e-38, %v1857
        %v1859 = vsel %vm1856, %v1858, %v1854
        %v1860 = vmul.f32 %v1783, %v1859
        %v1861 = vrcp.pop %v1817
        %v1862 = vmul.f32 %v1817, %v1861
        %v1863 = vsub.f32 1.0, %v1862
        %v1864 = vmul.f32 %v1861, %v1863
        %v1865 = vadd.f32 %v1861, %v1864
        %vm1866 = vweird.f32 %v1817
        %vm1867 = vweird.f32 %v1861
        %vm1868 = vmor %vm1866, %vm1867
        %v1869 = vsel %vm1868, %v1861, %v1865
        %v1870 = vand.u32 2147483647, %v1817
        %vm1871 = vcmp.eq.f32.partialorder %v1870, 8.507059e+37
        %v1872 = vand.u32 %v1817, 2147483648
        %v1873 = vor.u32 1.1754944e-38, %v1872
        %v1874 = vsel %vm1871, %v1873, %v1869
        %v1875 = vmul.f32 %v1785, %v1874
        %v1876 = vrcp.pop %v1819
        %v1877 = vmul.f32 %v1819, %v1876
        %v1878 = vsub.f32 1.0, %v1877
        %v1879 = vmul.f32 %v1876, %v1878
        %v1880 = vadd.f32 %v1876, %v1879
        %vm1881 = vweird.f32 %v1819
        %vm1882 = vweird.f32 %v1876
        %vm1883 = vmor %vm1881, %vm1882
        %v1884 = vsel %vm1883, %v1876, %v1880
        %v1885 = vand.u32 2147483647, %v1819
        %vm1886 = vcmp.eq.f32.partialorder %v1885, 8.507059e+37
        %v1887 = vand.u32 %v1819, 2147483648
        %v1888 = vor.u32 1.1754944e-38, %v1887
        %v1889 = vsel %vm1886, %v1888, %v1884
        %v1890 = vmul.f32 %v1787, %v1889
        %v1891 = vrcp.pop %v1821
        %v1892 = vmul.f32 %v1821, %v1891
        %v1893 = vsub.f32 1.0, %v1892
        %v1894 = vmul.f32 %v1891, %v1893
        %v1895 = vadd.f32 %v1891, %v1894
        %vm1896 = vweird.f32 %v1821
        %vm1897 = vweird.f32 %v1891
        %vm1898 = vmor %vm1896, %vm1897
        %v1899 = vsel %vm1898, %v1891, %v1895
        %v1900 = vand.u32 2147483647, %v1821
        %vm1901 = vcmp.eq.f32.partialorder %v1900, 8.507059e+37
        %v1902 = vand.u32 %v1821, 2147483648
        %v1903 = vor.u32 1.1754944e-38, %v1902
        %v1904 = vsel %vm1901, %v1903, %v1899
        %v1905 = vmul.f32 %v1789, %v1904
        %v1906 = vrcp.pop %v1823
        %v1907 = vmul.f32 %v1823, %v1906
        %v1908 = vsub.f32 1.0, %v1907
        %v1909 = vmul.f32 %v1906, %v1908
        %v1910 = vadd.f32 %v1906, %v1909
        %vm1911 = vweird.f32 %v1823
        %vm1912 = vweird.f32 %v1906
        %vm1913 = vmor %vm1911, %vm1912
        %v1914 = vsel %vm1913, %v1906, %v1910
        %v1915 = vand.u32 2147483647, %v1823
        %vm1916 = vcmp.eq.f32.partialorder %v1915, 8.507059e+37
        %v1917 = vand.u32 %v1823, 2147483648
        %v1918 = vor.u32 1.1754944e-38, %v1917
        %v1919 = vsel %vm1916, %v1918, %v1914
        %v1920 = vmul.f32 %v1791, %v1919
        %v1921 = vrcp.pop %v1825
        %v1922 = vmul.f32 %v1825, %v1921
        %v1923 = vsub.f32 1.0, %v1922
        %v1924 = vmul.f32 %v1921, %v1923
        %v1925 = vadd.f32 %v1921, %v1924
        %vm1926 = vweird.f32 %v1825
        %vm1927 = vweird.f32 %v1921
        %vm1928 = vmor %vm1926, %vm1927
        %v1929 = vsel %vm1928, %v1921, %v1925
        %v1930 = vand.u32 2147483647, %v1825
        %vm1931 = vcmp.eq.f32.partialorder %v1930, 8.507059e+37
        %v1932 = vand.u32 %v1825, 2147483648
        %v1933 = vor.u32 1.1754944e-38, %v1932
        %v1934 = vsel %vm1931, %v1933, %v1929
        %v1935 = vmul.f32 %v1793, %v1934
        %v1936 = vrcp.pop %v1827
        %v1937 = vmul.f32 %v1827, %v1936
        %v1938 = vsub.f32 1.0, %v1937
        %v1939 = vmul.f32 %v1936, %v1938
        %v1940 = vadd.f32 %v1936, %v1939
        %vm1941 = vweird.f32 %v1827
        %vm1942 = vweird.f32 %v1936
        %vm1943 = vmor %vm1941, %vm1942
        %v1944 = vsel %vm1943, %v1936, %v1940
        %v1945 = vand.u32 2147483647, %v1827
        %vm1946 = vcmp.eq.f32.partialorder %v1945, 8.507059e+37
        %v1947 = vand.u32 %v1827, 2147483648
        %v1948 = vor.u32 1.1754944e-38, %v1947
        %v1949 = vsel %vm1946, %v1948, %v1944
        %v1950 = vmul.f32 %v1795, %v1949
        %v1951 = vrcp.pop %v1829
        %v1952 = vmul.f32 %v1829, %v1951
        %v1953 = vsub.f32 1.0, %v1952
        %v1954 = vmul.f32 %v1951, %v1953
        %v1955 = vadd.f32 %v1951, %v1954
        %vm1956 = vweird.f32 %v1829
        %vm1957 = vweird.f32 %v1951
        %vm1958 = vmor %vm1956, %vm1957
        %v1959 = vsel %vm1958, %v1951, %v1955
        %v1960 = vand.u32 2147483647, %v1829
        %vm1961 = vcmp.eq.f32.partialorder %v1960, 8.507059e+37
        %v1962 = vand.u32 %v1829, 2147483648
        %v1963 = vor.u32 1.1754944e-38, %v1962
        %v1964 = vsel %vm1961, %v1963, %v1959
        %v1965 = vmul.f32 %v1797, %v1964
        %v1966 = vrcp.pop %v1831
        %v1967 = vmul.f32 %v1831, %v1966
        %v1968 = vsub.f32 1.0, %v1967
        %v1969 = vmul.f32 %v1966, %v1968
        %v1970 = vadd.f32 %v1966, %v1969
        %vm1971 = vweird.f32 %v1831
        %vm1972 = vweird.f32 %v1966
        %vm1973 = vmor %vm1971, %vm1972
        %v1974 = vsel %vm1973, %v1966, %v1970
        %v1975 = vand.u32 2147483647, %v1831
        %vm1976 = vcmp.eq.f32.partialorder %v1975, 8.507059e+37
        %v1977 = vand.u32 %v1831, 2147483648
        %v1978 = vor.u32 1.1754944e-38, %v1977
        %v1979 = vsel %vm1976, %v1978, %v1974
        %v1980 = vmul.f32 %v1799, %v1979
        %v1981 = vrcp.pop %v1833
        %v1982 = vmul.f32 %v1833, %v1981
        %v1983 = vsub.f32 1.0, %v1982
        %v1984 = vmul.f32 %v1981, %v1983
        %v1985 = vadd.f32 %v1981, %v1984
        %vm1986 = vweird.f32 %v1833
        %vm1987 = vweird.f32 %v1981
        %vm1988 = vmor %vm1986, %vm1987
        %v1989 = vsel %vm1988, %v1981, %v1985
        %v1990 = vand.u32 2147483647, %v1833
        %vm1991 = vcmp.eq.f32.partialorder %v1990, 8.507059e+37
        %v1992 = vand.u32 %v1833, 2147483648
        %v1993 = vor.u32 1.1754944e-38, %v1992
        %v1994 = vsel %vm1991, %v1993, %v1989
        %v1995 = vmul.f32 %v1801, %v1994
        %v1996 = vrcp.pop %v1835
        %v1997 = vmul.f32 %v1835, %v1996
        %v1998 = vsub.f32 1.0, %v1997
        %v1999 = vmul.f32 %v1996, %v1998
        %v2000 = vadd.f32 %v1996, %v1999
        %vm2001 = vweird.f32 %v1835
        %vm2002 = vweird.f32 %v1996
        %vm2003 = vmor %vm2001, %vm2002
        %v2004 = vsel %vm2003, %v1996, %v2000
        %v2005 = vand.u32 2147483647, %v1835
        %vm2006 = vcmp.eq.f32.partialorder %v2005, 8.507059e+37
        %v2007 = vand.u32 %v1835, 2147483648
        %v2008 = vor.u32 1.1754944e-38, %v2007
        %v2009 = vsel %vm2006, %v2008, %v2004
        %v2010 = vmul.f32 %v1803, %v2009
        %v2011 = vrcp.pop %v1837
        %v2012 = vmul.f32 %v1837, %v2011
        %v2013 = vsub.f32 1.0, %v2012
        %v2014 = vmul.f32 %v2011, %v2013
        %v2015 = vadd.f32 %v2011, %v2014
        %vm2016 = vweird.f32 %v1837
        %vm2017 = vweird.f32 %v2011
        %vm2018 = vmor %vm2016, %vm2017
        %v2019 = vsel %vm2018, %v2011, %v2015
        %v2020 = vand.u32 2147483647, %v1837
        %vm2021 = vcmp.eq.f32.partialorder %v2020, 8.507059e+37
        %v2022 = vand.u32 %v1837, 2147483648
        %v2023 = vor.u32 1.1754944e-38, %v2022
        %v2024 = vsel %vm2021, %v2023, %v2019
        %v2025 = vmul.f32 %v1805, %v2024
        %v2026 = vrcp.pop %v1839
        %v2027 = vmul.f32 %v1839, %v2026
        %v2028 = vsub.f32 1.0, %v2027
        %v2029 = vmul.f32 %v2026, %v2028
        %v2030 = vadd.f32 %v2026, %v2029
        %vm2031 = vweird.f32 %v1839
        %vm2032 = vweird.f32 %v2026
        %vm2033 = vmor %vm2031, %vm2032
        %v2034 = vsel %vm2033, %v2026, %v2030
        %v2035 = vand.u32 2147483647, %v1839
        %vm2036 = vcmp.eq.f32.partialorder %v2035, 8.507059e+37
        %v2037 = vand.u32 %v1839, 2147483648
        %v2038 = vor.u32 1.1754944e-38, %v2037
        %v2039 = vsel %vm2036, %v2038, %v2034
        %v2040 = vmul.f32 %v1807, %v2039
        %v2041 = vrcp.pop %v1841
        %v2042 = vmul.f32 %v1841, %v2041
        %v2043 = vsub.f32 1.0, %v2042
        %v2044 = vmul.f32 %v2041, %v2043
        %v2045 = vadd.f32 %v2041, %v2044
        %vm2046 = vweird.f32 %v1841
        %vm2047 = vweird.f32 %v2041
        %vm2048 = vmor %vm2046, %vm2047
        %v2049 = vsel %vm2048, %v2041, %v2045
        %v2050 = vand.u32 2147483647, %v1841
        %vm2051 = vcmp.eq.f32.partialorder %v2050, 8.507059e+37
        %v2052 = vand.u32 %v1841, 2147483648
        %v2053 = vor.u32 1.1754944e-38, %v2052
        %v2054 = vsel %vm2051, %v2053, %v2049
        %v2055 = vmul.f32 %v1809, %v2054
        %v2056 = vrcp.pop %v1843
        %v2057 = vmul.f32 %v1843, %v2056
        %v2058 = vsub.f32 1.0, %v2057
        %v2059 = vmul.f32 %v2056, %v2058
        %v2060 = vadd.f32 %v2056, %v2059
        %vm2061 = vweird.f32 %v1843
        %vm2062 = vweird.f32 %v2056
        %vm2063 = vmor %vm2061, %vm2062
        %v2064 = vsel %vm2063, %v2056, %v2060
        %v2065 = vand.u32 2147483647, %v1843
        %vm2066 = vcmp.eq.f32.partialorder %v2065, 8.507059e+37
        %v2067 = vand.u32 %v1843, 2147483648
        %v2068 = vor.u32 1.1754944e-38, %v2067
        %v2069 = vsel %vm2066, %v2068, %v2064
        %v2070 = vmul.f32 %v1811, %v2069
        %v2071 = vrcp.pop %v1845
        %v2072 = vmul.f32 %v1845, %v2071
        %v2073 = vsub.f32 1.0, %v2072
        %v2074 = vmul.f32 %v2071, %v2073
        %v2075 = vadd.f32 %v2071, %v2074
        %vm2076 = vweird.f32 %v1845
        %vm2077 = vweird.f32 %v2071
        %vm2078 = vmor %vm2076, %vm2077
        %v2079 = vsel %vm2078, %v2071, %v2075
        %v2080 = vand.u32 2147483647, %v1845
        %vm2081 = vcmp.eq.f32.partialorder %v2080, 8.507059e+37
        %v2082 = vand.u32 %v1845, 2147483648
        %v2083 = vor.u32 1.1754944e-38, %v2082
        %v2084 = vsel %vm2081, %v2083, %v2079
        %v2085 = vmul.f32 %v1813, %v2084
        %v2086 = vpack.c.bf16 %v1875, %v1860
        %v2087 = vpack.c.bf16 %v1905, %v1890
        %v2088 = vpack.c.bf16 %v1935, %v1920
        %v2089 = vpack.c.bf16 %v1965, %v1950
        %v2090 = vpack.c.bf16 %v1995, %v1980
        %v2091 = vpack.c.bf16 %v2025, %v2010
        %v2092 = vpack.c.bf16 %v2055, %v2040
        %v2093 = vpack.c.bf16 %v2085, %v2070
        %2102 = vrot.lane.b32.xlu0 %v1074, 96
        %v2103 = vpop.permute.xlu0 %2102
        %2104 = vrot.lane.b32.xlu0 %v1075, 96
        %v2105 = vpop.permute.xlu0 %2104
        %2106 = vrot.lane.b32.xlu0 %v1076, 96
        %v2107 = vpop.permute.xlu0 %2106
        %2108 = vrot.lane.b32.xlu0 %v1077, 96
        %v2109 = vpop.permute.xlu0 %2108
        %2110 = vrot.lane.b32.xlu0 %v1078, 96
        %v2111 = vpop.permute.xlu0 %2110
        %2112 = vrot.lane.b32.xlu0 %v1079, 96
        %v2113 = vpop.permute.xlu0 %2112
        %2114 = vrot.lane.b32.xlu0 %v1080, 96
        %v2115 = vpop.permute.xlu0 %2114
        %2116 = vrot.lane.b32.xlu0 %v1081, 96
        %v2117 = vpop.permute.xlu0 %2116
        %2126 = vmatpush.bf16.msra.mxu0 %v2117
        %2127 = vmatpush.bf16.msra.mxu0 %v2115
        %2128 = vmatpush.bf16.msra.mxu0 %v2113
        %2129 = vmatpush.bf16.msra.mxu0 %v2111
        %2130 = vmatpush.bf16.msra.mxu0 %v2109
        %2131 = vmatpush.bf16.msra.mxu0 %v2107
        %2132 = vmatpush.bf16.msra.mxu0 %v2105
        %2133 = vmatpush.bf16.msra.mxu0 %v2103
        %2134 = vmatmul.bf16.gmra.mxu0 %v2086
        %v2135 = vpop.f32.mrf.mxu0
        %v2136 = vadd.f32 0.0, %v2135
        %v2137 = vpop.f32.mrf.mxu0
        %v2138 = vadd.f32 0.0, %v2137
        %2139 = vmatmul.bf16.gmra.mxu0 %v2087
        %v2140 = vpop.f32.mrf.mxu0
        %v2141 = vadd.f32 0.0, %v2140
        %v2142 = vpop.f32.mrf.mxu0
        %v2143 = vadd.f32 0.0, %v2142
        %2144 = vmatmul.bf16.gmra.mxu0 %v2088
        %v2145 = vpop.f32.mrf.mxu0
        %v2146 = vadd.f32 0.0, %v2145
        %v2147 = vpop.f32.mrf.mxu0
        %v2148 = vadd.f32 0.0, %v2147
        %2149 = vmatmul.bf16.gmra.mxu0 %v2089
        %v2150 = vpop.f32.mrf.mxu0
        %v2151 = vadd.f32 0.0, %v2150
        %v2152 = vpop.f32.mrf.mxu0
        %v2153 = vadd.f32 0.0, %v2152
        %2154 = vmatmul.bf16.gmra.mxu0 %v2090
        %v2155 = vpop.f32.mrf.mxu0
        %v2156 = vadd.f32 0.0, %v2155
        %v2157 = vpop.f32.mrf.mxu0
        %v2158 = vadd.f32 0.0, %v2157
        %2159 = vmatmul.bf16.gmra.mxu0 %v2091
        %v2160 = vpop.f32.mrf.mxu0
        %v2161 = vadd.f32 0.0, %v2160
        %v2162 = vpop.f32.mrf.mxu0
        %v2163 = vadd.f32 0.0, %v2162
        %2164 = vmatmul.bf16.gmra.mxu0 %v2092
        %v2165 = vpop.f32.mrf.mxu0
        %v2166 = vadd.f32 0.0, %v2165
        %v2167 = vpop.f32.mrf.mxu0
        %v2168 = vadd.f32 0.0, %v2167
        %2169 = vmatmul.bf16.gmra.mxu0 %v2093
        %v2170 = vpop.f32.mrf.mxu0
        %v2171 = vadd.f32 0.0, %v2170
        %v2172 = vpop.f32.mrf.mxu0
        %v2173 = vadd.f32 0.0, %v2172
        %2174 = vdwg.mxu0
        %2175 = vrot.lane.b32.xlu0 %v1058, 64
        %v2176 = vpop.permute.xlu0 %2175
        %2177 = vrot.lane.b32.xlu0 %v1059, 64
        %v2178 = vpop.permute.xlu0 %2177
        %2179 = vrot.lane.b32.xlu0 %v1060, 64
        %v2180 = vpop.permute.xlu0 %2179
        %2181 = vrot.lane.b32.xlu0 %v1061, 64
        %v2182 = vpop.permute.xlu0 %2181
        %2183 = vrot.lane.b32.xlu0 %v1062, 64
        %v2184 = vpop.permute.xlu0 %2183
        %2185 = vrot.lane.b32.xlu0 %v1063, 64
        %v2186 = vpop.permute.xlu0 %2185
        %2187 = vrot.lane.b32.xlu0 %v1064, 64
        %v2188 = vpop.permute.xlu0 %2187
        %2189 = vrot.lane.b32.xlu0 %v1065, 64
        %v2190 = vpop.permute.xlu0 %2189
        %2191 = vrot.lane.b32.xlu0 %v1066, 64
        %v2192 = vpop.permute.xlu0 %2191
        %2193 = vrot.lane.b32.xlu0 %v1067, 64
        %v2194 = vpop.permute.xlu0 %2193
        %2195 = vrot.lane.b32.xlu0 %v1068, 64
        %v2196 = vpop.permute.xlu0 %2195
        %2197 = vrot.lane.b32.xlu0 %v1069, 64
        %v2198 = vpop.permute.xlu0 %2197
        %2199 = vrot.lane.b32.xlu0 %v1070, 64
        %v2200 = vpop.permute.xlu0 %2199
        %2201 = vrot.lane.b32.xlu0 %v1071, 64
        %v2202 = vpop.permute.xlu0 %2201
        %2203 = vrot.lane.b32.xlu0 %v1072, 64
        %v2204 = vpop.permute.xlu0 %2203
        %2205 = vrot.lane.b32.xlu0 %v1073, 64
        %v2206 = vpop.permute.xlu0 %2205
        %v2208 = vsel %vm1082, %v2176, 0
        %v2211 = vsel %vm1082, %v2178, 0
        %v2214 = vsel %vm1082, %v2180, 0
        %v2217 = vsel %vm1082, %v2182, 0
        %v2220 = vsel %vm1082, %v2184, 0
        %v2223 = vsel %vm1082, %v2186, 0
        %v2226 = vsel %vm1082, %v2188, 0
        %v2229 = vsel %vm1082, %v2190, 0
        %v2232 = vsel %vm1082, %v2192, 0
        %v2235 = vsel %vm1082, %v2194, 0
        %v2238 = vsel %vm1082, %v2196, 0
        %v2241 = vsel %vm1082, %v2198, 0
        %v2244 = vsel %vm1082, %v2200, 0
        %v2247 = vsel %vm1082, %v2202, 0
        %v2250 = vsel %vm1082, %v2204, 0
        %v2253 = vsel %vm1082, %v2206, 0
        %2255 = vmatpush.bf16.xpose.msra.mxu0 %v2253
        %2256 = vmatpush.bf16.xpose.msra.mxu0 %v2250
        %2257 = vmatpush.bf16.xpose.msra.mxu0 %v2247
        %2258 = vmatpush.bf16.xpose.msra.mxu0 %v2244
        %2259 = vmatpush.bf16.xpose.msra.mxu0 %v2241
        %2260 = vmatpush.bf16.xpose.msra.mxu0 %v2238
        %2261 = vmatpush.bf16.xpose.msra.mxu0 %v2235
        %2262 = vmatpush.bf16.xpose.msra.mxu0 %v2232
        %2263 = vmatmul.bf16.gmra.mxu0 %v2208
        %v2264 = vpop.f32.mrf.mxu0
        %v2265 = vadd.f32 0.0, %v2264
        %v2266 = vpop.f32.mrf.mxu0
        %v2267 = vadd.f32 0.0, %v2266
        %2268 = vmatmul.bf16.gmra.mxu0 %v2211
        %v2269 = vpop.f32.mrf.mxu0
        %v2270 = vadd.f32 0.0, %v2269
        %v2271 = vpop.f32.mrf.mxu0
        %v2272 = vadd.f32 0.0, %v2271
        %2273 = vmatmul.bf16.gmra.mxu0 %v2214
        %v2274 = vpop.f32.mrf.mxu0
        %v2275 = vadd.f32 0.0, %v2274
        %v2276 = vpop.f32.mrf.mxu0
        %v2277 = vadd.f32 0.0, %v2276
        %2278 = vmatmul.bf16.gmra.mxu0 %v2217
        %v2279 = vpop.f32.mrf.mxu0
        %v2280 = vadd.f32 0.0, %v2279
        %v2281 = vpop.f32.mrf.mxu0
        %v2282 = vadd.f32 0.0, %v2281
        %2283 = vmatmul.bf16.gmra.mxu0 %v2220
        %v2284 = vpop.f32.mrf.mxu0
        %v2285 = vadd.f32 0.0, %v2284
        %v2286 = vpop.f32.mrf.mxu0
        %v2287 = vadd.f32 0.0, %v2286
        %2288 = vmatmul.bf16.gmra.mxu0 %v2223
        %v2289 = vpop.f32.mrf.mxu0
        %v2290 = vadd.f32 0.0, %v2289
        %v2291 = vpop.f32.mrf.mxu0
        %v2292 = vadd.f32 0.0, %v2291
        %2293 = vmatmul.bf16.gmra.mxu0 %v2226
        %v2294 = vpop.f32.mrf.mxu0
        %v2295 = vadd.f32 0.0, %v2294
        %v2296 = vpop.f32.mrf.mxu0
        %v2297 = vadd.f32 0.0, %v2296
        %2298 = vmatmul.bf16.gmra.mxu0 %v2229
        %v2299 = vpop.f32.mrf.mxu0
        %v2300 = vadd.f32 0.0, %v2299
        %v2301 = vpop.f32.mrf.mxu0
        %v2302 = vadd.f32 0.0, %v2301
        %2303 = vdwg.mxu0
        %2304 = vmax.xlane.f32.xlu0 %v2265
        %v2305 = vpop.xlane.xlu0 %2304
        %2306 = vmax.xlane.f32.xlu0 %v2267
        %v2307 = vpop.xlane.xlu0 %2306
        %2308 = vmax.xlane.f32.xlu0 %v2270
        %v2309 = vpop.xlane.xlu0 %2308
        %2310 = vmax.xlane.f32.xlu0 %v2272
        %v2311 = vpop.xlane.xlu0 %2310
        %2312 = vmax.xlane.f32.xlu0 %v2275
        %v2313 = vpop.xlane.xlu0 %2312
        %2314 = vmax.xlane.f32.xlu0 %v2277
        %v2315 = vpop.xlane.xlu0 %2314
        %2316 = vmax.xlane.f32.xlu0 %v2280
        %v2317 = vpop.xlane.xlu0 %2316
        %2318 = vmax.xlane.f32.xlu0 %v2282
        %v2319 = vpop.xlane.xlu0 %2318
        %2320 = vmax.xlane.f32.xlu0 %v2285
        %v2321 = vpop.xlane.xlu0 %2320
        %2322 = vmax.xlane.f32.xlu0 %v2287
        %v2323 = vpop.xlane.xlu0 %2322
        %2324 = vmax.xlane.f32.xlu0 %v2290
        %v2325 = vpop.xlane.xlu0 %2324
        %2326 = vmax.xlane.f32.xlu0 %v2292
        %v2327 = vpop.xlane.xlu0 %2326
        %2328 = vmax.xlane.f32.xlu0 %v2295
        %v2329 = vpop.xlane.xlu0 %2328
        %2330 = vmax.xlane.f32.xlu0 %v2297
        %v2331 = vpop.xlane.xlu0 %2330
        %2332 = vmax.xlane.f32.xlu0 %v2300
        %v2333 = vpop.xlane.xlu0 %2332
        %2334 = vmax.xlane.f32.xlu0 %v2302
        %v2335 = vpop.xlane.xlu0 %2334
        %v2336 = vsub.f32 %v2265, %v2305
        %v2337 = vsub.f32 %v2267, %v2307
        %v2338 = vsub.f32 %v2270, %v2309
        %v2339 = vsub.f32 %v2272, %v2311
        %v2340 = vsub.f32 %v2275, %v2313
        %v2341 = vsub.f32 %v2277, %v2315
        %v2342 = vsub.f32 %v2280, %v2317
        %v2343 = vsub.f32 %v2282, %v2319
        %v2344 = vsub.f32 %v2285, %v2321
        %v2345 = vsub.f32 %v2287, %v2323
        %v2346 = vsub.f32 %v2290, %v2325
        %v2347 = vsub.f32 %v2292, %v2327
        %v2348 = vsub.f32 %v2295, %v2329
        %v2349 = vsub.f32 %v2297, %v2331
        %v2350 = vsub.f32 %v2300, %v2333
        %v2351 = vsub.f32 %v2302, %v2335
        %v2352 = vmul.f32 %v2336, 1.442695
        %v2353 = vpow.pop %v2352
        %v2354 = vmul.f32 %v2337, 1.442695
        %v2355 = vpow.pop %v2354
        %v2356 = vmul.f32 %v2338, 1.442695
        %v2357 = vpow.pop %v2356
        %v2358 = vmul.f32 %v2339, 1.442695
        %v2359 = vpow.pop %v2358
        %v2360 = vmul.f32 %v2340, 1.442695
        %v2361 = vpow.pop %v2360
        %v2362 = vmul.f32 %v2341, 1.442695
        %v2363 = vpow.pop %v2362
        %v2364 = vmul.f32 %v2342, 1.442695
        %v2365 = vpow.pop %v2364
        %v2366 = vmul.f32 %v2343, 1.442695
        %v2367 = vpow.pop %v2366
        %v2368 = vmul.f32 %v2344, 1.442695
        %v2369 = vpow.pop %v2368
        %v2370 = vmul.f32 %v2345, 1.442695
        %v2371 = vpow.pop %v2370
        %v2372 = vmul.f32 %v2346, 1.442695
        %v2373 = vpow.pop %v2372
        %v2374 = vmul.f32 %v2347, 1.442695
        %v2375 = vpow.pop %v2374
        %v2376 = vmul.f32 %v2348, 1.442695
        %v2377 = vpow.pop %v2376
        %v2378 = vmul.f32 %v2349, 1.442695
        %v2379 = vpow.pop %v2378
        %v2380 = vmul.f32 %v2350, 1.442695
        %v2381 = vpow.pop %v2380
        %v2382 = vmul.f32 %v2351, 1.442695
        %v2383 = vpow.pop %v2382
        %2384 = vadd.xlane.f32.xlu0 %v2353
        %v2385 = vpop.xlane.xlu0 %2384
        %2386 = vadd.xlane.f32.xlu0 %v2355
        %v2387 = vpop.xlane.xlu0 %2386
        %2388 = vadd.xlane.f32.xlu0 %v2357
        %v2389 = vpop.xlane.xlu0 %2388
        %2390 = vadd.xlane.f32.xlu0 %v2359
        %v2391 = vpop.xlane.xlu0 %2390
        %2392 = vadd.xlane.f32.xlu0 %v2361
        %v2393 = vpop.xlane.xlu0 %2392
        %2394 = vadd.xlane.f32.xlu0 %v2363
        %v2395 = vpop.xlane.xlu0 %2394
        %2396 = vadd.xlane.f32.xlu0 %v2365
        %v2397 = vpop.xlane.xlu0 %2396
        %2398 = vadd.xlane.f32.xlu0 %v2367
        %v2399 = vpop.xlane.xlu0 %2398
        %2400 = vadd.xlane.f32.xlu0 %v2369
        %v2401 = vpop.xlane.xlu0 %2400
        %2402 = vadd.xlane.f32.xlu0 %v2371
        %v2403 = vpop.xlane.xlu0 %2402
        %2404 = vadd.xlane.f32.xlu0 %v2373
        %v2405 = vpop.xlane.xlu0 %2404
        %2406 = vadd.xlane.f32.xlu0 %v2375
        %v2407 = vpop.xlane.xlu0 %2406
        %2408 = vadd.xlane.f32.xlu0 %v2377
        %v2409 = vpop.xlane.xlu0 %2408
        %2410 = vadd.xlane.f32.xlu0 %v2379
        %v2411 = vpop.xlane.xlu0 %2410
        %2412 = vadd.xlane.f32.xlu0 %v2381
        %v2413 = vpop.xlane.xlu0 %2412
        %2414 = vadd.xlane.f32.xlu0 %v2383
        %v2415 = vpop.xlane.xlu0 %2414
        %v2416 = vrcp.pop %v2385
        %v2417 = vmul.f32 %v2385, %v2416
        %v2418 = vsub.f32 1.0, %v2417
        %v2419 = vmul.f32 %v2416, %v2418
        %v2420 = vadd.f32 %v2416, %v2419
        %vm2421 = vweird.f32 %v2385
        %vm2422 = vweird.f32 %v2416
        %vm2423 = vmor %vm2421, %vm2422
        %v2424 = vsel %vm2423, %v2416, %v2420
        %v2425 = vand.u32 2147483647, %v2385
        %vm2426 = vcmp.eq.f32.partialorder %v2425, 8.507059e+37
        %v2427 = vand.u32 %v2385, 2147483648
        %v2428 = vor.u32 1.1754944e-38, %v2427
        %v2429 = vsel %vm2426, %v2428, %v2424
        %v2430 = vmul.f32 %v2353, %v2429
        %v2431 = vrcp.pop %v2387
        %v2432 = vmul.f32 %v2387, %v2431
        %v2433 = vsub.f32 1.0, %v2432
        %v2434 = vmul.f32 %v2431, %v2433
        %v2435 = vadd.f32 %v2431, %v2434
        %vm2436 = vweird.f32 %v2387
        %vm2437 = vweird.f32 %v2431
        %vm2438 = vmor %vm2436, %vm2437
        %v2439 = vsel %vm2438, %v2431, %v2435
        %v2440 = vand.u32 2147483647, %v2387
        %vm2441 = vcmp.eq.f32.partialorder %v2440, 8.507059e+37
        %v2442 = vand.u32 %v2387, 2147483648
        %v2443 = vor.u32 1.1754944e-38, %v2442
        %v2444 = vsel %vm2441, %v2443, %v2439
        %v2445 = vmul.f32 %v2355, %v2444
        %v2446 = vrcp.pop %v2389
        %v2447 = vmul.f32 %v2389, %v2446
        %v2448 = vsub.f32 1.0, %v2447
        %v2449 = vmul.f32 %v2446, %v2448
        %v2450 = vadd.f32 %v2446, %v2449
        %vm2451 = vweird.f32 %v2389
        %vm2452 = vweird.f32 %v2446
        %vm2453 = vmor %vm2451, %vm2452
        %v2454 = vsel %vm2453, %v2446, %v2450
        %v2455 = vand.u32 2147483647, %v2389
        %vm2456 = vcmp.eq.f32.partialorder %v2455, 8.507059e+37
        %v2457 = vand.u32 %v2389, 2147483648
        %v2458 = vor.u32 1.1754944e-38, %v2457
        %v2459 = vsel %vm2456, %v2458, %v2454
        %v2460 = vmul.f32 %v2357, %v2459
        %v2461 = vrcp.pop %v2391
        %v2462 = vmul.f32 %v2391, %v2461
        %v2463 = vsub.f32 1.0, %v2462
        %v2464 = vmul.f32 %v2461, %v2463
        %v2465 = vadd.f32 %v2461, %v2464
        %vm2466 = vweird.f32 %v2391
        %vm2467 = vweird.f32 %v2461
        %vm2468 = vmor %vm2466, %vm2467
        %v2469 = vsel %vm2468, %v2461, %v2465
        %v2470 = vand.u32 2147483647, %v2391
        %vm2471 = vcmp.eq.f32.partialorder %v2470, 8.507059e+37
        %v2472 = vand.u32 %v2391, 2147483648
        %v2473 = vor.u32 1.1754944e-38, %v2472
        %v2474 = vsel %vm2471, %v2473, %v2469
        %v2475 = vmul.f32 %v2359, %v2474
        %v2476 = vrcp.pop %v2393
        %v2477 = vmul.f32 %v2393, %v2476
        %v2478 = vsub.f32 1.0, %v2477
        %v2479 = vmul.f32 %v2476, %v2478
        %v2480 = vadd.f32 %v2476, %v2479
        %vm2481 = vweird.f32 %v2393
        %vm2482 = vweird.f32 %v2476
        %vm2483 = vmor %vm2481, %vm2482
        %v2484 = vsel %vm2483, %v2476, %v2480
        %v2485 = vand.u32 2147483647, %v2393
        %vm2486 = vcmp.eq.f32.partialorder %v2485, 8.507059e+37
        %v2487 = vand.u32 %v2393, 2147483648
        %v2488 = vor.u32 1.1754944e-38, %v2487
        %v2489 = vsel %vm2486, %v2488, %v2484
        %v2490 = vmul.f32 %v2361, %v2489
        %v2491 = vrcp.pop %v2395
        %v2492 = vmul.f32 %v2395, %v2491
        %v2493 = vsub.f32 1.0, %v2492
        %v2494 = vmul.f32 %v2491, %v2493
        %v2495 = vadd.f32 %v2491, %v2494
        %vm2496 = vweird.f32 %v2395
        %vm2497 = vweird.f32 %v2491
        %vm2498 = vmor %vm2496, %vm2497
        %v2499 = vsel %vm2498, %v2491, %v2495
        %v2500 = vand.u32 2147483647, %v2395
        %vm2501 = vcmp.eq.f32.partialorder %v2500, 8.507059e+37
        %v2502 = vand.u32 %v2395, 2147483648
        %v2503 = vor.u32 1.1754944e-38, %v2502
        %v2504 = vsel %vm2501, %v2503, %v2499
        %v2505 = vmul.f32 %v2363, %v2504
        %v2506 = vrcp.pop %v2397
        %v2507 = vmul.f32 %v2397, %v2506
        %v2508 = vsub.f32 1.0, %v2507
        %v2509 = vmul.f32 %v2506, %v2508
        %v2510 = vadd.f32 %v2506, %v2509
        %vm2511 = vweird.f32 %v2397
        %vm2512 = vweird.f32 %v2506
        %vm2513 = vmor %vm2511, %vm2512
        %v2514 = vsel %vm2513, %v2506, %v2510
        %v2515 = vand.u32 2147483647, %v2397
        %vm2516 = vcmp.eq.f32.partialorder %v2515, 8.507059e+37
        %v2517 = vand.u32 %v2397, 2147483648
        %v2518 = vor.u32 1.1754944e-38, %v2517
        %v2519 = vsel %vm2516, %v2518, %v2514
        %v2520 = vmul.f32 %v2365, %v2519
        %v2521 = vrcp.pop %v2399
        %v2522 = vmul.f32 %v2399, %v2521
        %v2523 = vsub.f32 1.0, %v2522
        %v2524 = vmul.f32 %v2521, %v2523
        %v2525 = vadd.f32 %v2521, %v2524
        %vm2526 = vweird.f32 %v2399
        %vm2527 = vweird.f32 %v2521
        %vm2528 = vmor %vm2526, %vm2527
        %v2529 = vsel %vm2528, %v2521, %v2525
        %v2530 = vand.u32 2147483647, %v2399
        %vm2531 = vcmp.eq.f32.partialorder %v2530, 8.507059e+37
        %v2532 = vand.u32 %v2399, 2147483648
        %v2533 = vor.u32 1.1754944e-38, %v2532
        %v2534 = vsel %vm2531, %v2533, %v2529
        %v2535 = vmul.f32 %v2367, %v2534
        %v2536 = vrcp.pop %v2401
        %v2537 = vmul.f32 %v2401, %v2536
        %v2538 = vsub.f32 1.0, %v2537
        %v2539 = vmul.f32 %v2536, %v2538
        %v2540 = vadd.f32 %v2536, %v2539
        %vm2541 = vweird.f32 %v2401
        %vm2542 = vweird.f32 %v2536
        %vm2543 = vmor %vm2541, %vm2542
        %v2544 = vsel %vm2543, %v2536, %v2540
        %v2545 = vand.u32 2147483647, %v2401
        %vm2546 = vcmp.eq.f32.partialorder %v2545, 8.507059e+37
        %v2547 = vand.u32 %v2401, 2147483648
        %v2548 = vor.u32 1.1754944e-38, %v2547
        %v2549 = vsel %vm2546, %v2548, %v2544
        %v2550 = vmul.f32 %v2369, %v2549
        %v2551 = vrcp.pop %v2403
        %v2552 = vmul.f32 %v2403, %v2551
        %v2553 = vsub.f32 1.0, %v2552
        %v2554 = vmul.f32 %v2551, %v2553
        %v2555 = vadd.f32 %v2551, %v2554
        %vm2556 = vweird.f32 %v2403
        %vm2557 = vweird.f32 %v2551
        %vm2558 = vmor %vm2556, %vm2557
        %v2559 = vsel %vm2558, %v2551, %v2555
        %v2560 = vand.u32 2147483647, %v2403
        %vm2561 = vcmp.eq.f32.partialorder %v2560, 8.507059e+37
        %v2562 = vand.u32 %v2403, 2147483648
        %v2563 = vor.u32 1.1754944e-38, %v2562
        %v2564 = vsel %vm2561, %v2563, %v2559
        %v2565 = vmul.f32 %v2371, %v2564
        %v2566 = vrcp.pop %v2405
        %v2567 = vmul.f32 %v2405, %v2566
        %v2568 = vsub.f32 1.0, %v2567
        %v2569 = vmul.f32 %v2566, %v2568
        %v2570 = vadd.f32 %v2566, %v2569
        %vm2571 = vweird.f32 %v2405
        %vm2572 = vweird.f32 %v2566
        %vm2573 = vmor %vm2571, %vm2572
        %v2574 = vsel %vm2573, %v2566, %v2570
        %v2575 = vand.u32 2147483647, %v2405
        %vm2576 = vcmp.eq.f32.partialorder %v2575, 8.507059e+37
        %v2577 = vand.u32 %v2405, 2147483648
        %v2578 = vor.u32 1.1754944e-38, %v2577
        %v2579 = vsel %vm2576, %v2578, %v2574
        %v2580 = vmul.f32 %v2373, %v2579
        %v2581 = vrcp.pop %v2407
        %v2582 = vmul.f32 %v2407, %v2581
        %v2583 = vsub.f32 1.0, %v2582
        %v2584 = vmul.f32 %v2581, %v2583
        %v2585 = vadd.f32 %v2581, %v2584
        %vm2586 = vweird.f32 %v2407
        %vm2587 = vweird.f32 %v2581
        %vm2588 = vmor %vm2586, %vm2587
        %v2589 = vsel %vm2588, %v2581, %v2585
        %v2590 = vand.u32 2147483647, %v2407
        %vm2591 = vcmp.eq.f32.partialorder %v2590, 8.507059e+37
        %v2592 = vand.u32 %v2407, 2147483648
        %v2593 = vor.u32 1.1754944e-38, %v2592
        %v2594 = vsel %vm2591, %v2593, %v2589
        %v2595 = vmul.f32 %v2375, %v2594
        %v2596 = vrcp.pop %v2409
        %v2597 = vmul.f32 %v2409, %v2596
        %v2598 = vsub.f32 1.0, %v2597
        %v2599 = vmul.f32 %v2596, %v2598
        %v2600 = vadd.f32 %v2596, %v2599
        %vm2601 = vweird.f32 %v2409
        %vm2602 = vweird.f32 %v2596
        %vm2603 = vmor %vm2601, %vm2602
        %v2604 = vsel %vm2603, %v2596, %v2600
        %v2605 = vand.u32 2147483647, %v2409
        %vm2606 = vcmp.eq.f32.partialorder %v2605, 8.507059e+37
        %v2607 = vand.u32 %v2409, 2147483648
        %v2608 = vor.u32 1.1754944e-38, %v2607
        %v2609 = vsel %vm2606, %v2608, %v2604
        %v2610 = vmul.f32 %v2377, %v2609
        %v2611 = vrcp.pop %v2411
        %v2612 = vmul.f32 %v2411, %v2611
        %v2613 = vsub.f32 1.0, %v2612
        %v2614 = vmul.f32 %v2611, %v2613
        %v2615 = vadd.f32 %v2611, %v2614
        %vm2616 = vweird.f32 %v2411
        %vm2617 = vweird.f32 %v2611
        %vm2618 = vmor %vm2616, %vm2617
        %v2619 = vsel %vm2618, %v2611, %v2615
        %v2620 = vand.u32 2147483647, %v2411
        %vm2621 = vcmp.eq.f32.partialorder %v2620, 8.507059e+37
        %v2622 = vand.u32 %v2411, 2147483648
        %v2623 = vor.u32 1.1754944e-38, %v2622
        %v2624 = vsel %vm2621, %v2623, %v2619
        %v2625 = vmul.f32 %v2379, %v2624
        %v2626 = vrcp.pop %v2413
        %v2627 = vmul.f32 %v2413, %v2626
        %v2628 = vsub.f32 1.0, %v2627
        %v2629 = vmul.f32 %v2626, %v2628
        %v2630 = vadd.f32 %v2626, %v2629
        %vm2631 = vweird.f32 %v2413
        %vm2632 = vweird.f32 %v2626
        %vm2633 = vmor %vm2631, %vm2632
        %v2634 = vsel %vm2633, %v2626, %v2630
        %v2635 = vand.u32 2147483647, %v2413
        %vm2636 = vcmp.eq.f32.partialorder %v2635, 8.507059e+37
        %v2637 = vand.u32 %v2413, 2147483648
        %v2638 = vor.u32 1.1754944e-38, %v2637
        %v2639 = vsel %vm2636, %v2638, %v2634
        %v2640 = vmul.f32 %v2381, %v2639
        %v2641 = vrcp.pop %v2415
        %v2642 = vmul.f32 %v2415, %v2641
        %v2643 = vsub.f32 1.0, %v2642
        %v2644 = vmul.f32 %v2641, %v2643
        %v2645 = vadd.f32 %v2641, %v2644
        %vm2646 = vweird.f32 %v2415
        %vm2647 = vweird.f32 %v2641
        %vm2648 = vmor %vm2646, %vm2647
        %v2649 = vsel %vm2648, %v2641, %v2645
        %v2650 = vand.u32 2147483647, %v2415
        %vm2651 = vcmp.eq.f32.partialorder %v2650, 8.507059e+37
        %v2652 = vand.u32 %v2415, 2147483648
        %v2653 = vor.u32 1.1754944e-38, %v2652
        %v2654 = vsel %vm2651, %v2653, %v2649
        %v2655 = vmul.f32 %v2383, %v2654
        %v2656 = vpack.c.bf16 %v2445, %v2430
        %v2657 = vpack.c.bf16 %v2475, %v2460
        %v2658 = vpack.c.bf16 %v2505, %v2490
        %v2659 = vpack.c.bf16 %v2535, %v2520
        %v2660 = vpack.c.bf16 %v2565, %v2550
        %v2661 = vpack.c.bf16 %v2595, %v2580
        %v2662 = vpack.c.bf16 %v2625, %v2610
        %v2663 = vpack.c.bf16 %v2655, %v2640
        %2664 = vrot.lane.b32.xlu0 %v1074, 64
        %v2665 = vpop.permute.xlu0 %2664
        %2666 = vrot.lane.b32.xlu0 %v1075, 64
        %v2667 = vpop.permute.xlu0 %2666
        %2668 = vrot.lane.b32.xlu0 %v1076, 64
        %v2669 = vpop.permute.xlu0 %2668
        %2670 = vrot.lane.b32.xlu0 %v1077, 64
        %v2671 = vpop.permute.xlu0 %2670
        %2672 = vrot.lane.b32.xlu0 %v1078, 64
        %v2673 = vpop.permute.xlu0 %2672
        %2674 = vrot.lane.b32.xlu0 %v1079, 64
        %v2675 = vpop.permute.xlu0 %2674
        %2676 = vrot.lane.b32.xlu0 %v1080, 64
        %v2677 = vpop.permute.xlu0 %2676
        %2678 = vrot.lane.b32.xlu0 %v1081, 64
        %v2679 = vpop.permute.xlu0 %2678
        %2688 = vmatpush.bf16.msra.mxu0 %v2679
        %2689 = vmatpush.bf16.msra.mxu0 %v2677
        %2690 = vmatpush.bf16.msra.mxu0 %v2675
        %2691 = vmatpush.bf16.msra.mxu0 %v2673
        %2692 = vmatpush.bf16.msra.mxu0 %v2671
        %2693 = vmatpush.bf16.msra.mxu0 %v2669
        %2694 = vmatpush.bf16.msra.mxu0 %v2667
        %2695 = vmatpush.bf16.msra.mxu0 %v2665
        %2696 = vmatmul.bf16.gmra.mxu0 %v2656
        %v2697 = vpop.f32.mrf.mxu0
        %v2698 = vadd.f32 0.0, %v2697
        %v2699 = vpop.f32.mrf.mxu0
        %v2700 = vadd.f32 0.0, %v2699
        %2701 = vmatmul.bf16.gmra.mxu0 %v2657
        %v2702 = vpop.f32.mrf.mxu0
        %v2703 = vadd.f32 0.0, %v2702
        %v2704 = vpop.f32.mrf.mxu0
        %v2705 = vadd.f32 0.0, %v2704
        %2706 = vmatmul.bf16.gmra.mxu0 %v2658
        %v2707 = vpop.f32.mrf.mxu0
        %v2708 = vadd.f32 0.0, %v2707
        %v2709 = vpop.f32.mrf.mxu0
        %v2710 = vadd.f32 0.0, %v2709
        %2711 = vmatmul.bf16.gmra.mxu0 %v2659
        %v2712 = vpop.f32.mrf.mxu0
        %v2713 = vadd.f32 0.0, %v2712
        %v2714 = vpop.f32.mrf.mxu0
        %v2715 = vadd.f32 0.0, %v2714
        %2716 = vmatmul.bf16.gmra.mxu0 %v2660
        %v2717 = vpop.f32.mrf.mxu0
        %v2718 = vadd.f32 0.0, %v2717
        %v2719 = vpop.f32.mrf.mxu0
        %v2720 = vadd.f32 0.0, %v2719
        %2721 = vmatmul.bf16.gmra.mxu0 %v2661
        %v2722 = vpop.f32.mrf.mxu0
        %v2723 = vadd.f32 0.0, %v2722
        %v2724 = vpop.f32.mrf.mxu0
        %v2725 = vadd.f32 0.0, %v2724
        %2726 = vmatmul.bf16.gmra.mxu0 %v2662
        %v2727 = vpop.f32.mrf.mxu0
        %v2728 = vadd.f32 0.0, %v2727
        %v2729 = vpop.f32.mrf.mxu0
        %v2730 = vadd.f32 0.0, %v2729
        %2731 = vmatmul.bf16.gmra.mxu0 %v2663
        %v2732 = vpop.f32.mrf.mxu0
        %v2733 = vadd.f32 0.0, %v2732
        %v2734 = vpop.f32.mrf.mxu0
        %v2735 = vadd.f32 0.0, %v2734
        %2736 = vdwg.mxu0
        %2737 = vrot.lane.b32.xlu0 %v1058, 32
        %v2738 = vpop.permute.xlu0 %2737
        %2739 = vrot.lane.b32.xlu0 %v1059, 32
        %v2740 = vpop.permute.xlu0 %2739
        %2741 = vrot.lane.b32.xlu0 %v1060, 32
        %v2742 = vpop.permute.xlu0 %2741
        %2743 = vrot.lane.b32.xlu0 %v1061, 32
        %v2744 = vpop.permute.xlu0 %2743
        %2745 = vrot.lane.b32.xlu0 %v1062, 32
        %v2746 = vpop.permute.xlu0 %2745
        %2747 = vrot.lane.b32.xlu0 %v1063, 32
        %v2748 = vpop.permute.xlu0 %2747
        %2749 = vrot.lane.b32.xlu0 %v1064, 32
        %v2750 = vpop.permute.xlu0 %2749
        %2751 = vrot.lane.b32.xlu0 %v1065, 32
        %v2752 = vpop.permute.xlu0 %2751
        %2753 = vrot.lane.b32.xlu0 %v1066, 32
        %v2754 = vpop.permute.xlu0 %2753
        %2755 = vrot.lane.b32.xlu0 %v1067, 32
        %v2756 = vpop.permute.xlu0 %2755
        %2757 = vrot.lane.b32.xlu0 %v1068, 32
        %v2758 = vpop.permute.xlu0 %2757
        %2759 = vrot.lane.b32.xlu0 %v1069, 32
        %v2760 = vpop.permute.xlu0 %2759
        %2761 = vrot.lane.b32.xlu0 %v1070, 32
        %v2762 = vpop.permute.xlu0 %2761
        %2763 = vrot.lane.b32.xlu0 %v1071, 32
        %v2764 = vpop.permute.xlu0 %2763
        %2765 = vrot.lane.b32.xlu0 %v1072, 32
        %v2766 = vpop.permute.xlu0 %2765
        %2767 = vrot.lane.b32.xlu0 %v1073, 32
        %v2768 = vpop.permute.xlu0 %2767
        %v2770 = vsel %vm1082, %v2738, 0
        %v2773 = vsel %vm1082, %v2740, 0
        %v2776 = vsel %vm1082, %v2742, 0
        %v2779 = vsel %vm1082, %v2744, 0
        %v2782 = vsel %vm1082, %v2746, 0
        %v2785 = vsel %vm1082, %v2748, 0
        %v2788 = vsel %vm1082, %v2750, 0
        %v2791 = vsel %vm1082, %v2752, 0
        %v2794 = vsel %vm1082, %v2754, 0
        %v2797 = vsel %vm1082, %v2756, 0
        %v2800 = vsel %vm1082, %v2758, 0
        %v2803 = vsel %vm1082, %v2760, 0
        %v2806 = vsel %vm1082, %v2762, 0
        %v2809 = vsel %vm1082, %v2764, 0
        %v2812 = vsel %vm1082, %v2766, 0
        %v2815 = vsel %vm1082, %v2768, 0
        %2817 = vmatpush.bf16.xpose.msra.mxu0 %v2815
        %2818 = vmatpush.bf16.xpose.msra.mxu0 %v2812
        %2819 = vmatpush.bf16.xpose.msra.mxu0 %v2809
        %2820 = vmatpush.bf16.xpose.msra.mxu0 %v2806
        %2821 = vmatpush.bf16.xpose.msra.mxu0 %v2803
        %2822 = vmatpush.bf16.xpose.msra.mxu0 %v2800
        %2823 = vmatpush.bf16.xpose.msra.mxu0 %v2797
        %2824 = vmatpush.bf16.xpose.msra.mxu0 %v2794
        %2825 = vmatmul.bf16.gmra.mxu0 %v2770
        %v2826 = vpop.f32.mrf.mxu0
        %v2827 = vadd.f32 0.0, %v2826
        %v2828 = vpop.f32.mrf.mxu0
        %v2829 = vadd.f32 0.0, %v2828
        %2830 = vmatmul.bf16.gmra.mxu0 %v2773
        %v2831 = vpop.f32.mrf.mxu0
        %v2832 = vadd.f32 0.0, %v2831
        %v2833 = vpop.f32.mrf.mxu0
        %v2834 = vadd.f32 0.0, %v2833
        %2835 = vmatmul.bf16.gmra.mxu0 %v2776
        %v2836 = vpop.f32.mrf.mxu0
        %v2837 = vadd.f32 0.0, %v2836
        %v2838 = vpop.f32.mrf.mxu0
        %v2839 = vadd.f32 0.0, %v2838
        %2840 = vmatmul.bf16.gmra.mxu0 %v2779
        %v2841 = vpop.f32.mrf.mxu0
        %v2842 = vadd.f32 0.0, %v2841
        %v2843 = vpop.f32.mrf.mxu0
        %v2844 = vadd.f32 0.0, %v2843
        %2845 = vmatmul.bf16.gmra.mxu0 %v2782
        %v2846 = vpop.f32.mrf.mxu0
        %v2847 = vadd.f32 0.0, %v2846
        %v2848 = vpop.f32.mrf.mxu0
        %v2849 = vadd.f32 0.0, %v2848
        %2850 = vmatmul.bf16.gmra.mxu0 %v2785
        %v2851 = vpop.f32.mrf.mxu0
        %v2852 = vadd.f32 0.0, %v2851
        %v2853 = vpop.f32.mrf.mxu0
        %v2854 = vadd.f32 0.0, %v2853
        %2855 = vmatmul.bf16.gmra.mxu0 %v2788
        %v2856 = vpop.f32.mrf.mxu0
        %v2857 = vadd.f32 0.0, %v2856
        %v2858 = vpop.f32.mrf.mxu0
        %v2859 = vadd.f32 0.0, %v2858
        %2860 = vmatmul.bf16.gmra.mxu0 %v2791
        %v2861 = vpop.f32.mrf.mxu0
        %v2862 = vadd.f32 0.0, %v2861
        %v2863 = vpop.f32.mrf.mxu0
        %v2864 = vadd.f32 0.0, %v2863
        %2865 = vdwg.mxu0
        %2866 = vmax.xlane.f32.xlu0 %v2827
        %v2867 = vpop.xlane.xlu0 %2866
        %2868 = vmax.xlane.f32.xlu0 %v2829
        %v2869 = vpop.xlane.xlu0 %2868
        %2870 = vmax.xlane.f32.xlu0 %v2832
        %v2871 = vpop.xlane.xlu0 %2870
        %2872 = vmax.xlane.f32.xlu0 %v2834
        %v2873 = vpop.xlane.xlu0 %2872
        %2874 = vmax.xlane.f32.xlu0 %v2837
        %v2875 = vpop.xlane.xlu0 %2874
        %2876 = vmax.xlane.f32.xlu0 %v2839
        %v2877 = vpop.xlane.xlu0 %2876
        %2878 = vmax.xlane.f32.xlu0 %v2842
        %v2879 = vpop.xlane.xlu0 %2878
        %2880 = vmax.xlane.f32.xlu0 %v2844
        %v2881 = vpop.xlane.xlu0 %2880
        %2882 = vmax.xlane.f32.xlu0 %v2847
        %v2883 = vpop.xlane.xlu0 %2882
        %2884 = vmax.xlane.f32.xlu0 %v2849
        %v2885 = vpop.xlane.xlu0 %2884
        %2886 = vmax.xlane.f32.xlu0 %v2852
        %v2887 = vpop.xlane.xlu0 %2886
        %2888 = vmax.xlane.f32.xlu0 %v2854
        %v2889 = vpop.xlane.xlu0 %2888
        %2890 = vmax.xlane.f32.xlu0 %v2857
        %v2891 = vpop.xlane.xlu0 %2890
        %2892 = vmax.xlane.f32.xlu0 %v2859
        %v2893 = vpop.xlane.xlu0 %2892
        %2894 = vmax.xlane.f32.xlu0 %v2862
        %v2895 = vpop.xlane.xlu0 %2894
        %2896 = vmax.xlane.f32.xlu0 %v2864
        %v2897 = vpop.xlane.xlu0 %2896
        %v2898 = vsub.f32 %v2827, %v2867
        %v2899 = vsub.f32 %v2829, %v2869
        %v2900 = vsub.f32 %v2832, %v2871
        %v2901 = vsub.f32 %v2834, %v2873
        %v2902 = vsub.f32 %v2837, %v2875
        %v2903 = vsub.f32 %v2839, %v2877
        %v2904 = vsub.f32 %v2842, %v2879
        %v2905 = vsub.f32 %v2844, %v2881
        %v2906 = vsub.f32 %v2847, %v2883
        %v2907 = vsub.f32 %v2849, %v2885
        %v2908 = vsub.f32 %v2852, %v2887
        %v2909 = vsub.f32 %v2854, %v2889
        %v2910 = vsub.f32 %v2857, %v2891
        %v2911 = vsub.f32 %v2859, %v2893
        %v2912 = vsub.f32 %v2862, %v2895
        %v2913 = vsub.f32 %v2864, %v2897
        %v2914 = vmul.f32 %v2898, 1.442695
        %v2915 = vpow.pop %v2914
        %v2916 = vmul.f32 %v2899, 1.442695
        %v2917 = vpow.pop %v2916
        %v2918 = vmul.f32 %v2900, 1.442695
        %v2919 = vpow.pop %v2918
        %v2920 = vmul.f32 %v2901, 1.442695
        %v2921 = vpow.pop %v2920
        %v2922 = vmul.f32 %v2902, 1.442695
        %v2923 = vpow.pop %v2922
        %v2924 = vmul.f32 %v2903, 1.442695
        %v2925 = vpow.pop %v2924
        %v2926 = vmul.f32 %v2904, 1.442695
        %v2927 = vpow.pop %v2926
        %v2928 = vmul.f32 %v2905, 1.442695
        %v2929 = vpow.pop %v2928
        %v2930 = vmul.f32 %v2906, 1.442695
        %v2931 = vpow.pop %v2930
        %v2932 = vmul.f32 %v2907, 1.442695
        %v2933 = vpow.pop %v2932
        %v2934 = vmul.f32 %v2908, 1.442695
        %v2935 = vpow.pop %v2934
        %v2936 = vmul.f32 %v2909, 1.442695
        %v2937 = vpow.pop %v2936
        %v2938 = vmul.f32 %v2910, 1.442695
        %v2939 = vpow.pop %v2938
        %v2940 = vmul.f32 %v2911, 1.442695
        %v2941 = vpow.pop %v2940
        %v2942 = vmul.f32 %v2912, 1.442695
        %v2943 = vpow.pop %v2942
        %v2944 = vmul.f32 %v2913, 1.442695
        %v2945 = vpow.pop %v2944
        %2946 = vadd.xlane.f32.xlu0 %v2915
        %v2947 = vpop.xlane.xlu0 %2946
        %2948 = vadd.xlane.f32.xlu0 %v2917
        %v2949 = vpop.xlane.xlu0 %2948
        %2950 = vadd.xlane.f32.xlu0 %v2919
        %v2951 = vpop.xlane.xlu0 %2950
        %2952 = vadd.xlane.f32.xlu0 %v2921
        %v2953 = vpop.xlane.xlu0 %2952
        %2954 = vadd.xlane.f32.xlu0 %v2923
        %v2955 = vpop.xlane.xlu0 %2954
        %2956 = vadd.xlane.f32.xlu0 %v2925
        %v2957 = vpop.xlane.xlu0 %2956
        %2958 = vadd.xlane.f32.xlu0 %v2927
        %v2959 = vpop.xlane.xlu0 %2958
        %2960 = vadd.xlane.f32.xlu0 %v2929
        %v2961 = vpop.xlane.xlu0 %2960
        %2962 = vadd.xlane.f32.xlu0 %v2931
        %v2963 = vpop.xlane.xlu0 %2962
        %2964 = vadd.xlane.f32.xlu0 %v2933
        %v2965 = vpop.xlane.xlu0 %2964
        %2966 = vadd.xlane.f32.xlu0 %v2935
        %v2967 = vpop.xlane.xlu0 %2966
        %2968 = vadd.xlane.f32.xlu0 %v2937
        %v2969 = vpop.xlane.xlu0 %2968
        %2970 = vadd.xlane.f32.xlu0 %v2939
        %v2971 = vpop.xlane.xlu0 %2970
        %2972 = vadd.xlane.f32.xlu0 %v2941
        %v2973 = vpop.xlane.xlu0 %2972
        %2974 = vadd.xlane.f32.xlu0 %v2943
        %v2975 = vpop.xlane.xlu0 %2974
        %2976 = vadd.xlane.f32.xlu0 %v2945
        %v2977 = vpop.xlane.xlu0 %2976
        %v2978 = vrcp.pop %v2947
        %v2979 = vmul.f32 %v2947, %v2978
        %v2980 = vsub.f32 1.0, %v2979
        %v2981 = vmul.f32 %v2978, %v2980
        %v2982 = vadd.f32 %v2978, %v2981
        %vm2983 = vweird.f32 %v2947
        %vm2984 = vweird.f32 %v2978
        %vm2985 = vmor %vm2983, %vm2984
        %v2986 = vsel %vm2985, %v2978, %v2982
        %v2987 = vand.u32 2147483647, %v2947
        %vm2988 = vcmp.eq.f32.partialorder %v2987, 8.507059e+37
        %v2989 = vand.u32 %v2947, 2147483648
        %v2990 = vor.u32 1.1754944e-38, %v2989
        %v2991 = vsel %vm2988, %v2990, %v2986
        %v2992 = vmul.f32 %v2915, %v2991
        %v2993 = vrcp.pop %v2949
        %v2994 = vmul.f32 %v2949, %v2993
        %v2995 = vsub.f32 1.0, %v2994
        %v2996 = vmul.f32 %v2993, %v2995
        %v2997 = vadd.f32 %v2993, %v2996
        %vm2998 = vweird.f32 %v2949
        %vm2999 = vweird.f32 %v2993
        %vm3000 = vmor %vm2998, %vm2999
        %v3001 = vsel %vm3000, %v2993, %v2997
        %v3002 = vand.u32 2147483647, %v2949
        %vm3003 = vcmp.eq.f32.partialorder %v3002, 8.507059e+37
        %v3004 = vand.u32 %v2949, 2147483648
        %v3005 = vor.u32 1.1754944e-38, %v3004
        %v3006 = vsel %vm3003, %v3005, %v3001
        %v3007 = vmul.f32 %v2917, %v3006
        %v3008 = vrcp.pop %v2951
        %v3009 = vmul.f32 %v2951, %v3008
        %v3010 = vsub.f32 1.0, %v3009
        %v3011 = vmul.f32 %v3008, %v3010
        %v3012 = vadd.f32 %v3008, %v3011
        %vm3013 = vweird.f32 %v2951
        %vm3014 = vweird.f32 %v3008
        %vm3015 = vmor %vm3013, %vm3014
        %v3016 = vsel %vm3015, %v3008, %v3012
        %v3017 = vand.u32 2147483647, %v2951
        %vm3018 = vcmp.eq.f32.partialorder %v3017, 8.507059e+37
        %v3019 = vand.u32 %v2951, 2147483648
        %v3020 = vor.u32 1.1754944e-38, %v3019
        %v3021 = vsel %vm3018, %v3020, %v3016
        %v3022 = vmul.f32 %v2919, %v3021
        %v3023 = vrcp.pop %v2953
        %v3024 = vmul.f32 %v2953, %v3023
        %v3025 = vsub.f32 1.0, %v3024
        %v3026 = vmul.f32 %v3023, %v3025
        %v3027 = vadd.f32 %v3023, %v3026
        %vm3028 = vweird.f32 %v2953
        %vm3029 = vweird.f32 %v3023
        %vm3030 = vmor %vm3028, %vm3029
        %v3031 = vsel %vm3030, %v3023, %v3027
        %v3032 = vand.u32 2147483647, %v2953
        %vm3033 = vcmp.eq.f32.partialorder %v3032, 8.507059e+37
        %v3034 = vand.u32 %v2953, 2147483648
        %v3035 = vor.u32 1.1754944e-38, %v3034
        %v3036 = vsel %vm3033, %v3035, %v3031
        %v3037 = vmul.f32 %v2921, %v3036
        %v3038 = vrcp.pop %v2955
        %v3039 = vmul.f32 %v2955, %v3038
        %v3040 = vsub.f32 1.0, %v3039
        %v3041 = vmul.f32 %v3038, %v3040
        %v3042 = vadd.f32 %v3038, %v3041
        %vm3043 = vweird.f32 %v2955
        %vm3044 = vweird.f32 %v3038
        %vm3045 = vmor %vm3043, %vm3044
        %v3046 = vsel %vm3045, %v3038, %v3042
        %v3047 = vand.u32 2147483647, %v2955
        %vm3048 = vcmp.eq.f32.partialorder %v3047, 8.507059e+37
        %v3049 = vand.u32 %v2955, 2147483648
        %v3050 = vor.u32 1.1754944e-38, %v3049
        %v3051 = vsel %vm3048, %v3050, %v3046
        %v3052 = vmul.f32 %v2923, %v3051
        %v3053 = vrcp.pop %v2957
        %v3054 = vmul.f32 %v2957, %v3053
        %v3055 = vsub.f32 1.0, %v3054
        %v3056 = vmul.f32 %v3053, %v3055
        %v3057 = vadd.f32 %v3053, %v3056
        %vm3058 = vweird.f32 %v2957
        %vm3059 = vweird.f32 %v3053
        %vm3060 = vmor %vm3058, %vm3059
        %v3061 = vsel %vm3060, %v3053, %v3057
        %v3062 = vand.u32 2147483647, %v2957
        %vm3063 = vcmp.eq.f32.partialorder %v3062, 8.507059e+37
        %v3064 = vand.u32 %v2957, 2147483648
        %v3065 = vor.u32 1.1754944e-38, %v3064
        %v3066 = vsel %vm3063, %v3065, %v3061
        %v3067 = vmul.f32 %v2925, %v3066
        %v3068 = vrcp.pop %v2959
        %v3069 = vmul.f32 %v2959, %v3068
        %v3070 = vsub.f32 1.0, %v3069
        %v3071 = vmul.f32 %v3068, %v3070
        %v3072 = vadd.f32 %v3068, %v3071
        %vm3073 = vweird.f32 %v2959
        %vm3074 = vweird.f32 %v3068
        %vm3075 = vmor %vm3073, %vm3074
        %v3076 = vsel %vm3075, %v3068, %v3072
        %v3077 = vand.u32 2147483647, %v2959
        %vm3078 = vcmp.eq.f32.partialorder %v3077, 8.507059e+37
        %v3079 = vand.u32 %v2959, 2147483648
        %v3080 = vor.u32 1.1754944e-38, %v3079
        %v3081 = vsel %vm3078, %v3080, %v3076
        %v3082 = vmul.f32 %v2927, %v3081
        %v3083 = vrcp.pop %v2961
        %v3084 = vmul.f32 %v2961, %v3083
        %v3085 = vsub.f32 1.0, %v3084
        %v3086 = vmul.f32 %v3083, %v3085
        %v3087 = vadd.f32 %v3083, %v3086
        %vm3088 = vweird.f32 %v2961
        %vm3089 = vweird.f32 %v3083
        %vm3090 = vmor %vm3088, %vm3089
        %v3091 = vsel %vm3090, %v3083, %v3087
        %v3092 = vand.u32 2147483647, %v2961
        %vm3093 = vcmp.eq.f32.partialorder %v3092, 8.507059e+37
        %v3094 = vand.u32 %v2961, 2147483648
        %v3095 = vor.u32 1.1754944e-38, %v3094
        %v3096 = vsel %vm3093, %v3095, %v3091
        %v3097 = vmul.f32 %v2929, %v3096
        %v3098 = vrcp.pop %v2963
        %v3099 = vmul.f32 %v2963, %v3098
        %v3100 = vsub.f32 1.0, %v3099
        %v3101 = vmul.f32 %v3098, %v3100
        %v3102 = vadd.f32 %v3098, %v3101
        %vm3103 = vweird.f32 %v2963
        %vm3104 = vweird.f32 %v3098
        %vm3105 = vmor %vm3103, %vm3104
        %v3106 = vsel %vm3105, %v3098, %v3102
        %v3107 = vand.u32 2147483647, %v2963
        %vm3108 = vcmp.eq.f32.partialorder %v3107, 8.507059e+37
        %v3109 = vand.u32 %v2963, 2147483648
        %v3110 = vor.u32 1.1754944e-38, %v3109
        %v3111 = vsel %vm3108, %v3110, %v3106
        %v3112 = vmul.f32 %v2931, %v3111
        %v3113 = vrcp.pop %v2965
        %v3114 = vmul.f32 %v2965, %v3113
        %v3115 = vsub.f32 1.0, %v3114
        %v3116 = vmul.f32 %v3113, %v3115
        %v3117 = vadd.f32 %v3113, %v3116
        %vm3118 = vweird.f32 %v2965
        %vm3119 = vweird.f32 %v3113
        %vm3120 = vmor %vm3118, %vm3119
        %v3121 = vsel %vm3120, %v3113, %v3117
        %v3122 = vand.u32 2147483647, %v2965
        %vm3123 = vcmp.eq.f32.partialorder %v3122, 8.507059e+37
        %v3124 = vand.u32 %v2965, 2147483648
        %v3125 = vor.u32 1.1754944e-38, %v3124
        %v3126 = vsel %vm3123, %v3125, %v3121
        %v3127 = vmul.f32 %v2933, %v3126
        %v3128 = vrcp.pop %v2967
        %v3129 = vmul.f32 %v2967, %v3128
        %v3130 = vsub.f32 1.0, %v3129
        %v3131 = vmul.f32 %v3128, %v3130
        %v3132 = vadd.f32 %v3128, %v3131
        %vm3133 = vweird.f32 %v2967
        %vm3134 = vweird.f32 %v3128
        %vm3135 = vmor %vm3133, %vm3134
        %v3136 = vsel %vm3135, %v3128, %v3132
        %v3137 = vand.u32 2147483647, %v2967
        %vm3138 = vcmp.eq.f32.partialorder %v3137, 8.507059e+37
        %v3139 = vand.u32 %v2967, 2147483648
        %v3140 = vor.u32 1.1754944e-38, %v3139
        %v3141 = vsel %vm3138, %v3140, %v3136
        %v3142 = vmul.f32 %v2935, %v3141
        %v3143 = vrcp.pop %v2969
        %v3144 = vmul.f32 %v2969, %v3143
        %v3145 = vsub.f32 1.0, %v3144
        %v3146 = vmul.f32 %v3143, %v3145
        %v3147 = vadd.f32 %v3143, %v3146
        %vm3148 = vweird.f32 %v2969
        %vm3149 = vweird.f32 %v3143
        %vm3150 = vmor %vm3148, %vm3149
        %v3151 = vsel %vm3150, %v3143, %v3147
        %v3152 = vand.u32 2147483647, %v2969
        %vm3153 = vcmp.eq.f32.partialorder %v3152, 8.507059e+37
        %v3154 = vand.u32 %v2969, 2147483648
        %v3155 = vor.u32 1.1754944e-38, %v3154
        %v3156 = vsel %vm3153, %v3155, %v3151
        %v3157 = vmul.f32 %v2937, %v3156
        %v3158 = vrcp.pop %v2971
        %v3159 = vmul.f32 %v2971, %v3158
        %v3160 = vsub.f32 1.0, %v3159
        %v3161 = vmul.f32 %v3158, %v3160
        %v3162 = vadd.f32 %v3158, %v3161
        %vm3163 = vweird.f32 %v2971
        %vm3164 = vweird.f32 %v3158
        %vm3165 = vmor %vm3163, %vm3164
        %v3166 = vsel %vm3165, %v3158, %v3162
        %v3167 = vand.u32 2147483647, %v2971
        %vm3168 = vcmp.eq.f32.partialorder %v3167, 8.507059e+37
        %v3169 = vand.u32 %v2971, 2147483648
        %v3170 = vor.u32 1.1754944e-38, %v3169
        %v3171 = vsel %vm3168, %v3170, %v3166
        %v3172 = vmul.f32 %v2939, %v3171
        %v3173 = vrcp.pop %v2973
        %v3174 = vmul.f32 %v2973, %v3173
        %v3175 = vsub.f32 1.0, %v3174
        %v3176 = vmul.f32 %v3173, %v3175
        %v3177 = vadd.f32 %v3173, %v3176
        %vm3178 = vweird.f32 %v2973
        %vm3179 = vweird.f32 %v3173
        %vm3180 = vmor %vm3178, %vm3179
        %v3181 = vsel %vm3180, %v3173, %v3177
        %v3182 = vand.u32 2147483647, %v2973
        %vm3183 = vcmp.eq.f32.partialorder %v3182, 8.507059e+37
        %v3184 = vand.u32 %v2973, 2147483648
        %v3185 = vor.u32 1.1754944e-38, %v3184
        %v3186 = vsel %vm3183, %v3185, %v3181
        %v3187 = vmul.f32 %v2941, %v3186
        %v3188 = vrcp.pop %v2975
        %v3189 = vmul.f32 %v2975, %v3188
        %v3190 = vsub.f32 1.0, %v3189
        %v3191 = vmul.f32 %v3188, %v3190
        %v3192 = vadd.f32 %v3188, %v3191
        %vm3193 = vweird.f32 %v2975
        %vm3194 = vweird.f32 %v3188
        %vm3195 = vmor %vm3193, %vm3194
        %v3196 = vsel %vm3195, %v3188, %v3192
        %v3197 = vand.u32 2147483647, %v2975
        %vm3198 = vcmp.eq.f32.partialorder %v3197, 8.507059e+37
        %v3199 = vand.u32 %v2975, 2147483648
        %v3200 = vor.u32 1.1754944e-38, %v3199
        %v3201 = vsel %vm3198, %v3200, %v3196
        %v3202 = vmul.f32 %v2943, %v3201
        %v3203 = vrcp.pop %v2977
        %v3204 = vmul.f32 %v2977, %v3203
        %v3205 = vsub.f32 1.0, %v3204
        %v3206 = vmul.f32 %v3203, %v3205
        %v3207 = vadd.f32 %v3203, %v3206
        %vm3208 = vweird.f32 %v2977
        %vm3209 = vweird.f32 %v3203
        %vm3210 = vmor %vm3208, %vm3209
        %v3211 = vsel %vm3210, %v3203, %v3207
        %v3212 = vand.u32 2147483647, %v2977
        %vm3213 = vcmp.eq.f32.partialorder %v3212, 8.507059e+37
        %v3214 = vand.u32 %v2977, 2147483648
        %v3215 = vor.u32 1.1754944e-38, %v3214
        %v3216 = vsel %vm3213, %v3215, %v3211
        %v3217 = vmul.f32 %v2945, %v3216
        %v3218 = vpack.c.bf16 %v3007, %v2992
        %v3219 = vpack.c.bf16 %v3037, %v3022
        %v3220 = vpack.c.bf16 %v3067, %v3052
        %v3221 = vpack.c.bf16 %v3097, %v3082
        %v3222 = vpack.c.bf16 %v3127, %v3112
        %v3223 = vpack.c.bf16 %v3157, %v3142
        %v3224 = vpack.c.bf16 %v3187, %v3172
        %v3225 = vpack.c.bf16 %v3217, %v3202
        %3226 = vrot.lane.b32.xlu0 %v1074, 32
        %v3227 = vpop.permute.xlu0 %3226
        %3228 = vrot.lane.b32.xlu0 %v1075, 32
        %v3229 = vpop.permute.xlu0 %3228
        %3230 = vrot.lane.b32.xlu0 %v1076, 32
        %v3231 = vpop.permute.xlu0 %3230
        %3232 = vrot.lane.b32.xlu0 %v1077, 32
        %v3233 = vpop.permute.xlu0 %3232
        %3234 = vrot.lane.b32.xlu0 %v1078, 32
        %v3235 = vpop.permute.xlu0 %3234
        %3236 = vrot.lane.b32.xlu0 %v1079, 32
        %v3237 = vpop.permute.xlu0 %3236
        %3238 = vrot.lane.b32.xlu0 %v1080, 32
        %v3239 = vpop.permute.xlu0 %3238
        %3240 = vrot.lane.b32.xlu0 %v1081, 32
        %v3241 = vpop.permute.xlu0 %3240
        %3250 = vmatpush.bf16.msra.mxu0 %v3241
        %3251 = vmatpush.bf16.msra.mxu0 %v3239
        %3252 = vmatpush.bf16.msra.mxu0 %v3237
        %3253 = vmatpush.bf16.msra.mxu0 %v3235
        %3254 = vmatpush.bf16.msra.mxu0 %v3233
        %3255 = vmatpush.bf16.msra.mxu0 %v3231
        %3256 = vmatpush.bf16.msra.mxu0 %v3229
        %3257 = vmatpush.bf16.msra.mxu0 %v3227
        %3258 = vmatmul.bf16.gmra.mxu0 %v3218
        %v3259 = vpop.f32.mrf.mxu0
        %v3260 = vadd.f32 0.0, %v3259
        %v3261 = vpop.f32.mrf.mxu0
        %v3262 = vadd.f32 0.0, %v3261
        %3263 = vmatmul.bf16.gmra.mxu0 %v3219
        %v3264 = vpop.f32.mrf.mxu0
        %v3265 = vadd.f32 0.0, %v3264
        %v3266 = vpop.f32.mrf.mxu0
        %v3267 = vadd.f32 0.0, %v3266
        %3268 = vmatmul.bf16.gmra.mxu0 %v3220
        %v3269 = vpop.f32.mrf.mxu0
        %v3270 = vadd.f32 0.0, %v3269
        %v3271 = vpop.f32.mrf.mxu0
        %v3272 = vadd.f32 0.0, %v3271
        %3273 = vmatmul.bf16.gmra.mxu0 %v3221
        %v3274 = vpop.f32.mrf.mxu0
        %v3275 = vadd.f32 0.0, %v3274
        %v3276 = vpop.f32.mrf.mxu0
        %v3277 = vadd.f32 0.0, %v3276
        %3278 = vmatmul.bf16.gmra.mxu0 %v3222
        %v3279 = vpop.f32.mrf.mxu0
        %v3280 = vadd.f32 0.0, %v3279
        %v3281 = vpop.f32.mrf.mxu0
        %v3282 = vadd.f32 0.0, %v3281
        %3283 = vmatmul.bf16.gmra.mxu0 %v3223
        %v3284 = vpop.f32.mrf.mxu0
        %v3285 = vadd.f32 0.0, %v3284
        %v3286 = vpop.f32.mrf.mxu0
        %v3287 = vadd.f32 0.0, %v3286
        %3288 = vmatmul.bf16.gmra.mxu0 %v3224
        %v3289 = vpop.f32.mrf.mxu0
        %v3290 = vadd.f32 0.0, %v3289
        %v3291 = vpop.f32.mrf.mxu0
        %v3292 = vadd.f32 0.0, %v3291
        %3293 = vmatmul.bf16.gmra.mxu0 %v3225
        %v3294 = vpop.f32.mrf.mxu0
        %v3295 = vadd.f32 0.0, %v3294
        %v3296 = vpop.f32.mrf.mxu0
        %v3297 = vadd.f32 0.0, %v3296
        %3298 = vdwg.mxu0
        %3315 = vrot.lane.b32.xlu0 %v2136, 32
        %v3316 = vpop.permute.xlu0 %3315
        %3317 = vrot.lane.b32.xlu0 %v2138, 32
        %v3318 = vpop.permute.xlu0 %3317
        %3319 = vrot.lane.b32.xlu0 %v2141, 32
        %v3320 = vpop.permute.xlu0 %3319
        %3321 = vrot.lane.b32.xlu0 %v2143, 32
        %v3322 = vpop.permute.xlu0 %3321
        %3323 = vrot.lane.b32.xlu0 %v2146, 32
        %v3324 = vpop.permute.xlu0 %3323
        %3325 = vrot.lane.b32.xlu0 %v2148, 32
        %v3326 = vpop.permute.xlu0 %3325
        %3327 = vrot.lane.b32.xlu0 %v2151, 32
        %v3328 = vpop.permute.xlu0 %3327
        %3329 = vrot.lane.b32.xlu0 %v2153, 32
        %v3330 = vpop.permute.xlu0 %3329
        %3331 = vrot.lane.b32.xlu0 %v2156, 32
        %v3332 = vpop.permute.xlu0 %3331
        %3333 = vrot.lane.b32.xlu0 %v2158, 32
        %v3334 = vpop.permute.xlu0 %3333
        %3335 = vrot.lane.b32.xlu0 %v2161, 32
        %v3336 = vpop.permute.xlu0 %3335
        %3337 = vrot.lane.b32.xlu0 %v2163, 32
        %v3338 = vpop.permute.xlu0 %3337
        %3339 = vrot.lane.b32.xlu0 %v2166, 32
        %v3340 = vpop.permute.xlu0 %3339
        %3341 = vrot.lane.b32.xlu0 %v2168, 32
        %v3342 = vpop.permute.xlu0 %3341
        %3343 = vrot.lane.b32.xlu0 %v2171, 32
        %v3344 = vpop.permute.xlu0 %3343
        %3345 = vrot.lane.b32.xlu0 %v2173, 32
        %v3346 = vpop.permute.xlu0 %3345
        %3379 = vrot.lane.b32.xlu0 %v2698, 64
        %v3380 = vpop.permute.xlu0 %3379
        %3381 = vrot.lane.b32.xlu0 %v2700, 64
        %v3382 = vpop.permute.xlu0 %3381
        %3383 = vrot.lane.b32.xlu0 %v2703, 64
        %v3384 = vpop.permute.xlu0 %3383
        %3385 = vrot.lane.b32.xlu0 %v2705, 64
        %v3386 = vpop.permute.xlu0 %3385
        %3387 = vrot.lane.b32.xlu0 %v2708, 64
        %v3388 = vpop.permute.xlu0 %3387
        %3389 = vrot.lane.b32.xlu0 %v2710, 64
        %v3390 = vpop.permute.xlu0 %3389
        %3391 = vrot.lane.b32.xlu0 %v2713, 64
        %v3392 = vpop.permute.xlu0 %3391
        %3393 = vrot.lane.b32.xlu0 %v2715, 64
        %v3394 = vpop.permute.xlu0 %3393
        %3395 = vrot.lane.b32.xlu0 %v2718, 64
        %v3396 = vpop.permute.xlu0 %3395
        %3397 = vrot.lane.b32.xlu0 %v2720, 64
        %v3398 = vpop.permute.xlu0 %3397
        %3399 = vrot.lane.b32.xlu0 %v2723, 64
        %v3400 = vpop.permute.xlu0 %3399
        %3401 = vrot.lane.b32.xlu0 %v2725, 64
        %v3402 = vpop.permute.xlu0 %3401
        %3403 = vrot.lane.b32.xlu0 %v2728, 64
        %v3404 = vpop.permute.xlu0 %3403
        %3405 = vrot.lane.b32.xlu0 %v2730, 64
        %v3406 = vpop.permute.xlu0 %3405
        %3407 = vrot.lane.b32.xlu0 %v2733, 64
        %v3408 = vpop.permute.xlu0 %3407
        %3409 = vrot.lane.b32.xlu0 %v2735, 64
        %v3410 = vpop.permute.xlu0 %3409
        %3443 = vrot.lane.b32.xlu0 %v3260, 96
        %v3444 = vpop.permute.xlu0 %3443
        %3445 = vrot.lane.b32.xlu0 %v3262, 96
        %v3446 = vpop.permute.xlu0 %3445
        %3447 = vrot.lane.b32.xlu0 %v3265, 96
        %v3448 = vpop.permute.xlu0 %3447
        %3449 = vrot.lane.b32.xlu0 %v3267, 96
        %v3450 = vpop.permute.xlu0 %3449
        %3451 = vrot.lane.b32.xlu0 %v3270, 96
        %v3452 = vpop.permute.xlu0 %3451
        %3453 = vrot.lane.b32.xlu0 %v3272, 96
        %v3454 = vpop.permute.xlu0 %3453
        %3455 = vrot.lane.b32.xlu0 %v3275, 96
        %v3456 = vpop.permute.xlu0 %3455
        %3457 = vrot.lane.b32.xlu0 %v3277, 96
        %v3458 = vpop.permute.xlu0 %3457
        %3459 = vrot.lane.b32.xlu0 %v3280, 96
        %v3460 = vpop.permute.xlu0 %3459
        %3461 = vrot.lane.b32.xlu0 %v3282, 96
        %v3462 = vpop.permute.xlu0 %3461
        %3463 = vrot.lane.b32.xlu0 %v3285, 96
        %v3464 = vpop.permute.xlu0 %3463
        %3465 = vrot.lane.b32.xlu0 %v3287, 96
        %v3466 = vpop.permute.xlu0 %3465
        %3467 = vrot.lane.b32.xlu0 %v3290, 96
        %v3468 = vpop.permute.xlu0 %3467
        %3469 = vrot.lane.b32.xlu0 %v3292, 96
        %v3470 = vpop.permute.xlu0 %3469
        %3471 = vrot.lane.b32.xlu0 %v3295, 96
        %v3472 = vpop.permute.xlu0 %3471
        %3473 = vrot.lane.b32.xlu0 %v3297, 96
        %v3474 = vpop.permute.xlu0 %3473
        %v3491 = vsel %vm1082, %v1550, %v3316
        %v3492 = vsel %vm1082, %v1552, %v3318
        %v3493 = vsel %vm1082, %v1555, %v3320
        %v3494 = vsel %vm1082, %v1557, %v3322
        %v3495 = vsel %vm1082, %v1560, %v3324
        %v3496 = vsel %vm1082, %v1562, %v3326
        %v3497 = vsel %vm1082, %v1565, %v3328
        %v3498 = vsel %vm1082, %v1567, %v3330
        %v3499 = vsel %vm1082, %v1570, %v3332
        %v3500 = vsel %vm1082, %v1572, %v3334
        %v3501 = vsel %vm1082, %v1575, %v3336
        %v3502 = vsel %vm1082, %v1577, %v3338
        %v3503 = vsel %vm1082, %v1580, %v3340
        %v3504 = vsel %vm1082, %v1582, %v3342
        %v3505 = vsel %vm1082, %v1585, %v3344
        %v3506 = vsel %vm1082, %v1587, %v3346
        %vm3507 = vcmask 523264
        %v3508 = vsel %vm3507, %v3491, %v3380
        %v3509 = vsel %vm3507, %v3492, %v3382
        %v3510 = vsel %vm3507, %v3493, %v3384
        %v3511 = vsel %vm3507, %v3494, %v3386
        %v3512 = vsel %vm3507, %v3495, %v3388
        %v3513 = vsel %vm3507, %v3496, %v3390
        %v3514 = vsel %vm3507, %v3497, %v3392
        %v3515 = vsel %vm3507, %v3498, %v3394
        %v3516 = vsel %vm3507, %v3499, %v3396
        %v3517 = vsel %vm3507, %v3500, %v3398
        %v3518 = vsel %vm3507, %v3501, %v3400
        %v3519 = vsel %vm3507, %v3502, %v3402
        %v3520 = vsel %vm3507, %v3503, %v3404
        %v3521 = vsel %vm3507, %v3504, %v3406
        %v3522 = vsel %vm3507, %v3505, %v3408
        %v3523 = vsel %vm3507, %v3506, %v3410
        %vm3524 = vcmask 785408
        %v3525 = vsel %vm3524, %v3508, %v3444
        %v3526 = vsel %vm3524, %v3509, %v3446
        %v3527 = vsel %vm3524, %v3510, %v3448
        %v3528 = vsel %vm3524, %v3511, %v3450
        %v3529 = vsel %vm3524, %v3512, %v3452
        %v3530 = vsel %vm3524, %v3513, %v3454
        %v3531 = vsel %vm3524, %v3514, %v3456
        %v3532 = vsel %vm3524, %v3515, %v3458
        %v3533 = vsel %vm3524, %v3516, %v3460
        %v3534 = vsel %vm3524, %v3517, %v3462
        %v3535 = vsel %vm3524, %v3518, %v3464
        %v3536 = vsel %vm3524, %v3519, %v3466
        %v3537 = vsel %vm3524, %v3520, %v3468
        %v3538 = vsel %vm3524, %v3521, %v3470
        %v3539 = vsel %vm3524, %v3522, %v3472
        %v3540 = vsel %vm3524, %v3523, %v3474
        %v3541 = vpack.c.bf16 %v3526, %v3525
        %v3542 = vpack.c.bf16 %v3528, %v3527
        %v3543 = vpack.c.bf16 %v3530, %v3529
        %v3544 = vpack.c.bf16 %v3532, %v3531
        %v3545 = vpack.c.bf16 %v3534, %v3533
        %v3546 = vpack.c.bf16 %v3536, %v3535
        %v3547 = vpack.c.bf16 %v3538, %v3537
        %v3548 = vpack.c.bf16 %v3540, %v3539
        %v3549 = vld [vmem:[#allocation6] sm:$0xf]
        %v3550 = vld [vmem:[#allocation6 + $0x4] sm:$0xf]
        %v3551 = vld [vmem:[#allocation6 + $0x8] sm:$0xf]
        %v3552 = vld [vmem:[#allocation6 + $0xc] sm:$0xf]
        %v3553 = vld [vmem:[#allocation6 + $0x10] sm:$0xf]
        %v3554 = vld [vmem:[#allocation6 + $0x14] sm:$0xf]
        %v3555 = vld [vmem:[#allocation6 + $0x18] sm:$0xf]
        %v3556 = vld [vmem:[#allocation6 + $0x1c] sm:$0xf]
        %v3557 = vld [vmem:[#allocation6 + $0x20] sm:$0xf]
        %v3558 = vld [vmem:[#allocation6 + $0x24] sm:$0xf]
        %v3559 = vld [vmem:[#allocation6 + $0x28] sm:$0xf]
        %v3560 = vld [vmem:[#allocation6 + $0x2c] sm:$0xf]
        %v3561 = vld [vmem:[#allocation6 + $0x30] sm:$0xf]
        %v3562 = vld [vmem:[#allocation6 + $0x34] sm:$0xf]
        %v3563 = vld [vmem:[#allocation6 + $0x38] sm:$0xf]
        %v3564 = vld [vmem:[#allocation6 + $0x3c] sm:$0xf]
        %v3565 = vld [vmem:[%s6] sm:$0x1]
        %v3567 = vperm.slane %v3565, 0
        %v3585 = vunpack.c.l.b16 %v3549
        %v3586 = vunpack.c.l.b16 %v3550
        %v3587 = vunpack.c.l.b16 %v3551
        %v3588 = vunpack.c.l.b16 %v3552
        %v3589 = vunpack.c.l.b16 %v3553
        %v3590 = vunpack.c.l.b16 %v3554
        %v3591 = vunpack.c.l.b16 %v3555
        %v3592 = vunpack.c.l.b16 %v3556
        %v3593 = vunpack.c.l.b16 %v3557
        %v3594 = vunpack.c.l.b16 %v3558
        %v3595 = vunpack.c.l.b16 %v3559
        %v3596 = vunpack.c.l.b16 %v3560
        %v3597 = vunpack.c.l.b16 %v3561
        %v3598 = vunpack.c.l.b16 %v3562
        %v3599 = vunpack.c.l.b16 %v3563
        %v3600 = vunpack.c.l.b16 %v3564
        %v3601 = vpack.c.b16 %v3586, %v3585
        %v3602 = vpack.c.b16 %v3588, %v3587
        %v3603 = vpack.c.b16 %v3590, %v3589
        %v3604 = vpack.c.b16 %v3592, %v3591
        %v3605 = vpack.c.b16 %v3594, %v3593
        %v3606 = vpack.c.b16 %v3596, %v3595
        %v3607 = vpack.c.b16 %v3598, %v3597
        %v3608 = vpack.c.b16 %v3600, %v3599
        %3617 = vmatpush.bf16.msra.mxu0 %v3608
        %3618 = vmatpush.bf16.msra.mxu0 %v3607
        %3619 = vmatpush.bf16.msra.mxu0 %v3606
        %3620 = vmatpush.bf16.msra.mxu0 %v3605
        %3621 = vmatpush.bf16.msra.mxu0 %v3604
        %3622 = vmatpush.bf16.msra.mxu0 %v3603
        %3623 = vmatpush.bf16.msra.mxu0 %v3602
        %3624 = vmatpush.bf16.msra.mxu0 %v3601
        %3625 = vmatmul.bf16.gmra.mxu0 %v3541
        %v3626 = vpop.f32.mrf.mxu0
        %v3627 = vadd.f32 %v3567, %v3626
        %v3628 = vpop.f32.mrf.mxu0
        %v3629 = vadd.f32 %v3567, %v3628
        %3630 = vmatmul.bf16.gmra.mxu0 %v3542
        %v3631 = vpop.f32.mrf.mxu0
        %v3632 = vadd.f32 %v3567, %v3631
        %v3633 = vpop.f32.mrf.mxu0
        %v3634 = vadd.f32 %v3567, %v3633
        %3635 = vmatmul.bf16.gmra.mxu0 %v3543
        %v3636 = vpop.f32.mrf.mxu0
        %v3637 = vadd.f32 %v3567, %v3636
        %v3638 = vpop.f32.mrf.mxu0
        %v3639 = vadd.f32 %v3567, %v3638
        %3640 = vmatmul.bf16.gmra.mxu0 %v3544
        %v3641 = vpop.f32.mrf.mxu0
        %v3642 = vadd.f32 %v3567, %v3641
        %v3643 = vpop.f32.mrf.mxu0
        %v3644 = vadd.f32 %v3567, %v3643
        %3645 = vmatmul.bf16.gmra.mxu0 %v3545
        %v3646 = vpop.f32.mrf.mxu0
        %v3647 = vadd.f32 %v3567, %v3646
        %v3648 = vpop.f32.mrf.mxu0
        %v3649 = vadd.f32 %v3567, %v3648
        %3650 = vmatmul.bf16.gmra.mxu0 %v3546
        %v3651 = vpop.f32.mrf.mxu0
        %v3652 = vadd.f32 %v3567, %v3651
        %v3653 = vpop.f32.mrf.mxu0
        %v3654 = vadd.f32 %v3567, %v3653
        %3655 = vmatmul.bf16.gmra.mxu0 %v3547
        %v3656 = vpop.f32.mrf.mxu0
        %v3657 = vadd.f32 %v3567, %v3656
        %v3658 = vpop.f32.mrf.mxu0
        %v3659 = vadd.f32 %v3567, %v3658
        %3660 = vmatmul.bf16.gmra.mxu0 %v3548
        %v3661 = vpop.f32.mrf.mxu0
        %v3662 = vadd.f32 %v3567, %v3661
        %v3663 = vpop.f32.mrf.mxu0
        %v3664 = vadd.f32 %v3567, %v3663
        %3665 = vdwg.mxu0
        %v3666 = vadd.f32 %v3627, %v336
        %v3667 = vadd.f32 %v3629, %v337
        %v3668 = vadd.f32 %v3632, %v338
        %v3669 = vadd.f32 %v3634, %v339
        %v3670 = vadd.f32 %v3637, %v340
        %v3671 = vadd.f32 %v3639, %v341
        %v3672 = vadd.f32 %v3642, %v342
        %v3673 = vadd.f32 %v3644, %v343
        %v3674 = vadd.f32 %v3647, %v344
        %v3675 = vadd.f32 %v3649, %v345
        %v3676 = vadd.f32 %v3652, %v346
        %v3677 = vadd.f32 %v3654, %v347
        %v3678 = vadd.f32 %v3657, %v348
        %v3679 = vadd.f32 %v3659, %v349
        %v3680 = vadd.f32 %v3662, %v350
        %v3681 = vadd.f32 %v3664, %v351
        %3682 = vst [vmem:[%s334] sm:$0xff] %v3666
        %3683 = vst [vmem:[%s334 + $0x8] sm:$0xff] %v3667
        %3684 = vst [vmem:[%s334 + $0x10] sm:$0xff] %v3668
        %3685 = vst [vmem:[%s334 + $0x18] sm:$0xff] %v3669
        %3686 = vst [vmem:[%s334 + $0x20] sm:$0xff] %v3670
        %3687 = vst [vmem:[%s334 + $0x28] sm:$0xff] %v3671
        %3688 = vst [vmem:[%s334 + $0x30] sm:$0xff] %v3672
        %3689 = vst [vmem:[%s334 + $0x38] sm:$0xff] %v3673
        %3690 = vst [vmem:[%s334 + $0x40] sm:$0xff] %v3674
        %3691 = vst [vmem:[%s334 + $0x48] sm:$0xff] %v3675
        %3692 = vst [vmem:[%s334 + $0x50] sm:$0xff] %v3676
        %3693 = vst [vmem:[%s334 + $0x58] sm:$0xff] %v3677
        %3694 = vst [vmem:[%s334 + $0x60] sm:$0xff] %v3678
        %3695 = vst [vmem:[%s334 + $0x68] sm:$0xff] %v3679
        %3696 = vst [vmem:[%s334 + $0x70] sm:$0xff] %v3680
        %3697 = vst [vmem:[%s334 + $0x78] sm:$0xff] %v3681
        %s3698 = smul.u32 16, %s22
        %p3699 = scmp.lt.s32.totalorder %s3698, 31
        %s3700 = scalar_select %p3699, %s3698, 31
        %s3701 = smul.addr %s3700, 8
        %s3702 = scalar_lea.vmem %s7, %s3701
        // Predicated region
        $region61: #{_lambda_.5} parent=47 // pred_check
          %p3703 = pneg %p192
        $region62: #{_lambda_.5} parent=47 // pred_check_branch
          %3705 = sbr.rel (%p3703) target = $region64
        $region63: #{_lambda_.5} parent=47 // pred_region
          %s3706 = smul.u32 16, %s22
        $region64: #{_lambda_.5} parent=47 // pred_fallthru
          _
      $region48: #{_lambda_.5} parent=5 // pred_fallthru
        _
      %p3707 = scmp.le.s32.totalorder 2, %s17
      // Predicated region
      $region65: #{_lambda_.5} parent=5 // pred_check
        %p3708 = pneg %p3707
      $region66: #{_lambda_.5} parent=5 // pred_check_branch
        %3710 = sbr.rel (%p3708) target = $region68
      $region67: #{_lambda_.5} parent=5 // pred_region
        %s3711 = ssub.s32 %s17, 2
        // Predicated region
        $region69: #{_lambda_.5} parent=67 // pred_check
          %p3712 = pneg %p198
        $region70: #{_lambda_.5} parent=67 // pred_check_branch
          %3714 = sbr.rel (%p3712) target = $region72
        $region71: #{_lambda_.5} parent=67 // pred_region
          %s3715 = smul.u32 16, %s23
          %p3716 = scmp.lt.s32.totalorder %s3715, 31
          %s3717 = scalar_select %p3716, %s3715, 31
          %s3718 = smul.addr %s3717, 8
          %s3719 = scalar_lea.vmem %s7, %s3718
        $region72: #{_lambda_.5} parent=67 // pred_fallthru
          _
      $region68: #{_lambda_.5} parent=5 // pred_fallthru
        _
    $region6: #{_lambda_.5} parent=1 // loop_footer
      %s21 = sadd.s32 1, %s17
    $region7: #{_lambda_.5} parent=1 // loop_footer_branch
      %16 = sbr.rel target = $region3
    $region8: #{_lambda_.5} parent=1 // loop_exit
      _
    %3720 = vsyncpa [#allocation3], 1
    %s3721 = scalar_lea.sflag [#allocation3], 1
    %3722 = vsyncpa %s3721, 1
    %3723 = vsyncpa [#allocation5], 1

</llo_original>
